<compile_context>
chip_gen: v6e
topology: v6e:2x2x1
jax: 0.10.0
libtpu: 0.0.40
codegen_flags: <defaults>
</compile_context>

<pallas_src>
import jax
import jax.numpy as jnp
import numpy as np
from jax.experimental import pallas as pl
from jax.experimental.pallas import tpu as pltpu


def _mm(a, b):
    """a @ b on the MXU with f32 accumulation."""
    return jax.lax.dot_general(a, b, (((1,), (0,)), ((), ())),
                               preferred_element_type=jnp.float32)


def _mm_t(a, b):
    """a @ b.T on the MXU with f32 accumulation (no explicit transpose)."""
    return jax.lax.dot_general(a, b, (((1,), (1,)), ((), ())),
                               preferred_element_type=jnp.float32)


def _sandwich(ur, ui, xr, xi):
    """linear_c: (ur + i*ui) @ (xr + i*xi) @ (ur + i*ui)^H, split real/imag."""
    pr = _mm(ur, xr) - _mm(ui, xi)
    pi = _mm(ur, xi) + _mm(ui, xr)
    # p @ U^H with U^H = ur^T - i*ui^T
    outr = _mm_t(pr, ur) + _mm_t(pi, ui)
    outi = _mm_t(pi, ur) - _mm_t(pr, ui)
    return outr, outi


def _attn_kernel(u_ref, qr_ref, qi_ref, kvr_ref, kvi_ref,
                 kmask_ref, qmask_ref, keep_ref, outr_ref, outi_ref):
    # u_ref:     (8, D, D)  [Uq_r, Uq_i, Uk_r, Uk_i, Uv_r, Uv_i, Uf_r, Uf_i]
    # qr/qi:     (D, D)     real / imag of Q for this batch element
    # kvr/kvi:   (D, D)     real / imag of KV
    # kmask_ref: (1, D)     additive key mask, already (1 - mask) * -1e5
    # qmask_ref: (D, 1)     multiplicative query mask
    # keep_ref:  (D, D)     QDropout keep matrix (off-diag bernoulli, diag 1)
    qr = qr_ref[...]
    qi = qi_ref[...]
    kvr = kvr_ref[...]
    kvi = kvi_ref[...]

    # --- Attention_1: query/key/value linear_c (U rho U^H) ---
    mqr, mqi = _sandwich(u_ref[0], u_ref[1], qr, qi)
    mkr, mki = _sandwich(u_ref[2], u_ref[3], kvr, kvi)
    mvr, mvi = _sandwich(u_ref[4], u_ref[5], kvr, kvi)

    # cal_score: Re(Q K^T) + 2 * (Q_imag K_imag^T) == Qr Kr^T + Qi Ki^T
    scores = _mm_t(mqr, mkr) + _mm_t(mqi, mki)
    scores = scores + kmask_ref[...]          # broadcast over query rows

    # softmax over keys (last axis)
    m = jnp.max(scores, axis=-1, keepdims=True)
    e = jnp.exp(scores - m)
    probs = e / jnp.sum(e, axis=-1, keepdims=True)
    # TODO(synk): nn.Dropout on attention_probs is identity in inference mode.

    qm = qmask_ref[...]
    ctxr = _mm(probs, mvr) * qm
    ctxi = _mm(probs, mvi) * qm

    # cross_src = 0.5 * new_src + 0.5 * Q
    crossr = 0.5 * ctxr + 0.5 * qr
    crossi = 0.5 * ctxi + 0.5 * qi

    # fc1 = linear_c, then QDropout via precomputed keep matrix
    fr, fi = _sandwich(u_ref[6], u_ref[7], crossr, crossi)
    keep = keep_ref[...]
    outr_ref[...] = 0.5 * crossr + 0.5 * (fr * keep)
    outi_ref[...] = 0.5 * crossi + 0.5 * (fi * keep)


def my_attention1_1_pallas(kv_r, kv_i, q_r, q_i, k_mask, q_mask, unitaries, keep):
    """Fused my_attention1_1 forward.

    kv_r/kv_i/q_r/q_i: (B, D, D) float32 (seq_len == embed_dim == D)
    k_mask, q_mask:    (B, D)    float32 0/1 masks
    unitaries:         (8, D, D) float32 = [Uq_r,Uq_i,Uk_r,Uk_i,Uv_r,Uv_i,Uf_r,Uf_i]
    keep:              (B, D, D) float32 QDropout keep matrix
    returns (out_real, out_imag), each (B, D, D) float32.
    """
    B, D, _ = q_r.shape
    kmask_add = ((1.0 - k_mask) * (-100000.0)).reshape(B, 1, D).astype(jnp.float32)
    qmask_col = q_mask.reshape(B, D, 1).astype(jnp.float32)

    spec_bdd = pl.BlockSpec((None, D, D), lambda b: (b, 0, 0))

    out_r, out_i = pl.pallas_call(
        _attn_kernel,
        out_shape=(jax.ShapeDtypeStruct((B, D, D), jnp.float32),
                   jax.ShapeDtypeStruct((B, D, D), jnp.float32)),
        grid=(B,),
        in_specs=[
            pl.BlockSpec((8, D, D), lambda b: (0, 0, 0)),     # unitaries (resident)
            spec_bdd, spec_bdd,                               # Q real / imag
            spec_bdd, spec_bdd,                               # KV real / imag
            pl.BlockSpec((None, 1, D), lambda b: (b, 0, 0)),  # additive key mask
            pl.BlockSpec((None, D, 1), lambda b: (b, 0, 0)),  # query mask column
            spec_bdd,                                         # QDropout keep matrix
        ],
        out_specs=(spec_bdd, spec_bdd),
        compiler_params=pltpu.CompilerParams(
            dimension_semantics=("parallel",)),
    )(unitaries, q_r, q_i, kv_r, kv_i, kmask_add, qmask_col, keep)
    return out_r, out_i


def build_qdropout_keep(bern, D):
    """Keep matrix equivalent to torch QDropout given the same bernoulli draw."""
    eye = jnp.eye(D, dtype=jnp.float32)
    b = jnp.triu(bern)
    b = b + jnp.swapaxes(b, -1, -2)
    return b * (eye == 0).astype(jnp.float32) + eye


def my_attention1_1_reference(KV, Q, K_mask, Q_mask, unitaries, bern):
    """Plain-JAX reference mirroring the torch forward op-by-op."""
    def linear_c(ur, ui, x):
        U = ur + 1j * ui
        UH = jnp.conj(U).T
        return jnp.matmul(jnp.matmul(U, x), UH)

    def cal_score(x, y):
        result = jnp.real(jnp.matmul(x, jnp.swapaxes(y, -1, -2)))
        result_bu = jnp.matmul(jnp.imag(x), jnp.swapaxes(jnp.imag(y), -1, -2))
        return result + 2.0 * result_bu

    mixed_q = linear_c(unitaries[0], unitaries[1], Q)
    mixed_k = linear_c(unitaries[2], unitaries[3], KV)
    mixed_v = linear_c(unitaries[4], unitaries[5], KV)

    scores = cal_score(mixed_q, mixed_k)
    scores = scores + ((1.0 - K_mask) * (-100000.0))[:, None, :]
    probs = jax.nn.softmax(scores, axis=-1)
    # nn.Dropout -> identity (inference).
    ctx_r = jnp.matmul(probs, jnp.real(mixed_v)) * Q_mask[:, :, None]
    ctx_i = jnp.matmul(probs, jnp.imag(mixed_v)) * Q_mask[:, :, None]
    new_src = ctx_r + 1j * ctx_i
    cross = 0.5 * new_src + 0.5 * Q
    cross1 = linear_c(unitaries[6], unitaries[7], cross)

    # QDropout (torch formula verbatim, same bernoulli draw).
    D = Q.shape[-1]
    eye = jnp.eye(D, dtype=jnp.float32)
    x_eye = cross1 * eye
    b = jnp.triu(bern)
    b = b + jnp.swapaxes(b, -1, -2)
    b = b * (eye == 0)
    y = cross1 * b + x_eye

    return 0.5 * cross + 0.5 * y


if __name__ == "__main__":
    B, D = 4, 128          # batch, seq_len == embed_dim (KV_size == Q_size == D)
    drop_p = 0.01          # dropout prob of the module

    key = jax.random.PRNGKey(0)
    (k_kvr, k_kvi, k_qr, k_qi, k_km, k_qm, k_u, k_bern) = jax.random.split(key, 8)

    kv_r = jax.random.normal(k_kvr, (B, D, D), jnp.float32)
    kv_i = jax.random.normal(k_kvi, (B, D, D), jnp.float32)
    q_r = jax.random.normal(k_qr, (B, D, D), jnp.float32)
    q_i = jax.random.normal(k_qi, (B, D, D), jnp.float32)

    k_mask = jax.random.bernoulli(k_km, 0.85, (B, D)).astype(jnp.float32)
    q_mask = jax.random.bernoulli(k_qm, 0.85, (B, D)).astype(jnp.float32)

    # linear_c parameters: module init is (eye, zeros); perturb slightly so the
    # complex U @ rho @ U^H path is actually exercised by the check.
    eye = jnp.eye(D, dtype=jnp.float32)
    u_keys = jax.random.split(k_u, 8)
    unitaries = jnp.stack([
        eye + 0.05 * jax.random.normal(u_keys[0], (D, D), jnp.float32),  # Uq real
        0.05 * jax.random.normal(u_keys[1], (D, D), jnp.float32),        # Uq imag
        eye + 0.05 * jax.random.normal(u_keys[2], (D, D), jnp.float32),  # Uk real
        0.05 * jax.random.normal(u_keys[3], (D, D), jnp.float32),        # Uk imag
        eye + 0.05 * jax.random.normal(u_keys[4], (D, D), jnp.float32),  # Uv real
        0.05 * jax.random.normal(u_keys[5], (D, D), jnp.float32),        # Uv imag
        eye + 0.05 * jax.random.normal(u_keys[6], (D, D), jnp.float32),  # Uf real
        0.05 * jax.random.normal(u_keys[7], (D, D), jnp.float32),        # Uf imag
    ], axis=0)

    # QDropout bernoulli draw (shared by kernel mask and reference).
    bern = jax.random.bernoulli(k_bern, 1.0 - drop_p, (B, D, D)).astype(jnp.float32)
    keep = build_qdropout_keep(bern, D)

    out_r, out_i = my_attention1_1_pallas(kv_r, kv_i, q_r, q_i, k_mask, q_mask,
                                          unitaries, keep)
    jax.block_until_ready((out_r, out_i))

    KV = kv_r + 1j * kv_i
    Q = q_r + 1j * q_i
    ref = my_attention1_1_reference(KV, Q, k_mask, q_mask, unitaries, bern)

    np.testing.assert_allclose(np.asarray(out_r), np.asarray(jnp.real(ref)),
                               rtol=2e-3, atol=2e-3)
    np.testing.assert_allclose(np.asarray(out_i), np.asarray(jnp.imag(ref)),
                               rtol=2e-3, atol=2e-3)

    print("KERNEL_OK")
</pallas_src>

<mosaic_0001>
module attributes {stable_mosaic.version = 11 : i64} {
  func.func @_attn_kernel(%arg0: i32, %arg1: memref<8x128x128xf32, #tpu.memory_space<vmem>>, %arg2: memref<1x128x128xf32, #tpu.memory_space<vmem>>, %arg3: memref<1x128x128xf32, #tpu.memory_space<vmem>>, %arg4: memref<1x128x128xf32, #tpu.memory_space<vmem>>, %arg5: memref<1x128x128xf32, #tpu.memory_space<vmem>>, %arg6: memref<1x1x128xf32, #tpu.memory_space<vmem>>, %arg7: memref<1x128x1xf32, #tpu.memory_space<vmem>>, %arg8: memref<1x128x128xf32, #tpu.memory_space<vmem>>, %arg9: memref<1x128x128xf32, #tpu.memory_space<vmem>>, %arg10: memref<1x128x128xf32, #tpu.memory_space<vmem>>) attributes {dimension_semantics = [#tpu.dimension_semantics<parallel>], iteration_bounds = array<i64: 4>, scalar_prefetch = 0 : i64, scratch_operands = 0 : i64, tpu.core_type = #tpu.core_type<tc>, window_params = [{pipeline_mode = #tpu.pipeline_mode<synchronous>, transform_indices = @transform_0, window_bounds = array<i64: 8, 128, 128>}, {transform_indices = @transform_1, window_bounds = array<i64: 1, 128, 128>}, {transform_indices = @transform_2, window_bounds = array<i64: 1, 128, 128>}, {transform_indices = @transform_3, window_bounds = array<i64: 1, 128, 128>}, {transform_indices = @transform_4, window_bounds = array<i64: 1, 128, 128>}, {transform_indices = @transform_5, window_bounds = array<i64: 1, 1, 128>}, {transform_indices = @transform_6, window_bounds = array<i64: 1, 128, 1>}, {transform_indices = @transform_7, window_bounds = array<i64: 1, 128, 128>}, {transform_indices = @transform_8, window_bounds = array<i64: 1, 128, 128>}, {transform_indices = @transform_9, window_bounds = array<i64: 1, 128, 128>}]} {
    %c0 = arith.constant 0 : index
    %c0_0 = arith.constant 0 : index
    %c0_1 = arith.constant 0 : index
    %0 = vector.load %arg2[%c0, %c0_0, %c0_1] : memref<1x128x128xf32, #tpu.memory_space<vmem>>, vector<1x128x128xf32>
    %1 = vector.shape_cast %0 : vector<1x128x128xf32> to vector<128x128xf32>
    %c0_2 = arith.constant 0 : index
    %c0_3 = arith.constant 0 : index
    %c0_4 = arith.constant 0 : index
    %2 = vector.load %arg3[%c0_2, %c0_3, %c0_4] : memref<1x128x128xf32, #tpu.memory_space<vmem>>, vector<1x128x128xf32>
    %3 = vector.shape_cast %2 : vector<1x128x128xf32> to vector<128x128xf32>
    %c0_5 = arith.constant 0 : index
    %c0_6 = arith.constant 0 : index
    %c0_7 = arith.constant 0 : index
    %4 = vector.load %arg4[%c0_5, %c0_6, %c0_7] : memref<1x128x128xf32, #tpu.memory_space<vmem>>, vector<1x128x128xf32>
    %5 = vector.shape_cast %4 : vector<1x128x128xf32> to vector<128x128xf32>
    %c0_8 = arith.constant 0 : index
    %c0_9 = arith.constant 0 : index
    %c0_10 = arith.constant 0 : index
    %6 = vector.load %arg5[%c0_8, %c0_9, %c0_10] : memref<1x128x128xf32, #tpu.memory_space<vmem>>, vector<1x128x128xf32>
    %7 = vector.shape_cast %6 : vector<1x128x128xf32> to vector<128x128xf32>
    %c0_11 = arith.constant 0 : index
    %c0_12 = arith.constant 0 : index
    %c0_13 = arith.constant 0 : index
    %8 = vector.load %arg1[%c0_11, %c0_12, %c0_13] : memref<8x128x128xf32, #tpu.memory_space<vmem>>, vector<1x128x128xf32>
    %9 = vector.shape_cast %8 : vector<1x128x128xf32> to vector<128x128xf32>
    %c1 = arith.constant 1 : index
    %c0_14 = arith.constant 0 : index
    %c0_15 = arith.constant 0 : index
    %10 = vector.load %arg1[%c1, %c0_14, %c0_15] : memref<8x128x128xf32, #tpu.memory_space<vmem>>, vector<1x128x128xf32>
    %11 = vector.shape_cast %10 : vector<1x128x128xf32> to vector<128x128xf32>
    %cst = arith.constant dense<0.000000e+00> : vector<128x128xf32>
    %12 = tpu.matmul %9, %1, %cst {dimension_numbers = #tpu.dot_dimension_numbers<[1], [0], [0], [1], [0, 0, 1, 1], [], []>} : vector<128x128xf32>, vector<128x128xf32>, vector<128x128xf32> -> vector<128x128xf32>
    %cst_16 = arith.constant dense<0.000000e+00> : vector<128x128xf32>
    %13 = tpu.matmul %11, %3, %cst_16 {dimension_numbers = #tpu.dot_dimension_numbers<[1], [0], [0], [1], [0, 0, 1, 1], [], []>} : vector<128x128xf32>, vector<128x128xf32>, vector<128x128xf32> -> vector<128x128xf32>
    %14 = arith.subf %12, %13 : vector<128x128xf32>
    %cst_17 = arith.constant dense<0.000000e+00> : vector<128x128xf32>
    %15 = tpu.matmul %9, %3, %cst_17 {dimension_numbers = #tpu.dot_dimension_numbers<[1], [0], [0], [1], [0, 0, 1, 1], [], []>} : vector<128x128xf32>, vector<128x128xf32>, vector<128x128xf32> -> vector<128x128xf32>
    %cst_18 = arith.constant dense<0.000000e+00> : vector<128x128xf32>
    %16 = tpu.matmul %11, %1, %cst_18 {dimension_numbers = #tpu.dot_dimension_numbers<[1], [0], [0], [1], [0, 0, 1, 1], [], []>} : vector<128x128xf32>, vector<128x128xf32>, vector<128x128xf32> -> vector<128x128xf32>
    %17 = arith.addf %15, %16 : vector<128x128xf32>
    %cst_19 = arith.constant dense<0.000000e+00> : vector<128x128xf32>
    %18 = tpu.matmul %14, %9, %cst_19 {dimension_numbers = #tpu.dot_dimension_numbers<[1], [1], [0], [0], [0, 0, 1, 0], [], []>} : vector<128x128xf32>, vector<128x128xf32>, vector<128x128xf32> -> vector<128x128xf32>
    %cst_20 = arith.constant dense<0.000000e+00> : vector<128x128xf32>
    %19 = tpu.matmul %17, %11, %cst_20 {dimension_numbers = #tpu.dot_dimension_numbers<[1], [1], [0], [0], [0, 0, 1, 0], [], []>} : vector<128x128xf32>, vector<128x128xf32>, vector<128x128xf32> -> vector<128x128xf32>
    %20 = arith.addf %18, %19 : vector<128x128xf32>
    %cst_21 = arith.constant dense<0.000000e+00> : vector<128x128xf32>
    %21 = tpu.matmul %17, %9, %cst_21 {dimension_numbers = #tpu.dot_dimension_numbers<[1], [1], [0], [0], [0, 0, 1, 0], [], []>} : vector<128x128xf32>, vector<128x128xf32>, vector<128x128xf32> -> vector<128x128xf32>
    %cst_22 = arith.constant dense<0.000000e+00> : vector<128x128xf32>
    %22 = tpu.matmul %14, %11, %cst_22 {dimension_numbers = #tpu.dot_dimension_numbers<[1], [1], [0], [0], [0, 0, 1, 0], [], []>} : vector<128x128xf32>, vector<128x128xf32>, vector<128x128xf32> -> vector<128x128xf32>
    %23 = arith.subf %21, %22 : vector<128x128xf32>
    %c2 = arith.constant 2 : index
    %c0_23 = arith.constant 0 : index
    %c0_24 = arith.constant 0 : index
    %24 = vector.load %arg1[%c2, %c0_23, %c0_24] : memref<8x128x128xf32, #tpu.memory_space<vmem>>, vector<1x128x128xf32>
    %25 = vector.shape_cast %24 : vector<1x128x128xf32> to vector<128x128xf32>
    %c3 = arith.constant 3 : index
    %c0_25 = arith.constant 0 : index
    %c0_26 = arith.constant 0 : index
    %26 = vector.load %arg1[%c3, %c0_25, %c0_26] : memref<8x128x128xf32, #tpu.memory_space<vmem>>, vector<1x128x128xf32>
    %27 = vector.shape_cast %26 : vector<1x128x128xf32> to vector<128x128xf32>
    %cst_27 = arith.constant dense<0.000000e+00> : vector<128x128xf32>
    %28 = tpu.matmul %25, %5, %cst_27 {dimension_numbers = #tpu.dot_dimension_numbers<[1], [0], [0], [1], [0, 0, 1, 1], [], []>} : vector<128x128xf32>, vector<128x128xf32>, vector<128x128xf32> -> vector<128x128xf32>
    %cst_28 = arith.constant dense<0.000000e+00> : vector<128x128xf32>
    %29 = tpu.matmul %27, %7, %cst_28 {dimension_numbers = #tpu.dot_dimension_numbers<[1], [0], [0], [1], [0, 0, 1, 1], [], []>} : vector<128x128xf32>, vector<128x128xf32>, vector<128x128xf32> -> vector<128x128xf32>
    %30 = arith.subf %28, %29 : vector<128x128xf32>
    %cst_29 = arith.constant dense<0.000000e+00> : vector<128x128xf32>
    %31 = tpu.matmul %25, %7, %cst_29 {dimension_numbers = #tpu.dot_dimension_numbers<[1], [0], [0], [1], [0, 0, 1, 1], [], []>} : vector<128x128xf32>, vector<128x128xf32>, vector<128x128xf32> -> vector<128x128xf32>
    %cst_30 = arith.constant dense<0.000000e+00> : vector<128x128xf32>
    %32 = tpu.matmul %27, %5, %cst_30 {dimension_numbers = #tpu.dot_dimension_numbers<[1], [0], [0], [1], [0, 0, 1, 1], [], []>} : vector<128x128xf32>, vector<128x128xf32>, vector<128x128xf32> -> vector<128x128xf32>
    %33 = arith.addf %31, %32 : vector<128x128xf32>
    %cst_31 = arith.constant dense<0.000000e+00> : vector<128x128xf32>
    %34 = tpu.matmul %30, %25, %cst_31 {dimension_numbers = #tpu.dot_dimension_numbers<[1], [1], [0], [0], [0, 0, 1, 0], [], []>} : vector<128x128xf32>, vector<128x128xf32>, vector<128x128xf32> -> vector<128x128xf32>
    %cst_32 = arith.constant dense<0.000000e+00> : vector<128x128xf32>
    %35 = tpu.matmul %33, %27, %cst_32 {dimension_numbers = #tpu.dot_dimension_numbers<[1], [1], [0], [0], [0, 0, 1, 0], [], []>} : vector<128x128xf32>, vector<128x128xf32>, vector<128x128xf32> -> vector<128x128xf32>
    %36 = arith.addf %34, %35 : vector<128x128xf32>
    %cst_33 = arith.constant dense<0.000000e+00> : vector<128x128xf32>
    %37 = tpu.matmul %33, %25, %cst_33 {dimension_numbers = #tpu.dot_dimension_numbers<[1], [1], [0], [0], [0, 0, 1, 0], [], []>} : vector<128x128xf32>, vector<128x128xf32>, vector<128x128xf32> -> vector<128x128xf32>
    %cst_34 = arith.constant dense<0.000000e+00> : vector<128x128xf32>
    %38 = tpu.matmul %30, %27, %cst_34 {dimension_numbers = #tpu.dot_dimension_numbers<[1], [1], [0], [0], [0, 0, 1, 0], [], []>} : vector<128x128xf32>, vector<128x128xf32>, vector<128x128xf32> -> vector<128x128xf32>
    %39 = arith.subf %37, %38 : vector<128x128xf32>
    %c4 = arith.constant 4 : index
    %c0_35 = arith.constant 0 : index
    %c0_36 = arith.constant 0 : index
    %40 = vector.load %arg1[%c4, %c0_35, %c0_36] : memref<8x128x128xf32, #tpu.memory_space<vmem>>, vector<1x128x128xf32>
    %41 = vector.shape_cast %40 : vector<1x128x128xf32> to vector<128x128xf32>
    %c5 = arith.constant 5 : index
    %c0_37 = arith.constant 0 : index
    %c0_38 = arith.constant 0 : index
    %42 = vector.load %arg1[%c5, %c0_37, %c0_38] : memref<8x128x128xf32, #tpu.memory_space<vmem>>, vector<1x128x128xf32>
    %43 = vector.shape_cast %42 : vector<1x128x128xf32> to vector<128x128xf32>
    %cst_39 = arith.constant dense<0.000000e+00> : vector<128x128xf32>
    %44 = tpu.matmul %41, %5, %cst_39 {dimension_numbers = #tpu.dot_dimension_numbers<[1], [0], [0], [1], [0, 0, 1, 1], [], []>} : vector<128x128xf32>, vector<128x128xf32>, vector<128x128xf32> -> vector<128x128xf32>
    %cst_40 = arith.constant dense<0.000000e+00> : vector<128x128xf32>
    %45 = tpu.matmul %43, %7, %cst_40 {dimension_numbers = #tpu.dot_dimension_numbers<[1], [0], [0], [1], [0, 0, 1, 1], [], []>} : vector<128x128xf32>, vector<128x128xf32>, vector<128x128xf32> -> vector<128x128xf32>
    %46 = arith.subf %44, %45 : vector<128x128xf32>
    %cst_41 = arith.constant dense<0.000000e+00> : vector<128x128xf32>
    %47 = tpu.matmul %41, %7, %cst_41 {dimension_numbers = #tpu.dot_dimension_numbers<[1], [0], [0], [1], [0, 0, 1, 1], [], []>} : vector<128x128xf32>, vector<128x128xf32>, vector<128x128xf32> -> vector<128x128xf32>
    %cst_42 = arith.constant dense<0.000000e+00> : vector<128x128xf32>
    %48 = tpu.matmul %43, %5, %cst_42 {dimension_numbers = #tpu.dot_dimension_numbers<[1], [0], [0], [1], [0, 0, 1, 1], [], []>} : vector<128x128xf32>, vector<128x128xf32>, vector<128x128xf32> -> vector<128x128xf32>
    %49 = arith.addf %47, %48 : vector<128x128xf32>
    %cst_43 = arith.constant dense<0.000000e+00> : vector<128x128xf32>
    %50 = tpu.matmul %46, %41, %cst_43 {dimension_numbers = #tpu.dot_dimension_numbers<[1], [1], [0], [0], [0, 0, 1, 0], [], []>} : vector<128x128xf32>, vector<128x128xf32>, vector<128x128xf32> -> vector<128x128xf32>
    %cst_44 = arith.constant dense<0.000000e+00> : vector<128x128xf32>
    %51 = tpu.matmul %49, %43, %cst_44 {dimension_numbers = #tpu.dot_dimension_numbers<[1], [1], [0], [0], [0, 0, 1, 0], [], []>} : vector<128x128xf32>, vector<128x128xf32>, vector<128x128xf32> -> vector<128x128xf32>
    %52 = arith.addf %50, %51 : vector<128x128xf32>
    %cst_45 = arith.constant dense<0.000000e+00> : vector<128x128xf32>
    %53 = tpu.matmul %49, %41, %cst_45 {dimension_numbers = #tpu.dot_dimension_numbers<[1], [1], [0], [0], [0, 0, 1, 0], [], []>} : vector<128x128xf32>, vector<128x128xf32>, vector<128x128xf32> -> vector<128x128xf32>
    %cst_46 = arith.constant dense<0.000000e+00> : vector<128x128xf32>
    %54 = tpu.matmul %46, %43, %cst_46 {dimension_numbers = #tpu.dot_dimension_numbers<[1], [1], [0], [0], [0, 0, 1, 0], [], []>} : vector<128x128xf32>, vector<128x128xf32>, vector<128x128xf32> -> vector<128x128xf32>
    %55 = arith.subf %53, %54 : vector<128x128xf32>
    %cst_47 = arith.constant dense<0.000000e+00> : vector<128x128xf32>
    %56 = tpu.matmul %20, %36, %cst_47 {dimension_numbers = #tpu.dot_dimension_numbers<[1], [1], [0], [0], [0, 0, 1, 0], [], []>} : vector<128x128xf32>, vector<128x128xf32>, vector<128x128xf32> -> vector<128x128xf32>
    %cst_48 = arith.constant dense<0.000000e+00> : vector<128x128xf32>
    %57 = tpu.matmul %23, %39, %cst_48 {dimension_numbers = #tpu.dot_dimension_numbers<[1], [1], [0], [0], [0, 0, 1, 0], [], []>} : vector<128x128xf32>, vector<128x128xf32>, vector<128x128xf32> -> vector<128x128xf32>
    %58 = arith.addf %56, %57 : vector<128x128xf32>
    %c0_49 = arith.constant 0 : index
    %c0_50 = arith.constant 0 : index
    %c0_51 = arith.constant 0 : index
    %59 = vector.load %arg6[%c0_49, %c0_50, %c0_51] : memref<1x1x128xf32, #tpu.memory_space<vmem>>, vector<1x1x128xf32>
    %60 = vector.shape_cast %59 : vector<1x1x128xf32> to vector<1x128xf32>
    %61 = vector.broadcast %60 : vector<1x128xf32> to vector<128x128xf32>
    %62 = arith.addf %58, %61 : vector<128x128xf32>
    %cst_52 = arith.constant dense<0xFF800000> : vector<128xf32>
    %63 = vector.multi_reduction <maximumf>, %62, %cst_52 [1] : vector<128x128xf32> to vector<128xf32>
    %64 = vector.shape_cast %63 : vector<128xf32> to vector<128x1xf32>
    %65 = vector.broadcast %64 : vector<128x1xf32> to vector<128x128xf32>
    %66 = arith.subf %62, %65 : vector<128x128xf32>
    %67 = math.exp %66 : vector<128x128xf32>
    %cst_53 = arith.constant dense<0.000000e+00> : vector<128xf32>
    %68 = vector.multi_reduction <add>, %67, %cst_53 [1] : vector<128x128xf32> to vector<128xf32>
    %69 = vector.shape_cast %68 : vector<128xf32> to vector<128x1xf32>
    %70 = vector.broadcast %69 : vector<128x1xf32> to vector<128x128xf32>
    %71 = arith.divf %67, %70 : vector<128x128xf32>
    %c0_54 = arith.constant 0 : index
    %c0_55 = arith.constant 0 : index
    %c0_56 = arith.constant 0 : index
    %72 = vector.load %arg7[%c0_54, %c0_55, %c0_56] : memref<1x128x1xf32, #tpu.memory_space<vmem>>, vector<1x128x1xf32>
    %73 = vector.shape_cast %72 : vector<1x128x1xf32> to vector<128x1xf32>
    %cst_57 = arith.constant dense<0.000000e+00> : vector<128x128xf32>
    %74 = tpu.matmul %71, %52, %cst_57 {dimension_numbers = #tpu.dot_dimension_numbers<[1], [0], [0], [1], [0, 0, 1, 1], [], []>} : vector<128x128xf32>, vector<128x128xf32>, vector<128x128xf32> -> vector<128x128xf32>
    %75 = vector.broadcast %73 : vector<128x1xf32> to vector<128x128xf32>
    %76 = arith.mulf %74, %75 : vector<128x128xf32>
    %cst_58 = arith.constant dense<0.000000e+00> : vector<128x128xf32>
    %77 = tpu.matmul %71, %55, %cst_58 {dimension_numbers = #tpu.dot_dimension_numbers<[1], [0], [0], [1], [0, 0, 1, 1], [], []>} : vector<128x128xf32>, vector<128x128xf32>, vector<128x128xf32> -> vector<128x128xf32>
    %78 = vector.broadcast %73 : vector<128x1xf32> to vector<128x128xf32>
    %79 = arith.mulf %77, %78 : vector<128x128xf32>
    %cst_59 = arith.constant 5.000000e-01 : f32
    %80 = vector.broadcast %cst_59 : f32 to vector<128x128xf32>
    %81 = arith.mulf %80, %76 : vector<128x128xf32>
    %cst_60 = arith.constant 5.000000e-01 : f32
    %82 = vector.broadcast %cst_60 : f32 to vector<128x128xf32>
    %83 = arith.mulf %82, %1 : vector<128x128xf32>
    %84 = arith.addf %81, %83 : vector<128x128xf32>
    %cst_61 = arith.constant 5.000000e-01 : f32
    %85 = vector.broadcast %cst_61 : f32 to vector<128x128xf32>
    %86 = arith.mulf %85, %79 : vector<128x128xf32>
    %cst_62 = arith.constant 5.000000e-01 : f32
    %87 = vector.broadcast %cst_62 : f32 to vector<128x128xf32>
    %88 = arith.mulf %87, %3 : vector<128x128xf32>
    %89 = arith.addf %86, %88 : vector<128x128xf32>
    %c6 = arith.constant 6 : index
    %c0_63 = arith.constant 0 : index
    %c0_64 = arith.constant 0 : index
    %90 = vector.load %arg1[%c6, %c0_63, %c0_64] : memref<8x128x128xf32, #tpu.memory_space<vmem>>, vector<1x128x128xf32>
    %91 = vector.shape_cast %90 : vector<1x128x128xf32> to vector<128x128xf32>
    %c7 = arith.constant 7 : index
    %c0_65 = arith.constant 0 : index
    %c0_66 = arith.constant 0 : index
    %92 = vector.load %arg1[%c7, %c0_65, %c0_66] : memref<8x128x128xf32, #tpu.memory_space<vmem>>, vector<1x128x128xf32>
    %93 = vector.shape_cast %92 : vector<1x128x128xf32> to vector<128x128xf32>
    %cst_67 = arith.constant dense<0.000000e+00> : vector<128x128xf32>
    %94 = tpu.matmul %91, %84, %cst_67 {dimension_numbers = #tpu.dot_dimension_numbers<[1], [0], [0], [1], [0, 0, 1, 1], [], []>} : vector<128x128xf32>, vector<128x128xf32>, vector<128x128xf32> -> vector<128x128xf32>
    %cst_68 = arith.constant dense<0.000000e+00> : vector<128x128xf32>
    %95 = tpu.matmul %93, %89, %cst_68 {dimension_numbers = #tpu.dot_dimension_numbers<[1], [0], [0], [1], [0, 0, 1, 1], [], []>} : vector<128x128xf32>, vector<128x128xf32>, vector<128x128xf32> -> vector<128x128xf32>
    %96 = arith.subf %94, %95 : vector<128x128xf32>
    %cst_69 = arith.constant dense<0.000000e+00> : vector<128x128xf32>
    %97 = tpu.matmul %91, %89, %cst_69 {dimension_numbers = #tpu.dot_dimension_numbers<[1], [0], [0], [1], [0, 0, 1, 1], [], []>} : vector<128x128xf32>, vector<128x128xf32>, vector<128x128xf32> -> vector<128x128xf32>
    %cst_70 = arith.constant dense<0.000000e+00> : vector<128x128xf32>
    %98 = tpu.matmul %93, %84, %cst_70 {dimension_numbers = #tpu.dot_dimension_numbers<[1], [0], [0], [1], [0, 0, 1, 1], [], []>} : vector<128x128xf32>, vector<128x128xf32>, vector<128x128xf32> -> vector<128x128xf32>
    %99 = arith.addf %97, %98 : vector<128x128xf32>
    %cst_71 = arith.constant dense<0.000000e+00> : vector<128x128xf32>
    %100 = tpu.matmul %96, %91, %cst_71 {dimension_numbers = #tpu.dot_dimension_numbers<[1], [1], [0], [0], [0, 0, 1, 0], [], []>} : vector<128x128xf32>, vector<128x128xf32>, vector<128x128xf32> -> vector<128x128xf32>
    %cst_72 = arith.constant dense<0.000000e+00> : vector<128x128xf32>
    %101 = tpu.matmul %99, %93, %cst_72 {dimension_numbers = #tpu.dot_dimension_numbers<[1], [1], [0], [0], [0, 0, 1, 0], [], []>} : vector<128x128xf32>, vector<128x128xf32>, vector<128x128xf32> -> vector<128x128xf32>
    %102 = arith.addf %100, %101 : vector<128x128xf32>
    %cst_73 = arith.constant dense<0.000000e+00> : vector<128x128xf32>
    %103 = tpu.matmul %99, %91, %cst_73 {dimension_numbers = #tpu.dot_dimension_numbers<[1], [1], [0], [0], [0, 0, 1, 0], [], []>} : vector<128x128xf32>, vector<128x128xf32>, vector<128x128xf32> -> vector<128x128xf32>
    %cst_74 = arith.constant dense<0.000000e+00> : vector<128x128xf32>
    %104 = tpu.matmul %96, %93, %cst_74 {dimension_numbers = #tpu.dot_dimension_numbers<[1], [1], [0], [0], [0, 0, 1, 0], [], []>} : vector<128x128xf32>, vector<128x128xf32>, vector<128x128xf32> -> vector<128x128xf32>
    %105 = arith.subf %103, %104 : vector<128x128xf32>
    %c0_75 = arith.constant 0 : index
    %c0_76 = arith.constant 0 : index
    %c0_77 = arith.constant 0 : index
    %106 = vector.load %arg8[%c0_75, %c0_76, %c0_77] : memref<1x128x128xf32, #tpu.memory_space<vmem>>, vector<1x128x128xf32>
    %107 = vector.shape_cast %106 : vector<1x128x128xf32> to vector<128x128xf32>
    %cst_78 = arith.constant 5.000000e-01 : f32
    %108 = vector.broadcast %cst_78 : f32 to vector<128x128xf32>
    %109 = arith.mulf %108, %84 : vector<128x128xf32>
    %110 = arith.mulf %102, %107 : vector<128x128xf32>
    %cst_79 = arith.constant 5.000000e-01 : f32
    %111 = vector.broadcast %cst_79 : f32 to vector<128x128xf32>
    %112 = arith.mulf %111, %110 : vector<128x128xf32>
    %113 = arith.addf %109, %112 : vector<128x128xf32>
    %c0_80 = arith.constant 0 : index
    %c0_81 = arith.constant 0 : index
    %c0_82 = arith.constant 0 : index
    %114 = vector.load %arg9[%c0_80, %c0_81, %c0_82] : memref<1x128x128xf32, #tpu.memory_space<vmem>>, vector<1x128x128xf32>
    %115 = vector.shape_cast %114 : vector<1x128x128xf32> to vector<128x128xf32>
    %116 = vector.shape_cast %113 : vector<128x128xf32> to vector<1x128x128xf32>
    tpu.vector_store %arg9[%c0_80, %c0_81, %c0_82], %116 {strides = array<i32>} : memref<1x128x128xf32, #tpu.memory_space<vmem>>, vector<1x128x128xf32>,
    %cst_83 = arith.constant 5.000000e-01 : f32
    %117 = vector.broadcast %cst_83 : f32 to vector<128x128xf32>
    %118 = arith.mulf %117, %89 : vector<128x128xf32>
    %119 = arith.mulf %105, %107 : vector<128x128xf32>
    %cst_84 = arith.constant 5.000000e-01 : f32
    %120 = vector.broadcast %cst_84 : f32 to vector<128x128xf32>
    %121 = arith.mulf %120, %119 : vector<128x128xf32>
    %122 = arith.addf %118, %121 : vector<128x128xf32>
    %c0_85 = arith.constant 0 : index
    %c0_86 = arith.constant 0 : index
    %c0_87 = arith.constant 0 : index
    %123 = vector.load %arg10[%c0_85, %c0_86, %c0_87] : memref<1x128x128xf32, #tpu.memory_space<vmem>>, vector<1x128x128xf32>
    %124 = vector.shape_cast %123 : vector<1x128x128xf32> to vector<128x128xf32>
    %125 = vector.shape_cast %122 : vector<128x128xf32> to vector<1x128x128xf32>
    tpu.vector_store %arg10[%c0_85, %c0_86, %c0_87], %125 {strides = array<i32>} : memref<1x128x128xf32, #tpu.memory_space<vmem>>, vector<1x128x128xf32>,
    return
  }
  func.func @transform_0(%arg0: i32) -> (i32, i32, i32) {
    %c0_i32 = arith.constant 0 : i32
    %c0_i32_0 = arith.constant 0 : i32
    %c0_i32_1 = arith.constant 0 : i32
    %c0_i32_2 = arith.constant 0 : i32
    return %c0_i32, %c0_i32_0, %c0_i32_1 : i32, i32, i32
  }
  func.func @transform_1(%arg0: i32) -> (i32, i32, i32) {
    %c0_i32 = arith.constant 0 : i32
    %c0_i32_0 = arith.constant 0 : i32
    %c0_i32_1 = arith.constant 0 : i32
    return %arg0, %c0_i32, %c0_i32_0 : i32, i32, i32
  }
  func.func @transform_2(%arg0: i32) -> (i32, i32, i32) {
    %c0_i32 = arith.constant 0 : i32
    %c0_i32_0 = arith.constant 0 : i32
    %c0_i32_1 = arith.constant 0 : i32
    return %arg0, %c0_i32, %c0_i32_0 : i32, i32, i32
  }
  func.func @transform_3(%arg0: i32) -> (i32, i32, i32) {
    %c0_i32 = arith.constant 0 : i32
    %c0_i32_0 = arith.constant 0 : i32
    %c0_i32_1 = arith.constant 0 : i32
    return %arg0, %c0_i32, %c0_i32_0 : i32, i32, i32
  }
  func.func @transform_4(%arg0: i32) -> (i32, i32, i32) {
    %c0_i32 = arith.constant 0 : i32
    %c0_i32_0 = arith.constant 0 : i32
    %c0_i32_1 = arith.constant 0 : i32
    return %arg0, %c0_i32, %c0_i32_0 : i32, i32, i32
  }
  func.func @transform_5(%arg0: i32) -> (i32, i32, i32) {
    %c0_i32 = arith.constant 0 : i32
    %c0_i32_0 = arith.constant 0 : i32
    %c0_i32_1 = arith.constant 0 : i32
    return %arg0, %c0_i32, %c0_i32_0 : i32, i32, i32
  }
  func.func @transform_6(%arg0: i32) -> (i32, i32, i32) {
    %c0_i32 = arith.constant 0 : i32
    %c0_i32_0 = arith.constant 0 : i32
    %c0_i32_1 = arith.constant 0 : i32
    return %arg0, %c0_i32, %c0_i32_0 : i32, i32, i32
  }
  func.func @transform_7(%arg0: i32) -> (i32, i32, i32) {
    %c0_i32 = arith.constant 0 : i32
    %c0_i32_0 = arith.constant 0 : i32
    %c0_i32_1 = arith.constant 0 : i32
    return %arg0, %c0_i32, %c0_i32_0 : i32, i32, i32
  }
  func.func @transform_8(%arg0: i32) -> (i32, i32, i32) {
    %c0_i32 = arith.constant 0 : i32
    %c0_i32_0 = arith.constant 0 : i32
    %c0_i32_1 = arith.constant 0 : i32
    return %arg0, %c0_i32, %c0_i32_0 : i32, i32, i32
  }
  func.func @transform_9(%arg0: i32) -> (i32, i32, i32) {
    %c0_i32 = arith.constant 0 : i32
    %c0_i32_0 = arith.constant 0 : i32
    %c0_i32_1 = arith.constant 0 : i32
    return %arg0, %c0_i32, %c0_i32_0 : i32, i32, i32
  }
}

</mosaic_0001>

<llo_original>
// kernel: tpu_custom_call.1
$region0: #{tpu_custom_call.1}
  #allocation0 [shape = 'u32[]', space=smem, size = 0x4, offset = 0x4, fixed_abs, tag = 'smem constant byte address 0x4 - core index']
  #allocation1 [shape = 'u32[144,128]{1,0:T(1,128)}', space=vmem, size = 0x12000, scoped, tag = 'internal scratch']
  %s0 = inlined_call_operand.hbm [shape: f32[8,128,128], index: 0, kind: input, shape index: {}]
  %s1 = inlined_call_operand.vmem [shape: f32[4,128,128], index: 1, kind: input, shape index: {}]
  %s2 = inlined_call_operand.hbm [shape: f32[4,128,128], index: 2, kind: input, shape index: {}]
  %s3 = inlined_call_operand.hbm [shape: f32[4,128,128], index: 3, kind: input, shape index: {}]
  %s4 = inlined_call_operand.hbm [shape: f32[4,128,128], index: 4, kind: input, shape index: {}]
  %s5 = inlined_call_operand.vmem [shape: f32[4,1,128], index: 5, kind: input, shape index: {}]
  %s6 = inlined_call_operand.vmem [shape: f32[4,128,1], index: 6, kind: input, shape index: {}]
  %s7 = inlined_call_operand.hbm [shape: f32[4,128,128], index: 7, kind: input, shape index: {}]
  %s8 = inlined_call_operand.hbm [shape: f32[4,128,128], index: 8, kind: output, shape index: {0}]
  %s9 = inlined_call_operand.hbm [shape: f32[4,128,128], index: 9, kind: output, shape index: {1}]
  %10 = xla_tuple %s8, %s9
  %s11 = sld [smem:[#allocation0]]
  $region93: #{tpu_custom_call.1} parent=0
    _
  %s13 = ssub.s32 1, %s11
  %s14 = scalar_select 0, %s13, %s11
  $region1: #{tpu_custom_call.1} parent=0
    #allocation2 [shape = 'u8[524288]{0}', space=vmem, size = 0x80000, scoped, tag = 'input window, operand 0, single buffered']
    #allocation3 [shape = 's32[2]{0}', space=sflag, size = 0x8, scoped, tag = 'scoped memory for tpu_custom_call.1']
    #allocation4 [shape = 's32[2]{0}', space=sflag, size = 0x8, scoped, tag = 'scoped memory for tpu_custom_call.1']
    #allocation5 [shape = 'u8[131072]{0}', space=vmem, size = 0x20000, scoped, tag = 'input window, operand 2']
    #allocation6 [shape = 's32[2]{0}', space=sflag, size = 0x8, scoped, tag = 'scoped memory for tpu_custom_call.1']
    #allocation7 [shape = 'u8[131072]{0}', space=vmem, size = 0x20000, scoped, tag = 'input window, operand 3']
    #allocation8 [shape = 'u8[131072]{0}', space=vmem, size = 0x20000, scoped, tag = 'input window, operand 4']
    #allocation9 [shape = 's32[2]{0}', space=sflag, size = 0x8, scoped, tag = 'scoped memory for tpu_custom_call.1']
    #allocation10 [shape = 'u8[131072]{0}', space=vmem, size = 0x20000, scoped, tag = 'input window, operand 7']
    #allocation11 [shape = 'u8[131072]{0}', space=vmem, size = 0x20000, scoped, tag = 'output window, operand 0']
    #allocation12 [shape = 'u8[131072]{0}', space=vmem, size = 0x20000, scoped, tag = 'output window, operand 1']
    #allocation13 [shape = 's32[2]{0}', space=sflag, size = 0x8, scoped, tag = 'scoped memory for tpu_custom_call.1']
    %15 = vsyncpa [#allocation3], 0
    %16 = vsyncpa [#allocation6], 0
    %s17 = scalar_lea.sflag [#allocation6], 1
    %18 = vsyncpa %s17, 0
    %19 = vsyncpa [#allocation9], 0
    %s20 = scalar_lea.sflag [#allocation9], 1
    %21 = vsyncpa %s20, 0
    %22 = vsyncpa [#allocation4], 0
    %s23 = scalar_lea.sflag [#allocation4], 1
    %24 = vsyncpa %s23, 0
    %25 = vsyncpa [#allocation13], 0
    %s26 = scalar_lea.sflag [#allocation13], 1
    %27 = vsyncpa %s26, 0
    loop: start=0, step=1, limit=6
    $region2: #{tpu_custom_call.1} parent=1 // loop_pre_header
      _
    $region3: #{tpu_custom_call.1} parent=1 // loop_header
      %s29 = sphi 0, %s33
      %p30 = scmp.ge.s32.totalorder %s29, 6
      %s37 = sphi 0, %s37
      %s39 = sphi 0, %s37
      %s40 = sphi 0, %s39
      %s54 = sphi 0, %s40
      %s60 = sphi 0, %s62
      %s63 = sphi 0, %s60
      %s64 = sphi 0, %s63
      %s80 = sphi 0, %s64
      %s86 = sphi 0, %s88
      %s89 = sphi 0, %s86
      %s90 = sphi 0, %s89
      %s106 = sphi 0, %s90
      %s112 = sphi 0, %s114
      %s115 = sphi 0, %s112
      %s116 = sphi 0, %s115
      %s132 = sphi 0, %s116
      %s138 = sphi 0, %s140
      %s141 = sphi 0, %s138
      %s142 = sphi 0, %s141
      %s158 = sphi 0, %s142
      %s164 = sphi 0, %s166
      %s167 = sphi 0, %s164
      %s168 = sphi 0, %s167
      %s184 = sphi 0, %s168
      %s190 = sphi 0, %s192
      %s193 = sphi 0, %s190
      %s194 = sphi 0, %s193
      %s210 = sphi 0, %s194
      %s216 = sphi 0, %s218
      %s219 = sphi 0, %s216
      %s220 = sphi 0, %s219
      %s236 = sphi 0, %s220
      %s242 = sphi 0, %s244
      %s245 = sphi 0, %s242
      %s246 = sphi 0, %s245
      %s262 = sphi 0, %s246
      %s268 = sphi 0, %s270
      %s271 = sphi 0, %s268
      %s272 = sphi 0, %s271
      %s288 = sphi 0, %s272
    $region4: #{tpu_custom_call.1} parent=1 // loop_header_branch
      %32 = sbr.rel (%p30) target = $region8
    $region5: #{tpu_custom_call.1} parent=1 // loop_body
      %s34 = ssub.s32 %s29, 1
      %s35 = ssub.s32 %s29, 2
      %s36 = sadd.s32 %s29, 1
      %s38 = sadd.s32 %s37, 1
      %p41 = scmp.eq.s32.totalorder %s29, 3
      %p42 = scmp.ne.s32.totalorder %s37, %s39
      %p43 = scmp.eq.s32.totalorder %s29, 0
      %p44 = por %p42, %p43
      %p45 = scmp.ne.s32.totalorder %s37, %s39
      %p46 = scmp.eq.s32.totalorder %s34, 3
      %p47 = por %p45, %p46
      %p48 = scmp.ne.s32.totalorder %s39, %s40
      %p49 = scmp.eq.s32.totalorder %s34, 0
      %p50 = por %p48, %p49
      %p51 = scmp.ne.s32.totalorder %s39, %s40
      %p52 = scmp.eq.s32.totalorder %s35, 3
      %p53 = por %p51, %p52
      %p55 = scmp.ne.s32.totalorder %s40, %s54
      %p56 = scmp.eq.s32.totalorder %s35, 0
      %p57 = por %p55, %p56
      %s58 = ssub.s32 %s29, %s36
      %p59 = scmp.eq.s32.totalorder %s58, 0
      %s61 = sadd.s32 %s60, 1
      %s62 = scalar_select %p59, %s60, %s61
      %p65 = pneg %p59
      %p66 = scmp.eq.s32.totalorder %s29, 3
      %p67 = por %p65, %p66
      %p68 = scmp.ne.s32.totalorder %s60, %s63
      %p69 = scmp.eq.s32.totalorder %s29, 0
      %p70 = por %p68, %p69
      %p71 = scmp.ne.s32.totalorder %s60, %s63
      %p72 = scmp.eq.s32.totalorder %s34, 3
      %p73 = por %p71, %p72
      %p74 = scmp.ne.s32.totalorder %s63, %s64
      %p75 = scmp.eq.s32.totalorder %s34, 0
      %p76 = por %p74, %p75
      %p77 = scmp.ne.s32.totalorder %s63, %s64
      %p78 = scmp.eq.s32.totalorder %s35, 3
      %p79 = por %p77, %p78
      %p81 = scmp.ne.s32.totalorder %s64, %s80
      %p82 = scmp.eq.s32.totalorder %s35, 0
      %p83 = por %p81, %p82
      %s84 = ssub.s32 %s29, %s36
      %p85 = scmp.eq.s32.totalorder %s84, 0
      %s87 = sadd.s32 %s86, 1
      %s88 = scalar_select %p85, %s86, %s87
      %p91 = pneg %p85
      %p92 = scmp.eq.s32.totalorder %s29, 3
      %p93 = por %p91, %p92
      %p94 = scmp.ne.s32.totalorder %s86, %s89
      %p95 = scmp.eq.s32.totalorder %s29, 0
      %p96 = por %p94, %p95
      %p97 = scmp.ne.s32.totalorder %s86, %s89
      %p98 = scmp.eq.s32.totalorder %s34, 3
      %p99 = por %p97, %p98
      %p100 = scmp.ne.s32.totalorder %s89, %s90
      %p101 = scmp.eq.s32.totalorder %s34, 0
      %p102 = por %p100, %p101
      %p103 = scmp.ne.s32.totalorder %s89, %s90
      %p104 = scmp.eq.s32.totalorder %s35, 3
      %p105 = por %p103, %p104
      %p107 = scmp.ne.s32.totalorder %s90, %s106
      %p108 = scmp.eq.s32.totalorder %s35, 0
      %p109 = por %p107, %p108
      %s110 = ssub.s32 %s29, %s36
      %p111 = scmp.eq.s32.totalorder %s110, 0
      %s113 = sadd.s32 %s112, 1
      %s114 = scalar_select %p111, %s112, %s113
      %p117 = pneg %p111
      %p118 = scmp.eq.s32.totalorder %s29, 3
      %p119 = por %p117, %p118
      %p120 = scmp.ne.s32.totalorder %s112, %s115
      %p121 = scmp.eq.s32.totalorder %s29, 0
      %p122 = por %p120, %p121
      %p123 = scmp.ne.s32.totalorder %s112, %s115
      %p124 = scmp.eq.s32.totalorder %s34, 3
      %p125 = por %p123, %p124
      %p126 = scmp.ne.s32.totalorder %s115, %s116
      %p127 = scmp.eq.s32.totalorder %s34, 0
      %p128 = por %p126, %p127
      %p129 = scmp.ne.s32.totalorder %s115, %s116
      %p130 = scmp.eq.s32.totalorder %s35, 3
      %p131 = por %p129, %p130
      %p133 = scmp.ne.s32.totalorder %s116, %s132
      %p134 = scmp.eq.s32.totalorder %s35, 0
      %p135 = por %p133, %p134
      %s136 = ssub.s32 %s29, %s36
      %p137 = scmp.eq.s32.totalorder %s136, 0
      %s139 = sadd.s32 %s138, 1
      %s140 = scalar_select %p137, %s138, %s139
      %p143 = pneg %p137
      %p144 = scmp.eq.s32.totalorder %s29, 3
      %p145 = por %p143, %p144
      %p146 = scmp.ne.s32.totalorder %s138, %s141
      %p147 = scmp.eq.s32.totalorder %s29, 0
      %p148 = por %p146, %p147
      %p149 = scmp.ne.s32.totalorder %s138, %s141
      %p150 = scmp.eq.s32.totalorder %s34, 3
      %p151 = por %p149, %p150
      %p152 = scmp.ne.s32.totalorder %s141, %s142
      %p153 = scmp.eq.s32.totalorder %s34, 0
      %p154 = por %p152, %p153
      %p155 = scmp.ne.s32.totalorder %s141, %s142
      %p156 = scmp.eq.s32.totalorder %s35, 3
      %p157 = por %p155, %p156
      %p159 = scmp.ne.s32.totalorder %s142, %s158
      %p160 = scmp.eq.s32.totalorder %s35, 0
      %p161 = por %p159, %p160
      %s162 = ssub.s32 %s29, %s36
      %p163 = scmp.eq.s32.totalorder %s162, 0
      %s165 = sadd.s32 %s164, 1
      %s166 = scalar_select %p163, %s164, %s165
      %p169 = pneg %p163
      %p170 = scmp.eq.s32.totalorder %s29, 3
      %p171 = por %p169, %p170
      %p172 = scmp.ne.s32.totalorder %s164, %s167
      %p173 = scmp.eq.s32.totalorder %s29, 0
      %p174 = por %p172, %p173
      %p175 = scmp.ne.s32.totalorder %s164, %s167
      %p176 = scmp.eq.s32.totalorder %s34, 3
      %p177 = por %p175, %p176
      %p178 = scmp.ne.s32.totalorder %s167, %s168
      %p179 = scmp.eq.s32.totalorder %s34, 0
      %p180 = por %p178, %p179
      %p181 = scmp.ne.s32.totalorder %s167, %s168
      %p182 = scmp.eq.s32.totalorder %s35, 3
      %p183 = por %p181, %p182
      %p185 = scmp.ne.s32.totalorder %s168, %s184
      %p186 = scmp.eq.s32.totalorder %s35, 0
      %p187 = por %p185, %p186
      %s188 = ssub.s32 %s29, %s36
      %p189 = scmp.eq.s32.totalorder %s188, 0
      %s191 = sadd.s32 %s190, 1
      %s192 = scalar_select %p189, %s190, %s191
      %p195 = pneg %p189
      %p196 = scmp.eq.s32.totalorder %s29, 3
      %p197 = por %p195, %p196
      %p198 = scmp.ne.s32.totalorder %s190, %s193
      %p199 = scmp.eq.s32.totalorder %s29, 0
      %p200 = por %p198, %p199
      %p201 = scmp.ne.s32.totalorder %s190, %s193
      %p202 = scmp.eq.s32.totalorder %s34, 3
      %p203 = por %p201, %p202
      %p204 = scmp.ne.s32.totalorder %s193, %s194
      %p205 = scmp.eq.s32.totalorder %s34, 0
      %p206 = por %p204, %p205
      %p207 = scmp.ne.s32.totalorder %s193, %s194
      %p208 = scmp.eq.s32.totalorder %s35, 3
      %p209 = por %p207, %p208
      %p211 = scmp.ne.s32.totalorder %s194, %s210
      %p212 = scmp.eq.s32.totalorder %s35, 0
      %p213 = por %p211, %p212
      %s214 = ssub.s32 %s29, %s36
      %p215 = scmp.eq.s32.totalorder %s214, 0
      %s217 = sadd.s32 %s216, 1
      %s218 = scalar_select %p215, %s216, %s217
      %p221 = pneg %p215
      %p222 = scmp.eq.s32.totalorder %s29, 3
      %p223 = por %p221, %p222
      %p224 = scmp.ne.s32.totalorder %s216, %s219
      %p225 = scmp.eq.s32.totalorder %s29, 0
      %p226 = por %p224, %p225
      %p227 = scmp.ne.s32.totalorder %s216, %s219
      %p228 = scmp.eq.s32.totalorder %s34, 3
      %p229 = por %p227, %p228
      %p230 = scmp.ne.s32.totalorder %s219, %s220
      %p231 = scmp.eq.s32.totalorder %s34, 0
      %p232 = por %p230, %p231
      %p233 = scmp.ne.s32.totalorder %s219, %s220
      %p234 = scmp.eq.s32.totalorder %s35, 3
      %p235 = por %p233, %p234
      %p237 = scmp.ne.s32.totalorder %s220, %s236
      %p238 = scmp.eq.s32.totalorder %s35, 0
      %p239 = por %p237, %p238
      %s240 = ssub.s32 %s29, %s36
      %p241 = scmp.eq.s32.totalorder %s240, 0
      %s243 = sadd.s32 %s242, 1
      %s244 = scalar_select %p241, %s242, %s243
      %p247 = pneg %p241
      %p248 = scmp.eq.s32.totalorder %s29, 3
      %p249 = por %p247, %p248
      %p250 = scmp.ne.s32.totalorder %s242, %s245
      %p251 = scmp.eq.s32.totalorder %s29, 0
      %p252 = por %p250, %p251
      %p253 = scmp.ne.s32.totalorder %s242, %s245
      %p254 = scmp.eq.s32.totalorder %s34, 3
      %p255 = por %p253, %p254
      %p256 = scmp.ne.s32.totalorder %s245, %s246
      %p257 = scmp.eq.s32.totalorder %s34, 0
      %p258 = por %p256, %p257
      %p259 = scmp.ne.s32.totalorder %s245, %s246
      %p260 = scmp.eq.s32.totalorder %s35, 3
      %p261 = por %p259, %p260
      %p263 = scmp.ne.s32.totalorder %s246, %s262
      %p264 = scmp.eq.s32.totalorder %s35, 0
      %p265 = por %p263, %p264
      %s266 = ssub.s32 %s29, %s36
      %p267 = scmp.eq.s32.totalorder %s266, 0
      %s269 = sadd.s32 %s268, 1
      %s270 = scalar_select %p267, %s268, %s269
      %p273 = pneg %p267
      %p274 = scmp.eq.s32.totalorder %s29, 3
      %p275 = por %p273, %p274
      %p276 = scmp.ne.s32.totalorder %s268, %s271
      %p277 = scmp.eq.s32.totalorder %s29, 0
      %p278 = por %p276, %p277
      %p279 = scmp.ne.s32.totalorder %s268, %s271
      %p280 = scmp.eq.s32.totalorder %s34, 3
      %p281 = por %p279, %p280
      %p282 = scmp.ne.s32.totalorder %s271, %s272
      %p283 = scmp.eq.s32.totalorder %s34, 0
      %p284 = por %p282, %p283
      %p285 = scmp.ne.s32.totalorder %s271, %s272
      %p286 = scmp.eq.s32.totalorder %s35, 3
      %p287 = por %p285, %p286
      %p289 = scmp.ne.s32.totalorder %s272, %s288
      %p290 = scmp.eq.s32.totalorder %s35, 0
      %p291 = por %p289, %p290
      %p292 = scmp.le.s32.totalorder 1, %s29
      %p293 = scmp.lt.s32.totalorder %s29, 5
      %p294 = pnand %p292, %p293
      %p295 = pneg %p294
      // Predicated region
      $region9: #{tpu_custom_call.1} parent=5 // pred_check
        _
      $region10: #{tpu_custom_call.1} parent=5 // pred_check_branch
        %297 = sbr.rel (%p294) target = $region12
      $region11: #{tpu_custom_call.1} parent=5 // pred_region
        %s298 = ssub.s32 %s29, 1
        // Predicated region
        $region13: #{tpu_custom_call.1} parent=11 // pred_check
          %p299 = pneg %p50
        $region14: #{tpu_custom_call.1} parent=11 // pred_check_branch
          %301 = sbr.rel (%p299) target = $region16
        $region15: #{tpu_custom_call.1} parent=11 // pred_region
          %s303 = ssub.s32 16384, 16384
          %304 = vsyncadd [#allocation3], %s303
          %s305 = sshll.u32 [#allocation2], 4
          %s306 = int_to_ptr.vmem [resolvable:$true] %s305
          %311 = dma.hbm_to_vmem [thread:$0]  %s0, 16384, %s306, [#allocation3], 128, 128, 8
        $region16: #{tpu_custom_call.1} parent=11 // pred_fallthru
          _
      $region12: #{tpu_custom_call.1} parent=5 // pred_fallthru
        _
      %p312 = scmp.lt.s32.totalorder %s29, 4
      // Predicated region
      $region17: #{tpu_custom_call.1} parent=5 // pred_check
        %p313 = pneg %p312
      $region18: #{tpu_custom_call.1} parent=5 // pred_check_branch
        %315 = sbr.rel (%p313) target = $region20
      $region19: #{tpu_custom_call.1} parent=5 // pred_region
        // Predicated region
        $region21: #{tpu_custom_call.1} parent=19 // pred_check
          %p316 = pneg %p70
        $region22: #{tpu_custom_call.1} parent=19 // pred_check_branch
          %318 = sbr.rel (%p316) target = $region24
        $region23: #{tpu_custom_call.1} parent=19 // pred_region
          %p319 = scmp.lt.s32.totalorder %s29, 3
          %s320 = scalar_select %p319, %s29, 3
          %s321 = smul.addr %s320, 16
          %s322 = smul.addr %s321, 8
          %s323 = scalar_lea.vmem %s1, %s322
        $region24: #{tpu_custom_call.1} parent=19 // pred_fallthru
          _
        // Predicated region
        $region25: #{tpu_custom_call.1} parent=19 // pred_check
          %p324 = pneg %p96
        $region26: #{tpu_custom_call.1} parent=19 // pred_check_branch
          %326 = sbr.rel (%p324) target = $region28
        $region27: #{tpu_custom_call.1} parent=19 // pred_region
          %s327 = sand.u32 %s29, 1
          %s328 = scalar_lea.sflag [#allocation6], %s327
          %s329 = sand.u32 %s86, 1
          %s330 = smul.addr %s329, 128
          %s331 = scalar_lea.vmem [#allocation5], %s330
          %s333 = ssub.s32 2048, 2048
          %334 = vsyncadd %s328, %s333
          %s335 = smul.addr %s29, 16
          %s336 = smul.addr %s335, 128
          %s337 = scalar_lea.hbm %s2, %s336
          %s338 = sshll.u32 %s331, 4
          %s339 = int_to_ptr.vmem [resolvable:$true] %s338
          %344 = dma.hbm_to_vmem [thread:$0]  %s337, 2048, %s339, %s328, 128, 128, 8
        $region28: #{tpu_custom_call.1} parent=19 // pred_fallthru
          _
        // Predicated region
        $region29: #{tpu_custom_call.1} parent=19 // pred_check
          %p345 = pneg %p122
        $region30: #{tpu_custom_call.1} parent=19 // pred_check_branch
          %347 = sbr.rel (%p345) target = $region32
        $region31: #{tpu_custom_call.1} parent=19 // pred_region
          %s348 = sand.u32 %s29, 1
          %s349 = scalar_lea.sflag [#allocation6], %s348
          %s350 = sand.u32 %s112, 1
          %s351 = smul.addr %s350, 128
          %s352 = scalar_lea.vmem [#allocation7], %s351
          %s354 = ssub.s32 2048, 2048
          %355 = vsyncadd %s349, %s354
          %s356 = smul.addr %s29, 16
          %s357 = smul.addr %s356, 128
          %s358 = scalar_lea.hbm %s3, %s357
          %s359 = sshll.u32 %s352, 4
          %s360 = int_to_ptr.vmem [resolvable:$true] %s359
          %365 = dma.hbm_to_vmem [thread:$0]  %s358, 2048, %s360, %s349, 128, 128, 8
        $region32: #{tpu_custom_call.1} parent=19 // pred_fallthru
          _
        // Predicated region
        $region33: #{tpu_custom_call.1} parent=19 // pred_check
          %p366 = pneg %p148
        $region34: #{tpu_custom_call.1} parent=19 // pred_check_branch
          %368 = sbr.rel (%p366) target = $region36
        $region35: #{tpu_custom_call.1} parent=19 // pred_region
          %s369 = sand.u32 %s29, 1
          %s370 = scalar_lea.sflag [#allocation9], %s369
          %s371 = sand.u32 %s138, 1
          %s372 = smul.addr %s371, 128
          %s373 = scalar_lea.vmem [#allocation8], %s372
          %s375 = ssub.s32 2048, 2048
          %376 = vsyncadd %s370, %s375
          %s377 = smul.addr %s29, 16
          %s378 = smul.addr %s377, 128
          %s379 = scalar_lea.hbm %s4, %s378
          %s380 = sshll.u32 %s373, 4
          %s381 = int_to_ptr.vmem [resolvable:$true] %s380
          %386 = dma.hbm_to_vmem [thread:$0]  %s379, 2048, %s381, %s370, 128, 128, 8
        $region36: #{tpu_custom_call.1} parent=19 // pred_fallthru
          _
        // Predicated region
        $region37: #{tpu_custom_call.1} parent=19 // pred_check
          %p387 = pneg %p174
        $region38: #{tpu_custom_call.1} parent=19 // pred_check_branch
          %389 = sbr.rel (%p387) target = $region40
        $region39: #{tpu_custom_call.1} parent=19 // pred_region
          %p390 = scmp.lt.s32.totalorder %s29, 3
          %s391 = scalar_select %p390, %s29, 3
          %s392 = scalar_lea.vmem %s5, %s391
        $region40: #{tpu_custom_call.1} parent=19 // pred_fallthru
          _
        // Predicated region
        $region41: #{tpu_custom_call.1} parent=19 // pred_check
          %p393 = pneg %p200
        $region42: #{tpu_custom_call.1} parent=19 // pred_check_branch
          %395 = sbr.rel (%p393) target = $region44
        $region43: #{tpu_custom_call.1} parent=19 // pred_region
          %p396 = scmp.lt.s32.totalorder %s29, 3
          %s397 = scalar_select %p396, %s29, 3
          %s398 = smul.addr %s397, 16
          %s399 = smul.addr %s398, 8
          %s400 = scalar_lea.vmem %s6, %s399
        $region44: #{tpu_custom_call.1} parent=19 // pred_fallthru
          _
        // Predicated region
        $region45: #{tpu_custom_call.1} parent=19 // pred_check
          %p401 = pneg %p226
        $region46: #{tpu_custom_call.1} parent=19 // pred_check_branch
          %403 = sbr.rel (%p401) target = $region48
        $region47: #{tpu_custom_call.1} parent=19 // pred_region
          %s404 = sand.u32 %s29, 1
          %s405 = scalar_lea.sflag [#allocation9], %s404
          %s406 = sand.u32 %s216, 1
          %s407 = smul.addr %s406, 128
          %s408 = scalar_lea.vmem [#allocation10], %s407
          %s410 = ssub.s32 2048, 2048
          %411 = vsyncadd %s405, %s410
          %s412 = smul.addr %s29, 16
          %s413 = smul.addr %s412, 128
          %s414 = scalar_lea.hbm %s7, %s413
          %s415 = sshll.u32 %s408, 4
          %s416 = int_to_ptr.vmem [resolvable:$true] %s415
          %421 = dma.hbm_to_vmem [thread:$0]  %s414, 2048, %s416, %s405, 128, 128, 8
        $region48: #{tpu_custom_call.1} parent=19 // pred_fallthru
          _
      $region20: #{tpu_custom_call.1} parent=5 // pred_fallthru
        _
      %p422 = scmp.le.s32.totalorder 1, %s29
      %p423 = scmp.lt.s32.totalorder %s29, 5
      %p424 = pnand %p422, %p423
      %p425 = pneg %p424
      // Predicated region
      $region49: #{tpu_custom_call.1} parent=5 // pred_check
        _
      $region50: #{tpu_custom_call.1} parent=5 // pred_check_branch
        %427 = sbr.rel (%p424) target = $region52
      $region51: #{tpu_custom_call.1} parent=5 // pred_region
        %s428 = ssub.s32 %s29, 1
        // Predicated region
        $region53: #{tpu_custom_call.1} parent=51 // pred_check
          %p429 = pneg %p50
        $region54: #{tpu_custom_call.1} parent=51 // pred_check_branch
          %431 = sbr.rel (%p429) target = $region56
        $region55: #{tpu_custom_call.1} parent=51 // pred_region
          %432 = dma.done [#allocation3], 16384
        $region56: #{tpu_custom_call.1} parent=51 // pred_fallthru
          _
        %s433 = sand.u32 %s34, 1
        %s434 = scalar_lea.sflag [#allocation6], %s433
        %s435 = sand.u32 %s89, 1
        %s436 = smul.addr %s435, 128
        %s437 = scalar_lea.vmem [#allocation5], %s436
        // Predicated region
        $region57: #{tpu_custom_call.1} parent=51 // pred_check
          %p438 = pneg %p102
        $region58: #{tpu_custom_call.1} parent=51 // pred_check_branch
          %440 = sbr.rel (%p438) target = $region60
        $region59: #{tpu_custom_call.1} parent=51 // pred_region
          %441 = dma.done %s434, 2048
        $region60: #{tpu_custom_call.1} parent=51 // pred_fallthru
          _
        %s442 = sand.u32 %s34, 1
        %s443 = scalar_lea.sflag [#allocation6], %s442
        %s444 = sand.u32 %s115, 1
        %s445 = smul.addr %s444, 128
        %s446 = scalar_lea.vmem [#allocation7], %s445
        // Predicated region
        $region61: #{tpu_custom_call.1} parent=51 // pred_check
          %p447 = pneg %p128
        $region62: #{tpu_custom_call.1} parent=51 // pred_check_branch
          %449 = sbr.rel (%p447) target = $region64
        $region63: #{tpu_custom_call.1} parent=51 // pred_region
          %450 = dma.done %s443, 2048
        $region64: #{tpu_custom_call.1} parent=51 // pred_fallthru
          _
        %s451 = sand.u32 %s34, 1
        %s452 = scalar_lea.sflag [#allocation9], %s451
        %s453 = sand.u32 %s141, 1
        %s454 = smul.addr %s453, 128
        %s455 = scalar_lea.vmem [#allocation8], %s454
        // Predicated region
        $region65: #{tpu_custom_call.1} parent=51 // pred_check
          %p456 = pneg %p154
        $region66: #{tpu_custom_call.1} parent=51 // pred_check_branch
          %458 = sbr.rel (%p456) target = $region68
        $region67: #{tpu_custom_call.1} parent=51 // pred_region
          %459 = dma.done %s452, 2048
        $region68: #{tpu_custom_call.1} parent=51 // pred_fallthru
          _
        %s460 = sand.u32 %s34, 1
        %s461 = scalar_lea.sflag [#allocation9], %s460
        %s462 = sand.u32 %s219, 1
        %s463 = smul.addr %s462, 128
        %s464 = scalar_lea.vmem [#allocation10], %s463
        // Predicated region
        $region69: #{tpu_custom_call.1} parent=51 // pred_check
          %p465 = pneg %p232
        $region70: #{tpu_custom_call.1} parent=51 // pred_check_branch
          %467 = sbr.rel (%p465) target = $region72
        $region71: #{tpu_custom_call.1} parent=51 // pred_region
          %468 = dma.done %s461, 2048
        $region72: #{tpu_custom_call.1} parent=51 // pred_fallthru
          _
        %p469 = pneg %p50
        %p470 = pneg %p47
        %p471 = scmp.lt.s32.totalorder %s34, 3
        %s472 = scalar_select %p471, %s34, 3
        %s473 = smul.addr %s472, 16
        %s474 = smul.addr %s473, 8
        %s475 = scalar_lea.vmem %s1, %s474
        %p476 = pneg %p76
        %p477 = pneg %p73
        %s478 = sand.u32 %s34, 1
        %s479 = scalar_lea.sflag [#allocation6], %s478
        %s480 = sand.u32 %s89, 1
        %s481 = smul.addr %s480, 128
        %s482 = scalar_lea.vmem [#allocation5], %s481
        %p483 = pneg %p102
        %p484 = pneg %p99
        %s485 = sand.u32 %s34, 1
        %s486 = scalar_lea.sflag [#allocation6], %s485
        %s487 = sand.u32 %s115, 1
        %s488 = smul.addr %s487, 128
        %s489 = scalar_lea.vmem [#allocation7], %s488
        %p490 = pneg %p128
        %p491 = pneg %p125
        %s492 = sand.u32 %s34, 1
        %s493 = scalar_lea.sflag [#allocation9], %s492
        %s494 = sand.u32 %s141, 1
        %s495 = smul.addr %s494, 128
        %s496 = scalar_lea.vmem [#allocation8], %s495
        %p497 = pneg %p154
        %p498 = pneg %p151
        %p499 = scmp.lt.s32.totalorder %s34, 3
        %s500 = scalar_select %p499, %s34, 3
        %s501 = scalar_lea.vmem %s5, %s500
        %p502 = pneg %p180
        %p503 = pneg %p177
        %p504 = scmp.lt.s32.totalorder %s34, 3
        %s505 = scalar_select %p504, %s34, 3
        %s506 = smul.addr %s505, 16
        %s507 = smul.addr %s506, 8
        %s508 = scalar_lea.vmem %s6, %s507
        %p509 = pneg %p206
        %p510 = pneg %p203
        %s511 = sand.u32 %s34, 1
        %s512 = scalar_lea.sflag [#allocation9], %s511
        %s513 = sand.u32 %s219, 1
        %s514 = smul.addr %s513, 128
        %s515 = scalar_lea.vmem [#allocation10], %s514
        %p516 = pneg %p232
        %p517 = pneg %p229
        %p518 = pneg %p258
        %p519 = pneg %p255
        %s520 = sand.u32 %s245, 1
        %s521 = scalar_lea.sflag [#allocation4], %s520
        %s522 = sand.u32 %s245, 1
        %s523 = smul.addr %s522, 128
        %s524 = scalar_lea.vmem [#allocation11], %s523
        %p525 = pneg %p284
        %p526 = pneg %p281
        %s527 = sand.u32 %s271, 1
        %s528 = scalar_lea.sflag [#allocation13], %s527
        %s529 = sand.u32 %s271, 1
        %s530 = smul.addr %s529, 128
        %s531 = scalar_lea.vmem [#allocation12], %s530
        %p532 = scmp.lt.s32.totalorder %s34, 3
        %s533 = scalar_select %p532, %s34, 3
        %s534 = smul.addr %s533, 16
        %s535 = smul.addr %s534, 8
        %s536 = scalar_lea.vmem %s1, %s535
        %p537 = scmp.lt.s32.totalorder %s34, 3
        %s538 = scalar_select %p537, %s34, 3
        %s539 = scalar_lea.vmem %s5, %s538
        %p540 = scmp.lt.s32.totalorder %s34, 3
        %s541 = scalar_select %p540, %s34, 3
        %s542 = smul.addr %s541, 16
        %s543 = smul.addr %s542, 8
        %s544 = scalar_lea.vmem %s6, %s543
        %v545 = vld [vmem:[%s536] sm:$0xff]
        %v546 = vld [vmem:[%s536 + $0x8] sm:$0xff]
        %v547 = vld [vmem:[%s536 + $0x10] sm:$0xff]
        %v548 = vld [vmem:[%s536 + $0x18] sm:$0xff]
        %v549 = vld [vmem:[%s536 + $0x20] sm:$0xff]
        %v550 = vld [vmem:[%s536 + $0x28] sm:$0xff]
        %v551 = vld [vmem:[%s536 + $0x30] sm:$0xff]
        %v552 = vld [vmem:[%s536 + $0x38] sm:$0xff]
        %v553 = vld [vmem:[%s536 + $0x40] sm:$0xff]
        %v554 = vld [vmem:[%s536 + $0x48] sm:$0xff]
        %v555 = vld [vmem:[%s536 + $0x50] sm:$0xff]
        %v556 = vld [vmem:[%s536 + $0x58] sm:$0xff]
        %v557 = vld [vmem:[%s536 + $0x60] sm:$0xff]
        %v558 = vld [vmem:[%s536 + $0x68] sm:$0xff]
        %v559 = vld [vmem:[%s536 + $0x70] sm:$0xff]
        %v560 = vld [vmem:[%s536 + $0x78] sm:$0xff]
        %v561 = vld [vmem:[%s437] sm:$0xff]
        %v562 = vld [vmem:[%s437 + $0x8] sm:$0xff]
        %v563 = vld [vmem:[%s437 + $0x10] sm:$0xff]
        %v564 = vld [vmem:[%s437 + $0x18] sm:$0xff]
        %v565 = vld [vmem:[%s437 + $0x20] sm:$0xff]
        %v566 = vld [vmem:[%s437 + $0x28] sm:$0xff]
        %v567 = vld [vmem:[%s437 + $0x30] sm:$0xff]
        %v568 = vld [vmem:[%s437 + $0x38] sm:$0xff]
        %v569 = vld [vmem:[%s437 + $0x40] sm:$0xff]
        %v570 = vld [vmem:[%s437 + $0x48] sm:$0xff]
        %v571 = vld [vmem:[%s437 + $0x50] sm:$0xff]
        %v572 = vld [vmem:[%s437 + $0x58] sm:$0xff]
        %v573 = vld [vmem:[%s437 + $0x60] sm:$0xff]
        %v574 = vld [vmem:[%s437 + $0x68] sm:$0xff]
        %v575 = vld [vmem:[%s437 + $0x70] sm:$0xff]
        %v576 = vld [vmem:[%s437 + $0x78] sm:$0xff]
        %v577 = vld [vmem:[%s446] sm:$0xff]
        %v578 = vld [vmem:[%s446 + $0x8] sm:$0xff]
        %v579 = vld [vmem:[%s446 + $0x10] sm:$0xff]
        %v580 = vld [vmem:[%s446 + $0x18] sm:$0xff]
        %v581 = vld [vmem:[%s446 + $0x20] sm:$0xff]
        %v582 = vld [vmem:[%s446 + $0x28] sm:$0xff]
        %v583 = vld [vmem:[%s446 + $0x30] sm:$0xff]
        %v584 = vld [vmem:[%s446 + $0x38] sm:$0xff]
        %v585 = vld [vmem:[%s446 + $0x40] sm:$0xff]
        %v586 = vld [vmem:[%s446 + $0x48] sm:$0xff]
        %v587 = vld [vmem:[%s446 + $0x50] sm:$0xff]
        %v588 = vld [vmem:[%s446 + $0x58] sm:$0xff]
        %v589 = vld [vmem:[%s446 + $0x60] sm:$0xff]
        %v590 = vld [vmem:[%s446 + $0x68] sm:$0xff]
        %v591 = vld [vmem:[%s446 + $0x70] sm:$0xff]
        %v592 = vld [vmem:[%s446 + $0x78] sm:$0xff]
        %v593 = vld [vmem:[%s455] sm:$0xff]
        %v594 = vld [vmem:[%s455 + $0x8] sm:$0xff]
        %v595 = vld [vmem:[%s455 + $0x10] sm:$0xff]
        %v596 = vld [vmem:[%s455 + $0x18] sm:$0xff]
        %v597 = vld [vmem:[%s455 + $0x20] sm:$0xff]
        %v598 = vld [vmem:[%s455 + $0x28] sm:$0xff]
        %v599 = vld [vmem:[%s455 + $0x30] sm:$0xff]
        %v600 = vld [vmem:[%s455 + $0x38] sm:$0xff]
        %v601 = vld [vmem:[%s455 + $0x40] sm:$0xff]
        %v602 = vld [vmem:[%s455 + $0x48] sm:$0xff]
        %v603 = vld [vmem:[%s455 + $0x50] sm:$0xff]
        %v604 = vld [vmem:[%s455 + $0x58] sm:$0xff]
        %v605 = vld [vmem:[%s455 + $0x60] sm:$0xff]
        %v606 = vld [vmem:[%s455 + $0x68] sm:$0xff]
        %v607 = vld [vmem:[%s455 + $0x70] sm:$0xff]
        %v608 = vld [vmem:[%s455 + $0x78] sm:$0xff]
        %v609 = vld [vmem:[#allocation2] sm:$0xff]
        %v610 = vld [vmem:[#allocation2 + $0x8] sm:$0xff]
        %v611 = vld [vmem:[#allocation2 + $0x10] sm:$0xff]
        %v612 = vld [vmem:[#allocation2 + $0x18] sm:$0xff]
        %v613 = vld [vmem:[#allocation2 + $0x20] sm:$0xff]
        %v614 = vld [vmem:[#allocation2 + $0x28] sm:$0xff]
        %v615 = vld [vmem:[#allocation2 + $0x30] sm:$0xff]
        %v616 = vld [vmem:[#allocation2 + $0x38] sm:$0xff]
        %v617 = vld [vmem:[#allocation2 + $0x40] sm:$0xff]
        %v618 = vld [vmem:[#allocation2 + $0x48] sm:$0xff]
        %v619 = vld [vmem:[#allocation2 + $0x50] sm:$0xff]
        %v620 = vld [vmem:[#allocation2 + $0x58] sm:$0xff]
        %v621 = vld [vmem:[#allocation2 + $0x60] sm:$0xff]
        %v622 = vld [vmem:[#allocation2 + $0x68] sm:$0xff]
        %v623 = vld [vmem:[#allocation2 + $0x70] sm:$0xff]
        %v624 = vld [vmem:[#allocation2 + $0x78] sm:$0xff]
        %s625 = scalar_lea.vmem [#allocation2], 128
        %v626 = vld [vmem:[%s625] sm:$0xff]
        %v627 = vld [vmem:[%s625 + $0x8] sm:$0xff]
        %v628 = vld [vmem:[%s625 + $0x10] sm:$0xff]
        %v629 = vld [vmem:[%s625 + $0x18] sm:$0xff]
        %v630 = vld [vmem:[%s625 + $0x20] sm:$0xff]
        %v631 = vld [vmem:[%s625 + $0x28] sm:$0xff]
        %v632 = vld [vmem:[%s625 + $0x30] sm:$0xff]
        %v633 = vld [vmem:[%s625 + $0x38] sm:$0xff]
        %v634 = vld [vmem:[%s625 + $0x40] sm:$0xff]
        %v635 = vld [vmem:[%s625 + $0x48] sm:$0xff]
        %v636 = vld [vmem:[%s625 + $0x50] sm:$0xff]
        %v637 = vld [vmem:[%s625 + $0x58] sm:$0xff]
        %v638 = vld [vmem:[%s625 + $0x60] sm:$0xff]
        %v639 = vld [vmem:[%s625 + $0x68] sm:$0xff]
        %v640 = vld [vmem:[%s625 + $0x70] sm:$0xff]
        %v641 = vld [vmem:[%s625 + $0x78] sm:$0xff]
        %642 = vmatprep.subr.mxu0 0.0
        %643 = vmatpush1.msra.mxu0 %v560
        %644 = vmatprep.subr.mxu0 0.0
        %645 = vmatpush1.msra.mxu0 %v559
        %646 = vmatprep.subr.mxu0 0.0
        %647 = vmatpush1.msra.mxu0 %v558
        %648 = vmatprep.subr.mxu0 0.0
        %649 = vmatpush1.msra.mxu0 %v557
        %650 = vmatprep.subr.mxu0 0.0
        %651 = vmatpush1.msra.mxu0 %v556
        %652 = vmatprep.subr.mxu0 0.0
        %653 = vmatpush1.msra.mxu0 %v555
        %654 = vmatprep.subr.mxu0 0.0
        %655 = vmatpush1.msra.mxu0 %v554
        %656 = vmatprep.subr.mxu0 0.0
        %657 = vmatpush1.msra.mxu0 %v553
        %658 = vmatprep.subr.mxu0 0.0
        %659 = vmatpush1.msra.mxu0 %v552
        %660 = vmatprep.subr.mxu0 0.0
        %661 = vmatpush1.msra.mxu0 %v551
        %662 = vmatprep.subr.mxu0 0.0
        %663 = vmatpush1.msra.mxu0 %v550
        %664 = vmatprep.subr.mxu0 0.0
        %665 = vmatpush1.msra.mxu0 %v549
        %666 = vmatprep.subr.mxu0 0.0
        %667 = vmatpush1.msra.mxu0 %v548
        %668 = vmatprep.subr.mxu0 0.0
        %669 = vmatpush1.msra.mxu0 %v547
        %670 = vmatprep.subr.mxu0 0.0
        %671 = vmatpush1.msra.mxu0 %v546
        %672 = vmatprep.subr.mxu0 0.0
        %673 = vmatpush1.msra.mxu0 %v545
        %674 = vmatprep.subr.mxu0 0.0
        %675 = vmatpush2.msra.mxu0 0.0
        %676 = vmatprep.subr.mxu0 0.0
        %677 = vmatpush2.msra.mxu0 0.0
        %678 = vmatprep.subr.mxu0 0.0
        %679 = vmatpush2.msra.mxu0 0.0
        %680 = vmatprep.subr.mxu0 0.0
        %681 = vmatpush2.msra.mxu0 0.0
        %682 = vmatprep.subr.mxu0 0.0
        %683 = vmatpush2.msra.mxu0 0.0
        %684 = vmatprep.subr.mxu0 0.0
        %685 = vmatpush2.msra.mxu0 0.0
        %686 = vmatprep.subr.mxu0 0.0
        %687 = vmatpush2.msra.mxu0 0.0
        %688 = vmatprep.subr.mxu0 0.0
        %689 = vmatpush2.msra.mxu0 0.0
        %690 = vmatprep.subr.mxu0 0.0
        %691 = vmatpush2.msra.mxu0 0.0
        %692 = vmatprep.subr.mxu0 0.0
        %693 = vmatpush2.msra.mxu0 0.0
        %694 = vmatprep.subr.mxu0 0.0
        %695 = vmatpush2.msra.mxu0 0.0
        %696 = vmatprep.subr.mxu0 0.0
        %697 = vmatpush2.msra.mxu0 0.0
        %698 = vmatprep.subr.mxu0 0.0
        %699 = vmatpush2.msra.mxu0 0.0
        %700 = vmatprep.subr.mxu0 0.0
        %701 = vmatpush2.msra.mxu0 0.0
        %702 = vmatprep.subr.mxu0 0.0
        %703 = vmatpush2.msra.mxu0 0.0
        %704 = vmatprep.subr.mxu0 0.0
        %705 = vmatpush2.msra.mxu0 0.0
        %706 = vmatprep.mubr.f32.mxu0 0.0
        %707 = vmatmul.mubr.f32.gmra.mxu0 %v609
        %v708 = vpop.f32.mrf.mxu0
        %v709 = vadd.f32 0.0, %v708
        %v710 = vpop.f32.mrf.mxu0
        %711 = vmatprep.mubr.f32.mxu0 0.0
        %712 = vmatmul.mubr.f32.gmra.mxu0 %v610
        %v713 = vpop.f32.mrf.mxu0
        %v714 = vadd.f32 0.0, %v713
        %v715 = vpop.f32.mrf.mxu0
        %716 = vmatprep.mubr.f32.mxu0 0.0
        %717 = vmatmul.mubr.f32.gmra.mxu0 %v611
        %v718 = vpop.f32.mrf.mxu0
        %v719 = vadd.f32 0.0, %v718
        %v720 = vpop.f32.mrf.mxu0
        %721 = vmatprep.mubr.f32.mxu0 0.0
        %722 = vmatmul.mubr.f32.gmra.mxu0 %v612
        %v723 = vpop.f32.mrf.mxu0
        %v724 = vadd.f32 0.0, %v723
        %v725 = vpop.f32.mrf.mxu0
        %726 = vmatprep.mubr.f32.mxu0 0.0
        %727 = vmatmul.mubr.f32.gmra.mxu0 %v613
        %v728 = vpop.f32.mrf.mxu0
        %v729 = vadd.f32 0.0, %v728
        %v730 = vpop.f32.mrf.mxu0
        %731 = vmatprep.mubr.f32.mxu0 0.0
        %732 = vmatmul.mubr.f32.gmra.mxu0 %v614
        %v733 = vpop.f32.mrf.mxu0
        %v734 = vadd.f32 0.0, %v733
        %v735 = vpop.f32.mrf.mxu0
        %736 = vmatprep.mubr.f32.mxu0 0.0
        %737 = vmatmul.mubr.f32.gmra.mxu0 %v615
        %v738 = vpop.f32.mrf.mxu0
        %v739 = vadd.f32 0.0, %v738
        %v740 = vpop.f32.mrf.mxu0
        %741 = vmatprep.mubr.f32.mxu0 0.0
        %742 = vmatmul.mubr.f32.gmra.mxu0 %v616
        %v743 = vpop.f32.mrf.mxu0
        %v744 = vadd.f32 0.0, %v743
        %v745 = vpop.f32.mrf.mxu0
        %746 = vmatprep.mubr.f32.mxu0 0.0
        %747 = vmatmul.mubr.f32.gmra.mxu0 %v617
        %v748 = vpop.f32.mrf.mxu0
        %v749 = vadd.f32 0.0, %v748
        %v750 = vpop.f32.mrf.mxu0
        %751 = vmatprep.mubr.f32.mxu0 0.0
        %752 = vmatmul.mubr.f32.gmra.mxu0 %v618
        %v753 = vpop.f32.mrf.mxu0
        %v754 = vadd.f32 0.0, %v753
        %v755 = vpop.f32.mrf.mxu0
        %756 = vmatprep.mubr.f32.mxu0 0.0
        %757 = vmatmul.mubr.f32.gmra.mxu0 %v619
        %v758 = vpop.f32.mrf.mxu0
        %v759 = vadd.f32 0.0, %v758
        %v760 = vpop.f32.mrf.mxu0
        %761 = vmatprep.mubr.f32.mxu0 0.0
        %762 = vmatmul.mubr.f32.gmra.mxu0 %v620
        %v763 = vpop.f32.mrf.mxu0
        %v764 = vadd.f32 0.0, %v763
        %v765 = vpop.f32.mrf.mxu0
        %766 = vmatprep.mubr.f32.mxu0 0.0
        %767 = vmatmul.mubr.f32.gmra.mxu0 %v621
        %v768 = vpop.f32.mrf.mxu0
        %v769 = vadd.f32 0.0, %v768
        %v770 = vpop.f32.mrf.mxu0
        %771 = vmatprep.mubr.f32.mxu0 0.0
        %772 = vmatmul.mubr.f32.gmra.mxu0 %v622
        %v773 = vpop.f32.mrf.mxu0
        %v774 = vadd.f32 0.0, %v773
        %v775 = vpop.f32.mrf.mxu0
        %776 = vmatprep.mubr.f32.mxu0 0.0
        %777 = vmatmul.mubr.f32.gmra.mxu0 %v623
        %v778 = vpop.f32.mrf.mxu0
        %v779 = vadd.f32 0.0, %v778
        %v780 = vpop.f32.mrf.mxu0
        %781 = vmatprep.mubr.f32.mxu0 0.0
        %782 = vmatmul.mubr.f32.gmra.mxu0 %v624
        %v783 = vpop.f32.mrf.mxu0
        %v784 = vadd.f32 0.0, %v783
        %v785 = vpop.f32.mrf.mxu0
        %786 = vdwg.mxu0
        %787 = vmatprep.subr.mxu0 0.0
        %788 = vmatpush1.msra.mxu0 %v576
        %789 = vmatprep.subr.mxu0 0.0
        %790 = vmatpush1.msra.mxu0 %v575
        %791 = vmatprep.subr.mxu0 0.0
        %792 = vmatpush1.msra.mxu0 %v574
        %793 = vmatprep.subr.mxu0 0.0
        %794 = vmatpush1.msra.mxu0 %v573
        %795 = vmatprep.subr.mxu0 0.0
        %796 = vmatpush1.msra.mxu0 %v572
        %797 = vmatprep.subr.mxu0 0.0
        %798 = vmatpush1.msra.mxu0 %v571
        %799 = vmatprep.subr.mxu0 0.0
        %800 = vmatpush1.msra.mxu0 %v570
        %801 = vmatprep.subr.mxu0 0.0
        %802 = vmatpush1.msra.mxu0 %v569
        %803 = vmatprep.subr.mxu0 0.0
        %804 = vmatpush1.msra.mxu0 %v568
        %805 = vmatprep.subr.mxu0 0.0
        %806 = vmatpush1.msra.mxu0 %v567
        %807 = vmatprep.subr.mxu0 0.0
        %808 = vmatpush1.msra.mxu0 %v566
        %809 = vmatprep.subr.mxu0 0.0
        %810 = vmatpush1.msra.mxu0 %v565
        %811 = vmatprep.subr.mxu0 0.0
        %812 = vmatpush1.msra.mxu0 %v564
        %813 = vmatprep.subr.mxu0 0.0
        %814 = vmatpush1.msra.mxu0 %v563
        %815 = vmatprep.subr.mxu0 0.0
        %816 = vmatpush1.msra.mxu0 %v562
        %817 = vmatprep.subr.mxu0 0.0
        %818 = vmatpush1.msra.mxu0 %v561
        %819 = vmatprep.subr.mxu0 0.0
        %820 = vmatpush2.msra.mxu0 0.0
        %821 = vmatprep.subr.mxu0 0.0
        %822 = vmatpush2.msra.mxu0 0.0
        %823 = vmatprep.subr.mxu0 0.0
        %824 = vmatpush2.msra.mxu0 0.0
        %825 = vmatprep.subr.mxu0 0.0
        %826 = vmatpush2.msra.mxu0 0.0
        %827 = vmatprep.subr.mxu0 0.0
        %828 = vmatpush2.msra.mxu0 0.0
        %829 = vmatprep.subr.mxu0 0.0
        %830 = vmatpush2.msra.mxu0 0.0
        %831 = vmatprep.subr.mxu0 0.0
        %832 = vmatpush2.msra.mxu0 0.0
        %833 = vmatprep.subr.mxu0 0.0
        %834 = vmatpush2.msra.mxu0 0.0
        %835 = vmatprep.subr.mxu0 0.0
        %836 = vmatpush2.msra.mxu0 0.0
        %837 = vmatprep.subr.mxu0 0.0
        %838 = vmatpush2.msra.mxu0 0.0
        %839 = vmatprep.subr.mxu0 0.0
        %840 = vmatpush2.msra.mxu0 0.0
        %841 = vmatprep.subr.mxu0 0.0
        %842 = vmatpush2.msra.mxu0 0.0
        %843 = vmatprep.subr.mxu0 0.0
        %844 = vmatpush2.msra.mxu0 0.0
        %845 = vmatprep.subr.mxu0 0.0
        %846 = vmatpush2.msra.mxu0 0.0
        %847 = vmatprep.subr.mxu0 0.0
        %848 = vmatpush2.msra.mxu0 0.0
        %849 = vmatprep.subr.mxu0 0.0
        %850 = vmatpush2.msra.mxu0 0.0
        %851 = vmatprep.mubr.f32.mxu0 0.0
        %852 = vmatmul.mubr.f32.gmra.mxu0 %v626
        %v853 = vpop.f32.mrf.mxu0
        %v854 = vadd.f32 0.0, %v853
        %v855 = vpop.f32.mrf.mxu0
        %856 = vmatprep.mubr.f32.mxu0 0.0
        %857 = vmatmul.mubr.f32.gmra.mxu0 %v627
        %v858 = vpop.f32.mrf.mxu0
        %v859 = vadd.f32 0.0, %v858
        %v860 = vpop.f32.mrf.mxu0
        %861 = vmatprep.mubr.f32.mxu0 0.0
        %862 = vmatmul.mubr.f32.gmra.mxu0 %v628
        %v863 = vpop.f32.mrf.mxu0
        %v864 = vadd.f32 0.0, %v863
        %v865 = vpop.f32.mrf.mxu0
        %866 = vmatprep.mubr.f32.mxu0 0.0
        %867 = vmatmul.mubr.f32.gmra.mxu0 %v629
        %v868 = vpop.f32.mrf.mxu0
        %v869 = vadd.f32 0.0, %v868
        %v870 = vpop.f32.mrf.mxu0
        %871 = vmatprep.mubr.f32.mxu0 0.0
        %872 = vmatmul.mubr.f32.gmra.mxu0 %v630
        %v873 = vpop.f32.mrf.mxu0
        %v874 = vadd.f32 0.0, %v873
        %v875 = vpop.f32.mrf.mxu0
        %876 = vmatprep.mubr.f32.mxu0 0.0
        %877 = vmatmul.mubr.f32.gmra.mxu0 %v631
        %v878 = vpop.f32.mrf.mxu0
        %v879 = vadd.f32 0.0, %v878
        %v880 = vpop.f32.mrf.mxu0
        %881 = vmatprep.mubr.f32.mxu0 0.0
        %882 = vmatmul.mubr.f32.gmra.mxu0 %v632
        %v883 = vpop.f32.mrf.mxu0
        %v884 = vadd.f32 0.0, %v883
        %v885 = vpop.f32.mrf.mxu0
        %886 = vmatprep.mubr.f32.mxu0 0.0
        %887 = vmatmul.mubr.f32.gmra.mxu0 %v633
        %v888 = vpop.f32.mrf.mxu0
        %v889 = vadd.f32 0.0, %v888
        %v890 = vpop.f32.mrf.mxu0
        %891 = vmatprep.mubr.f32.mxu0 0.0
        %892 = vmatmul.mubr.f32.gmra.mxu0 %v634
        %v893 = vpop.f32.mrf.mxu0
        %v894 = vadd.f32 0.0, %v893
        %v895 = vpop.f32.mrf.mxu0
        %896 = vmatprep.mubr.f32.mxu0 0.0
        %897 = vmatmul.mubr.f32.gmra.mxu0 %v635
        %v898 = vpop.f32.mrf.mxu0
        %v899 = vadd.f32 0.0, %v898
        %v900 = vpop.f32.mrf.mxu0
        %901 = vmatprep.mubr.f32.mxu0 0.0
        %902 = vmatmul.mubr.f32.gmra.mxu0 %v636
        %v903 = vpop.f32.mrf.mxu0
        %v904 = vadd.f32 0.0, %v903
        %v905 = vpop.f32.mrf.mxu0
        %906 = vmatprep.mubr.f32.mxu0 0.0
        %907 = vmatmul.mubr.f32.gmra.mxu0 %v637
        %v908 = vpop.f32.mrf.mxu0
        %v909 = vadd.f32 0.0, %v908
        %v910 = vpop.f32.mrf.mxu0
        %911 = vmatprep.mubr.f32.mxu0 0.0
        %912 = vmatmul.mubr.f32.gmra.mxu0 %v638
        %v913 = vpop.f32.mrf.mxu0
        %v914 = vadd.f32 0.0, %v913
        %v915 = vpop.f32.mrf.mxu0
        %916 = vmatprep.mubr.f32.mxu0 0.0
        %917 = vmatmul.mubr.f32.gmra.mxu0 %v639
        %v918 = vpop.f32.mrf.mxu0
        %v919 = vadd.f32 0.0, %v918
        %v920 = vpop.f32.mrf.mxu0
        %921 = vmatprep.mubr.f32.mxu0 0.0
        %922 = vmatmul.mubr.f32.gmra.mxu0 %v640
        %v923 = vpop.f32.mrf.mxu0
        %v924 = vadd.f32 0.0, %v923
        %v925 = vpop.f32.mrf.mxu0
        %926 = vmatprep.mubr.f32.mxu0 0.0
        %927 = vmatmul.mubr.f32.gmra.mxu0 %v641
        %v928 = vpop.f32.mrf.mxu0
        %v929 = vadd.f32 0.0, %v928
        %v930 = vpop.f32.mrf.mxu0
        %931 = vdwg.mxu0
        %v932 = vsub.f32 %v709, %v854
        %v933 = vsub.f32 %v714, %v859
        %v934 = vsub.f32 %v719, %v864
        %v935 = vsub.f32 %v724, %v869
        %v936 = vsub.f32 %v729, %v874
        %v937 = vsub.f32 %v734, %v879
        %v938 = vsub.f32 %v739, %v884
        %v939 = vsub.f32 %v744, %v889
        %v940 = vsub.f32 %v749, %v894
        %v941 = vsub.f32 %v754, %v899
        %v942 = vsub.f32 %v759, %v904
        %v943 = vsub.f32 %v764, %v909
        %v944 = vsub.f32 %v769, %v914
        %v945 = vsub.f32 %v774, %v919
        %v946 = vsub.f32 %v779, %v924
        %v947 = vsub.f32 %v784, %v929
        %948 = vmatprep.subr.mxu0 0.0
        %949 = vmatpush1.msra.mxu0 %v560
        %950 = vmatprep.subr.mxu0 0.0
        %951 = vmatpush1.msra.mxu0 %v559
        %952 = vmatprep.subr.mxu0 0.0
        %953 = vmatpush1.msra.mxu0 %v558
        %954 = vmatprep.subr.mxu0 0.0
        %955 = vmatpush1.msra.mxu0 %v557
        %956 = vmatprep.subr.mxu0 0.0
        %957 = vmatpush1.msra.mxu0 %v556
        %958 = vmatprep.subr.mxu0 0.0
        %959 = vmatpush1.msra.mxu0 %v555
        %960 = vmatprep.subr.mxu0 0.0
        %961 = vmatpush1.msra.mxu0 %v554
        %962 = vmatprep.subr.mxu0 0.0
        %963 = vmatpush1.msra.mxu0 %v553
        %964 = vmatprep.subr.mxu0 0.0
        %965 = vmatpush1.msra.mxu0 %v552
        %966 = vmatprep.subr.mxu0 0.0
        %967 = vmatpush1.msra.mxu0 %v551
        %968 = vmatprep.subr.mxu0 0.0
        %969 = vmatpush1.msra.mxu0 %v550
        %970 = vmatprep.subr.mxu0 0.0
        %971 = vmatpush1.msra.mxu0 %v549
        %972 = vmatprep.subr.mxu0 0.0
        %973 = vmatpush1.msra.mxu0 %v548
        %974 = vmatprep.subr.mxu0 0.0
        %975 = vmatpush1.msra.mxu0 %v547
        %976 = vmatprep.subr.mxu0 0.0
        %977 = vmatpush1.msra.mxu0 %v546
        %978 = vmatprep.subr.mxu0 0.0
        %979 = vmatpush1.msra.mxu0 %v545
        %980 = vmatprep.subr.mxu0 0.0
        %981 = vmatpush2.msra.mxu0 0.0
        %982 = vmatprep.subr.mxu0 0.0
        %983 = vmatpush2.msra.mxu0 0.0
        %984 = vmatprep.subr.mxu0 0.0
        %985 = vmatpush2.msra.mxu0 0.0
        %986 = vmatprep.subr.mxu0 0.0
        %987 = vmatpush2.msra.mxu0 0.0
        %988 = vmatprep.subr.mxu0 0.0
        %989 = vmatpush2.msra.mxu0 0.0
        %990 = vmatprep.subr.mxu0 0.0
        %991 = vmatpush2.msra.mxu0 0.0
        %992 = vmatprep.subr.mxu0 0.0
        %993 = vmatpush2.msra.mxu0 0.0
        %994 = vmatprep.subr.mxu0 0.0
        %995 = vmatpush2.msra.mxu0 0.0
        %996 = vmatprep.subr.mxu0 0.0
        %997 = vmatpush2.msra.mxu0 0.0
        %998 = vmatprep.subr.mxu0 0.0
        %999 = vmatpush2.msra.mxu0 0.0
        %1000 = vmatprep.subr.mxu0 0.0
        %1001 = vmatpush2.msra.mxu0 0.0
        %1002 = vmatprep.subr.mxu0 0.0
        %1003 = vmatpush2.msra.mxu0 0.0
        %1004 = vmatprep.subr.mxu0 0.0
        %1005 = vmatpush2.msra.mxu0 0.0
        %1006 = vmatprep.subr.mxu0 0.0
        %1007 = vmatpush2.msra.mxu0 0.0
        %1008 = vmatprep.subr.mxu0 0.0
        %1009 = vmatpush2.msra.mxu0 0.0
        %1010 = vmatprep.subr.mxu0 0.0
        %1011 = vmatpush2.msra.mxu0 0.0
        %1012 = vmatprep.mubr.f32.mxu0 0.0
        %1013 = vmatmul.mubr.f32.gmra.mxu0 %v626
        %v1014 = vpop.f32.mrf.mxu0
        %v1015 = vadd.f32 0.0, %v1014
        %v1016 = vpop.f32.mrf.mxu0
        %1017 = vmatprep.mubr.f32.mxu0 0.0
        %1018 = vmatmul.mubr.f32.gmra.mxu0 %v627
        %v1019 = vpop.f32.mrf.mxu0
        %v1020 = vadd.f32 0.0, %v1019
        %v1021 = vpop.f32.mrf.mxu0
        %1022 = vmatprep.mubr.f32.mxu0 0.0
        %1023 = vmatmul.mubr.f32.gmra.mxu0 %v628
        %v1024 = vpop.f32.mrf.mxu0
        %v1025 = vadd.f32 0.0, %v1024
        %v1026 = vpop.f32.mrf.mxu0
        %1027 = vmatprep.mubr.f32.mxu0 0.0
        %1028 = vmatmul.mubr.f32.gmra.mxu0 %v629
        %v1029 = vpop.f32.mrf.mxu0
        %v1030 = vadd.f32 0.0, %v1029
        %v1031 = vpop.f32.mrf.mxu0
        %1032 = vmatprep.mubr.f32.mxu0 0.0
        %1033 = vmatmul.mubr.f32.gmra.mxu0 %v630
        %v1034 = vpop.f32.mrf.mxu0
        %v1035 = vadd.f32 0.0, %v1034
        %v1036 = vpop.f32.mrf.mxu0
        %1037 = vmatprep.mubr.f32.mxu0 0.0
        %1038 = vmatmul.mubr.f32.gmra.mxu0 %v631
        %v1039 = vpop.f32.mrf.mxu0
        %v1040 = vadd.f32 0.0, %v1039
        %v1041 = vpop.f32.mrf.mxu0
        %1042 = vmatprep.mubr.f32.mxu0 0.0
        %1043 = vmatmul.mubr.f32.gmra.mxu0 %v632
        %v1044 = vpop.f32.mrf.mxu0
        %v1045 = vadd.f32 0.0, %v1044
        %v1046 = vpop.f32.mrf.mxu0
        %1047 = vmatprep.mubr.f32.mxu0 0.0
        %1048 = vmatmul.mubr.f32.gmra.mxu0 %v633
        %v1049 = vpop.f32.mrf.mxu0
        %v1050 = vadd.f32 0.0, %v1049
        %v1051 = vpop.f32.mrf.mxu0
        %1052 = vmatprep.mubr.f32.mxu0 0.0
        %1053 = vmatmul.mubr.f32.gmra.mxu0 %v634
        %v1054 = vpop.f32.mrf.mxu0
        %v1055 = vadd.f32 0.0, %v1054
        %v1056 = vpop.f32.mrf.mxu0
        %1057 = vmatprep.mubr.f32.mxu0 0.0
        %1058 = vmatmul.mubr.f32.gmra.mxu0 %v635
        %v1059 = vpop.f32.mrf.mxu0
        %v1060 = vadd.f32 0.0, %v1059
        %v1061 = vpop.f32.mrf.mxu0
        %1062 = vmatprep.mubr.f32.mxu0 0.0
        %1063 = vmatmul.mubr.f32.gmra.mxu0 %v636
        %v1064 = vpop.f32.mrf.mxu0
        %v1065 = vadd.f32 0.0, %v1064
        %v1066 = vpop.f32.mrf.mxu0
        %1067 = vmatprep.mubr.f32.mxu0 0.0
        %1068 = vmatmul.mubr.f32.gmra.mxu0 %v637
        %v1069 = vpop.f32.mrf.mxu0
        %v1070 = vadd.f32 0.0, %v1069
        %v1071 = vpop.f32.mrf.mxu0
        %1072 = vmatprep.mubr.f32.mxu0 0.0
        %1073 = vmatmul.mubr.f32.gmra.mxu0 %v638
        %v1074 = vpop.f32.mrf.mxu0
        %v1075 = vadd.f32 0.0, %v1074
        %v1076 = vpop.f32.mrf.mxu0
        %1077 = vmatprep.mubr.f32.mxu0 0.0
        %1078 = vmatmul.mubr.f32.gmra.mxu0 %v639
        %v1079 = vpop.f32.mrf.mxu0
        %v1080 = vadd.f32 0.0, %v1079
        %v1081 = vpop.f32.mrf.mxu0
        %1082 = vmatprep.mubr.f32.mxu0 0.0
        %1083 = vmatmul.mubr.f32.gmra.mxu0 %v640
        %v1084 = vpop.f32.mrf.mxu0
        %v1085 = vadd.f32 0.0, %v1084
        %v1086 = vpop.f32.mrf.mxu0
        %1087 = vmatprep.mubr.f32.mxu0 0.0
        %1088 = vmatmul.mubr.f32.gmra.mxu0 %v641
        %v1089 = vpop.f32.mrf.mxu0
        %v1090 = vadd.f32 0.0, %v1089
        %v1091 = vpop.f32.mrf.mxu0
        %1092 = vdwg.mxu0
        %1093 = vmatprep.subr.mxu0 0.0
        %1094 = vmatpush1.msra.mxu0 %v576
        %1095 = vmatprep.subr.mxu0 0.0
        %1096 = vmatpush1.msra.mxu0 %v575
        %1097 = vmatprep.subr.mxu0 0.0
        %1098 = vmatpush1.msra.mxu0 %v574
        %1099 = vmatprep.subr.mxu0 0.0
        %1100 = vmatpush1.msra.mxu0 %v573
        %1101 = vmatprep.subr.mxu0 0.0
        %1102 = vmatpush1.msra.mxu0 %v572
        %1103 = vmatprep.subr.mxu0 0.0
        %1104 = vmatpush1.msra.mxu0 %v571
        %1105 = vmatprep.subr.mxu0 0.0
        %1106 = vmatpush1.msra.mxu0 %v570
        %1107 = vmatprep.subr.mxu0 0.0
        %1108 = vmatpush1.msra.mxu0 %v569
        %1109 = vmatprep.subr.mxu0 0.0
        %1110 = vmatpush1.msra.mxu0 %v568
        %1111 = vmatprep.subr.mxu0 0.0
        %1112 = vmatpush1.msra.mxu0 %v567
        %1113 = vmatprep.subr.mxu0 0.0
        %1114 = vmatpush1.msra.mxu0 %v566
        %1115 = vmatprep.subr.mxu0 0.0
        %1116 = vmatpush1.msra.mxu0 %v565
        %1117 = vmatprep.subr.mxu0 0.0
        %1118 = vmatpush1.msra.mxu0 %v564
        %1119 = vmatprep.subr.mxu0 0.0
        %1120 = vmatpush1.msra.mxu0 %v563
        %1121 = vmatprep.subr.mxu0 0.0
        %1122 = vmatpush1.msra.mxu0 %v562
        %1123 = vmatprep.subr.mxu0 0.0
        %1124 = vmatpush1.msra.mxu0 %v561
        %1125 = vmatprep.subr.mxu0 0.0
        %1126 = vmatpush2.msra.mxu0 0.0
        %1127 = vmatprep.subr.mxu0 0.0
        %1128 = vmatpush2.msra.mxu0 0.0
        %1129 = vmatprep.subr.mxu0 0.0
        %1130 = vmatpush2.msra.mxu0 0.0
        %1131 = vmatprep.subr.mxu0 0.0
        %1132 = vmatpush2.msra.mxu0 0.0
        %1133 = vmatprep.subr.mxu0 0.0
        %1134 = vmatpush2.msra.mxu0 0.0
        %1135 = vmatprep.subr.mxu0 0.0
        %1136 = vmatpush2.msra.mxu0 0.0
        %1137 = vmatprep.subr.mxu0 0.0
        %1138 = vmatpush2.msra.mxu0 0.0
        %1139 = vmatprep.subr.mxu0 0.0
        %1140 = vmatpush2.msra.mxu0 0.0
        %1141 = vmatprep.subr.mxu0 0.0
        %1142 = vmatpush2.msra.mxu0 0.0
        %1143 = vmatprep.subr.mxu0 0.0
        %1144 = vmatpush2.msra.mxu0 0.0
        %1145 = vmatprep.subr.mxu0 0.0
        %1146 = vmatpush2.msra.mxu0 0.0
        %1147 = vmatprep.subr.mxu0 0.0
        %1148 = vmatpush2.msra.mxu0 0.0
        %1149 = vmatprep.subr.mxu0 0.0
        %1150 = vmatpush2.msra.mxu0 0.0
        %1151 = vmatprep.subr.mxu0 0.0
        %1152 = vmatpush2.msra.mxu0 0.0
        %1153 = vmatprep.subr.mxu0 0.0
        %1154 = vmatpush2.msra.mxu0 0.0
        %1155 = vmatprep.subr.mxu0 0.0
        %1156 = vmatpush2.msra.mxu0 0.0
        %1157 = vmatprep.mubr.f32.mxu0 0.0
        %1158 = vmatmul.mubr.f32.gmra.mxu0 %v609
        %v1159 = vpop.f32.mrf.mxu0
        %v1160 = vadd.f32 %v1015, %v1159
        %v1161 = vpop.f32.mrf.mxu0
        %1162 = vmatprep.mubr.f32.mxu0 0.0
        %1163 = vmatmul.mubr.f32.gmra.mxu0 %v610
        %v1164 = vpop.f32.mrf.mxu0
        %v1165 = vadd.f32 %v1020, %v1164
        %v1166 = vpop.f32.mrf.mxu0
        %1167 = vmatprep.mubr.f32.mxu0 0.0
        %1168 = vmatmul.mubr.f32.gmra.mxu0 %v611
        %v1169 = vpop.f32.mrf.mxu0
        %v1170 = vadd.f32 %v1025, %v1169
        %v1171 = vpop.f32.mrf.mxu0
        %1172 = vmatprep.mubr.f32.mxu0 0.0
        %1173 = vmatmul.mubr.f32.gmra.mxu0 %v612
        %v1174 = vpop.f32.mrf.mxu0
        %v1175 = vadd.f32 %v1030, %v1174
        %v1176 = vpop.f32.mrf.mxu0
        %1177 = vmatprep.mubr.f32.mxu0 0.0
        %1178 = vmatmul.mubr.f32.gmra.mxu0 %v613
        %v1179 = vpop.f32.mrf.mxu0
        %v1180 = vadd.f32 %v1035, %v1179
        %v1181 = vpop.f32.mrf.mxu0
        %1182 = vmatprep.mubr.f32.mxu0 0.0
        %1183 = vmatmul.mubr.f32.gmra.mxu0 %v614
        %v1184 = vpop.f32.mrf.mxu0
        %v1185 = vadd.f32 %v1040, %v1184
        %v1186 = vpop.f32.mrf.mxu0
        %1187 = vmatprep.mubr.f32.mxu0 0.0
        %1188 = vmatmul.mubr.f32.gmra.mxu0 %v615
        %v1189 = vpop.f32.mrf.mxu0
        %v1190 = vadd.f32 %v1045, %v1189
        %v1191 = vpop.f32.mrf.mxu0
        %1192 = vmatprep.mubr.f32.mxu0 0.0
        %1193 = vmatmul.mubr.f32.gmra.mxu0 %v616
        %v1194 = vpop.f32.mrf.mxu0
        %v1195 = vadd.f32 %v1050, %v1194
        %v1196 = vpop.f32.mrf.mxu0
        %1197 = vmatprep.mubr.f32.mxu0 0.0
        %1198 = vmatmul.mubr.f32.gmra.mxu0 %v617
        %v1199 = vpop.f32.mrf.mxu0
        %v1200 = vadd.f32 %v1055, %v1199
        %v1201 = vpop.f32.mrf.mxu0
        %1202 = vmatprep.mubr.f32.mxu0 0.0
        %1203 = vmatmul.mubr.f32.gmra.mxu0 %v618
        %v1204 = vpop.f32.mrf.mxu0
        %v1205 = vadd.f32 %v1060, %v1204
        %v1206 = vpop.f32.mrf.mxu0
        %1207 = vmatprep.mubr.f32.mxu0 0.0
        %1208 = vmatmul.mubr.f32.gmra.mxu0 %v619
        %v1209 = vpop.f32.mrf.mxu0
        %v1210 = vadd.f32 %v1065, %v1209
        %v1211 = vpop.f32.mrf.mxu0
        %1212 = vmatprep.mubr.f32.mxu0 0.0
        %1213 = vmatmul.mubr.f32.gmra.mxu0 %v620
        %v1214 = vpop.f32.mrf.mxu0
        %v1215 = vadd.f32 %v1070, %v1214
        %v1216 = vpop.f32.mrf.mxu0
        %1217 = vmatprep.mubr.f32.mxu0 0.0
        %1218 = vmatmul.mubr.f32.gmra.mxu0 %v621
        %v1219 = vpop.f32.mrf.mxu0
        %v1220 = vadd.f32 %v1075, %v1219
        %v1221 = vpop.f32.mrf.mxu0
        %1222 = vmatprep.mubr.f32.mxu0 0.0
        %1223 = vmatmul.mubr.f32.gmra.mxu0 %v622
        %v1224 = vpop.f32.mrf.mxu0
        %v1225 = vadd.f32 %v1080, %v1224
        %v1226 = vpop.f32.mrf.mxu0
        %1227 = vmatprep.mubr.f32.mxu0 0.0
        %1228 = vmatmul.mubr.f32.gmra.mxu0 %v623
        %v1229 = vpop.f32.mrf.mxu0
        %v1230 = vadd.f32 %v1085, %v1229
        %v1231 = vpop.f32.mrf.mxu0
        %1232 = vmatprep.mubr.f32.mxu0 0.0
        %1233 = vmatmul.mubr.f32.gmra.mxu0 %v624
        %v1234 = vpop.f32.mrf.mxu0
        %v1235 = vadd.f32 %v1090, %v1234
        %v1236 = vpop.f32.mrf.mxu0
        %1237 = vdwg.mxu0
        %1238 = vmatprep.subr.mxu0 0.0
        %1239 = vmatpush1.xpose.msra.mxu0 %v641
        %1240 = vmatprep.subr.mxu0 0.0
        %1241 = vmatpush1.xpose.msra.mxu0 %v640
        %1242 = vmatprep.subr.mxu0 0.0
        %1243 = vmatpush1.xpose.msra.mxu0 %v639
        %1244 = vmatprep.subr.mxu0 0.0
        %1245 = vmatpush1.xpose.msra.mxu0 %v638
        %1246 = vmatprep.subr.mxu0 0.0
        %1247 = vmatpush1.xpose.msra.mxu0 %v637
        %1248 = vmatprep.subr.mxu0 0.0
        %1249 = vmatpush1.xpose.msra.mxu0 %v636
        %1250 = vmatprep.subr.mxu0 0.0
        %1251 = vmatpush1.xpose.msra.mxu0 %v635
        %1252 = vmatprep.subr.mxu0 0.0
        %1253 = vmatpush1.xpose.msra.mxu0 %v634
        %1254 = vmatprep.subr.mxu0 0.0
        %1255 = vmatpush1.xpose.msra.mxu0 %v633
        %1256 = vmatprep.subr.mxu0 0.0
        %1257 = vmatpush1.xpose.msra.mxu0 %v632
        %1258 = vmatprep.subr.mxu0 0.0
        %1259 = vmatpush1.xpose.msra.mxu0 %v631
        %1260 = vmatprep.subr.mxu0 0.0
        %1261 = vmatpush1.xpose.msra.mxu0 %v630
        %1262 = vmatprep.subr.mxu0 0.0
        %1263 = vmatpush1.xpose.msra.mxu0 %v629
        %1264 = vmatprep.subr.mxu0 0.0
        %1265 = vmatpush1.xpose.msra.mxu0 %v628
        %1266 = vmatprep.subr.mxu0 0.0
        %1267 = vmatpush1.xpose.msra.mxu0 %v627
        %1268 = vmatprep.subr.mxu0 0.0
        %1269 = vmatpush1.xpose.msra.mxu0 %v626
        %1270 = vmatprep.subr.mxu0 0.0
        %1271 = vmatpush2.xpose.msra.mxu0 0.0
        %1272 = vmatprep.subr.mxu0 0.0
        %1273 = vmatpush2.xpose.msra.mxu0 0.0
        %1274 = vmatprep.subr.mxu0 0.0
        %1275 = vmatpush2.xpose.msra.mxu0 0.0
        %1276 = vmatprep.subr.mxu0 0.0
        %1277 = vmatpush2.xpose.msra.mxu0 0.0
        %1278 = vmatprep.subr.mxu0 0.0
        %1279 = vmatpush2.xpose.msra.mxu0 0.0
        %1280 = vmatprep.subr.mxu0 0.0
        %1281 = vmatpush2.xpose.msra.mxu0 0.0
        %1282 = vmatprep.subr.mxu0 0.0
        %1283 = vmatpush2.xpose.msra.mxu0 0.0
        %1284 = vmatprep.subr.mxu0 0.0
        %1285 = vmatpush2.xpose.msra.mxu0 0.0
        %1286 = vmatprep.subr.mxu0 0.0
        %1287 = vmatpush2.xpose.msra.mxu0 0.0
        %1288 = vmatprep.subr.mxu0 0.0
        %1289 = vmatpush2.xpose.msra.mxu0 0.0
        %1290 = vmatprep.subr.mxu0 0.0
        %1291 = vmatpush2.xpose.msra.mxu0 0.0
        %1292 = vmatprep.subr.mxu0 0.0
        %1293 = vmatpush2.xpose.msra.mxu0 0.0
        %1294 = vmatprep.subr.mxu0 0.0
        %1295 = vmatpush2.xpose.msra.mxu0 0.0
        %1296 = vmatprep.subr.mxu0 0.0
        %1297 = vmatpush2.xpose.msra.mxu0 0.0
        %1298 = vmatprep.subr.mxu0 0.0
        %1299 = vmatpush2.xpose.msra.mxu0 0.0
        %1300 = vmatprep.subr.mxu0 0.0
        %1301 = vmatpush2.xpose.msra.mxu0 0.0
        %1302 = vmatprep.mubr.f32.mxu0 0.0
        %1303 = vmatmul.mubr.f32.gmra.mxu0 %v1160
        %v1304 = vpop.f32.mrf.mxu0
        %v1305 = vadd.f32 0.0, %v1304
        %v1306 = vpop.f32.mrf.mxu0
        %1307 = vmatprep.mubr.f32.mxu0 0.0
        %1308 = vmatmul.mubr.f32.gmra.mxu0 %v1165
        %v1309 = vpop.f32.mrf.mxu0
        %v1310 = vadd.f32 0.0, %v1309
        %v1311 = vpop.f32.mrf.mxu0
        %1312 = vmatprep.mubr.f32.mxu0 0.0
        %1313 = vmatmul.mubr.f32.gmra.mxu0 %v1170
        %v1314 = vpop.f32.mrf.mxu0
        %v1315 = vadd.f32 0.0, %v1314
        %v1316 = vpop.f32.mrf.mxu0
        %1317 = vmatprep.mubr.f32.mxu0 0.0
        %1318 = vmatmul.mubr.f32.gmra.mxu0 %v1175
        %v1319 = vpop.f32.mrf.mxu0
        %v1320 = vadd.f32 0.0, %v1319
        %v1321 = vpop.f32.mrf.mxu0
        %1322 = vmatprep.mubr.f32.mxu0 0.0
        %1323 = vmatmul.mubr.f32.gmra.mxu0 %v1180
        %v1324 = vpop.f32.mrf.mxu0
        %v1325 = vadd.f32 0.0, %v1324
        %v1326 = vpop.f32.mrf.mxu0
        %1327 = vmatprep.mubr.f32.mxu0 0.0
        %1328 = vmatmul.mubr.f32.gmra.mxu0 %v1185
        %v1329 = vpop.f32.mrf.mxu0
        %v1330 = vadd.f32 0.0, %v1329
        %v1331 = vpop.f32.mrf.mxu0
        %1332 = vmatprep.mubr.f32.mxu0 0.0
        %1333 = vmatmul.mubr.f32.gmra.mxu0 %v1190
        %v1334 = vpop.f32.mrf.mxu0
        %v1335 = vadd.f32 0.0, %v1334
        %v1336 = vpop.f32.mrf.mxu0
        %1337 = vmatprep.mubr.f32.mxu0 0.0
        %1338 = vmatmul.mubr.f32.gmra.mxu0 %v1195
        %v1339 = vpop.f32.mrf.mxu0
        %v1340 = vadd.f32 0.0, %v1339
        %v1341 = vpop.f32.mrf.mxu0
        %1342 = vmatprep.mubr.f32.mxu0 0.0
        %1343 = vmatmul.mubr.f32.gmra.mxu0 %v1200
        %v1344 = vpop.f32.mrf.mxu0
        %v1345 = vadd.f32 0.0, %v1344
        %v1346 = vpop.f32.mrf.mxu0
        %1347 = vmatprep.mubr.f32.mxu0 0.0
        %1348 = vmatmul.mubr.f32.gmra.mxu0 %v1205
        %v1349 = vpop.f32.mrf.mxu0
        %v1350 = vadd.f32 0.0, %v1349
        %v1351 = vpop.f32.mrf.mxu0
        %1352 = vmatprep.mubr.f32.mxu0 0.0
        %1353 = vmatmul.mubr.f32.gmra.mxu0 %v1210
        %v1354 = vpop.f32.mrf.mxu0
        %v1355 = vadd.f32 0.0, %v1354
        %v1356 = vpop.f32.mrf.mxu0
        %1357 = vmatprep.mubr.f32.mxu0 0.0
        %1358 = vmatmul.mubr.f32.gmra.mxu0 %v1215
        %v1359 = vpop.f32.mrf.mxu0
        %v1360 = vadd.f32 0.0, %v1359
        %v1361 = vpop.f32.mrf.mxu0
        %1362 = vmatprep.mubr.f32.mxu0 0.0
        %1363 = vmatmul.mubr.f32.gmra.mxu0 %v1220
        %v1364 = vpop.f32.mrf.mxu0
        %v1365 = vadd.f32 0.0, %v1364
        %v1366 = vpop.f32.mrf.mxu0
        %1367 = vmatprep.mubr.f32.mxu0 0.0
        %1368 = vmatmul.mubr.f32.gmra.mxu0 %v1225
        %v1369 = vpop.f32.mrf.mxu0
        %v1370 = vadd.f32 0.0, %v1369
        %v1371 = vpop.f32.mrf.mxu0
        %1372 = vmatprep.mubr.f32.mxu0 0.0
        %1373 = vmatmul.mubr.f32.gmra.mxu0 %v1230
        %v1374 = vpop.f32.mrf.mxu0
        %v1375 = vadd.f32 0.0, %v1374
        %v1376 = vpop.f32.mrf.mxu0
        %1377 = vmatprep.mubr.f32.mxu0 0.0
        %1378 = vmatmul.mubr.f32.gmra.mxu0 %v1235
        %v1379 = vpop.f32.mrf.mxu0
        %v1380 = vadd.f32 0.0, %v1379
        %v1381 = vpop.f32.mrf.mxu0
        %1382 = vdwg.mxu0
        %1383 = vmatprep.subr.mxu0 0.0
        %1384 = vmatpush1.xpose.msra.mxu0 %v624
        %1385 = vmatprep.subr.mxu0 0.0
        %1386 = vmatpush1.xpose.msra.mxu0 %v623
        %1387 = vmatprep.subr.mxu0 0.0
        %1388 = vmatpush1.xpose.msra.mxu0 %v622
        %1389 = vmatprep.subr.mxu0 0.0
        %1390 = vmatpush1.xpose.msra.mxu0 %v621
        %1391 = vmatprep.subr.mxu0 0.0
        %1392 = vmatpush1.xpose.msra.mxu0 %v620
        %1393 = vmatprep.subr.mxu0 0.0
        %1394 = vmatpush1.xpose.msra.mxu0 %v619
        %1395 = vmatprep.subr.mxu0 0.0
        %1396 = vmatpush1.xpose.msra.mxu0 %v618
        %1397 = vmatprep.subr.mxu0 0.0
        %1398 = vmatpush1.xpose.msra.mxu0 %v617
        %1399 = vmatprep.subr.mxu0 0.0
        %1400 = vmatpush1.xpose.msra.mxu0 %v616
        %1401 = vmatprep.subr.mxu0 0.0
        %1402 = vmatpush1.xpose.msra.mxu0 %v615
        %1403 = vmatprep.subr.mxu0 0.0
        %1404 = vmatpush1.xpose.msra.mxu0 %v614
        %1405 = vmatprep.subr.mxu0 0.0
        %1406 = vmatpush1.xpose.msra.mxu0 %v613
        %1407 = vmatprep.subr.mxu0 0.0
        %1408 = vmatpush1.xpose.msra.mxu0 %v612
        %1409 = vmatprep.subr.mxu0 0.0
        %1410 = vmatpush1.xpose.msra.mxu0 %v611
        %1411 = vmatprep.subr.mxu0 0.0
        %1412 = vmatpush1.xpose.msra.mxu0 %v610
        %1413 = vmatprep.subr.mxu0 0.0
        %1414 = vmatpush1.xpose.msra.mxu0 %v609
        %1415 = vmatprep.subr.mxu0 0.0
        %1416 = vmatpush2.xpose.msra.mxu0 0.0
        %1417 = vmatprep.subr.mxu0 0.0
        %1418 = vmatpush2.xpose.msra.mxu0 0.0
        %1419 = vmatprep.subr.mxu0 0.0
        %1420 = vmatpush2.xpose.msra.mxu0 0.0
        %1421 = vmatprep.subr.mxu0 0.0
        %1422 = vmatpush2.xpose.msra.mxu0 0.0
        %1423 = vmatprep.subr.mxu0 0.0
        %1424 = vmatpush2.xpose.msra.mxu0 0.0
        %1425 = vmatprep.subr.mxu0 0.0
        %1426 = vmatpush2.xpose.msra.mxu0 0.0
        %1427 = vmatprep.subr.mxu0 0.0
        %1428 = vmatpush2.xpose.msra.mxu0 0.0
        %1429 = vmatprep.subr.mxu0 0.0
        %1430 = vmatpush2.xpose.msra.mxu0 0.0
        %1431 = vmatprep.subr.mxu0 0.0
        %1432 = vmatpush2.xpose.msra.mxu0 0.0
        %1433 = vmatprep.subr.mxu0 0.0
        %1434 = vmatpush2.xpose.msra.mxu0 0.0
        %1435 = vmatprep.subr.mxu0 0.0
        %1436 = vmatpush2.xpose.msra.mxu0 0.0
        %1437 = vmatprep.subr.mxu0 0.0
        %1438 = vmatpush2.xpose.msra.mxu0 0.0
        %1439 = vmatprep.subr.mxu0 0.0
        %1440 = vmatpush2.xpose.msra.mxu0 0.0
        %1441 = vmatprep.subr.mxu0 0.0
        %1442 = vmatpush2.xpose.msra.mxu0 0.0
        %1443 = vmatprep.subr.mxu0 0.0
        %1444 = vmatpush2.xpose.msra.mxu0 0.0
        %1445 = vmatprep.subr.mxu0 0.0
        %1446 = vmatpush2.xpose.msra.mxu0 0.0
        %1447 = vmatprep.mubr.f32.mxu0 0.0
        %1448 = vmatmul.mubr.f32.gmra.mxu0 %v932
        %v1449 = vpop.f32.mrf.mxu0
        %v1450 = vadd.f32 %v1305, %v1449
        %v1451 = vpop.f32.mrf.mxu0
        %1452 = vmatprep.mubr.f32.mxu0 0.0
        %1453 = vmatmul.mubr.f32.gmra.mxu0 %v933
        %v1454 = vpop.f32.mrf.mxu0
        %v1455 = vadd.f32 %v1310, %v1454
        %v1456 = vpop.f32.mrf.mxu0
        %1457 = vmatprep.mubr.f32.mxu0 0.0
        %1458 = vmatmul.mubr.f32.gmra.mxu0 %v934
        %v1459 = vpop.f32.mrf.mxu0
        %v1460 = vadd.f32 %v1315, %v1459
        %v1461 = vpop.f32.mrf.mxu0
        %1462 = vmatprep.mubr.f32.mxu0 0.0
        %1463 = vmatmul.mubr.f32.gmra.mxu0 %v935
        %v1464 = vpop.f32.mrf.mxu0
        %v1465 = vadd.f32 %v1320, %v1464
        %v1466 = vpop.f32.mrf.mxu0
        %1467 = vmatprep.mubr.f32.mxu0 0.0
        %1468 = vmatmul.mubr.f32.gmra.mxu0 %v936
        %v1469 = vpop.f32.mrf.mxu0
        %v1470 = vadd.f32 %v1325, %v1469
        %v1471 = vpop.f32.mrf.mxu0
        %1472 = vmatprep.mubr.f32.mxu0 0.0
        %1473 = vmatmul.mubr.f32.gmra.mxu0 %v937
        %v1474 = vpop.f32.mrf.mxu0
        %v1475 = vadd.f32 %v1330, %v1474
        %v1476 = vpop.f32.mrf.mxu0
        %1477 = vmatprep.mubr.f32.mxu0 0.0
        %1478 = vmatmul.mubr.f32.gmra.mxu0 %v938
        %v1479 = vpop.f32.mrf.mxu0
        %v1480 = vadd.f32 %v1335, %v1479
        %v1481 = vpop.f32.mrf.mxu0
        %1482 = vmatprep.mubr.f32.mxu0 0.0
        %1483 = vmatmul.mubr.f32.gmra.mxu0 %v939
        %v1484 = vpop.f32.mrf.mxu0
        %v1485 = vadd.f32 %v1340, %v1484
        %v1486 = vpop.f32.mrf.mxu0
        %1487 = vmatprep.mubr.f32.mxu0 0.0
        %1488 = vmatmul.mubr.f32.gmra.mxu0 %v940
        %v1489 = vpop.f32.mrf.mxu0
        %v1490 = vadd.f32 %v1345, %v1489
        %v1491 = vpop.f32.mrf.mxu0
        %1492 = vmatprep.mubr.f32.mxu0 0.0
        %1493 = vmatmul.mubr.f32.gmra.mxu0 %v941
        %v1494 = vpop.f32.mrf.mxu0
        %v1495 = vadd.f32 %v1350, %v1494
        %v1496 = vpop.f32.mrf.mxu0
        %1497 = vmatprep.mubr.f32.mxu0 0.0
        %1498 = vmatmul.mubr.f32.gmra.mxu0 %v942
        %v1499 = vpop.f32.mrf.mxu0
        %v1500 = vadd.f32 %v1355, %v1499
        %v1501 = vpop.f32.mrf.mxu0
        %1502 = vmatprep.mubr.f32.mxu0 0.0
        %1503 = vmatmul.mubr.f32.gmra.mxu0 %v943
        %v1504 = vpop.f32.mrf.mxu0
        %v1505 = vadd.f32 %v1360, %v1504
        %v1506 = vpop.f32.mrf.mxu0
        %1507 = vmatprep.mubr.f32.mxu0 0.0
        %1508 = vmatmul.mubr.f32.gmra.mxu0 %v944
        %v1509 = vpop.f32.mrf.mxu0
        %v1510 = vadd.f32 %v1365, %v1509
        %v1511 = vpop.f32.mrf.mxu0
        %1512 = vmatprep.mubr.f32.mxu0 0.0
        %1513 = vmatmul.mubr.f32.gmra.mxu0 %v945
        %v1514 = vpop.f32.mrf.mxu0
        %v1515 = vadd.f32 %v1370, %v1514
        %v1516 = vpop.f32.mrf.mxu0
        %1517 = vmatprep.mubr.f32.mxu0 0.0
        %1518 = vmatmul.mubr.f32.gmra.mxu0 %v946
        %v1519 = vpop.f32.mrf.mxu0
        %v1520 = vadd.f32 %v1375, %v1519
        %v1521 = vpop.f32.mrf.mxu0
        %1522 = vmatprep.mubr.f32.mxu0 0.0
        %1523 = vmatmul.mubr.f32.gmra.mxu0 %v947
        %v1524 = vpop.f32.mrf.mxu0
        %v1525 = vadd.f32 %v1380, %v1524
        %v1526 = vpop.f32.mrf.mxu0
        %1527 = vdwg.mxu0
        %1528 = vmatprep.subr.mxu0 0.0
        %1529 = vmatpush1.xpose.msra.mxu0 %v624
        %1530 = vmatprep.subr.mxu0 0.0
        %1531 = vmatpush1.xpose.msra.mxu0 %v623
        %1532 = vmatprep.subr.mxu0 0.0
        %1533 = vmatpush1.xpose.msra.mxu0 %v622
        %1534 = vmatprep.subr.mxu0 0.0
        %1535 = vmatpush1.xpose.msra.mxu0 %v621
        %1536 = vmatprep.subr.mxu0 0.0
        %1537 = vmatpush1.xpose.msra.mxu0 %v620
        %1538 = vmatprep.subr.mxu0 0.0
        %1539 = vmatpush1.xpose.msra.mxu0 %v619
        %1540 = vmatprep.subr.mxu0 0.0
        %1541 = vmatpush1.xpose.msra.mxu0 %v618
        %1542 = vmatprep.subr.mxu0 0.0
        %1543 = vmatpush1.xpose.msra.mxu0 %v617
        %1544 = vmatprep.subr.mxu0 0.0
        %1545 = vmatpush1.xpose.msra.mxu0 %v616
        %1546 = vmatprep.subr.mxu0 0.0
        %1547 = vmatpush1.xpose.msra.mxu0 %v615
        %1548 = vmatprep.subr.mxu0 0.0
        %1549 = vmatpush1.xpose.msra.mxu0 %v614
        %1550 = vmatprep.subr.mxu0 0.0
        %1551 = vmatpush1.xpose.msra.mxu0 %v613
        %1552 = vmatprep.subr.mxu0 0.0
        %1553 = vmatpush1.xpose.msra.mxu0 %v612
        %1554 = vmatprep.subr.mxu0 0.0
        %1555 = vmatpush1.xpose.msra.mxu0 %v611
        %1556 = vmatprep.subr.mxu0 0.0
        %1557 = vmatpush1.xpose.msra.mxu0 %v610
        %1558 = vmatprep.subr.mxu0 0.0
        %1559 = vmatpush1.xpose.msra.mxu0 %v609
        %1560 = vmatprep.subr.mxu0 0.0
        %1561 = vmatpush2.xpose.msra.mxu0 0.0
        %1562 = vmatprep.subr.mxu0 0.0
        %1563 = vmatpush2.xpose.msra.mxu0 0.0
        %1564 = vmatprep.subr.mxu0 0.0
        %1565 = vmatpush2.xpose.msra.mxu0 0.0
        %1566 = vmatprep.subr.mxu0 0.0
        %1567 = vmatpush2.xpose.msra.mxu0 0.0
        %1568 = vmatprep.subr.mxu0 0.0
        %1569 = vmatpush2.xpose.msra.mxu0 0.0
        %1570 = vmatprep.subr.mxu0 0.0
        %1571 = vmatpush2.xpose.msra.mxu0 0.0
        %1572 = vmatprep.subr.mxu0 0.0
        %1573 = vmatpush2.xpose.msra.mxu0 0.0
        %1574 = vmatprep.subr.mxu0 0.0
        %1575 = vmatpush2.xpose.msra.mxu0 0.0
        %1576 = vmatprep.subr.mxu0 0.0
        %1577 = vmatpush2.xpose.msra.mxu0 0.0
        %1578 = vmatprep.subr.mxu0 0.0
        %1579 = vmatpush2.xpose.msra.mxu0 0.0
        %1580 = vmatprep.subr.mxu0 0.0
        %1581 = vmatpush2.xpose.msra.mxu0 0.0
        %1582 = vmatprep.subr.mxu0 0.0
        %1583 = vmatpush2.xpose.msra.mxu0 0.0
        %1584 = vmatprep.subr.mxu0 0.0
        %1585 = vmatpush2.xpose.msra.mxu0 0.0
        %1586 = vmatprep.subr.mxu0 0.0
        %1587 = vmatpush2.xpose.msra.mxu0 0.0
        %1588 = vmatprep.subr.mxu0 0.0
        %1589 = vmatpush2.xpose.msra.mxu0 0.0
        %1590 = vmatprep.subr.mxu0 0.0
        %1591 = vmatpush2.xpose.msra.mxu0 0.0
        %1592 = vmatprep.mubr.f32.mxu0 0.0
        %1593 = vmatmul.mubr.f32.gmra.mxu0 %v1160
        %v1594 = vpop.f32.mrf.mxu0
        %v1595 = vadd.f32 0.0, %v1594
        %v1596 = vpop.f32.mrf.mxu0
        %1597 = vmatprep.mubr.f32.mxu0 0.0
        %1598 = vmatmul.mubr.f32.gmra.mxu0 %v1165
        %v1599 = vpop.f32.mrf.mxu0
        %v1600 = vadd.f32 0.0, %v1599
        %v1601 = vpop.f32.mrf.mxu0
        %1602 = vmatprep.mubr.f32.mxu0 0.0
        %1603 = vmatmul.mubr.f32.gmra.mxu0 %v1170
        %v1604 = vpop.f32.mrf.mxu0
        %v1605 = vadd.f32 0.0, %v1604
        %v1606 = vpop.f32.mrf.mxu0
        %1607 = vmatprep.mubr.f32.mxu0 0.0
        %1608 = vmatmul.mubr.f32.gmra.mxu0 %v1175
        %v1609 = vpop.f32.mrf.mxu0
        %v1610 = vadd.f32 0.0, %v1609
        %v1611 = vpop.f32.mrf.mxu0
        %1612 = vmatprep.mubr.f32.mxu0 0.0
        %1613 = vmatmul.mubr.f32.gmra.mxu0 %v1180
        %v1614 = vpop.f32.mrf.mxu0
        %v1615 = vadd.f32 0.0, %v1614
        %v1616 = vpop.f32.mrf.mxu0
        %1617 = vmatprep.mubr.f32.mxu0 0.0
        %1618 = vmatmul.mubr.f32.gmra.mxu0 %v1185
        %v1619 = vpop.f32.mrf.mxu0
        %v1620 = vadd.f32 0.0, %v1619
        %v1621 = vpop.f32.mrf.mxu0
        %1622 = vmatprep.mubr.f32.mxu0 0.0
        %1623 = vmatmul.mubr.f32.gmra.mxu0 %v1190
        %v1624 = vpop.f32.mrf.mxu0
        %v1625 = vadd.f32 0.0, %v1624
        %v1626 = vpop.f32.mrf.mxu0
        %1627 = vmatprep.mubr.f32.mxu0 0.0
        %1628 = vmatmul.mubr.f32.gmra.mxu0 %v1195
        %v1629 = vpop.f32.mrf.mxu0
        %v1630 = vadd.f32 0.0, %v1629
        %v1631 = vpop.f32.mrf.mxu0
        %1632 = vmatprep.mubr.f32.mxu0 0.0
        %1633 = vmatmul.mubr.f32.gmra.mxu0 %v1200
        %v1634 = vpop.f32.mrf.mxu0
        %v1635 = vadd.f32 0.0, %v1634
        %v1636 = vpop.f32.mrf.mxu0
        %1637 = vmatprep.mubr.f32.mxu0 0.0
        %1638 = vmatmul.mubr.f32.gmra.mxu0 %v1205
        %v1639 = vpop.f32.mrf.mxu0
        %v1640 = vadd.f32 0.0, %v1639
        %v1641 = vpop.f32.mrf.mxu0
        %1642 = vmatprep.mubr.f32.mxu0 0.0
        %1643 = vmatmul.mubr.f32.gmra.mxu0 %v1210
        %v1644 = vpop.f32.mrf.mxu0
        %v1645 = vadd.f32 0.0, %v1644
        %v1646 = vpop.f32.mrf.mxu0
        %1647 = vmatprep.mubr.f32.mxu0 0.0
        %1648 = vmatmul.mubr.f32.gmra.mxu0 %v1215
        %v1649 = vpop.f32.mrf.mxu0
        %v1650 = vadd.f32 0.0, %v1649
        %v1651 = vpop.f32.mrf.mxu0
        %1652 = vmatprep.mubr.f32.mxu0 0.0
        %1653 = vmatmul.mubr.f32.gmra.mxu0 %v1220
        %v1654 = vpop.f32.mrf.mxu0
        %v1655 = vadd.f32 0.0, %v1654
        %v1656 = vpop.f32.mrf.mxu0
        %1657 = vmatprep.mubr.f32.mxu0 0.0
        %1658 = vmatmul.mubr.f32.gmra.mxu0 %v1225
        %v1659 = vpop.f32.mrf.mxu0
        %v1660 = vadd.f32 0.0, %v1659
        %v1661 = vpop.f32.mrf.mxu0
        %1662 = vmatprep.mubr.f32.mxu0 0.0
        %1663 = vmatmul.mubr.f32.gmra.mxu0 %v1230
        %v1664 = vpop.f32.mrf.mxu0
        %v1665 = vadd.f32 0.0, %v1664
        %v1666 = vpop.f32.mrf.mxu0
        %1667 = vmatprep.mubr.f32.mxu0 0.0
        %1668 = vmatmul.mubr.f32.gmra.mxu0 %v1235
        %v1669 = vpop.f32.mrf.mxu0
        %v1670 = vadd.f32 0.0, %v1669
        %v1671 = vpop.f32.mrf.mxu0
        %1672 = vdwg.mxu0
        %1673 = vmatprep.subr.mxu0 0.0
        %1674 = vmatpush1.xpose.msra.mxu0 %v641
        %1675 = vmatprep.subr.mxu0 0.0
        %1676 = vmatpush1.xpose.msra.mxu0 %v640
        %1677 = vmatprep.subr.mxu0 0.0
        %1678 = vmatpush1.xpose.msra.mxu0 %v639
        %1679 = vmatprep.subr.mxu0 0.0
        %1680 = vmatpush1.xpose.msra.mxu0 %v638
        %1681 = vmatprep.subr.mxu0 0.0
        %1682 = vmatpush1.xpose.msra.mxu0 %v637
        %1683 = vmatprep.subr.mxu0 0.0
        %1684 = vmatpush1.xpose.msra.mxu0 %v636
        %1685 = vmatprep.subr.mxu0 0.0
        %1686 = vmatpush1.xpose.msra.mxu0 %v635
        %1687 = vmatprep.subr.mxu0 0.0
        %1688 = vmatpush1.xpose.msra.mxu0 %v634
        %1689 = vmatprep.subr.mxu0 0.0
        %1690 = vmatpush1.xpose.msra.mxu0 %v633
        %1691 = vmatprep.subr.mxu0 0.0
        %1692 = vmatpush1.xpose.msra.mxu0 %v632
        %1693 = vmatprep.subr.mxu0 0.0
        %1694 = vmatpush1.xpose.msra.mxu0 %v631
        %1695 = vmatprep.subr.mxu0 0.0
        %1696 = vmatpush1.xpose.msra.mxu0 %v630
        %1697 = vmatprep.subr.mxu0 0.0
        %1698 = vmatpush1.xpose.msra.mxu0 %v629
        %1699 = vmatprep.subr.mxu0 0.0
        %1700 = vmatpush1.xpose.msra.mxu0 %v628
        %1701 = vmatprep.subr.mxu0 0.0
        %1702 = vmatpush1.xpose.msra.mxu0 %v627
        %1703 = vmatprep.subr.mxu0 0.0
        %1704 = vmatpush1.xpose.msra.mxu0 %v626
        %1705 = vmatprep.subr.mxu0 0.0
        %1706 = vmatpush2.xpose.msra.mxu0 0.0
        %1707 = vmatprep.subr.mxu0 0.0
        %1708 = vmatpush2.xpose.msra.mxu0 0.0
        %1709 = vmatprep.subr.mxu0 0.0
        %1710 = vmatpush2.xpose.msra.mxu0 0.0
        %1711 = vmatprep.subr.mxu0 0.0
        %1712 = vmatpush2.xpose.msra.mxu0 0.0
        %1713 = vmatprep.subr.mxu0 0.0
        %1714 = vmatpush2.xpose.msra.mxu0 0.0
        %1715 = vmatprep.subr.mxu0 0.0
        %1716 = vmatpush2.xpose.msra.mxu0 0.0
        %1717 = vmatprep.subr.mxu0 0.0
        %1718 = vmatpush2.xpose.msra.mxu0 0.0
        %1719 = vmatprep.subr.mxu0 0.0
        %1720 = vmatpush2.xpose.msra.mxu0 0.0
        %1721 = vmatprep.subr.mxu0 0.0
        %1722 = vmatpush2.xpose.msra.mxu0 0.0
        %1723 = vmatprep.subr.mxu0 0.0
        %1724 = vmatpush2.xpose.msra.mxu0 0.0
        %1725 = vmatprep.subr.mxu0 0.0
        %1726 = vmatpush2.xpose.msra.mxu0 0.0
        %1727 = vmatprep.subr.mxu0 0.0
        %1728 = vmatpush2.xpose.msra.mxu0 0.0
        %1729 = vmatprep.subr.mxu0 0.0
        %1730 = vmatpush2.xpose.msra.mxu0 0.0
        %1731 = vmatprep.subr.mxu0 0.0
        %1732 = vmatpush2.xpose.msra.mxu0 0.0
        %1733 = vmatprep.subr.mxu0 0.0
        %1734 = vmatpush2.xpose.msra.mxu0 0.0
        %1735 = vmatprep.subr.mxu0 0.0
        %1736 = vmatpush2.xpose.msra.mxu0 0.0
        %1737 = vmatprep.mubr.f32.mxu0 0.0
        %1738 = vmatmul.mubr.f32.gmra.mxu0 %v932
        %v1739 = vpop.f32.mrf.mxu0
        %v1740 = vadd.f32 0.0, %v1739
        %v1741 = vpop.f32.mrf.mxu0
        %1742 = vmatprep.mubr.f32.mxu0 0.0
        %1743 = vmatmul.mubr.f32.gmra.mxu0 %v933
        %v1744 = vpop.f32.mrf.mxu0
        %v1745 = vadd.f32 0.0, %v1744
        %v1746 = vpop.f32.mrf.mxu0
        %1747 = vmatprep.mubr.f32.mxu0 0.0
        %1748 = vmatmul.mubr.f32.gmra.mxu0 %v934
        %v1749 = vpop.f32.mrf.mxu0
        %v1750 = vadd.f32 0.0, %v1749
        %v1751 = vpop.f32.mrf.mxu0
        %1752 = vmatprep.mubr.f32.mxu0 0.0
        %1753 = vmatmul.mubr.f32.gmra.mxu0 %v935
        %v1754 = vpop.f32.mrf.mxu0
        %v1755 = vadd.f32 0.0, %v1754
        %v1756 = vpop.f32.mrf.mxu0
        %1757 = vmatprep.mubr.f32.mxu0 0.0
        %1758 = vmatmul.mubr.f32.gmra.mxu0 %v936
        %v1759 = vpop.f32.mrf.mxu0
        %v1760 = vadd.f32 0.0, %v1759
        %v1761 = vpop.f32.mrf.mxu0
        %1762 = vmatprep.mubr.f32.mxu0 0.0
        %1763 = vmatmul.mubr.f32.gmra.mxu0 %v937
        %v1764 = vpop.f32.mrf.mxu0
        %v1765 = vadd.f32 0.0, %v1764
        %v1766 = vpop.f32.mrf.mxu0
        %1767 = vmatprep.mubr.f32.mxu0 0.0
        %1768 = vmatmul.mubr.f32.gmra.mxu0 %v938
        %v1769 = vpop.f32.mrf.mxu0
        %v1770 = vadd.f32 0.0, %v1769
        %v1771 = vpop.f32.mrf.mxu0
        %1772 = vmatprep.mubr.f32.mxu0 0.0
        %1773 = vmatmul.mubr.f32.gmra.mxu0 %v939
        %v1774 = vpop.f32.mrf.mxu0
        %v1775 = vadd.f32 0.0, %v1774
        %v1776 = vpop.f32.mrf.mxu0
        %1777 = vmatprep.mubr.f32.mxu0 0.0
        %1778 = vmatmul.mubr.f32.gmra.mxu0 %v940
        %v1779 = vpop.f32.mrf.mxu0
        %v1780 = vadd.f32 0.0, %v1779
        %v1781 = vpop.f32.mrf.mxu0
        %1782 = vmatprep.mubr.f32.mxu0 0.0
        %1783 = vmatmul.mubr.f32.gmra.mxu0 %v941
        %v1784 = vpop.f32.mrf.mxu0
        %v1785 = vadd.f32 0.0, %v1784
        %v1786 = vpop.f32.mrf.mxu0
        %1787 = vmatprep.mubr.f32.mxu0 0.0
        %1788 = vmatmul.mubr.f32.gmra.mxu0 %v942
        %v1789 = vpop.f32.mrf.mxu0
        %v1790 = vadd.f32 0.0, %v1789
        %v1791 = vpop.f32.mrf.mxu0
        %1792 = vmatprep.mubr.f32.mxu0 0.0
        %1793 = vmatmul.mubr.f32.gmra.mxu0 %v943
        %v1794 = vpop.f32.mrf.mxu0
        %v1795 = vadd.f32 0.0, %v1794
        %v1796 = vpop.f32.mrf.mxu0
        %1797 = vmatprep.mubr.f32.mxu0 0.0
        %1798 = vmatmul.mubr.f32.gmra.mxu0 %v944
        %v1799 = vpop.f32.mrf.mxu0
        %v1800 = vadd.f32 0.0, %v1799
        %v1801 = vpop.f32.mrf.mxu0
        %1802 = vmatprep.mubr.f32.mxu0 0.0
        %1803 = vmatmul.mubr.f32.gmra.mxu0 %v945
        %v1804 = vpop.f32.mrf.mxu0
        %v1805 = vadd.f32 0.0, %v1804
        %v1806 = vpop.f32.mrf.mxu0
        %1807 = vmatprep.mubr.f32.mxu0 0.0
        %1808 = vmatmul.mubr.f32.gmra.mxu0 %v946
        %v1809 = vpop.f32.mrf.mxu0
        %v1810 = vadd.f32 0.0, %v1809
        %v1811 = vpop.f32.mrf.mxu0
        %1812 = vmatprep.mubr.f32.mxu0 0.0
        %1813 = vmatmul.mubr.f32.gmra.mxu0 %v947
        %v1814 = vpop.f32.mrf.mxu0
        %v1815 = vadd.f32 0.0, %v1814
        %v1816 = vpop.f32.mrf.mxu0
        %1817 = vdwg.mxu0
        %v1818 = vsub.f32 %v1595, %v1740
        %v1819 = vsub.f32 %v1600, %v1745
        %v1820 = vsub.f32 %v1605, %v1750
        %v1821 = vsub.f32 %v1610, %v1755
        %v1822 = vsub.f32 %v1615, %v1760
        %v1823 = vsub.f32 %v1620, %v1765
        %v1824 = vsub.f32 %v1625, %v1770
        %v1825 = vsub.f32 %v1630, %v1775
        %v1826 = vsub.f32 %v1635, %v1780
        %v1827 = vsub.f32 %v1640, %v1785
        %v1828 = vsub.f32 %v1645, %v1790
        %v1829 = vsub.f32 %v1650, %v1795
        %v1830 = vsub.f32 %v1655, %v1800
        %v1831 = vsub.f32 %v1660, %v1805
        %v1832 = vsub.f32 %v1665, %v1810
        %v1833 = vsub.f32 %v1670, %v1815
        %s1834 = scalar_lea.vmem [#allocation2], 256
        %v1835 = vld [vmem:[%s1834] sm:$0xff]
        %v1836 = vld [vmem:[%s1834 + $0x8] sm:$0xff]
        %v1837 = vld [vmem:[%s1834 + $0x10] sm:$0xff]
        %v1838 = vld [vmem:[%s1834 + $0x18] sm:$0xff]
        %v1839 = vld [vmem:[%s1834 + $0x20] sm:$0xff]
        %v1840 = vld [vmem:[%s1834 + $0x28] sm:$0xff]
        %v1841 = vld [vmem:[%s1834 + $0x30] sm:$0xff]
        %v1842 = vld [vmem:[%s1834 + $0x38] sm:$0xff]
        %v1843 = vld [vmem:[%s1834 + $0x40] sm:$0xff]
        %v1844 = vld [vmem:[%s1834 + $0x48] sm:$0xff]
        %v1845 = vld [vmem:[%s1834 + $0x50] sm:$0xff]
        %v1846 = vld [vmem:[%s1834 + $0x58] sm:$0xff]
        %v1847 = vld [vmem:[%s1834 + $0x60] sm:$0xff]
        %v1848 = vld [vmem:[%s1834 + $0x68] sm:$0xff]
        %v1849 = vld [vmem:[%s1834 + $0x70] sm:$0xff]
        %v1850 = vld [vmem:[%s1834 + $0x78] sm:$0xff]
        %s1851 = scalar_lea.vmem [#allocation2], 384
        %v1852 = vld [vmem:[%s1851] sm:$0xff]
        %v1853 = vld [vmem:[%s1851 + $0x8] sm:$0xff]
        %v1854 = vld [vmem:[%s1851 + $0x10] sm:$0xff]
        %v1855 = vld [vmem:[%s1851 + $0x18] sm:$0xff]
        %v1856 = vld [vmem:[%s1851 + $0x20] sm:$0xff]
        %v1857 = vld [vmem:[%s1851 + $0x28] sm:$0xff]
        %v1858 = vld [vmem:[%s1851 + $0x30] sm:$0xff]
        %v1859 = vld [vmem:[%s1851 + $0x38] sm:$0xff]
        %v1860 = vld [vmem:[%s1851 + $0x40] sm:$0xff]
        %v1861 = vld [vmem:[%s1851 + $0x48] sm:$0xff]
        %v1862 = vld [vmem:[%s1851 + $0x50] sm:$0xff]
        %v1863 = vld [vmem:[%s1851 + $0x58] sm:$0xff]
        %v1864 = vld [vmem:[%s1851 + $0x60] sm:$0xff]
        %v1865 = vld [vmem:[%s1851 + $0x68] sm:$0xff]
        %v1866 = vld [vmem:[%s1851 + $0x70] sm:$0xff]
        %v1867 = vld [vmem:[%s1851 + $0x78] sm:$0xff]
        %1868 = vmatprep.subr.mxu0 0.0
        %1869 = vmatpush1.msra.mxu0 %v592
        %1870 = vmatprep.subr.mxu0 0.0
        %1871 = vmatpush1.msra.mxu0 %v591
        %1872 = vmatprep.subr.mxu0 0.0
        %1873 = vmatpush1.msra.mxu0 %v590
        %1874 = vmatprep.subr.mxu0 0.0
        %1875 = vmatpush1.msra.mxu0 %v589
        %1876 = vmatprep.subr.mxu0 0.0
        %1877 = vmatpush1.msra.mxu0 %v588
        %1878 = vmatprep.subr.mxu0 0.0
        %1879 = vmatpush1.msra.mxu0 %v587
        %1880 = vmatprep.subr.mxu0 0.0
        %1881 = vmatpush1.msra.mxu0 %v586
        %1882 = vmatprep.subr.mxu0 0.0
        %1883 = vmatpush1.msra.mxu0 %v585
        %1884 = vmatprep.subr.mxu0 0.0
        %1885 = vmatpush1.msra.mxu0 %v584
        %1886 = vmatprep.subr.mxu0 0.0
        %1887 = vmatpush1.msra.mxu0 %v583
        %1888 = vmatprep.subr.mxu0 0.0
        %1889 = vmatpush1.msra.mxu0 %v582
        %1890 = vmatprep.subr.mxu0 0.0
        %1891 = vmatpush1.msra.mxu0 %v581
        %1892 = vmatprep.subr.mxu0 0.0
        %1893 = vmatpush1.msra.mxu0 %v580
        %1894 = vmatprep.subr.mxu0 0.0
        %1895 = vmatpush1.msra.mxu0 %v579
        %1896 = vmatprep.subr.mxu0 0.0
        %1897 = vmatpush1.msra.mxu0 %v578
        %1898 = vmatprep.subr.mxu0 0.0
        %1899 = vmatpush1.msra.mxu0 %v577
        %1900 = vmatprep.subr.mxu0 0.0
        %1901 = vmatpush2.msra.mxu0 0.0
        %1902 = vmatprep.subr.mxu0 0.0
        %1903 = vmatpush2.msra.mxu0 0.0
        %1904 = vmatprep.subr.mxu0 0.0
        %1905 = vmatpush2.msra.mxu0 0.0
        %1906 = vmatprep.subr.mxu0 0.0
        %1907 = vmatpush2.msra.mxu0 0.0
        %1908 = vmatprep.subr.mxu0 0.0
        %1909 = vmatpush2.msra.mxu0 0.0
        %1910 = vmatprep.subr.mxu0 0.0
        %1911 = vmatpush2.msra.mxu0 0.0
        %1912 = vmatprep.subr.mxu0 0.0
        %1913 = vmatpush2.msra.mxu0 0.0
        %1914 = vmatprep.subr.mxu0 0.0
        %1915 = vmatpush2.msra.mxu0 0.0
        %1916 = vmatprep.subr.mxu0 0.0
        %1917 = vmatpush2.msra.mxu0 0.0
        %1918 = vmatprep.subr.mxu0 0.0
        %1919 = vmatpush2.msra.mxu0 0.0
        %1920 = vmatprep.subr.mxu0 0.0
        %1921 = vmatpush2.msra.mxu0 0.0
        %1922 = vmatprep.subr.mxu0 0.0
        %1923 = vmatpush2.msra.mxu0 0.0
        %1924 = vmatprep.subr.mxu0 0.0
        %1925 = vmatpush2.msra.mxu0 0.0
        %1926 = vmatprep.subr.mxu0 0.0
        %1927 = vmatpush2.msra.mxu0 0.0
        %1928 = vmatprep.subr.mxu0 0.0
        %1929 = vmatpush2.msra.mxu0 0.0
        %1930 = vmatprep.subr.mxu0 0.0
        %1931 = vmatpush2.msra.mxu0 0.0
        %1932 = vmatprep.mubr.f32.mxu0 0.0
        %1933 = vmatmul.mubr.f32.gmra.mxu0 %v1835
        %v1934 = vpop.f32.mrf.mxu0
        %v1935 = vadd.f32 0.0, %v1934
        %v1936 = vpop.f32.mrf.mxu0
        %1937 = vmatprep.mubr.f32.mxu0 0.0
        %1938 = vmatmul.mubr.f32.gmra.mxu0 %v1836
        %v1939 = vpop.f32.mrf.mxu0
        %v1940 = vadd.f32 0.0, %v1939
        %v1941 = vpop.f32.mrf.mxu0
        %1942 = vmatprep.mubr.f32.mxu0 0.0
        %1943 = vmatmul.mubr.f32.gmra.mxu0 %v1837
        %v1944 = vpop.f32.mrf.mxu0
        %v1945 = vadd.f32 0.0, %v1944
        %v1946 = vpop.f32.mrf.mxu0
        %1947 = vmatprep.mubr.f32.mxu0 0.0
        %1948 = vmatmul.mubr.f32.gmra.mxu0 %v1838
        %v1949 = vpop.f32.mrf.mxu0
        %v1950 = vadd.f32 0.0, %v1949
        %v1951 = vpop.f32.mrf.mxu0
        %1952 = vmatprep.mubr.f32.mxu0 0.0
        %1953 = vmatmul.mubr.f32.gmra.mxu0 %v1839
        %v1954 = vpop.f32.mrf.mxu0
        %v1955 = vadd.f32 0.0, %v1954
        %v1956 = vpop.f32.mrf.mxu0
        %1957 = vmatprep.mubr.f32.mxu0 0.0
        %1958 = vmatmul.mubr.f32.gmra.mxu0 %v1840
        %v1959 = vpop.f32.mrf.mxu0
        %v1960 = vadd.f32 0.0, %v1959
        %v1961 = vpop.f32.mrf.mxu0
        %1962 = vmatprep.mubr.f32.mxu0 0.0
        %1963 = vmatmul.mubr.f32.gmra.mxu0 %v1841
        %v1964 = vpop.f32.mrf.mxu0
        %v1965 = vadd.f32 0.0, %v1964
        %v1966 = vpop.f32.mrf.mxu0
        %1967 = vmatprep.mubr.f32.mxu0 0.0
        %1968 = vmatmul.mubr.f32.gmra.mxu0 %v1842
        %v1969 = vpop.f32.mrf.mxu0
        %v1970 = vadd.f32 0.0, %v1969
        %v1971 = vpop.f32.mrf.mxu0
        %1972 = vmatprep.mubr.f32.mxu0 0.0
        %1973 = vmatmul.mubr.f32.gmra.mxu0 %v1843
        %v1974 = vpop.f32.mrf.mxu0
        %v1975 = vadd.f32 0.0, %v1974
        %v1976 = vpop.f32.mrf.mxu0
        %1977 = vmatprep.mubr.f32.mxu0 0.0
        %1978 = vmatmul.mubr.f32.gmra.mxu0 %v1844
        %v1979 = vpop.f32.mrf.mxu0
        %v1980 = vadd.f32 0.0, %v1979
        %v1981 = vpop.f32.mrf.mxu0
        %1982 = vmatprep.mubr.f32.mxu0 0.0
        %1983 = vmatmul.mubr.f32.gmra.mxu0 %v1845
        %v1984 = vpop.f32.mrf.mxu0
        %v1985 = vadd.f32 0.0, %v1984
        %v1986 = vpop.f32.mrf.mxu0
        %1987 = vmatprep.mubr.f32.mxu0 0.0
        %1988 = vmatmul.mubr.f32.gmra.mxu0 %v1846
        %v1989 = vpop.f32.mrf.mxu0
        %v1990 = vadd.f32 0.0, %v1989
        %v1991 = vpop.f32.mrf.mxu0
        %1992 = vmatprep.mubr.f32.mxu0 0.0
        %1993 = vmatmul.mubr.f32.gmra.mxu0 %v1847
        %v1994 = vpop.f32.mrf.mxu0
        %v1995 = vadd.f32 0.0, %v1994
        %v1996 = vpop.f32.mrf.mxu0
        %1997 = vmatprep.mubr.f32.mxu0 0.0
        %1998 = vmatmul.mubr.f32.gmra.mxu0 %v1848
        %v1999 = vpop.f32.mrf.mxu0
        %v2000 = vadd.f32 0.0, %v1999
        %v2001 = vpop.f32.mrf.mxu0
        %2002 = vmatprep.mubr.f32.mxu0 0.0
        %2003 = vmatmul.mubr.f32.gmra.mxu0 %v1849
        %v2004 = vpop.f32.mrf.mxu0
        %v2005 = vadd.f32 0.0, %v2004
        %v2006 = vpop.f32.mrf.mxu0
        %2007 = vmatprep.mubr.f32.mxu0 0.0
        %2008 = vmatmul.mubr.f32.gmra.mxu0 %v1850
        %v2009 = vpop.f32.mrf.mxu0
        %v2010 = vadd.f32 0.0, %v2009
        %v2011 = vpop.f32.mrf.mxu0
        %2012 = vdwg.mxu0
        %2013 = vmatprep.subr.mxu0 0.0
        %2014 = vmatpush1.msra.mxu0 %v608
        %2015 = vmatprep.subr.mxu0 0.0
        %2016 = vmatpush1.msra.mxu0 %v607
        %2017 = vmatprep.subr.mxu0 0.0
        %2018 = vmatpush1.msra.mxu0 %v606
        %2019 = vmatprep.subr.mxu0 0.0
        %2020 = vmatpush1.msra.mxu0 %v605
        %2021 = vmatprep.subr.mxu0 0.0
        %2022 = vmatpush1.msra.mxu0 %v604
        %2023 = vmatprep.subr.mxu0 0.0
        %2024 = vmatpush1.msra.mxu0 %v603
        %2025 = vmatprep.subr.mxu0 0.0
        %2026 = vmatpush1.msra.mxu0 %v602
        %2027 = vmatprep.subr.mxu0 0.0
        %2028 = vmatpush1.msra.mxu0 %v601
        %2029 = vmatprep.subr.mxu0 0.0
        %2030 = vmatpush1.msra.mxu0 %v600
        %2031 = vmatprep.subr.mxu0 0.0
        %2032 = vmatpush1.msra.mxu0 %v599
        %2033 = vmatprep.subr.mxu0 0.0
        %2034 = vmatpush1.msra.mxu0 %v598
        %2035 = vmatprep.subr.mxu0 0.0
        %2036 = vmatpush1.msra.mxu0 %v597
        %2037 = vmatprep.subr.mxu0 0.0
        %2038 = vmatpush1.msra.mxu0 %v596
        %2039 = vmatprep.subr.mxu0 0.0
        %2040 = vmatpush1.msra.mxu0 %v595
        %2041 = vmatprep.subr.mxu0 0.0
        %2042 = vmatpush1.msra.mxu0 %v594
        %2043 = vmatprep.subr.mxu0 0.0
        %2044 = vmatpush1.msra.mxu0 %v593
        %2045 = vmatprep.subr.mxu0 0.0
        %2046 = vmatpush2.msra.mxu0 0.0
        %2047 = vmatprep.subr.mxu0 0.0
        %2048 = vmatpush2.msra.mxu0 0.0
        %2049 = vmatprep.subr.mxu0 0.0
        %2050 = vmatpush2.msra.mxu0 0.0
        %2051 = vmatprep.subr.mxu0 0.0
        %2052 = vmatpush2.msra.mxu0 0.0
        %2053 = vmatprep.subr.mxu0 0.0
        %2054 = vmatpush2.msra.mxu0 0.0
        %2055 = vmatprep.subr.mxu0 0.0
        %2056 = vmatpush2.msra.mxu0 0.0
        %2057 = vmatprep.subr.mxu0 0.0
        %2058 = vmatpush2.msra.mxu0 0.0
        %2059 = vmatprep.subr.mxu0 0.0
        %2060 = vmatpush2.msra.mxu0 0.0
        %2061 = vmatprep.subr.mxu0 0.0
        %2062 = vmatpush2.msra.mxu0 0.0
        %2063 = vmatprep.subr.mxu0 0.0
        %2064 = vmatpush2.msra.mxu0 0.0
        %2065 = vmatprep.subr.mxu0 0.0
        %2066 = vmatpush2.msra.mxu0 0.0
        %2067 = vmatprep.subr.mxu0 0.0
        %2068 = vmatpush2.msra.mxu0 0.0
        %2069 = vmatprep.subr.mxu0 0.0
        %2070 = vmatpush2.msra.mxu0 0.0
        %2071 = vmatprep.subr.mxu0 0.0
        %2072 = vmatpush2.msra.mxu0 0.0
        %2073 = vmatprep.subr.mxu0 0.0
        %2074 = vmatpush2.msra.mxu0 0.0
        %2075 = vmatprep.subr.mxu0 0.0
        %2076 = vmatpush2.msra.mxu0 0.0
        %2077 = vmatprep.mubr.f32.mxu0 0.0
        %2078 = vmatmul.mubr.f32.gmra.mxu0 %v1852
        %v2079 = vpop.f32.mrf.mxu0
        %v2080 = vadd.f32 0.0, %v2079
        %v2081 = vpop.f32.mrf.mxu0
        %2082 = vmatprep.mubr.f32.mxu0 0.0
        %2083 = vmatmul.mubr.f32.gmra.mxu0 %v1853
        %v2084 = vpop.f32.mrf.mxu0
        %v2085 = vadd.f32 0.0, %v2084
        %v2086 = vpop.f32.mrf.mxu0
        %2087 = vmatprep.mubr.f32.mxu0 0.0
        %2088 = vmatmul.mubr.f32.gmra.mxu0 %v1854
        %v2089 = vpop.f32.mrf.mxu0
        %v2090 = vadd.f32 0.0, %v2089
        %v2091 = vpop.f32.mrf.mxu0
        %2092 = vmatprep.mubr.f32.mxu0 0.0
        %2093 = vmatmul.mubr.f32.gmra.mxu0 %v1855
        %v2094 = vpop.f32.mrf.mxu0
        %v2095 = vadd.f32 0.0, %v2094
        %v2096 = vpop.f32.mrf.mxu0
        %2097 = vmatprep.mubr.f32.mxu0 0.0
        %2098 = vmatmul.mubr.f32.gmra.mxu0 %v1856
        %v2099 = vpop.f32.mrf.mxu0
        %v2100 = vadd.f32 0.0, %v2099
        %v2101 = vpop.f32.mrf.mxu0
        %2102 = vmatprep.mubr.f32.mxu0 0.0
        %2103 = vmatmul.mubr.f32.gmra.mxu0 %v1857
        %v2104 = vpop.f32.mrf.mxu0
        %v2105 = vadd.f32 0.0, %v2104
        %v2106 = vpop.f32.mrf.mxu0
        %2107 = vmatprep.mubr.f32.mxu0 0.0
        %2108 = vmatmul.mubr.f32.gmra.mxu0 %v1858
        %v2109 = vpop.f32.mrf.mxu0
        %v2110 = vadd.f32 0.0, %v2109
        %v2111 = vpop.f32.mrf.mxu0
        %2112 = vmatprep.mubr.f32.mxu0 0.0
        %2113 = vmatmul.mubr.f32.gmra.mxu0 %v1859
        %v2114 = vpop.f32.mrf.mxu0
        %v2115 = vadd.f32 0.0, %v2114
        %v2116 = vpop.f32.mrf.mxu0
        %2117 = vmatprep.mubr.f32.mxu0 0.0
        %2118 = vmatmul.mubr.f32.gmra.mxu0 %v1860
        %v2119 = vpop.f32.mrf.mxu0
        %v2120 = vadd.f32 0.0, %v2119
        %v2121 = vpop.f32.mrf.mxu0
        %2122 = vmatprep.mubr.f32.mxu0 0.0
        %2123 = vmatmul.mubr.f32.gmra.mxu0 %v1861
        %v2124 = vpop.f32.mrf.mxu0
        %v2125 = vadd.f32 0.0, %v2124
        %v2126 = vpop.f32.mrf.mxu0
        %2127 = vmatprep.mubr.f32.mxu0 0.0
        %2128 = vmatmul.mubr.f32.gmra.mxu0 %v1862
        %v2129 = vpop.f32.mrf.mxu0
        %v2130 = vadd.f32 0.0, %v2129
        %v2131 = vpop.f32.mrf.mxu0
        %2132 = vmatprep.mubr.f32.mxu0 0.0
        %2133 = vmatmul.mubr.f32.gmra.mxu0 %v1863
        %v2134 = vpop.f32.mrf.mxu0
        %v2135 = vadd.f32 0.0, %v2134
        %v2136 = vpop.f32.mrf.mxu0
        %2137 = vmatprep.mubr.f32.mxu0 0.0
        %2138 = vmatmul.mubr.f32.gmra.mxu0 %v1864
        %v2139 = vpop.f32.mrf.mxu0
        %v2140 = vadd.f32 0.0, %v2139
        %v2141 = vpop.f32.mrf.mxu0
        %2142 = vmatprep.mubr.f32.mxu0 0.0
        %2143 = vmatmul.mubr.f32.gmra.mxu0 %v1865
        %v2144 = vpop.f32.mrf.mxu0
        %v2145 = vadd.f32 0.0, %v2144
        %v2146 = vpop.f32.mrf.mxu0
        %2147 = vmatprep.mubr.f32.mxu0 0.0
        %2148 = vmatmul.mubr.f32.gmra.mxu0 %v1866
        %v2149 = vpop.f32.mrf.mxu0
        %v2150 = vadd.f32 0.0, %v2149
        %v2151 = vpop.f32.mrf.mxu0
        %2152 = vmatprep.mubr.f32.mxu0 0.0
        %2153 = vmatmul.mubr.f32.gmra.mxu0 %v1867
        %v2154 = vpop.f32.mrf.mxu0
        %v2155 = vadd.f32 0.0, %v2154
        %v2156 = vpop.f32.mrf.mxu0
        %2157 = vdwg.mxu0
        %v2158 = vsub.f32 %v1935, %v2080
        %v2159 = vsub.f32 %v1940, %v2085
        %v2160 = vsub.f32 %v1945, %v2090
        %v2161 = vsub.f32 %v1950, %v2095
        %v2162 = vsub.f32 %v1955, %v2100
        %v2163 = vsub.f32 %v1960, %v2105
        %v2164 = vsub.f32 %v1965, %v2110
        %v2165 = vsub.f32 %v1970, %v2115
        %v2166 = vsub.f32 %v1975, %v2120
        %v2167 = vsub.f32 %v1980, %v2125
        %v2168 = vsub.f32 %v1985, %v2130
        %v2169 = vsub.f32 %v1990, %v2135
        %v2170 = vsub.f32 %v1995, %v2140
        %v2171 = vsub.f32 %v2000, %v2145
        %v2172 = vsub.f32 %v2005, %v2150
        %v2173 = vsub.f32 %v2010, %v2155
        %2174 = vmatprep.subr.mxu0 0.0
        %2175 = vmatpush1.msra.mxu0 %v592
        %2176 = vmatprep.subr.mxu0 0.0
        %2177 = vmatpush1.msra.mxu0 %v591
        %2178 = vmatprep.subr.mxu0 0.0
        %2179 = vmatpush1.msra.mxu0 %v590
        %2180 = vmatprep.subr.mxu0 0.0
        %2181 = vmatpush1.msra.mxu0 %v589
        %2182 = vmatprep.subr.mxu0 0.0
        %2183 = vmatpush1.msra.mxu0 %v588
        %2184 = vmatprep.subr.mxu0 0.0
        %2185 = vmatpush1.msra.mxu0 %v587
        %2186 = vmatprep.subr.mxu0 0.0
        %2187 = vmatpush1.msra.mxu0 %v586
        %2188 = vmatprep.subr.mxu0 0.0
        %2189 = vmatpush1.msra.mxu0 %v585
        %2190 = vmatprep.subr.mxu0 0.0
        %2191 = vmatpush1.msra.mxu0 %v584
        %2192 = vmatprep.subr.mxu0 0.0
        %2193 = vmatpush1.msra.mxu0 %v583
        %2194 = vmatprep.subr.mxu0 0.0
        %2195 = vmatpush1.msra.mxu0 %v582
        %2196 = vmatprep.subr.mxu0 0.0
        %2197 = vmatpush1.msra.mxu0 %v581
        %2198 = vmatprep.subr.mxu0 0.0
        %2199 = vmatpush1.msra.mxu0 %v580
        %2200 = vmatprep.subr.mxu0 0.0
        %2201 = vmatpush1.msra.mxu0 %v579
        %2202 = vmatprep.subr.mxu0 0.0
        %2203 = vmatpush1.msra.mxu0 %v578
        %2204 = vmatprep.subr.mxu0 0.0
        %2205 = vmatpush1.msra.mxu0 %v577
        %2206 = vmatprep.subr.mxu0 0.0
        %2207 = vmatpush2.msra.mxu0 0.0
        %2208 = vmatprep.subr.mxu0 0.0
        %2209 = vmatpush2.msra.mxu0 0.0
        %2210 = vmatprep.subr.mxu0 0.0
        %2211 = vmatpush2.msra.mxu0 0.0
        %2212 = vmatprep.subr.mxu0 0.0
        %2213 = vmatpush2.msra.mxu0 0.0
        %2214 = vmatprep.subr.mxu0 0.0
        %2215 = vmatpush2.msra.mxu0 0.0
        %2216 = vmatprep.subr.mxu0 0.0
        %2217 = vmatpush2.msra.mxu0 0.0
        %2218 = vmatprep.subr.mxu0 0.0
        %2219 = vmatpush2.msra.mxu0 0.0
        %2220 = vmatprep.subr.mxu0 0.0
        %2221 = vmatpush2.msra.mxu0 0.0
        %2222 = vmatprep.subr.mxu0 0.0
        %2223 = vmatpush2.msra.mxu0 0.0
        %2224 = vmatprep.subr.mxu0 0.0
        %2225 = vmatpush2.msra.mxu0 0.0
        %2226 = vmatprep.subr.mxu0 0.0
        %2227 = vmatpush2.msra.mxu0 0.0
        %2228 = vmatprep.subr.mxu0 0.0
        %2229 = vmatpush2.msra.mxu0 0.0
        %2230 = vmatprep.subr.mxu0 0.0
        %2231 = vmatpush2.msra.mxu0 0.0
        %2232 = vmatprep.subr.mxu0 0.0
        %2233 = vmatpush2.msra.mxu0 0.0
        %2234 = vmatprep.subr.mxu0 0.0
        %2235 = vmatpush2.msra.mxu0 0.0
        %2236 = vmatprep.subr.mxu0 0.0
        %2237 = vmatpush2.msra.mxu0 0.0
        %2238 = vmatprep.mubr.f32.mxu0 0.0
        %2239 = vmatmul.mubr.f32.gmra.mxu0 %v1852
        %v2240 = vpop.f32.mrf.mxu0
        %v2241 = vadd.f32 0.0, %v2240
        %v2242 = vpop.f32.mrf.mxu0
        %2243 = vmatprep.mubr.f32.mxu0 0.0
        %2244 = vmatmul.mubr.f32.gmra.mxu0 %v1853
        %v2245 = vpop.f32.mrf.mxu0
        %v2246 = vadd.f32 0.0, %v2245
        %v2247 = vpop.f32.mrf.mxu0
        %2248 = vmatprep.mubr.f32.mxu0 0.0
        %2249 = vmatmul.mubr.f32.gmra.mxu0 %v1854
        %v2250 = vpop.f32.mrf.mxu0
        %v2251 = vadd.f32 0.0, %v2250
        %v2252 = vpop.f32.mrf.mxu0
        %2253 = vmatprep.mubr.f32.mxu0 0.0
        %2254 = vmatmul.mubr.f32.gmra.mxu0 %v1855
        %v2255 = vpop.f32.mrf.mxu0
        %v2256 = vadd.f32 0.0, %v2255
        %v2257 = vpop.f32.mrf.mxu0
        %2258 = vmatprep.mubr.f32.mxu0 0.0
        %2259 = vmatmul.mubr.f32.gmra.mxu0 %v1856
        %v2260 = vpop.f32.mrf.mxu0
        %v2261 = vadd.f32 0.0, %v2260
        %v2262 = vpop.f32.mrf.mxu0
        %2263 = vmatprep.mubr.f32.mxu0 0.0
        %2264 = vmatmul.mubr.f32.gmra.mxu0 %v1857
        %v2265 = vpop.f32.mrf.mxu0
        %v2266 = vadd.f32 0.0, %v2265
        %v2267 = vpop.f32.mrf.mxu0
        %2268 = vmatprep.mubr.f32.mxu0 0.0
        %2269 = vmatmul.mubr.f32.gmra.mxu0 %v1858
        %v2270 = vpop.f32.mrf.mxu0
        %v2271 = vadd.f32 0.0, %v2270
        %v2272 = vpop.f32.mrf.mxu0
        %2273 = vmatprep.mubr.f32.mxu0 0.0
        %2274 = vmatmul.mubr.f32.gmra.mxu0 %v1859
        %v2275 = vpop.f32.mrf.mxu0
        %v2276 = vadd.f32 0.0, %v2275
        %v2277 = vpop.f32.mrf.mxu0
        %2278 = vmatprep.mubr.f32.mxu0 0.0
        %2279 = vmatmul.mubr.f32.gmra.mxu0 %v1860
        %v2280 = vpop.f32.mrf.mxu0
        %v2281 = vadd.f32 0.0, %v2280
        %v2282 = vpop.f32.mrf.mxu0
        %2283 = vmatprep.mubr.f32.mxu0 0.0
        %2284 = vmatmul.mubr.f32.gmra.mxu0 %v1861
        %v2285 = vpop.f32.mrf.mxu0
        %v2286 = vadd.f32 0.0, %v2285
        %v2287 = vpop.f32.mrf.mxu0
        %2288 = vmatprep.mubr.f32.mxu0 0.0
        %2289 = vmatmul.mubr.f32.gmra.mxu0 %v1862
        %v2290 = vpop.f32.mrf.mxu0
        %v2291 = vadd.f32 0.0, %v2290
        %v2292 = vpop.f32.mrf.mxu0
        %2293 = vmatprep.mubr.f32.mxu0 0.0
        %2294 = vmatmul.mubr.f32.gmra.mxu0 %v1863
        %v2295 = vpop.f32.mrf.mxu0
        %v2296 = vadd.f32 0.0, %v2295
        %v2297 = vpop.f32.mrf.mxu0
        %2298 = vmatprep.mubr.f32.mxu0 0.0
        %2299 = vmatmul.mubr.f32.gmra.mxu0 %v1864
        %v2300 = vpop.f32.mrf.mxu0
        %v2301 = vadd.f32 0.0, %v2300
        %v2302 = vpop.f32.mrf.mxu0
        %2303 = vmatprep.mubr.f32.mxu0 0.0
        %2304 = vmatmul.mubr.f32.gmra.mxu0 %v1865
        %v2305 = vpop.f32.mrf.mxu0
        %v2306 = vadd.f32 0.0, %v2305
        %v2307 = vpop.f32.mrf.mxu0
        %2308 = vmatprep.mubr.f32.mxu0 0.0
        %2309 = vmatmul.mubr.f32.gmra.mxu0 %v1866
        %v2310 = vpop.f32.mrf.mxu0
        %v2311 = vadd.f32 0.0, %v2310
        %v2312 = vpop.f32.mrf.mxu0
        %2313 = vmatprep.mubr.f32.mxu0 0.0
        %2314 = vmatmul.mubr.f32.gmra.mxu0 %v1867
        %v2315 = vpop.f32.mrf.mxu0
        %v2316 = vadd.f32 0.0, %v2315
        %v2317 = vpop.f32.mrf.mxu0
        %2318 = vdwg.mxu0
        %2319 = vmatprep.subr.mxu0 0.0
        %2320 = vmatpush1.msra.mxu0 %v608
        %2321 = vmatprep.subr.mxu0 0.0
        %2322 = vmatpush1.msra.mxu0 %v607
        %2323 = vmatprep.subr.mxu0 0.0
        %2324 = vmatpush1.msra.mxu0 %v606
        %2325 = vmatprep.subr.mxu0 0.0
        %2326 = vmatpush1.msra.mxu0 %v605
        %2327 = vmatprep.subr.mxu0 0.0
        %2328 = vmatpush1.msra.mxu0 %v604
        %2329 = vmatprep.subr.mxu0 0.0
        %2330 = vmatpush1.msra.mxu0 %v603
        %2331 = vmatprep.subr.mxu0 0.0
        %2332 = vmatpush1.msra.mxu0 %v602
        %2333 = vmatprep.subr.mxu0 0.0
        %2334 = vmatpush1.msra.mxu0 %v601
        %2335 = vmatprep.subr.mxu0 0.0
        %2336 = vmatpush1.msra.mxu0 %v600
        %2337 = vmatprep.subr.mxu0 0.0
        %2338 = vmatpush1.msra.mxu0 %v599
        %2339 = vmatprep.subr.mxu0 0.0
        %2340 = vmatpush1.msra.mxu0 %v598
        %2341 = vmatprep.subr.mxu0 0.0
        %2342 = vmatpush1.msra.mxu0 %v597
        %2343 = vmatprep.subr.mxu0 0.0
        %2344 = vmatpush1.msra.mxu0 %v596
        %2345 = vmatprep.subr.mxu0 0.0
        %2346 = vmatpush1.msra.mxu0 %v595
        %2347 = vmatprep.subr.mxu0 0.0
        %2348 = vmatpush1.msra.mxu0 %v594
        %2349 = vmatprep.subr.mxu0 0.0
        %2350 = vmatpush1.msra.mxu0 %v593
        %2351 = vmatprep.subr.mxu0 0.0
        %2352 = vmatpush2.msra.mxu0 0.0
        %2353 = vmatprep.subr.mxu0 0.0
        %2354 = vmatpush2.msra.mxu0 0.0
        %2355 = vmatprep.subr.mxu0 0.0
        %2356 = vmatpush2.msra.mxu0 0.0
        %2357 = vmatprep.subr.mxu0 0.0
        %2358 = vmatpush2.msra.mxu0 0.0
        %2359 = vmatprep.subr.mxu0 0.0
        %2360 = vmatpush2.msra.mxu0 0.0
        %2361 = vmatprep.subr.mxu0 0.0
        %2362 = vmatpush2.msra.mxu0 0.0
        %2363 = vmatprep.subr.mxu0 0.0
        %2364 = vmatpush2.msra.mxu0 0.0
        %2365 = vmatprep.subr.mxu0 0.0
        %2366 = vmatpush2.msra.mxu0 0.0
        %2367 = vmatprep.subr.mxu0 0.0
        %2368 = vmatpush2.msra.mxu0 0.0
        %2369 = vmatprep.subr.mxu0 0.0
        %2370 = vmatpush2.msra.mxu0 0.0
        %2371 = vmatprep.subr.mxu0 0.0
        %2372 = vmatpush2.msra.mxu0 0.0
        %2373 = vmatprep.subr.mxu0 0.0
        %2374 = vmatpush2.msra.mxu0 0.0
        %2375 = vmatprep.subr.mxu0 0.0
        %2376 = vmatpush2.msra.mxu0 0.0
        %2377 = vmatprep.subr.mxu0 0.0
        %2378 = vmatpush2.msra.mxu0 0.0
        %2379 = vmatprep.subr.mxu0 0.0
        %2380 = vmatpush2.msra.mxu0 0.0
        %2381 = vmatprep.subr.mxu0 0.0
        %2382 = vmatpush2.msra.mxu0 0.0
        %2383 = vmatprep.mubr.f32.mxu0 0.0
        %2384 = vmatmul.mubr.f32.gmra.mxu0 %v1835
        %v2385 = vpop.f32.mrf.mxu0
        %v2386 = vadd.f32 %v2241, %v2385
        %v2387 = vpop.f32.mrf.mxu0
        %2388 = vmatprep.mubr.f32.mxu0 0.0
        %2389 = vmatmul.mubr.f32.gmra.mxu0 %v1836
        %v2390 = vpop.f32.mrf.mxu0
        %v2391 = vadd.f32 %v2246, %v2390
        %v2392 = vpop.f32.mrf.mxu0
        %2393 = vmatprep.mubr.f32.mxu0 0.0
        %2394 = vmatmul.mubr.f32.gmra.mxu0 %v1837
        %v2395 = vpop.f32.mrf.mxu0
        %v2396 = vadd.f32 %v2251, %v2395
        %v2397 = vpop.f32.mrf.mxu0
        %2398 = vmatprep.mubr.f32.mxu0 0.0
        %2399 = vmatmul.mubr.f32.gmra.mxu0 %v1838
        %v2400 = vpop.f32.mrf.mxu0
        %v2401 = vadd.f32 %v2256, %v2400
        %v2402 = vpop.f32.mrf.mxu0
        %2403 = vmatprep.mubr.f32.mxu0 0.0
        %2404 = vmatmul.mubr.f32.gmra.mxu0 %v1839
        %v2405 = vpop.f32.mrf.mxu0
        %v2406 = vadd.f32 %v2261, %v2405
        %v2407 = vpop.f32.mrf.mxu0
        %2408 = vmatprep.mubr.f32.mxu0 0.0
        %2409 = vmatmul.mubr.f32.gmra.mxu0 %v1840
        %v2410 = vpop.f32.mrf.mxu0
        %v2411 = vadd.f32 %v2266, %v2410
        %v2412 = vpop.f32.mrf.mxu0
        %2413 = vmatprep.mubr.f32.mxu0 0.0
        %2414 = vmatmul.mubr.f32.gmra.mxu0 %v1841
        %v2415 = vpop.f32.mrf.mxu0
        %v2416 = vadd.f32 %v2271, %v2415
        %v2417 = vpop.f32.mrf.mxu0
        %2418 = vmatprep.mubr.f32.mxu0 0.0
        %2419 = vmatmul.mubr.f32.gmra.mxu0 %v1842
        %v2420 = vpop.f32.mrf.mxu0
        %v2421 = vadd.f32 %v2276, %v2420
        %v2422 = vpop.f32.mrf.mxu0
        %2423 = vmatprep.mubr.f32.mxu0 0.0
        %2424 = vmatmul.mubr.f32.gmra.mxu0 %v1843
        %v2425 = vpop.f32.mrf.mxu0
        %v2426 = vadd.f32 %v2281, %v2425
        %v2427 = vpop.f32.mrf.mxu0
        %2428 = vmatprep.mubr.f32.mxu0 0.0
        %2429 = vmatmul.mubr.f32.gmra.mxu0 %v1844
        %v2430 = vpop.f32.mrf.mxu0
        %v2431 = vadd.f32 %v2286, %v2430
        %v2432 = vpop.f32.mrf.mxu0
        %2433 = vmatprep.mubr.f32.mxu0 0.0
        %2434 = vmatmul.mubr.f32.gmra.mxu0 %v1845
        %v2435 = vpop.f32.mrf.mxu0
        %v2436 = vadd.f32 %v2291, %v2435
        %v2437 = vpop.f32.mrf.mxu0
        %2438 = vmatprep.mubr.f32.mxu0 0.0
        %2439 = vmatmul.mubr.f32.gmra.mxu0 %v1846
        %v2440 = vpop.f32.mrf.mxu0
        %v2441 = vadd.f32 %v2296, %v2440
        %v2442 = vpop.f32.mrf.mxu0
        %2443 = vmatprep.mubr.f32.mxu0 0.0
        %2444 = vmatmul.mubr.f32.gmra.mxu0 %v1847
        %v2445 = vpop.f32.mrf.mxu0
        %v2446 = vadd.f32 %v2301, %v2445
        %v2447 = vpop.f32.mrf.mxu0
        %2448 = vmatprep.mubr.f32.mxu0 0.0
        %2449 = vmatmul.mubr.f32.gmra.mxu0 %v1848
        %v2450 = vpop.f32.mrf.mxu0
        %v2451 = vadd.f32 %v2306, %v2450
        %v2452 = vpop.f32.mrf.mxu0
        %2453 = vmatprep.mubr.f32.mxu0 0.0
        %2454 = vmatmul.mubr.f32.gmra.mxu0 %v1849
        %v2455 = vpop.f32.mrf.mxu0
        %v2456 = vadd.f32 %v2311, %v2455
        %v2457 = vpop.f32.mrf.mxu0
        %2458 = vmatprep.mubr.f32.mxu0 0.0
        %2459 = vmatmul.mubr.f32.gmra.mxu0 %v1850
        %v2460 = vpop.f32.mrf.mxu0
        %v2461 = vadd.f32 %v2316, %v2460
        %v2462 = vpop.f32.mrf.mxu0
        %2463 = vdwg.mxu0
        %2464 = vmatprep.subr.mxu0 0.0
        %2465 = vmatpush1.xpose.msra.mxu0 %v1867
        %2466 = vmatprep.subr.mxu0 0.0
        %2467 = vmatpush1.xpose.msra.mxu0 %v1866
        %2468 = vmatprep.subr.mxu0 0.0
        %2469 = vmatpush1.xpose.msra.mxu0 %v1865
        %2470 = vmatprep.subr.mxu0 0.0
        %2471 = vmatpush1.xpose.msra.mxu0 %v1864
        %2472 = vmatprep.subr.mxu0 0.0
        %2473 = vmatpush1.xpose.msra.mxu0 %v1863
        %2474 = vmatprep.subr.mxu0 0.0
        %2475 = vmatpush1.xpose.msra.mxu0 %v1862
        %2476 = vmatprep.subr.mxu0 0.0
        %2477 = vmatpush1.xpose.msra.mxu0 %v1861
        %2478 = vmatprep.subr.mxu0 0.0
        %2479 = vmatpush1.xpose.msra.mxu0 %v1860
        %2480 = vmatprep.subr.mxu0 0.0
        %2481 = vmatpush1.xpose.msra.mxu0 %v1859
        %2482 = vmatprep.subr.mxu0 0.0
        %2483 = vmatpush1.xpose.msra.mxu0 %v1858
        %2484 = vmatprep.subr.mxu0 0.0
        %2485 = vmatpush1.xpose.msra.mxu0 %v1857
        %2486 = vmatprep.subr.mxu0 0.0
        %2487 = vmatpush1.xpose.msra.mxu0 %v1856
        %2488 = vmatprep.subr.mxu0 0.0
        %2489 = vmatpush1.xpose.msra.mxu0 %v1855
        %2490 = vmatprep.subr.mxu0 0.0
        %2491 = vmatpush1.xpose.msra.mxu0 %v1854
        %2492 = vmatprep.subr.mxu0 0.0
        %2493 = vmatpush1.xpose.msra.mxu0 %v1853
        %2494 = vmatprep.subr.mxu0 0.0
        %2495 = vmatpush1.xpose.msra.mxu0 %v1852
        %2496 = vmatprep.subr.mxu0 0.0
        %2497 = vmatpush2.xpose.msra.mxu0 0.0
        %2498 = vmatprep.subr.mxu0 0.0
        %2499 = vmatpush2.xpose.msra.mxu0 0.0
        %2500 = vmatprep.subr.mxu0 0.0
        %2501 = vmatpush2.xpose.msra.mxu0 0.0
        %2502 = vmatprep.subr.mxu0 0.0
        %2503 = vmatpush2.xpose.msra.mxu0 0.0
        %2504 = vmatprep.subr.mxu0 0.0
        %2505 = vmatpush2.xpose.msra.mxu0 0.0
        %2506 = vmatprep.subr.mxu0 0.0
        %2507 = vmatpush2.xpose.msra.mxu0 0.0
        %2508 = vmatprep.subr.mxu0 0.0
        %2509 = vmatpush2.xpose.msra.mxu0 0.0
        %2510 = vmatprep.subr.mxu0 0.0
        %2511 = vmatpush2.xpose.msra.mxu0 0.0
        %2512 = vmatprep.subr.mxu0 0.0
        %2513 = vmatpush2.xpose.msra.mxu0 0.0
        %2514 = vmatprep.subr.mxu0 0.0
        %2515 = vmatpush2.xpose.msra.mxu0 0.0
        %2516 = vmatprep.subr.mxu0 0.0
        %2517 = vmatpush2.xpose.msra.mxu0 0.0
        %2518 = vmatprep.subr.mxu0 0.0
        %2519 = vmatpush2.xpose.msra.mxu0 0.0
        %2520 = vmatprep.subr.mxu0 0.0
        %2521 = vmatpush2.xpose.msra.mxu0 0.0
        %2522 = vmatprep.subr.mxu0 0.0
        %2523 = vmatpush2.xpose.msra.mxu0 0.0
        %2524 = vmatprep.subr.mxu0 0.0
        %2525 = vmatpush2.xpose.msra.mxu0 0.0
        %2526 = vmatprep.subr.mxu0 0.0
        %2527 = vmatpush2.xpose.msra.mxu0 0.0
        %2528 = vmatprep.mubr.f32.mxu0 0.0
        %2529 = vmatmul.mubr.f32.gmra.mxu0 %v2386
        %v2530 = vpop.f32.mrf.mxu0
        %v2531 = vadd.f32 0.0, %v2530
        %v2532 = vpop.f32.mrf.mxu0
        %2533 = vmatprep.mubr.f32.mxu0 0.0
        %2534 = vmatmul.mubr.f32.gmra.mxu0 %v2391
        %v2535 = vpop.f32.mrf.mxu0
        %v2536 = vadd.f32 0.0, %v2535
        %v2537 = vpop.f32.mrf.mxu0
        %2538 = vmatprep.mubr.f32.mxu0 0.0
        %2539 = vmatmul.mubr.f32.gmra.mxu0 %v2396
        %v2540 = vpop.f32.mrf.mxu0
        %v2541 = vadd.f32 0.0, %v2540
        %v2542 = vpop.f32.mrf.mxu0
        %2543 = vmatprep.mubr.f32.mxu0 0.0
        %2544 = vmatmul.mubr.f32.gmra.mxu0 %v2401
        %v2545 = vpop.f32.mrf.mxu0
        %v2546 = vadd.f32 0.0, %v2545
        %v2547 = vpop.f32.mrf.mxu0
        %2548 = vmatprep.mubr.f32.mxu0 0.0
        %2549 = vmatmul.mubr.f32.gmra.mxu0 %v2406
        %v2550 = vpop.f32.mrf.mxu0
        %v2551 = vadd.f32 0.0, %v2550
        %v2552 = vpop.f32.mrf.mxu0
        %2553 = vmatprep.mubr.f32.mxu0 0.0
        %2554 = vmatmul.mubr.f32.gmra.mxu0 %v2411
        %v2555 = vpop.f32.mrf.mxu0
        %v2556 = vadd.f32 0.0, %v2555
        %v2557 = vpop.f32.mrf.mxu0
        %2558 = vmatprep.mubr.f32.mxu0 0.0
        %2559 = vmatmul.mubr.f32.gmra.mxu0 %v2416
        %v2560 = vpop.f32.mrf.mxu0
        %v2561 = vadd.f32 0.0, %v2560
        %v2562 = vpop.f32.mrf.mxu0
        %2563 = vmatprep.mubr.f32.mxu0 0.0
        %2564 = vmatmul.mubr.f32.gmra.mxu0 %v2421
        %v2565 = vpop.f32.mrf.mxu0
        %v2566 = vadd.f32 0.0, %v2565
        %v2567 = vpop.f32.mrf.mxu0
        %2568 = vmatprep.mubr.f32.mxu0 0.0
        %2569 = vmatmul.mubr.f32.gmra.mxu0 %v2426
        %v2570 = vpop.f32.mrf.mxu0
        %v2571 = vadd.f32 0.0, %v2570
        %v2572 = vpop.f32.mrf.mxu0
        %2573 = vmatprep.mubr.f32.mxu0 0.0
        %2574 = vmatmul.mubr.f32.gmra.mxu0 %v2431
        %v2575 = vpop.f32.mrf.mxu0
        %v2576 = vadd.f32 0.0, %v2575
        %v2577 = vpop.f32.mrf.mxu0
        %2578 = vmatprep.mubr.f32.mxu0 0.0
        %2579 = vmatmul.mubr.f32.gmra.mxu0 %v2436
        %v2580 = vpop.f32.mrf.mxu0
        %v2581 = vadd.f32 0.0, %v2580
        %v2582 = vpop.f32.mrf.mxu0
        %2583 = vmatprep.mubr.f32.mxu0 0.0
        %2584 = vmatmul.mubr.f32.gmra.mxu0 %v2441
        %v2585 = vpop.f32.mrf.mxu0
        %v2586 = vadd.f32 0.0, %v2585
        %v2587 = vpop.f32.mrf.mxu0
        %2588 = vmatprep.mubr.f32.mxu0 0.0
        %2589 = vmatmul.mubr.f32.gmra.mxu0 %v2446
        %v2590 = vpop.f32.mrf.mxu0
        %v2591 = vadd.f32 0.0, %v2590
        %v2592 = vpop.f32.mrf.mxu0
        %2593 = vmatprep.mubr.f32.mxu0 0.0
        %2594 = vmatmul.mubr.f32.gmra.mxu0 %v2451
        %v2595 = vpop.f32.mrf.mxu0
        %v2596 = vadd.f32 0.0, %v2595
        %v2597 = vpop.f32.mrf.mxu0
        %2598 = vmatprep.mubr.f32.mxu0 0.0
        %2599 = vmatmul.mubr.f32.gmra.mxu0 %v2456
        %v2600 = vpop.f32.mrf.mxu0
        %v2601 = vadd.f32 0.0, %v2600
        %v2602 = vpop.f32.mrf.mxu0
        %2603 = vmatprep.mubr.f32.mxu0 0.0
        %2604 = vmatmul.mubr.f32.gmra.mxu0 %v2461
        %v2605 = vpop.f32.mrf.mxu0
        %v2606 = vadd.f32 0.0, %v2605
        %v2607 = vpop.f32.mrf.mxu0
        %2608 = vdwg.mxu0
        %2609 = vmatprep.subr.mxu0 0.0
        %2610 = vmatpush1.xpose.msra.mxu0 %v1850
        %2611 = vmatprep.subr.mxu0 0.0
        %2612 = vmatpush1.xpose.msra.mxu0 %v1849
        %2613 = vmatprep.subr.mxu0 0.0
        %2614 = vmatpush1.xpose.msra.mxu0 %v1848
        %2615 = vmatprep.subr.mxu0 0.0
        %2616 = vmatpush1.xpose.msra.mxu0 %v1847
        %2617 = vmatprep.subr.mxu0 0.0
        %2618 = vmatpush1.xpose.msra.mxu0 %v1846
        %2619 = vmatprep.subr.mxu0 0.0
        %2620 = vmatpush1.xpose.msra.mxu0 %v1845
        %2621 = vmatprep.subr.mxu0 0.0
        %2622 = vmatpush1.xpose.msra.mxu0 %v1844
        %2623 = vmatprep.subr.mxu0 0.0
        %2624 = vmatpush1.xpose.msra.mxu0 %v1843
        %2625 = vmatprep.subr.mxu0 0.0
        %2626 = vmatpush1.xpose.msra.mxu0 %v1842
        %2627 = vmatprep.subr.mxu0 0.0
        %2628 = vmatpush1.xpose.msra.mxu0 %v1841
        %2629 = vmatprep.subr.mxu0 0.0
        %2630 = vmatpush1.xpose.msra.mxu0 %v1840
        %2631 = vmatprep.subr.mxu0 0.0
        %2632 = vmatpush1.xpose.msra.mxu0 %v1839
        %2633 = vmatprep.subr.mxu0 0.0
        %2634 = vmatpush1.xpose.msra.mxu0 %v1838
        %2635 = vmatprep.subr.mxu0 0.0
        %2636 = vmatpush1.xpose.msra.mxu0 %v1837
        %2637 = vmatprep.subr.mxu0 0.0
        %2638 = vmatpush1.xpose.msra.mxu0 %v1836
        %2639 = vmatprep.subr.mxu0 0.0
        %2640 = vmatpush1.xpose.msra.mxu0 %v1835
        %2641 = vmatprep.subr.mxu0 0.0
        %2642 = vmatpush2.xpose.msra.mxu0 0.0
        %2643 = vmatprep.subr.mxu0 0.0
        %2644 = vmatpush2.xpose.msra.mxu0 0.0
        %2645 = vmatprep.subr.mxu0 0.0
        %2646 = vmatpush2.xpose.msra.mxu0 0.0
        %2647 = vmatprep.subr.mxu0 0.0
        %2648 = vmatpush2.xpose.msra.mxu0 0.0
        %2649 = vmatprep.subr.mxu0 0.0
        %2650 = vmatpush2.xpose.msra.mxu0 0.0
        %2651 = vmatprep.subr.mxu0 0.0
        %2652 = vmatpush2.xpose.msra.mxu0 0.0
        %2653 = vmatprep.subr.mxu0 0.0
        %2654 = vmatpush2.xpose.msra.mxu0 0.0
        %2655 = vmatprep.subr.mxu0 0.0
        %2656 = vmatpush2.xpose.msra.mxu0 0.0
        %2657 = vmatprep.subr.mxu0 0.0
        %2658 = vmatpush2.xpose.msra.mxu0 0.0
        %2659 = vmatprep.subr.mxu0 0.0
        %2660 = vmatpush2.xpose.msra.mxu0 0.0
        %2661 = vmatprep.subr.mxu0 0.0
        %2662 = vmatpush2.xpose.msra.mxu0 0.0
        %2663 = vmatprep.subr.mxu0 0.0
        %2664 = vmatpush2.xpose.msra.mxu0 0.0
        %2665 = vmatprep.subr.mxu0 0.0
        %2666 = vmatpush2.xpose.msra.mxu0 0.0
        %2667 = vmatprep.subr.mxu0 0.0
        %2668 = vmatpush2.xpose.msra.mxu0 0.0
        %2669 = vmatprep.subr.mxu0 0.0
        %2670 = vmatpush2.xpose.msra.mxu0 0.0
        %2671 = vmatprep.subr.mxu0 0.0
        %2672 = vmatpush2.xpose.msra.mxu0 0.0
        %2673 = vmatprep.mubr.f32.mxu0 0.0
        %2674 = vmatmul.mubr.f32.gmra.mxu0 %v2158
        %v2675 = vpop.f32.mrf.mxu0
        %v2676 = vadd.f32 %v2531, %v2675
        %v2677 = vpop.f32.mrf.mxu0
        %2678 = vmatprep.mubr.f32.mxu0 0.0
        %2679 = vmatmul.mubr.f32.gmra.mxu0 %v2159
        %v2680 = vpop.f32.mrf.mxu0
        %v2681 = vadd.f32 %v2536, %v2680
        %v2682 = vpop.f32.mrf.mxu0
        %2683 = vmatprep.mubr.f32.mxu0 0.0
        %2684 = vmatmul.mubr.f32.gmra.mxu0 %v2160
        %v2685 = vpop.f32.mrf.mxu0
        %v2686 = vadd.f32 %v2541, %v2685
        %v2687 = vpop.f32.mrf.mxu0
        %2688 = vmatprep.mubr.f32.mxu0 0.0
        %2689 = vmatmul.mubr.f32.gmra.mxu0 %v2161
        %v2690 = vpop.f32.mrf.mxu0
        %v2691 = vadd.f32 %v2546, %v2690
        %v2692 = vpop.f32.mrf.mxu0
        %2693 = vmatprep.mubr.f32.mxu0 0.0
        %2694 = vmatmul.mubr.f32.gmra.mxu0 %v2162
        %v2695 = vpop.f32.mrf.mxu0
        %v2696 = vadd.f32 %v2551, %v2695
        %v2697 = vpop.f32.mrf.mxu0
        %2698 = vmatprep.mubr.f32.mxu0 0.0
        %2699 = vmatmul.mubr.f32.gmra.mxu0 %v2163
        %v2700 = vpop.f32.mrf.mxu0
        %v2701 = vadd.f32 %v2556, %v2700
        %v2702 = vpop.f32.mrf.mxu0
        %2703 = vmatprep.mubr.f32.mxu0 0.0
        %2704 = vmatmul.mubr.f32.gmra.mxu0 %v2164
        %v2705 = vpop.f32.mrf.mxu0
        %v2706 = vadd.f32 %v2561, %v2705
        %v2707 = vpop.f32.mrf.mxu0
        %2708 = vmatprep.mubr.f32.mxu0 0.0
        %2709 = vmatmul.mubr.f32.gmra.mxu0 %v2165
        %v2710 = vpop.f32.mrf.mxu0
        %v2711 = vadd.f32 %v2566, %v2710
        %v2712 = vpop.f32.mrf.mxu0
        %2713 = vmatprep.mubr.f32.mxu0 0.0
        %2714 = vmatmul.mubr.f32.gmra.mxu0 %v2166
        %v2715 = vpop.f32.mrf.mxu0
        %v2716 = vadd.f32 %v2571, %v2715
        %v2717 = vpop.f32.mrf.mxu0
        %2718 = vmatprep.mubr.f32.mxu0 0.0
        %2719 = vmatmul.mubr.f32.gmra.mxu0 %v2167
        %v2720 = vpop.f32.mrf.mxu0
        %v2721 = vadd.f32 %v2576, %v2720
        %v2722 = vpop.f32.mrf.mxu0
        %2723 = vmatprep.mubr.f32.mxu0 0.0
        %2724 = vmatmul.mubr.f32.gmra.mxu0 %v2168
        %v2725 = vpop.f32.mrf.mxu0
        %v2726 = vadd.f32 %v2581, %v2725
        %v2727 = vpop.f32.mrf.mxu0
        %2728 = vmatprep.mubr.f32.mxu0 0.0
        %2729 = vmatmul.mubr.f32.gmra.mxu0 %v2169
        %v2730 = vpop.f32.mrf.mxu0
        %v2731 = vadd.f32 %v2586, %v2730
        %v2732 = vpop.f32.mrf.mxu0
        %2733 = vmatprep.mubr.f32.mxu0 0.0
        %2734 = vmatmul.mubr.f32.gmra.mxu0 %v2170
        %v2735 = vpop.f32.mrf.mxu0
        %v2736 = vadd.f32 %v2591, %v2735
        %v2737 = vpop.f32.mrf.mxu0
        %2738 = vmatprep.mubr.f32.mxu0 0.0
        %2739 = vmatmul.mubr.f32.gmra.mxu0 %v2171
        %v2740 = vpop.f32.mrf.mxu0
        %v2741 = vadd.f32 %v2596, %v2740
        %v2742 = vpop.f32.mrf.mxu0
        %2743 = vmatprep.mubr.f32.mxu0 0.0
        %2744 = vmatmul.mubr.f32.gmra.mxu0 %v2172
        %v2745 = vpop.f32.mrf.mxu0
        %v2746 = vadd.f32 %v2601, %v2745
        %v2747 = vpop.f32.mrf.mxu0
        %2748 = vmatprep.mubr.f32.mxu0 0.0
        %2749 = vmatmul.mubr.f32.gmra.mxu0 %v2173
        %v2750 = vpop.f32.mrf.mxu0
        %v2751 = vadd.f32 %v2606, %v2750
        %v2752 = vpop.f32.mrf.mxu0
        %2753 = vdwg.mxu0
        %2754 = vmatprep.subr.mxu0 0.0
        %2755 = vmatpush1.xpose.msra.mxu0 %v1850
        %2756 = vmatprep.subr.mxu0 0.0
        %2757 = vmatpush1.xpose.msra.mxu0 %v1849
        %2758 = vmatprep.subr.mxu0 0.0
        %2759 = vmatpush1.xpose.msra.mxu0 %v1848
        %2760 = vmatprep.subr.mxu0 0.0
        %2761 = vmatpush1.xpose.msra.mxu0 %v1847
        %2762 = vmatprep.subr.mxu0 0.0
        %2763 = vmatpush1.xpose.msra.mxu0 %v1846
        %2764 = vmatprep.subr.mxu0 0.0
        %2765 = vmatpush1.xpose.msra.mxu0 %v1845
        %2766 = vmatprep.subr.mxu0 0.0
        %2767 = vmatpush1.xpose.msra.mxu0 %v1844
        %2768 = vmatprep.subr.mxu0 0.0
        %2769 = vmatpush1.xpose.msra.mxu0 %v1843
        %2770 = vmatprep.subr.mxu0 0.0
        %2771 = vmatpush1.xpose.msra.mxu0 %v1842
        %2772 = vmatprep.subr.mxu0 0.0
        %2773 = vmatpush1.xpose.msra.mxu0 %v1841
        %2774 = vmatprep.subr.mxu0 0.0
        %2775 = vmatpush1.xpose.msra.mxu0 %v1840
        %2776 = vmatprep.subr.mxu0 0.0
        %2777 = vmatpush1.xpose.msra.mxu0 %v1839
        %2778 = vmatprep.subr.mxu0 0.0
        %2779 = vmatpush1.xpose.msra.mxu0 %v1838
        %2780 = vmatprep.subr.mxu0 0.0
        %2781 = vmatpush1.xpose.msra.mxu0 %v1837
        %2782 = vmatprep.subr.mxu0 0.0
        %2783 = vmatpush1.xpose.msra.mxu0 %v1836
        %2784 = vmatprep.subr.mxu0 0.0
        %2785 = vmatpush1.xpose.msra.mxu0 %v1835
        %2786 = vmatprep.subr.mxu0 0.0
        %2787 = vmatpush2.xpose.msra.mxu0 0.0
        %2788 = vmatprep.subr.mxu0 0.0
        %2789 = vmatpush2.xpose.msra.mxu0 0.0
        %2790 = vmatprep.subr.mxu0 0.0
        %2791 = vmatpush2.xpose.msra.mxu0 0.0
        %2792 = vmatprep.subr.mxu0 0.0
        %2793 = vmatpush2.xpose.msra.mxu0 0.0
        %2794 = vmatprep.subr.mxu0 0.0
        %2795 = vmatpush2.xpose.msra.mxu0 0.0
        %2796 = vmatprep.subr.mxu0 0.0
        %2797 = vmatpush2.xpose.msra.mxu0 0.0
        %2798 = vmatprep.subr.mxu0 0.0
        %2799 = vmatpush2.xpose.msra.mxu0 0.0
        %2800 = vmatprep.subr.mxu0 0.0
        %2801 = vmatpush2.xpose.msra.mxu0 0.0
        %2802 = vmatprep.subr.mxu0 0.0
        %2803 = vmatpush2.xpose.msra.mxu0 0.0
        %2804 = vmatprep.subr.mxu0 0.0
        %2805 = vmatpush2.xpose.msra.mxu0 0.0
        %2806 = vmatprep.subr.mxu0 0.0
        %2807 = vmatpush2.xpose.msra.mxu0 0.0
        %2808 = vmatprep.subr.mxu0 0.0
        %2809 = vmatpush2.xpose.msra.mxu0 0.0
        %2810 = vmatprep.subr.mxu0 0.0
        %2811 = vmatpush2.xpose.msra.mxu0 0.0
        %2812 = vmatprep.subr.mxu0 0.0
        %2813 = vmatpush2.xpose.msra.mxu0 0.0
        %2814 = vmatprep.subr.mxu0 0.0
        %2815 = vmatpush2.xpose.msra.mxu0 0.0
        %2816 = vmatprep.subr.mxu0 0.0
        %2817 = vmatpush2.xpose.msra.mxu0 0.0
        %2818 = vmatprep.mubr.f32.mxu0 0.0
        %2819 = vmatmul.mubr.f32.gmra.mxu0 %v2386
        %v2820 = vpop.f32.mrf.mxu0
        %v2821 = vadd.f32 0.0, %v2820
        %v2822 = vpop.f32.mrf.mxu0
        %2823 = vmatprep.mubr.f32.mxu0 0.0
        %2824 = vmatmul.mubr.f32.gmra.mxu0 %v2391
        %v2825 = vpop.f32.mrf.mxu0
        %v2826 = vadd.f32 0.0, %v2825
        %v2827 = vpop.f32.mrf.mxu0
        %2828 = vmatprep.mubr.f32.mxu0 0.0
        %2829 = vmatmul.mubr.f32.gmra.mxu0 %v2396
        %v2830 = vpop.f32.mrf.mxu0
        %v2831 = vadd.f32 0.0, %v2830
        %v2832 = vpop.f32.mrf.mxu0
        %2833 = vmatprep.mubr.f32.mxu0 0.0
        %2834 = vmatmul.mubr.f32.gmra.mxu0 %v2401
        %v2835 = vpop.f32.mrf.mxu0
        %v2836 = vadd.f32 0.0, %v2835
        %v2837 = vpop.f32.mrf.mxu0
        %2838 = vmatprep.mubr.f32.mxu0 0.0
        %2839 = vmatmul.mubr.f32.gmra.mxu0 %v2406
        %v2840 = vpop.f32.mrf.mxu0
        %v2841 = vadd.f32 0.0, %v2840
        %v2842 = vpop.f32.mrf.mxu0
        %2843 = vmatprep.mubr.f32.mxu0 0.0
        %2844 = vmatmul.mubr.f32.gmra.mxu0 %v2411
        %v2845 = vpop.f32.mrf.mxu0
        %v2846 = vadd.f32 0.0, %v2845
        %v2847 = vpop.f32.mrf.mxu0
        %2848 = vmatprep.mubr.f32.mxu0 0.0
        %2849 = vmatmul.mubr.f32.gmra.mxu0 %v2416
        %v2850 = vpop.f32.mrf.mxu0
        %v2851 = vadd.f32 0.0, %v2850
        %v2852 = vpop.f32.mrf.mxu0
        %2853 = vmatprep.mubr.f32.mxu0 0.0
        %2854 = vmatmul.mubr.f32.gmra.mxu0 %v2421
        %v2855 = vpop.f32.mrf.mxu0
        %v2856 = vadd.f32 0.0, %v2855
        %v2857 = vpop.f32.mrf.mxu0
        %2858 = vmatprep.mubr.f32.mxu0 0.0
        %2859 = vmatmul.mubr.f32.gmra.mxu0 %v2426
        %v2860 = vpop.f32.mrf.mxu0
        %v2861 = vadd.f32 0.0, %v2860
        %v2862 = vpop.f32.mrf.mxu0
        %2863 = vmatprep.mubr.f32.mxu0 0.0
        %2864 = vmatmul.mubr.f32.gmra.mxu0 %v2431
        %v2865 = vpop.f32.mrf.mxu0
        %v2866 = vadd.f32 0.0, %v2865
        %v2867 = vpop.f32.mrf.mxu0
        %2868 = vmatprep.mubr.f32.mxu0 0.0
        %2869 = vmatmul.mubr.f32.gmra.mxu0 %v2436
        %v2870 = vpop.f32.mrf.mxu0
        %v2871 = vadd.f32 0.0, %v2870
        %v2872 = vpop.f32.mrf.mxu0
        %2873 = vmatprep.mubr.f32.mxu0 0.0
        %2874 = vmatmul.mubr.f32.gmra.mxu0 %v2441
        %v2875 = vpop.f32.mrf.mxu0
        %v2876 = vadd.f32 0.0, %v2875
        %v2877 = vpop.f32.mrf.mxu0
        %2878 = vmatprep.mubr.f32.mxu0 0.0
        %2879 = vmatmul.mubr.f32.gmra.mxu0 %v2446
        %v2880 = vpop.f32.mrf.mxu0
        %v2881 = vadd.f32 0.0, %v2880
        %v2882 = vpop.f32.mrf.mxu0
        %2883 = vmatprep.mubr.f32.mxu0 0.0
        %2884 = vmatmul.mubr.f32.gmra.mxu0 %v2451
        %v2885 = vpop.f32.mrf.mxu0
        %v2886 = vadd.f32 0.0, %v2885
        %v2887 = vpop.f32.mrf.mxu0
        %2888 = vmatprep.mubr.f32.mxu0 0.0
        %2889 = vmatmul.mubr.f32.gmra.mxu0 %v2456
        %v2890 = vpop.f32.mrf.mxu0
        %v2891 = vadd.f32 0.0, %v2890
        %v2892 = vpop.f32.mrf.mxu0
        %2893 = vmatprep.mubr.f32.mxu0 0.0
        %2894 = vmatmul.mubr.f32.gmra.mxu0 %v2461
        %v2895 = vpop.f32.mrf.mxu0
        %v2896 = vadd.f32 0.0, %v2895
        %v2897 = vpop.f32.mrf.mxu0
        %2898 = vdwg.mxu0
        %2899 = vmatprep.subr.mxu0 0.0
        %2900 = vmatpush1.xpose.msra.mxu0 %v1867
        %2901 = vmatprep.subr.mxu0 0.0
        %2902 = vmatpush1.xpose.msra.mxu0 %v1866
        %2903 = vmatprep.subr.mxu0 0.0
        %2904 = vmatpush1.xpose.msra.mxu0 %v1865
        %2905 = vmatprep.subr.mxu0 0.0
        %2906 = vmatpush1.xpose.msra.mxu0 %v1864
        %2907 = vmatprep.subr.mxu0 0.0
        %2908 = vmatpush1.xpose.msra.mxu0 %v1863
        %2909 = vmatprep.subr.mxu0 0.0
        %2910 = vmatpush1.xpose.msra.mxu0 %v1862
        %2911 = vmatprep.subr.mxu0 0.0
        %2912 = vmatpush1.xpose.msra.mxu0 %v1861
        %2913 = vmatprep.subr.mxu0 0.0
        %2914 = vmatpush1.xpose.msra.mxu0 %v1860
        %2915 = vmatprep.subr.mxu0 0.0
        %2916 = vmatpush1.xpose.msra.mxu0 %v1859
        %2917 = vmatprep.subr.mxu0 0.0
        %2918 = vmatpush1.xpose.msra.mxu0 %v1858
        %2919 = vmatprep.subr.mxu0 0.0
        %2920 = vmatpush1.xpose.msra.mxu0 %v1857
        %2921 = vmatprep.subr.mxu0 0.0
        %2922 = vmatpush1.xpose.msra.mxu0 %v1856
        %2923 = vmatprep.subr.mxu0 0.0
        %2924 = vmatpush1.xpose.msra.mxu0 %v1855
        %2925 = vmatprep.subr.mxu0 0.0
        %2926 = vmatpush1.xpose.msra.mxu0 %v1854
        %2927 = vmatprep.subr.mxu0 0.0
        %2928 = vmatpush1.xpose.msra.mxu0 %v1853
        %2929 = vmatprep.subr.mxu0 0.0
        %2930 = vmatpush1.xpose.msra.mxu0 %v1852
        %2931 = vmatprep.subr.mxu0 0.0
        %2932 = vmatpush2.xpose.msra.mxu0 0.0
        %2933 = vmatprep.subr.mxu0 0.0
        %2934 = vmatpush2.xpose.msra.mxu0 0.0
        %2935 = vmatprep.subr.mxu0 0.0
        %2936 = vmatpush2.xpose.msra.mxu0 0.0
        %2937 = vmatprep.subr.mxu0 0.0
        %2938 = vmatpush2.xpose.msra.mxu0 0.0
        %2939 = vmatprep.subr.mxu0 0.0
        %2940 = vmatpush2.xpose.msra.mxu0 0.0
        %2941 = vmatprep.subr.mxu0 0.0
        %2942 = vmatpush2.xpose.msra.mxu0 0.0
        %2943 = vmatprep.subr.mxu0 0.0
        %2944 = vmatpush2.xpose.msra.mxu0 0.0
        %2945 = vmatprep.subr.mxu0 0.0
        %2946 = vmatpush2.xpose.msra.mxu0 0.0
        %2947 = vmatprep.subr.mxu0 0.0
        %2948 = vmatpush2.xpose.msra.mxu0 0.0
        %2949 = vmatprep.subr.mxu0 0.0
        %2950 = vmatpush2.xpose.msra.mxu0 0.0
        %2951 = vmatprep.subr.mxu0 0.0
        %2952 = vmatpush2.xpose.msra.mxu0 0.0
        %2953 = vmatprep.subr.mxu0 0.0
        %2954 = vmatpush2.xpose.msra.mxu0 0.0
        %2955 = vmatprep.subr.mxu0 0.0
        %2956 = vmatpush2.xpose.msra.mxu0 0.0
        %2957 = vmatprep.subr.mxu0 0.0
        %2958 = vmatpush2.xpose.msra.mxu0 0.0
        %2959 = vmatprep.subr.mxu0 0.0
        %2960 = vmatpush2.xpose.msra.mxu0 0.0
        %2961 = vmatprep.subr.mxu0 0.0
        %2962 = vmatpush2.xpose.msra.mxu0 0.0
        %2963 = vmatprep.mubr.f32.mxu0 0.0
        %2964 = vmatmul.mubr.f32.gmra.mxu0 %v2158
        %v2965 = vpop.f32.mrf.mxu0
        %v2966 = vadd.f32 0.0, %v2965
        %v2967 = vpop.f32.mrf.mxu0
        %2968 = vmatprep.mubr.f32.mxu0 0.0
        %2969 = vmatmul.mubr.f32.gmra.mxu0 %v2159
        %v2970 = vpop.f32.mrf.mxu0
        %v2971 = vadd.f32 0.0, %v2970
        %v2972 = vpop.f32.mrf.mxu0
        %2973 = vmatprep.mubr.f32.mxu0 0.0
        %2974 = vmatmul.mubr.f32.gmra.mxu0 %v2160
        %v2975 = vpop.f32.mrf.mxu0
        %v2976 = vadd.f32 0.0, %v2975
        %v2977 = vpop.f32.mrf.mxu0
        %2978 = vmatprep.mubr.f32.mxu0 0.0
        %2979 = vmatmul.mubr.f32.gmra.mxu0 %v2161
        %v2980 = vpop.f32.mrf.mxu0
        %v2981 = vadd.f32 0.0, %v2980
        %v2982 = vpop.f32.mrf.mxu0
        %2983 = vmatprep.mubr.f32.mxu0 0.0
        %2984 = vmatmul.mubr.f32.gmra.mxu0 %v2162
        %v2985 = vpop.f32.mrf.mxu0
        %v2986 = vadd.f32 0.0, %v2985
        %v2987 = vpop.f32.mrf.mxu0
        %2988 = vmatprep.mubr.f32.mxu0 0.0
        %2989 = vmatmul.mubr.f32.gmra.mxu0 %v2163
        %v2990 = vpop.f32.mrf.mxu0
        %v2991 = vadd.f32 0.0, %v2990
        %v2992 = vpop.f32.mrf.mxu0
        %2993 = vmatprep.mubr.f32.mxu0 0.0
        %2994 = vmatmul.mubr.f32.gmra.mxu0 %v2164
        %v2995 = vpop.f32.mrf.mxu0
        %v2996 = vadd.f32 0.0, %v2995
        %v2997 = vpop.f32.mrf.mxu0
        %2998 = vmatprep.mubr.f32.mxu0 0.0
        %2999 = vmatmul.mubr.f32.gmra.mxu0 %v2165
        %v3000 = vpop.f32.mrf.mxu0
        %v3001 = vadd.f32 0.0, %v3000
        %v3002 = vpop.f32.mrf.mxu0
        %3003 = vmatprep.mubr.f32.mxu0 0.0
        %3004 = vmatmul.mubr.f32.gmra.mxu0 %v2166
        %v3005 = vpop.f32.mrf.mxu0
        %v3006 = vadd.f32 0.0, %v3005
        %v3007 = vpop.f32.mrf.mxu0
        %3008 = vmatprep.mubr.f32.mxu0 0.0
        %3009 = vmatmul.mubr.f32.gmra.mxu0 %v2167
        %v3010 = vpop.f32.mrf.mxu0
        %v3011 = vadd.f32 0.0, %v3010
        %v3012 = vpop.f32.mrf.mxu0
        %3013 = vmatprep.mubr.f32.mxu0 0.0
        %3014 = vmatmul.mubr.f32.gmra.mxu0 %v2168
        %v3015 = vpop.f32.mrf.mxu0
        %v3016 = vadd.f32 0.0, %v3015
        %v3017 = vpop.f32.mrf.mxu0
        %3018 = vmatprep.mubr.f32.mxu0 0.0
        %3019 = vmatmul.mubr.f32.gmra.mxu0 %v2169
        %v3020 = vpop.f32.mrf.mxu0
        %v3021 = vadd.f32 0.0, %v3020
        %v3022 = vpop.f32.mrf.mxu0
        %3023 = vmatprep.mubr.f32.mxu0 0.0
        %3024 = vmatmul.mubr.f32.gmra.mxu0 %v2170
        %v3025 = vpop.f32.mrf.mxu0
        %v3026 = vadd.f32 0.0, %v3025
        %v3027 = vpop.f32.mrf.mxu0
        %3028 = vmatprep.mubr.f32.mxu0 0.0
        %3029 = vmatmul.mubr.f32.gmra.mxu0 %v2171
        %v3030 = vpop.f32.mrf.mxu0
        %v3031 = vadd.f32 0.0, %v3030
        %v3032 = vpop.f32.mrf.mxu0
        %3033 = vmatprep.mubr.f32.mxu0 0.0
        %3034 = vmatmul.mubr.f32.gmra.mxu0 %v2172
        %v3035 = vpop.f32.mrf.mxu0
        %v3036 = vadd.f32 0.0, %v3035
        %v3037 = vpop.f32.mrf.mxu0
        %3038 = vmatprep.mubr.f32.mxu0 0.0
        %3039 = vmatmul.mubr.f32.gmra.mxu0 %v2173
        %v3040 = vpop.f32.mrf.mxu0
        %v3041 = vadd.f32 0.0, %v3040
        %v3042 = vpop.f32.mrf.mxu0
        %3043 = vdwg.mxu0
        %v3044 = vsub.f32 %v2821, %v2966
        %v3045 = vsub.f32 %v2826, %v2971
        %v3046 = vsub.f32 %v2831, %v2976
        %v3047 = vsub.f32 %v2836, %v2981
        %v3048 = vsub.f32 %v2841, %v2986
        %v3049 = vsub.f32 %v2846, %v2991
        %v3050 = vsub.f32 %v2851, %v2996
        %v3051 = vsub.f32 %v2856, %v3001
        %v3052 = vsub.f32 %v2861, %v3006
        %v3053 = vsub.f32 %v2866, %v3011
        %v3054 = vsub.f32 %v2871, %v3016
        %v3055 = vsub.f32 %v2876, %v3021
        %v3056 = vsub.f32 %v2881, %v3026
        %v3057 = vsub.f32 %v2886, %v3031
        %v3058 = vsub.f32 %v2891, %v3036
        %v3059 = vsub.f32 %v2896, %v3041
        %s3060 = scalar_lea.vmem [#allocation2], 512
        %v3061 = vld [vmem:[%s3060] sm:$0xff]
        %v3062 = vld [vmem:[%s3060 + $0x8] sm:$0xff]
        %v3063 = vld [vmem:[%s3060 + $0x10] sm:$0xff]
        %v3064 = vld [vmem:[%s3060 + $0x18] sm:$0xff]
        %v3065 = vld [vmem:[%s3060 + $0x20] sm:$0xff]
        %v3066 = vld [vmem:[%s3060 + $0x28] sm:$0xff]
        %v3067 = vld [vmem:[%s3060 + $0x30] sm:$0xff]
        %v3068 = vld [vmem:[%s3060 + $0x38] sm:$0xff]
        %v3069 = vld [vmem:[%s3060 + $0x40] sm:$0xff]
        %v3070 = vld [vmem:[%s3060 + $0x48] sm:$0xff]
        %v3071 = vld [vmem:[%s3060 + $0x50] sm:$0xff]
        %v3072 = vld [vmem:[%s3060 + $0x58] sm:$0xff]
        %v3073 = vld [vmem:[%s3060 + $0x60] sm:$0xff]
        %v3074 = vld [vmem:[%s3060 + $0x68] sm:$0xff]
        %v3075 = vld [vmem:[%s3060 + $0x70] sm:$0xff]
        %v3076 = vld [vmem:[%s3060 + $0x78] sm:$0xff]
        %s3077 = scalar_lea.vmem [#allocation2], 640
        %v3078 = vld [vmem:[%s3077] sm:$0xff]
        %v3079 = vld [vmem:[%s3077 + $0x8] sm:$0xff]
        %v3080 = vld [vmem:[%s3077 + $0x10] sm:$0xff]
        %v3081 = vld [vmem:[%s3077 + $0x18] sm:$0xff]
        %v3082 = vld [vmem:[%s3077 + $0x20] sm:$0xff]
        %v3083 = vld [vmem:[%s3077 + $0x28] sm:$0xff]
        %v3084 = vld [vmem:[%s3077 + $0x30] sm:$0xff]
        %v3085 = vld [vmem:[%s3077 + $0x38] sm:$0xff]
        %v3086 = vld [vmem:[%s3077 + $0x40] sm:$0xff]
        %v3087 = vld [vmem:[%s3077 + $0x48] sm:$0xff]
        %v3088 = vld [vmem:[%s3077 + $0x50] sm:$0xff]
        %v3089 = vld [vmem:[%s3077 + $0x58] sm:$0xff]
        %v3090 = vld [vmem:[%s3077 + $0x60] sm:$0xff]
        %v3091 = vld [vmem:[%s3077 + $0x68] sm:$0xff]
        %v3092 = vld [vmem:[%s3077 + $0x70] sm:$0xff]
        %v3093 = vld [vmem:[%s3077 + $0x78] sm:$0xff]
        %3094 = vmatprep.subr.mxu0 0.0
        %3095 = vmatpush1.msra.mxu0 %v592
        %3096 = vmatprep.subr.mxu0 0.0
        %3097 = vmatpush1.msra.mxu0 %v591
        %3098 = vmatprep.subr.mxu0 0.0
        %3099 = vmatpush1.msra.mxu0 %v590
        %3100 = vmatprep.subr.mxu0 0.0
        %3101 = vmatpush1.msra.mxu0 %v589
        %3102 = vmatprep.subr.mxu0 0.0
        %3103 = vmatpush1.msra.mxu0 %v588
        %3104 = vmatprep.subr.mxu0 0.0
        %3105 = vmatpush1.msra.mxu0 %v587
        %3106 = vmatprep.subr.mxu0 0.0
        %3107 = vmatpush1.msra.mxu0 %v586
        %3108 = vmatprep.subr.mxu0 0.0
        %3109 = vmatpush1.msra.mxu0 %v585
        %3110 = vmatprep.subr.mxu0 0.0
        %3111 = vmatpush1.msra.mxu0 %v584
        %3112 = vmatprep.subr.mxu0 0.0
        %3113 = vmatpush1.msra.mxu0 %v583
        %3114 = vmatprep.subr.mxu0 0.0
        %3115 = vmatpush1.msra.mxu0 %v582
        %3116 = vmatprep.subr.mxu0 0.0
        %3117 = vmatpush1.msra.mxu0 %v581
        %3118 = vmatprep.subr.mxu0 0.0
        %3119 = vmatpush1.msra.mxu0 %v580
        %3120 = vmatprep.subr.mxu0 0.0
        %3121 = vmatpush1.msra.mxu0 %v579
        %3122 = vmatprep.subr.mxu0 0.0
        %3123 = vmatpush1.msra.mxu0 %v578
        %3124 = vmatprep.subr.mxu0 0.0
        %3125 = vmatpush1.msra.mxu0 %v577
        %3126 = vmatprep.subr.mxu0 0.0
        %3127 = vmatpush2.msra.mxu0 0.0
        %3128 = vmatprep.subr.mxu0 0.0
        %3129 = vmatpush2.msra.mxu0 0.0
        %3130 = vmatprep.subr.mxu0 0.0
        %3131 = vmatpush2.msra.mxu0 0.0
        %3132 = vmatprep.subr.mxu0 0.0
        %3133 = vmatpush2.msra.mxu0 0.0
        %3134 = vmatprep.subr.mxu0 0.0
        %3135 = vmatpush2.msra.mxu0 0.0
        %3136 = vmatprep.subr.mxu0 0.0
        %3137 = vmatpush2.msra.mxu0 0.0
        %3138 = vmatprep.subr.mxu0 0.0
        %3139 = vmatpush2.msra.mxu0 0.0
        %3140 = vmatprep.subr.mxu0 0.0
        %3141 = vmatpush2.msra.mxu0 0.0
        %3142 = vmatprep.subr.mxu0 0.0
        %3143 = vmatpush2.msra.mxu0 0.0
        %3144 = vmatprep.subr.mxu0 0.0
        %3145 = vmatpush2.msra.mxu0 0.0
        %3146 = vmatprep.subr.mxu0 0.0
        %3147 = vmatpush2.msra.mxu0 0.0
        %3148 = vmatprep.subr.mxu0 0.0
        %3149 = vmatpush2.msra.mxu0 0.0
        %3150 = vmatprep.subr.mxu0 0.0
        %3151 = vmatpush2.msra.mxu0 0.0
        %3152 = vmatprep.subr.mxu0 0.0
        %3153 = vmatpush2.msra.mxu0 0.0
        %3154 = vmatprep.subr.mxu0 0.0
        %3155 = vmatpush2.msra.mxu0 0.0
        %3156 = vmatprep.subr.mxu0 0.0
        %3157 = vmatpush2.msra.mxu0 0.0
        %3158 = vmatprep.mubr.f32.mxu0 0.0
        %3159 = vmatmul.mubr.f32.gmra.mxu0 %v3061
        %v3160 = vpop.f32.mrf.mxu0
        %v3161 = vadd.f32 0.0, %v3160
        %v3162 = vpop.f32.mrf.mxu0
        %3163 = vmatprep.mubr.f32.mxu0 0.0
        %3164 = vmatmul.mubr.f32.gmra.mxu0 %v3062
        %v3165 = vpop.f32.mrf.mxu0
        %v3166 = vadd.f32 0.0, %v3165
        %v3167 = vpop.f32.mrf.mxu0
        %3168 = vmatprep.mubr.f32.mxu0 0.0
        %3169 = vmatmul.mubr.f32.gmra.mxu0 %v3063
        %v3170 = vpop.f32.mrf.mxu0
        %v3171 = vadd.f32 0.0, %v3170
        %v3172 = vpop.f32.mrf.mxu0
        %3173 = vmatprep.mubr.f32.mxu0 0.0
        %3174 = vmatmul.mubr.f32.gmra.mxu0 %v3064
        %v3175 = vpop.f32.mrf.mxu0
        %v3176 = vadd.f32 0.0, %v3175
        %v3177 = vpop.f32.mrf.mxu0
        %3178 = vmatprep.mubr.f32.mxu0 0.0
        %3179 = vmatmul.mubr.f32.gmra.mxu0 %v3065
        %v3180 = vpop.f32.mrf.mxu0
        %v3181 = vadd.f32 0.0, %v3180
        %v3182 = vpop.f32.mrf.mxu0
        %3183 = vmatprep.mubr.f32.mxu0 0.0
        %3184 = vmatmul.mubr.f32.gmra.mxu0 %v3066
        %v3185 = vpop.f32.mrf.mxu0
        %v3186 = vadd.f32 0.0, %v3185
        %v3187 = vpop.f32.mrf.mxu0
        %3188 = vmatprep.mubr.f32.mxu0 0.0
        %3189 = vmatmul.mubr.f32.gmra.mxu0 %v3067
        %v3190 = vpop.f32.mrf.mxu0
        %v3191 = vadd.f32 0.0, %v3190
        %v3192 = vpop.f32.mrf.mxu0
        %3193 = vmatprep.mubr.f32.mxu0 0.0
        %3194 = vmatmul.mubr.f32.gmra.mxu0 %v3068
        %v3195 = vpop.f32.mrf.mxu0
        %v3196 = vadd.f32 0.0, %v3195
        %v3197 = vpop.f32.mrf.mxu0
        %3198 = vmatprep.mubr.f32.mxu0 0.0
        %3199 = vmatmul.mubr.f32.gmra.mxu0 %v3069
        %v3200 = vpop.f32.mrf.mxu0
        %v3201 = vadd.f32 0.0, %v3200
        %v3202 = vpop.f32.mrf.mxu0
        %3203 = vmatprep.mubr.f32.mxu0 0.0
        %3204 = vmatmul.mubr.f32.gmra.mxu0 %v3070
        %v3205 = vpop.f32.mrf.mxu0
        %v3206 = vadd.f32 0.0, %v3205
        %v3207 = vpop.f32.mrf.mxu0
        %3208 = vmatprep.mubr.f32.mxu0 0.0
        %3209 = vmatmul.mubr.f32.gmra.mxu0 %v3071
        %v3210 = vpop.f32.mrf.mxu0
        %v3211 = vadd.f32 0.0, %v3210
        %v3212 = vpop.f32.mrf.mxu0
        %3213 = vmatprep.mubr.f32.mxu0 0.0
        %3214 = vmatmul.mubr.f32.gmra.mxu0 %v3072
        %v3215 = vpop.f32.mrf.mxu0
        %v3216 = vadd.f32 0.0, %v3215
        %v3217 = vpop.f32.mrf.mxu0
        %3218 = vmatprep.mubr.f32.mxu0 0.0
        %3219 = vmatmul.mubr.f32.gmra.mxu0 %v3073
        %v3220 = vpop.f32.mrf.mxu0
        %v3221 = vadd.f32 0.0, %v3220
        %v3222 = vpop.f32.mrf.mxu0
        %3223 = vmatprep.mubr.f32.mxu0 0.0
        %3224 = vmatmul.mubr.f32.gmra.mxu0 %v3074
        %v3225 = vpop.f32.mrf.mxu0
        %v3226 = vadd.f32 0.0, %v3225
        %v3227 = vpop.f32.mrf.mxu0
        %3228 = vmatprep.mubr.f32.mxu0 0.0
        %3229 = vmatmul.mubr.f32.gmra.mxu0 %v3075
        %v3230 = vpop.f32.mrf.mxu0
        %v3231 = vadd.f32 0.0, %v3230
        %v3232 = vpop.f32.mrf.mxu0
        %3233 = vmatprep.mubr.f32.mxu0 0.0
        %3234 = vmatmul.mubr.f32.gmra.mxu0 %v3076
        %v3235 = vpop.f32.mrf.mxu0
        %v3236 = vadd.f32 0.0, %v3235
        %v3237 = vpop.f32.mrf.mxu0
        %3238 = vdwg.mxu0
        %3239 = vmatprep.subr.mxu0 0.0
        %3240 = vmatpush1.msra.mxu0 %v608
        %3241 = vmatprep.subr.mxu0 0.0
        %3242 = vmatpush1.msra.mxu0 %v607
        %3243 = vmatprep.subr.mxu0 0.0
        %3244 = vmatpush1.msra.mxu0 %v606
        %3245 = vmatprep.subr.mxu0 0.0
        %3246 = vmatpush1.msra.mxu0 %v605
        %3247 = vmatprep.subr.mxu0 0.0
        %3248 = vmatpush1.msra.mxu0 %v604
        %3249 = vmatprep.subr.mxu0 0.0
        %3250 = vmatpush1.msra.mxu0 %v603
        %3251 = vmatprep.subr.mxu0 0.0
        %3252 = vmatpush1.msra.mxu0 %v602
        %3253 = vmatprep.subr.mxu0 0.0
        %3254 = vmatpush1.msra.mxu0 %v601
        %3255 = vmatprep.subr.mxu0 0.0
        %3256 = vmatpush1.msra.mxu0 %v600
        %3257 = vmatprep.subr.mxu0 0.0
        %3258 = vmatpush1.msra.mxu0 %v599
        %3259 = vmatprep.subr.mxu0 0.0
        %3260 = vmatpush1.msra.mxu0 %v598
        %3261 = vmatprep.subr.mxu0 0.0
        %3262 = vmatpush1.msra.mxu0 %v597
        %3263 = vmatprep.subr.mxu0 0.0
        %3264 = vmatpush1.msra.mxu0 %v596
        %3265 = vmatprep.subr.mxu0 0.0
        %3266 = vmatpush1.msra.mxu0 %v595
        %3267 = vmatprep.subr.mxu0 0.0
        %3268 = vmatpush1.msra.mxu0 %v594
        %3269 = vmatprep.subr.mxu0 0.0
        %3270 = vmatpush1.msra.mxu0 %v593
        %3271 = vmatprep.subr.mxu0 0.0
        %3272 = vmatpush2.msra.mxu0 0.0
        %3273 = vmatprep.subr.mxu0 0.0
        %3274 = vmatpush2.msra.mxu0 0.0
        %3275 = vmatprep.subr.mxu0 0.0
        %3276 = vmatpush2.msra.mxu0 0.0
        %3277 = vmatprep.subr.mxu0 0.0
        %3278 = vmatpush2.msra.mxu0 0.0
        %3279 = vmatprep.subr.mxu0 0.0
        %3280 = vmatpush2.msra.mxu0 0.0
        %3281 = vmatprep.subr.mxu0 0.0
        %3282 = vmatpush2.msra.mxu0 0.0
        %3283 = vmatprep.subr.mxu0 0.0
        %3284 = vmatpush2.msra.mxu0 0.0
        %3285 = vmatprep.subr.mxu0 0.0
        %3286 = vmatpush2.msra.mxu0 0.0
        %3287 = vmatprep.subr.mxu0 0.0
        %3288 = vmatpush2.msra.mxu0 0.0
        %3289 = vmatprep.subr.mxu0 0.0
        %3290 = vmatpush2.msra.mxu0 0.0
        %3291 = vmatprep.subr.mxu0 0.0
        %3292 = vmatpush2.msra.mxu0 0.0
        %3293 = vmatprep.subr.mxu0 0.0
        %3294 = vmatpush2.msra.mxu0 0.0
        %3295 = vmatprep.subr.mxu0 0.0
        %3296 = vmatpush2.msra.mxu0 0.0
        %3297 = vmatprep.subr.mxu0 0.0
        %3298 = vmatpush2.msra.mxu0 0.0
        %3299 = vmatprep.subr.mxu0 0.0
        %3300 = vmatpush2.msra.mxu0 0.0
        %3301 = vmatprep.subr.mxu0 0.0
        %3302 = vmatpush2.msra.mxu0 0.0
        %3303 = vmatprep.mubr.f32.mxu0 0.0
        %3304 = vmatmul.mubr.f32.gmra.mxu0 %v3078
        %v3305 = vpop.f32.mrf.mxu0
        %v3306 = vadd.f32 0.0, %v3305
        %v3307 = vpop.f32.mrf.mxu0
        %3308 = vmatprep.mubr.f32.mxu0 0.0
        %3309 = vmatmul.mubr.f32.gmra.mxu0 %v3079
        %v3310 = vpop.f32.mrf.mxu0
        %v3311 = vadd.f32 0.0, %v3310
        %v3312 = vpop.f32.mrf.mxu0
        %3313 = vmatprep.mubr.f32.mxu0 0.0
        %3314 = vmatmul.mubr.f32.gmra.mxu0 %v3080
        %v3315 = vpop.f32.mrf.mxu0
        %v3316 = vadd.f32 0.0, %v3315
        %v3317 = vpop.f32.mrf.mxu0
        %3318 = vmatprep.mubr.f32.mxu0 0.0
        %3319 = vmatmul.mubr.f32.gmra.mxu0 %v3081
        %v3320 = vpop.f32.mrf.mxu0
        %v3321 = vadd.f32 0.0, %v3320
        %v3322 = vpop.f32.mrf.mxu0
        %3323 = vmatprep.mubr.f32.mxu0 0.0
        %3324 = vmatmul.mubr.f32.gmra.mxu0 %v3082
        %v3325 = vpop.f32.mrf.mxu0
        %v3326 = vadd.f32 0.0, %v3325
        %v3327 = vpop.f32.mrf.mxu0
        %3328 = vmatprep.mubr.f32.mxu0 0.0
        %3329 = vmatmul.mubr.f32.gmra.mxu0 %v3083
        %v3330 = vpop.f32.mrf.mxu0
        %v3331 = vadd.f32 0.0, %v3330
        %v3332 = vpop.f32.mrf.mxu0
        %3333 = vmatprep.mubr.f32.mxu0 0.0
        %3334 = vmatmul.mubr.f32.gmra.mxu0 %v3084
        %v3335 = vpop.f32.mrf.mxu0
        %v3336 = vadd.f32 0.0, %v3335
        %v3337 = vpop.f32.mrf.mxu0
        %3338 = vmatprep.mubr.f32.mxu0 0.0
        %3339 = vmatmul.mubr.f32.gmra.mxu0 %v3085
        %v3340 = vpop.f32.mrf.mxu0
        %v3341 = vadd.f32 0.0, %v3340
        %v3342 = vpop.f32.mrf.mxu0
        %3343 = vmatprep.mubr.f32.mxu0 0.0
        %3344 = vmatmul.mubr.f32.gmra.mxu0 %v3086
        %v3345 = vpop.f32.mrf.mxu0
        %v3346 = vadd.f32 0.0, %v3345
        %v3347 = vpop.f32.mrf.mxu0
        %3348 = vmatprep.mubr.f32.mxu0 0.0
        %3349 = vmatmul.mubr.f32.gmra.mxu0 %v3087
        %v3350 = vpop.f32.mrf.mxu0
        %v3351 = vadd.f32 0.0, %v3350
        %v3352 = vpop.f32.mrf.mxu0
        %3353 = vmatprep.mubr.f32.mxu0 0.0
        %3354 = vmatmul.mubr.f32.gmra.mxu0 %v3088
        %v3355 = vpop.f32.mrf.mxu0
        %v3356 = vadd.f32 0.0, %v3355
        %v3357 = vpop.f32.mrf.mxu0
        %3358 = vmatprep.mubr.f32.mxu0 0.0
        %3359 = vmatmul.mubr.f32.gmra.mxu0 %v3089
        %v3360 = vpop.f32.mrf.mxu0
        %v3361 = vadd.f32 0.0, %v3360
        %v3362 = vpop.f32.mrf.mxu0
        %3363 = vmatprep.mubr.f32.mxu0 0.0
        %3364 = vmatmul.mubr.f32.gmra.mxu0 %v3090
        %v3365 = vpop.f32.mrf.mxu0
        %v3366 = vadd.f32 0.0, %v3365
        %v3367 = vpop.f32.mrf.mxu0
        %3368 = vmatprep.mubr.f32.mxu0 0.0
        %3369 = vmatmul.mubr.f32.gmra.mxu0 %v3091
        %v3370 = vpop.f32.mrf.mxu0
        %v3371 = vadd.f32 0.0, %v3370
        %v3372 = vpop.f32.mrf.mxu0
        %3373 = vmatprep.mubr.f32.mxu0 0.0
        %3374 = vmatmul.mubr.f32.gmra.mxu0 %v3092
        %v3375 = vpop.f32.mrf.mxu0
        %v3376 = vadd.f32 0.0, %v3375
        %v3377 = vpop.f32.mrf.mxu0
        %3378 = vmatprep.mubr.f32.mxu0 0.0
        %3379 = vmatmul.mubr.f32.gmra.mxu0 %v3093
        %v3380 = vpop.f32.mrf.mxu0
        %v3381 = vadd.f32 0.0, %v3380
        %v3382 = vpop.f32.mrf.mxu0
        %3383 = vdwg.mxu0
        %v3384 = vsub.f32 %v3161, %v3306
        %v3385 = vsub.f32 %v3166, %v3311
        %v3386 = vsub.f32 %v3171, %v3316
        %v3387 = vsub.f32 %v3176, %v3321
        %v3388 = vsub.f32 %v3181, %v3326
        %v3389 = vsub.f32 %v3186, %v3331
        %v3390 = vsub.f32 %v3191, %v3336
        %v3391 = vsub.f32 %v3196, %v3341
        %v3392 = vsub.f32 %v3201, %v3346
        %v3393 = vsub.f32 %v3206, %v3351
        %v3394 = vsub.f32 %v3211, %v3356
        %v3395 = vsub.f32 %v3216, %v3361
        %v3396 = vsub.f32 %v3221, %v3366
        %v3397 = vsub.f32 %v3226, %v3371
        %v3398 = vsub.f32 %v3231, %v3376
        %v3399 = vsub.f32 %v3236, %v3381
        %3400 = vmatprep.subr.mxu0 0.0
        %3401 = vmatpush1.msra.mxu0 %v592
        %3402 = vmatprep.subr.mxu0 0.0
        %3403 = vmatpush1.msra.mxu0 %v591
        %3404 = vmatprep.subr.mxu0 0.0
        %3405 = vmatpush1.msra.mxu0 %v590
        %3406 = vmatprep.subr.mxu0 0.0
        %3407 = vmatpush1.msra.mxu0 %v589
        %3408 = vmatprep.subr.mxu0 0.0
        %3409 = vmatpush1.msra.mxu0 %v588
        %3410 = vmatprep.subr.mxu0 0.0
        %3411 = vmatpush1.msra.mxu0 %v587
        %3412 = vmatprep.subr.mxu0 0.0
        %3413 = vmatpush1.msra.mxu0 %v586
        %3414 = vmatprep.subr.mxu0 0.0
        %3415 = vmatpush1.msra.mxu0 %v585
        %3416 = vmatprep.subr.mxu0 0.0
        %3417 = vmatpush1.msra.mxu0 %v584
        %3418 = vmatprep.subr.mxu0 0.0
        %3419 = vmatpush1.msra.mxu0 %v583
        %3420 = vmatprep.subr.mxu0 0.0
        %3421 = vmatpush1.msra.mxu0 %v582
        %3422 = vmatprep.subr.mxu0 0.0
        %3423 = vmatpush1.msra.mxu0 %v581
        %3424 = vmatprep.subr.mxu0 0.0
        %3425 = vmatpush1.msra.mxu0 %v580
        %3426 = vmatprep.subr.mxu0 0.0
        %3427 = vmatpush1.msra.mxu0 %v579
        %3428 = vmatprep.subr.mxu0 0.0
        %3429 = vmatpush1.msra.mxu0 %v578
        %3430 = vmatprep.subr.mxu0 0.0
        %3431 = vmatpush1.msra.mxu0 %v577
        %3432 = vmatprep.subr.mxu0 0.0
        %3433 = vmatpush2.msra.mxu0 0.0
        %3434 = vmatprep.subr.mxu0 0.0
        %3435 = vmatpush2.msra.mxu0 0.0
        %3436 = vmatprep.subr.mxu0 0.0
        %3437 = vmatpush2.msra.mxu0 0.0
        %3438 = vmatprep.subr.mxu0 0.0
        %3439 = vmatpush2.msra.mxu0 0.0
        %3440 = vmatprep.subr.mxu0 0.0
        %3441 = vmatpush2.msra.mxu0 0.0
        %3442 = vmatprep.subr.mxu0 0.0
        %3443 = vmatpush2.msra.mxu0 0.0
        %3444 = vmatprep.subr.mxu0 0.0
        %3445 = vmatpush2.msra.mxu0 0.0
        %3446 = vmatprep.subr.mxu0 0.0
        %3447 = vmatpush2.msra.mxu0 0.0
        %3448 = vmatprep.subr.mxu0 0.0
        %3449 = vmatpush2.msra.mxu0 0.0
        %3450 = vmatprep.subr.mxu0 0.0
        %3451 = vmatpush2.msra.mxu0 0.0
        %3452 = vmatprep.subr.mxu0 0.0
        %3453 = vmatpush2.msra.mxu0 0.0
        %3454 = vmatprep.subr.mxu0 0.0
        %3455 = vmatpush2.msra.mxu0 0.0
        %3456 = vmatprep.subr.mxu0 0.0
        %3457 = vmatpush2.msra.mxu0 0.0
        %3458 = vmatprep.subr.mxu0 0.0
        %3459 = vmatpush2.msra.mxu0 0.0
        %3460 = vmatprep.subr.mxu0 0.0
        %3461 = vmatpush2.msra.mxu0 0.0
        %3462 = vmatprep.subr.mxu0 0.0
        %3463 = vmatpush2.msra.mxu0 0.0
        %3464 = vmatprep.mubr.f32.mxu0 0.0
        %3465 = vmatmul.mubr.f32.gmra.mxu0 %v3078
        %v3466 = vpop.f32.mrf.mxu0
        %v3467 = vadd.f32 0.0, %v3466
        %v3468 = vpop.f32.mrf.mxu0
        %3469 = vmatprep.mubr.f32.mxu0 0.0
        %3470 = vmatmul.mubr.f32.gmra.mxu0 %v3079
        %v3471 = vpop.f32.mrf.mxu0
        %v3472 = vadd.f32 0.0, %v3471
        %v3473 = vpop.f32.mrf.mxu0
        %3474 = vmatprep.mubr.f32.mxu0 0.0
        %3475 = vmatmul.mubr.f32.gmra.mxu0 %v3080
        %v3476 = vpop.f32.mrf.mxu0
        %v3477 = vadd.f32 0.0, %v3476
        %v3478 = vpop.f32.mrf.mxu0
        %3479 = vmatprep.mubr.f32.mxu0 0.0
        %3480 = vmatmul.mubr.f32.gmra.mxu0 %v3081
        %v3481 = vpop.f32.mrf.mxu0
        %v3482 = vadd.f32 0.0, %v3481
        %v3483 = vpop.f32.mrf.mxu0
        %3484 = vmatprep.mubr.f32.mxu0 0.0
        %3485 = vmatmul.mubr.f32.gmra.mxu0 %v3082
        %v3486 = vpop.f32.mrf.mxu0
        %v3487 = vadd.f32 0.0, %v3486
        %v3488 = vpop.f32.mrf.mxu0
        %3489 = vmatprep.mubr.f32.mxu0 0.0
        %3490 = vmatmul.mubr.f32.gmra.mxu0 %v3083
        %v3491 = vpop.f32.mrf.mxu0
        %v3492 = vadd.f32 0.0, %v3491
        %v3493 = vpop.f32.mrf.mxu0
        %3494 = vmatprep.mubr.f32.mxu0 0.0
        %3495 = vmatmul.mubr.f32.gmra.mxu0 %v3084
        %v3496 = vpop.f32.mrf.mxu0
        %v3497 = vadd.f32 0.0, %v3496
        %v3498 = vpop.f32.mrf.mxu0
        %3499 = vmatprep.mubr.f32.mxu0 0.0
        %3500 = vmatmul.mubr.f32.gmra.mxu0 %v3085
        %v3501 = vpop.f32.mrf.mxu0
        %v3502 = vadd.f32 0.0, %v3501
        %v3503 = vpop.f32.mrf.mxu0
        %3504 = vmatprep.mubr.f32.mxu0 0.0
        %3505 = vmatmul.mubr.f32.gmra.mxu0 %v3086
        %v3506 = vpop.f32.mrf.mxu0
        %v3507 = vadd.f32 0.0, %v3506
        %v3508 = vpop.f32.mrf.mxu0
        %3509 = vmatprep.mubr.f32.mxu0 0.0
        %3510 = vmatmul.mubr.f32.gmra.mxu0 %v3087
        %v3511 = vpop.f32.mrf.mxu0
        %v3512 = vadd.f32 0.0, %v3511
        %v3513 = vpop.f32.mrf.mxu0
        %3514 = vmatprep.mubr.f32.mxu0 0.0
        %3515 = vmatmul.mubr.f32.gmra.mxu0 %v3088
        %v3516 = vpop.f32.mrf.mxu0
        %v3517 = vadd.f32 0.0, %v3516
        %v3518 = vpop.f32.mrf.mxu0
        %3519 = vmatprep.mubr.f32.mxu0 0.0
        %3520 = vmatmul.mubr.f32.gmra.mxu0 %v3089
        %v3521 = vpop.f32.mrf.mxu0
        %v3522 = vadd.f32 0.0, %v3521
        %v3523 = vpop.f32.mrf.mxu0
        %3524 = vmatprep.mubr.f32.mxu0 0.0
        %3525 = vmatmul.mubr.f32.gmra.mxu0 %v3090
        %v3526 = vpop.f32.mrf.mxu0
        %v3527 = vadd.f32 0.0, %v3526
        %v3528 = vpop.f32.mrf.mxu0
        %3529 = vmatprep.mubr.f32.mxu0 0.0
        %3530 = vmatmul.mubr.f32.gmra.mxu0 %v3091
        %v3531 = vpop.f32.mrf.mxu0
        %v3532 = vadd.f32 0.0, %v3531
        %v3533 = vpop.f32.mrf.mxu0
        %3534 = vmatprep.mubr.f32.mxu0 0.0
        %3535 = vmatmul.mubr.f32.gmra.mxu0 %v3092
        %v3536 = vpop.f32.mrf.mxu0
        %v3537 = vadd.f32 0.0, %v3536
        %v3538 = vpop.f32.mrf.mxu0
        %3539 = vmatprep.mubr.f32.mxu0 0.0
        %3540 = vmatmul.mubr.f32.gmra.mxu0 %v3093
        %v3541 = vpop.f32.mrf.mxu0
        %v3542 = vadd.f32 0.0, %v3541
        %v3543 = vpop.f32.mrf.mxu0
        %3544 = vdwg.mxu0
        %3545 = vmatprep.subr.mxu0 0.0
        %3546 = vmatpush1.msra.mxu0 %v608
        %3547 = vmatprep.subr.mxu0 0.0
        %3548 = vmatpush1.msra.mxu0 %v607
        %3549 = vmatprep.subr.mxu0 0.0
        %3550 = vmatpush1.msra.mxu0 %v606
        %3551 = vmatprep.subr.mxu0 0.0
        %3552 = vmatpush1.msra.mxu0 %v605
        %3553 = vmatprep.subr.mxu0 0.0
        %3554 = vmatpush1.msra.mxu0 %v604
        %3555 = vmatprep.subr.mxu0 0.0
        %3556 = vmatpush1.msra.mxu0 %v603
        %3557 = vmatprep.subr.mxu0 0.0
        %3558 = vmatpush1.msra.mxu0 %v602
        %3559 = vmatprep.subr.mxu0 0.0
        %3560 = vmatpush1.msra.mxu0 %v601
        %3561 = vmatprep.subr.mxu0 0.0
        %3562 = vmatpush1.msra.mxu0 %v600
        %3563 = vmatprep.subr.mxu0 0.0
        %3564 = vmatpush1.msra.mxu0 %v599
        %3565 = vmatprep.subr.mxu0 0.0
        %3566 = vmatpush1.msra.mxu0 %v598
        %3567 = vmatprep.subr.mxu0 0.0
        %3568 = vmatpush1.msra.mxu0 %v597
        %3569 = vmatprep.subr.mxu0 0.0
        %3570 = vmatpush1.msra.mxu0 %v596
        %3571 = vmatprep.subr.mxu0 0.0
        %3572 = vmatpush1.msra.mxu0 %v595
        %3573 = vmatprep.subr.mxu0 0.0
        %3574 = vmatpush1.msra.mxu0 %v594
        %3575 = vmatprep.subr.mxu0 0.0
        %3576 = vmatpush1.msra.mxu0 %v593
        %3577 = vmatprep.subr.mxu0 0.0
        %3578 = vmatpush2.msra.mxu0 0.0
        %3579 = vmatprep.subr.mxu0 0.0
        %3580 = vmatpush2.msra.mxu0 0.0
        %3581 = vmatprep.subr.mxu0 0.0
        %3582 = vmatpush2.msra.mxu0 0.0
        %3583 = vmatprep.subr.mxu0 0.0
        %3584 = vmatpush2.msra.mxu0 0.0
        %3585 = vmatprep.subr.mxu0 0.0
        %3586 = vmatpush2.msra.mxu0 0.0
        %3587 = vmatprep.subr.mxu0 0.0
        %3588 = vmatpush2.msra.mxu0 0.0
        %3589 = vmatprep.subr.mxu0 0.0
        %3590 = vmatpush2.msra.mxu0 0.0
        %3591 = vmatprep.subr.mxu0 0.0
        %3592 = vmatpush2.msra.mxu0 0.0
        %3593 = vmatprep.subr.mxu0 0.0
        %3594 = vmatpush2.msra.mxu0 0.0
        %3595 = vmatprep.subr.mxu0 0.0
        %3596 = vmatpush2.msra.mxu0 0.0
        %3597 = vmatprep.subr.mxu0 0.0
        %3598 = vmatpush2.msra.mxu0 0.0
        %3599 = vmatprep.subr.mxu0 0.0
        %3600 = vmatpush2.msra.mxu0 0.0
        %3601 = vmatprep.subr.mxu0 0.0
        %3602 = vmatpush2.msra.mxu0 0.0
        %3603 = vmatprep.subr.mxu0 0.0
        %3604 = vmatpush2.msra.mxu0 0.0
        %3605 = vmatprep.subr.mxu0 0.0
        %3606 = vmatpush2.msra.mxu0 0.0
        %3607 = vmatprep.subr.mxu0 0.0
        %3608 = vmatpush2.msra.mxu0 0.0
        %3609 = vmatprep.mubr.f32.mxu0 0.0
        %3610 = vmatmul.mubr.f32.gmra.mxu0 %v3061
        %v3611 = vpop.f32.mrf.mxu0
        %v3612 = vadd.f32 %v3467, %v3611
        %v3613 = vpop.f32.mrf.mxu0
        %3614 = vmatprep.mubr.f32.mxu0 0.0
        %3615 = vmatmul.mubr.f32.gmra.mxu0 %v3062
        %v3616 = vpop.f32.mrf.mxu0
        %v3617 = vadd.f32 %v3472, %v3616
        %v3618 = vpop.f32.mrf.mxu0
        %3619 = vmatprep.mubr.f32.mxu0 0.0
        %3620 = vmatmul.mubr.f32.gmra.mxu0 %v3063
        %v3621 = vpop.f32.mrf.mxu0
        %v3622 = vadd.f32 %v3477, %v3621
        %v3623 = vpop.f32.mrf.mxu0
        %3624 = vmatprep.mubr.f32.mxu0 0.0
        %3625 = vmatmul.mubr.f32.gmra.mxu0 %v3064
        %v3626 = vpop.f32.mrf.mxu0
        %v3627 = vadd.f32 %v3482, %v3626
        %v3628 = vpop.f32.mrf.mxu0
        %3629 = vmatprep.mubr.f32.mxu0 0.0
        %3630 = vmatmul.mubr.f32.gmra.mxu0 %v3065
        %v3631 = vpop.f32.mrf.mxu0
        %v3632 = vadd.f32 %v3487, %v3631
        %v3633 = vpop.f32.mrf.mxu0
        %3634 = vmatprep.mubr.f32.mxu0 0.0
        %3635 = vmatmul.mubr.f32.gmra.mxu0 %v3066
        %v3636 = vpop.f32.mrf.mxu0
        %v3637 = vadd.f32 %v3492, %v3636
        %v3638 = vpop.f32.mrf.mxu0
        %3639 = vmatprep.mubr.f32.mxu0 0.0
        %3640 = vmatmul.mubr.f32.gmra.mxu0 %v3067
        %v3641 = vpop.f32.mrf.mxu0
        %v3642 = vadd.f32 %v3497, %v3641
        %v3643 = vpop.f32.mrf.mxu0
        %3644 = vmatprep.mubr.f32.mxu0 0.0
        %3645 = vmatmul.mubr.f32.gmra.mxu0 %v3068
        %v3646 = vpop.f32.mrf.mxu0
        %v3647 = vadd.f32 %v3502, %v3646
        %v3648 = vpop.f32.mrf.mxu0
        %3649 = vmatprep.mubr.f32.mxu0 0.0
        %3650 = vmatmul.mubr.f32.gmra.mxu0 %v3069
        %v3651 = vpop.f32.mrf.mxu0
        %v3652 = vadd.f32 %v3507, %v3651
        %v3653 = vpop.f32.mrf.mxu0
        %3654 = vmatprep.mubr.f32.mxu0 0.0
        %3655 = vmatmul.mubr.f32.gmra.mxu0 %v3070
        %v3656 = vpop.f32.mrf.mxu0
        %v3657 = vadd.f32 %v3512, %v3656
        %v3658 = vpop.f32.mrf.mxu0
        %3659 = vmatprep.mubr.f32.mxu0 0.0
        %3660 = vmatmul.mubr.f32.gmra.mxu0 %v3071
        %v3661 = vpop.f32.mrf.mxu0
        %v3662 = vadd.f32 %v3517, %v3661
        %v3663 = vpop.f32.mrf.mxu0
        %3664 = vmatprep.mubr.f32.mxu0 0.0
        %3665 = vmatmul.mubr.f32.gmra.mxu0 %v3072
        %v3666 = vpop.f32.mrf.mxu0
        %v3667 = vadd.f32 %v3522, %v3666
        %v3668 = vpop.f32.mrf.mxu0
        %3669 = vmatprep.mubr.f32.mxu0 0.0
        %3670 = vmatmul.mubr.f32.gmra.mxu0 %v3073
        %v3671 = vpop.f32.mrf.mxu0
        %v3672 = vadd.f32 %v3527, %v3671
        %v3673 = vpop.f32.mrf.mxu0
        %3674 = vmatprep.mubr.f32.mxu0 0.0
        %3675 = vmatmul.mubr.f32.gmra.mxu0 %v3074
        %v3676 = vpop.f32.mrf.mxu0
        %v3677 = vadd.f32 %v3532, %v3676
        %v3678 = vpop.f32.mrf.mxu0
        %3679 = vmatprep.mubr.f32.mxu0 0.0
        %3680 = vmatmul.mubr.f32.gmra.mxu0 %v3075
        %v3681 = vpop.f32.mrf.mxu0
        %v3682 = vadd.f32 %v3537, %v3681
        %v3683 = vpop.f32.mrf.mxu0
        %3684 = vmatprep.mubr.f32.mxu0 0.0
        %3685 = vmatmul.mubr.f32.gmra.mxu0 %v3076
        %v3686 = vpop.f32.mrf.mxu0
        %v3687 = vadd.f32 %v3542, %v3686
        %v3688 = vpop.f32.mrf.mxu0
        %3689 = vdwg.mxu0
        %3690 = vmatprep.subr.mxu0 0.0
        %3691 = vmatpush1.xpose.msra.mxu0 %v3093
        %3692 = vmatprep.subr.mxu0 0.0
        %3693 = vmatpush1.xpose.msra.mxu0 %v3092
        %3694 = vmatprep.subr.mxu0 0.0
        %3695 = vmatpush1.xpose.msra.mxu0 %v3091
        %3696 = vmatprep.subr.mxu0 0.0
        %3697 = vmatpush1.xpose.msra.mxu0 %v3090
        %3698 = vmatprep.subr.mxu0 0.0
        %3699 = vmatpush1.xpose.msra.mxu0 %v3089
        %3700 = vmatprep.subr.mxu0 0.0
        %3701 = vmatpush1.xpose.msra.mxu0 %v3088
        %3702 = vmatprep.subr.mxu0 0.0
        %3703 = vmatpush1.xpose.msra.mxu0 %v3087
        %3704 = vmatprep.subr.mxu0 0.0
        %3705 = vmatpush1.xpose.msra.mxu0 %v3086
        %3706 = vmatprep.subr.mxu0 0.0
        %3707 = vmatpush1.xpose.msra.mxu0 %v3085
        %3708 = vmatprep.subr.mxu0 0.0
        %3709 = vmatpush1.xpose.msra.mxu0 %v3084
        %3710 = vmatprep.subr.mxu0 0.0
        %3711 = vmatpush1.xpose.msra.mxu0 %v3083
        %3712 = vmatprep.subr.mxu0 0.0
        %3713 = vmatpush1.xpose.msra.mxu0 %v3082
        %3714 = vmatprep.subr.mxu0 0.0
        %3715 = vmatpush1.xpose.msra.mxu0 %v3081
        %3716 = vmatprep.subr.mxu0 0.0
        %3717 = vmatpush1.xpose.msra.mxu0 %v3080
        %3718 = vmatprep.subr.mxu0 0.0
        %3719 = vmatpush1.xpose.msra.mxu0 %v3079
        %3720 = vmatprep.subr.mxu0 0.0
        %3721 = vmatpush1.xpose.msra.mxu0 %v3078
        %3722 = vmatprep.subr.mxu0 0.0
        %3723 = vmatpush2.xpose.msra.mxu0 0.0
        %3724 = vmatprep.subr.mxu0 0.0
        %3725 = vmatpush2.xpose.msra.mxu0 0.0
        %3726 = vmatprep.subr.mxu0 0.0
        %3727 = vmatpush2.xpose.msra.mxu0 0.0
        %3728 = vmatprep.subr.mxu0 0.0
        %3729 = vmatpush2.xpose.msra.mxu0 0.0
        %3730 = vmatprep.subr.mxu0 0.0
        %3731 = vmatpush2.xpose.msra.mxu0 0.0
        %3732 = vmatprep.subr.mxu0 0.0
        %3733 = vmatpush2.xpose.msra.mxu0 0.0
        %3734 = vmatprep.subr.mxu0 0.0
        %3735 = vmatpush2.xpose.msra.mxu0 0.0
        %3736 = vmatprep.subr.mxu0 0.0
        %3737 = vmatpush2.xpose.msra.mxu0 0.0
        %3738 = vmatprep.subr.mxu0 0.0
        %3739 = vmatpush2.xpose.msra.mxu0 0.0
        %3740 = vmatprep.subr.mxu0 0.0
        %3741 = vmatpush2.xpose.msra.mxu0 0.0
        %3742 = vmatprep.subr.mxu0 0.0
        %3743 = vmatpush2.xpose.msra.mxu0 0.0
        %3744 = vmatprep.subr.mxu0 0.0
        %3745 = vmatpush2.xpose.msra.mxu0 0.0
        %3746 = vmatprep.subr.mxu0 0.0
        %3747 = vmatpush2.xpose.msra.mxu0 0.0
        %3748 = vmatprep.subr.mxu0 0.0
        %3749 = vmatpush2.xpose.msra.mxu0 0.0
        %3750 = vmatprep.subr.mxu0 0.0
        %3751 = vmatpush2.xpose.msra.mxu0 0.0
        %3752 = vmatprep.subr.mxu0 0.0
        %3753 = vmatpush2.xpose.msra.mxu0 0.0
        %3754 = vmatprep.mubr.f32.mxu0 0.0
        %3755 = vmatmul.mubr.f32.gmra.mxu0 %v3612
        %v3756 = vpop.f32.mrf.mxu0
        %v3757 = vadd.f32 0.0, %v3756
        %v3758 = vpop.f32.mrf.mxu0
        %3759 = vmatprep.mubr.f32.mxu0 0.0
        %3760 = vmatmul.mubr.f32.gmra.mxu0 %v3617
        %v3761 = vpop.f32.mrf.mxu0
        %v3762 = vadd.f32 0.0, %v3761
        %v3763 = vpop.f32.mrf.mxu0
        %3764 = vmatprep.mubr.f32.mxu0 0.0
        %3765 = vmatmul.mubr.f32.gmra.mxu0 %v3622
        %v3766 = vpop.f32.mrf.mxu0
        %v3767 = vadd.f32 0.0, %v3766
        %v3768 = vpop.f32.mrf.mxu0
        %3769 = vmatprep.mubr.f32.mxu0 0.0
        %3770 = vmatmul.mubr.f32.gmra.mxu0 %v3627
        %v3771 = vpop.f32.mrf.mxu0
        %v3772 = vadd.f32 0.0, %v3771
        %v3773 = vpop.f32.mrf.mxu0
        %3774 = vmatprep.mubr.f32.mxu0 0.0
        %3775 = vmatmul.mubr.f32.gmra.mxu0 %v3632
        %v3776 = vpop.f32.mrf.mxu0
        %v3777 = vadd.f32 0.0, %v3776
        %v3778 = vpop.f32.mrf.mxu0
        %3779 = vmatprep.mubr.f32.mxu0 0.0
        %3780 = vmatmul.mubr.f32.gmra.mxu0 %v3637
        %v3781 = vpop.f32.mrf.mxu0
        %v3782 = vadd.f32 0.0, %v3781
        %v3783 = vpop.f32.mrf.mxu0
        %3784 = vmatprep.mubr.f32.mxu0 0.0
        %3785 = vmatmul.mubr.f32.gmra.mxu0 %v3642
        %v3786 = vpop.f32.mrf.mxu0
        %v3787 = vadd.f32 0.0, %v3786
        %v3788 = vpop.f32.mrf.mxu0
        %3789 = vmatprep.mubr.f32.mxu0 0.0
        %3790 = vmatmul.mubr.f32.gmra.mxu0 %v3647
        %v3791 = vpop.f32.mrf.mxu0
        %v3792 = vadd.f32 0.0, %v3791
        %v3793 = vpop.f32.mrf.mxu0
        %3794 = vmatprep.mubr.f32.mxu0 0.0
        %3795 = vmatmul.mubr.f32.gmra.mxu0 %v3652
        %v3796 = vpop.f32.mrf.mxu0
        %v3797 = vadd.f32 0.0, %v3796
        %v3798 = vpop.f32.mrf.mxu0
        %3799 = vmatprep.mubr.f32.mxu0 0.0
        %3800 = vmatmul.mubr.f32.gmra.mxu0 %v3657
        %v3801 = vpop.f32.mrf.mxu0
        %v3802 = vadd.f32 0.0, %v3801
        %v3803 = vpop.f32.mrf.mxu0
        %3804 = vmatprep.mubr.f32.mxu0 0.0
        %3805 = vmatmul.mubr.f32.gmra.mxu0 %v3662
        %v3806 = vpop.f32.mrf.mxu0
        %v3807 = vadd.f32 0.0, %v3806
        %v3808 = vpop.f32.mrf.mxu0
        %3809 = vmatprep.mubr.f32.mxu0 0.0
        %3810 = vmatmul.mubr.f32.gmra.mxu0 %v3667
        %v3811 = vpop.f32.mrf.mxu0
        %v3812 = vadd.f32 0.0, %v3811
        %v3813 = vpop.f32.mrf.mxu0
        %3814 = vmatprep.mubr.f32.mxu0 0.0
        %3815 = vmatmul.mubr.f32.gmra.mxu0 %v3672
        %v3816 = vpop.f32.mrf.mxu0
        %v3817 = vadd.f32 0.0, %v3816
        %v3818 = vpop.f32.mrf.mxu0
        %3819 = vmatprep.mubr.f32.mxu0 0.0
        %3820 = vmatmul.mubr.f32.gmra.mxu0 %v3677
        %v3821 = vpop.f32.mrf.mxu0
        %v3822 = vadd.f32 0.0, %v3821
        %v3823 = vpop.f32.mrf.mxu0
        %3824 = vmatprep.mubr.f32.mxu0 0.0
        %3825 = vmatmul.mubr.f32.gmra.mxu0 %v3682
        %v3826 = vpop.f32.mrf.mxu0
        %v3827 = vadd.f32 0.0, %v3826
        %v3828 = vpop.f32.mrf.mxu0
        %3829 = vmatprep.mubr.f32.mxu0 0.0
        %3830 = vmatmul.mubr.f32.gmra.mxu0 %v3687
        %v3831 = vpop.f32.mrf.mxu0
        %v3832 = vadd.f32 0.0, %v3831
        %v3833 = vpop.f32.mrf.mxu0
        %3834 = vdwg.mxu0
        %3835 = vmatprep.subr.mxu0 0.0
        %3836 = vmatpush1.xpose.msra.mxu0 %v3076
        %3837 = vmatprep.subr.mxu0 0.0
        %3838 = vmatpush1.xpose.msra.mxu0 %v3075
        %3839 = vmatprep.subr.mxu0 0.0
        %3840 = vmatpush1.xpose.msra.mxu0 %v3074
        %3841 = vmatprep.subr.mxu0 0.0
        %3842 = vmatpush1.xpose.msra.mxu0 %v3073
        %3843 = vmatprep.subr.mxu0 0.0
        %3844 = vmatpush1.xpose.msra.mxu0 %v3072
        %3845 = vmatprep.subr.mxu0 0.0
        %3846 = vmatpush1.xpose.msra.mxu0 %v3071
        %3847 = vmatprep.subr.mxu0 0.0
        %3848 = vmatpush1.xpose.msra.mxu0 %v3070
        %3849 = vmatprep.subr.mxu0 0.0
        %3850 = vmatpush1.xpose.msra.mxu0 %v3069
        %3851 = vmatprep.subr.mxu0 0.0
        %3852 = vmatpush1.xpose.msra.mxu0 %v3068
        %3853 = vmatprep.subr.mxu0 0.0
        %3854 = vmatpush1.xpose.msra.mxu0 %v3067
        %3855 = vmatprep.subr.mxu0 0.0
        %3856 = vmatpush1.xpose.msra.mxu0 %v3066
        %3857 = vmatprep.subr.mxu0 0.0
        %3858 = vmatpush1.xpose.msra.mxu0 %v3065
        %3859 = vmatprep.subr.mxu0 0.0
        %3860 = vmatpush1.xpose.msra.mxu0 %v3064
        %3861 = vmatprep.subr.mxu0 0.0
        %3862 = vmatpush1.xpose.msra.mxu0 %v3063
        %3863 = vmatprep.subr.mxu0 0.0
        %3864 = vmatpush1.xpose.msra.mxu0 %v3062
        %3865 = vmatprep.subr.mxu0 0.0
        %3866 = vmatpush1.xpose.msra.mxu0 %v3061
        %3867 = vmatprep.subr.mxu0 0.0
        %3868 = vmatpush2.xpose.msra.mxu0 0.0
        %3869 = vmatprep.subr.mxu0 0.0
        %3870 = vmatpush2.xpose.msra.mxu0 0.0
        %3871 = vmatprep.subr.mxu0 0.0
        %3872 = vmatpush2.xpose.msra.mxu0 0.0
        %3873 = vmatprep.subr.mxu0 0.0
        %3874 = vmatpush2.xpose.msra.mxu0 0.0
        %3875 = vmatprep.subr.mxu0 0.0
        %3876 = vmatpush2.xpose.msra.mxu0 0.0
        %3877 = vmatprep.subr.mxu0 0.0
        %3878 = vmatpush2.xpose.msra.mxu0 0.0
        %3879 = vmatprep.subr.mxu0 0.0
        %3880 = vmatpush2.xpose.msra.mxu0 0.0
        %3881 = vmatprep.subr.mxu0 0.0
        %3882 = vmatpush2.xpose.msra.mxu0 0.0
        %3883 = vmatprep.subr.mxu0 0.0
        %3884 = vmatpush2.xpose.msra.mxu0 0.0
        %3885 = vmatprep.subr.mxu0 0.0
        %3886 = vmatpush2.xpose.msra.mxu0 0.0
        %3887 = vmatprep.subr.mxu0 0.0
        %3888 = vmatpush2.xpose.msra.mxu0 0.0
        %3889 = vmatprep.subr.mxu0 0.0
        %3890 = vmatpush2.xpose.msra.mxu0 0.0
        %3891 = vmatprep.subr.mxu0 0.0
        %3892 = vmatpush2.xpose.msra.mxu0 0.0
        %3893 = vmatprep.subr.mxu0 0.0
        %3894 = vmatpush2.xpose.msra.mxu0 0.0
        %3895 = vmatprep.subr.mxu0 0.0
        %3896 = vmatpush2.xpose.msra.mxu0 0.0
        %3897 = vmatprep.subr.mxu0 0.0
        %3898 = vmatpush2.xpose.msra.mxu0 0.0
        %3899 = vmatprep.mubr.f32.mxu0 0.0
        %3900 = vmatmul.mubr.f32.gmra.mxu0 %v3384
        %v3901 = vpop.f32.mrf.mxu0
        %v3902 = vadd.f32 %v3757, %v3901
        %v3903 = vpop.f32.mrf.mxu0
        %3904 = vmatprep.mubr.f32.mxu0 0.0
        %3905 = vmatmul.mubr.f32.gmra.mxu0 %v3385
        %v3906 = vpop.f32.mrf.mxu0
        %v3907 = vadd.f32 %v3762, %v3906
        %v3908 = vpop.f32.mrf.mxu0
        %3909 = vmatprep.mubr.f32.mxu0 0.0
        %3910 = vmatmul.mubr.f32.gmra.mxu0 %v3386
        %v3911 = vpop.f32.mrf.mxu0
        %v3912 = vadd.f32 %v3767, %v3911
        %v3913 = vpop.f32.mrf.mxu0
        %3914 = vmatprep.mubr.f32.mxu0 0.0
        %3915 = vmatmul.mubr.f32.gmra.mxu0 %v3387
        %v3916 = vpop.f32.mrf.mxu0
        %v3917 = vadd.f32 %v3772, %v3916
        %v3918 = vpop.f32.mrf.mxu0
        %3919 = vmatprep.mubr.f32.mxu0 0.0
        %3920 = vmatmul.mubr.f32.gmra.mxu0 %v3388
        %v3921 = vpop.f32.mrf.mxu0
        %v3922 = vadd.f32 %v3777, %v3921
        %v3923 = vpop.f32.mrf.mxu0
        %3924 = vmatprep.mubr.f32.mxu0 0.0
        %3925 = vmatmul.mubr.f32.gmra.mxu0 %v3389
        %v3926 = vpop.f32.mrf.mxu0
        %v3927 = vadd.f32 %v3782, %v3926
        %v3928 = vpop.f32.mrf.mxu0
        %3929 = vmatprep.mubr.f32.mxu0 0.0
        %3930 = vmatmul.mubr.f32.gmra.mxu0 %v3390
        %v3931 = vpop.f32.mrf.mxu0
        %v3932 = vadd.f32 %v3787, %v3931
        %v3933 = vpop.f32.mrf.mxu0
        %3934 = vmatprep.mubr.f32.mxu0 0.0
        %3935 = vmatmul.mubr.f32.gmra.mxu0 %v3391
        %v3936 = vpop.f32.mrf.mxu0
        %v3937 = vadd.f32 %v3792, %v3936
        %v3938 = vpop.f32.mrf.mxu0
        %3939 = vmatprep.mubr.f32.mxu0 0.0
        %3940 = vmatmul.mubr.f32.gmra.mxu0 %v3392
        %v3941 = vpop.f32.mrf.mxu0
        %v3942 = vadd.f32 %v3797, %v3941
        %v3943 = vpop.f32.mrf.mxu0
        %3944 = vmatprep.mubr.f32.mxu0 0.0
        %3945 = vmatmul.mubr.f32.gmra.mxu0 %v3393
        %v3946 = vpop.f32.mrf.mxu0
        %v3947 = vadd.f32 %v3802, %v3946
        %v3948 = vpop.f32.mrf.mxu0
        %3949 = vmatprep.mubr.f32.mxu0 0.0
        %3950 = vmatmul.mubr.f32.gmra.mxu0 %v3394
        %v3951 = vpop.f32.mrf.mxu0
        %v3952 = vadd.f32 %v3807, %v3951
        %v3953 = vpop.f32.mrf.mxu0
        %3954 = vmatprep.mubr.f32.mxu0 0.0
        %3955 = vmatmul.mubr.f32.gmra.mxu0 %v3395
        %v3956 = vpop.f32.mrf.mxu0
        %v3957 = vadd.f32 %v3812, %v3956
        %v3958 = vpop.f32.mrf.mxu0
        %3959 = vmatprep.mubr.f32.mxu0 0.0
        %3960 = vmatmul.mubr.f32.gmra.mxu0 %v3396
        %v3961 = vpop.f32.mrf.mxu0
        %v3962 = vadd.f32 %v3817, %v3961
        %v3963 = vpop.f32.mrf.mxu0
        %3964 = vmatprep.mubr.f32.mxu0 0.0
        %3965 = vmatmul.mubr.f32.gmra.mxu0 %v3397
        %v3966 = vpop.f32.mrf.mxu0
        %v3967 = vadd.f32 %v3822, %v3966
        %v3968 = vpop.f32.mrf.mxu0
        %3969 = vmatprep.mubr.f32.mxu0 0.0
        %3970 = vmatmul.mubr.f32.gmra.mxu0 %v3398
        %v3971 = vpop.f32.mrf.mxu0
        %v3972 = vadd.f32 %v3827, %v3971
        %v3973 = vpop.f32.mrf.mxu0
        %3974 = vmatprep.mubr.f32.mxu0 0.0
        %3975 = vmatmul.mubr.f32.gmra.mxu0 %v3399
        %v3976 = vpop.f32.mrf.mxu0
        %v3977 = vadd.f32 %v3832, %v3976
        %v3978 = vpop.f32.mrf.mxu0
        %3979 = vdwg.mxu0
        %3980 = vmatprep.subr.mxu0 0.0
        %3981 = vmatpush1.xpose.msra.mxu0 %v3076
        %3982 = vmatprep.subr.mxu0 0.0
        %3983 = vmatpush1.xpose.msra.mxu0 %v3075
        %3984 = vmatprep.subr.mxu0 0.0
        %3985 = vmatpush1.xpose.msra.mxu0 %v3074
        %3986 = vmatprep.subr.mxu0 0.0
        %3987 = vmatpush1.xpose.msra.mxu0 %v3073
        %3988 = vmatprep.subr.mxu0 0.0
        %3989 = vmatpush1.xpose.msra.mxu0 %v3072
        %3990 = vmatprep.subr.mxu0 0.0
        %3991 = vmatpush1.xpose.msra.mxu0 %v3071
        %3992 = vmatprep.subr.mxu0 0.0
        %3993 = vmatpush1.xpose.msra.mxu0 %v3070
        %3994 = vmatprep.subr.mxu0 0.0
        %3995 = vmatpush1.xpose.msra.mxu0 %v3069
        %3996 = vmatprep.subr.mxu0 0.0
        %3997 = vmatpush1.xpose.msra.mxu0 %v3068
        %3998 = vmatprep.subr.mxu0 0.0
        %3999 = vmatpush1.xpose.msra.mxu0 %v3067
        %4000 = vmatprep.subr.mxu0 0.0
        %4001 = vmatpush1.xpose.msra.mxu0 %v3066
        %4002 = vmatprep.subr.mxu0 0.0
        %4003 = vmatpush1.xpose.msra.mxu0 %v3065
        %4004 = vmatprep.subr.mxu0 0.0
        %4005 = vmatpush1.xpose.msra.mxu0 %v3064
        %4006 = vmatprep.subr.mxu0 0.0
        %4007 = vmatpush1.xpose.msra.mxu0 %v3063
        %4008 = vmatprep.subr.mxu0 0.0
        %4009 = vmatpush1.xpose.msra.mxu0 %v3062
        %4010 = vmatprep.subr.mxu0 0.0
        %4011 = vmatpush1.xpose.msra.mxu0 %v3061
        %4012 = vmatprep.subr.mxu0 0.0
        %4013 = vmatpush2.xpose.msra.mxu0 0.0
        %4014 = vmatprep.subr.mxu0 0.0
        %4015 = vmatpush2.xpose.msra.mxu0 0.0
        %4016 = vmatprep.subr.mxu0 0.0
        %4017 = vmatpush2.xpose.msra.mxu0 0.0
        %4018 = vmatprep.subr.mxu0 0.0
        %4019 = vmatpush2.xpose.msra.mxu0 0.0
        %4020 = vmatprep.subr.mxu0 0.0
        %4021 = vmatpush2.xpose.msra.mxu0 0.0
        %4022 = vmatprep.subr.mxu0 0.0
        %4023 = vmatpush2.xpose.msra.mxu0 0.0
        %4024 = vmatprep.subr.mxu0 0.0
        %4025 = vmatpush2.xpose.msra.mxu0 0.0
        %4026 = vmatprep.subr.mxu0 0.0
        %4027 = vmatpush2.xpose.msra.mxu0 0.0
        %4028 = vmatprep.subr.mxu0 0.0
        %4029 = vmatpush2.xpose.msra.mxu0 0.0
        %4030 = vmatprep.subr.mxu0 0.0
        %4031 = vmatpush2.xpose.msra.mxu0 0.0
        %4032 = vmatprep.subr.mxu0 0.0
        %4033 = vmatpush2.xpose.msra.mxu0 0.0
        %4034 = vmatprep.subr.mxu0 0.0
        %4035 = vmatpush2.xpose.msra.mxu0 0.0
        %4036 = vmatprep.subr.mxu0 0.0
        %4037 = vmatpush2.xpose.msra.mxu0 0.0
        %4038 = vmatprep.subr.mxu0 0.0
        %4039 = vmatpush2.xpose.msra.mxu0 0.0
        %4040 = vmatprep.subr.mxu0 0.0
        %4041 = vmatpush2.xpose.msra.mxu0 0.0
        %4042 = vmatprep.subr.mxu0 0.0
        %4043 = vmatpush2.xpose.msra.mxu0 0.0
        %4044 = vmatprep.mubr.f32.mxu0 0.0
        %4045 = vmatmul.mubr.f32.gmra.mxu0 %v3612
        %v4046 = vpop.f32.mrf.mxu0
        %v4047 = vadd.f32 0.0, %v4046
        %v4048 = vpop.f32.mrf.mxu0
        %4049 = vmatprep.mubr.f32.mxu0 0.0
        %4050 = vmatmul.mubr.f32.gmra.mxu0 %v3617
        %v4051 = vpop.f32.mrf.mxu0
        %v4052 = vadd.f32 0.0, %v4051
        %v4053 = vpop.f32.mrf.mxu0
        %4054 = vmatprep.mubr.f32.mxu0 0.0
        %4055 = vmatmul.mubr.f32.gmra.mxu0 %v3622
        %v4056 = vpop.f32.mrf.mxu0
        %v4057 = vadd.f32 0.0, %v4056
        %v4058 = vpop.f32.mrf.mxu0
        %4059 = vmatprep.mubr.f32.mxu0 0.0
        %4060 = vmatmul.mubr.f32.gmra.mxu0 %v3627
        %v4061 = vpop.f32.mrf.mxu0
        %v4062 = vadd.f32 0.0, %v4061
        %v4063 = vpop.f32.mrf.mxu0
        %4064 = vmatprep.mubr.f32.mxu0 0.0
        %4065 = vmatmul.mubr.f32.gmra.mxu0 %v3632
        %v4066 = vpop.f32.mrf.mxu0
        %v4067 = vadd.f32 0.0, %v4066
        %v4068 = vpop.f32.mrf.mxu0
        %4069 = vmatprep.mubr.f32.mxu0 0.0
        %4070 = vmatmul.mubr.f32.gmra.mxu0 %v3637
        %v4071 = vpop.f32.mrf.mxu0
        %v4072 = vadd.f32 0.0, %v4071
        %v4073 = vpop.f32.mrf.mxu0
        %4074 = vmatprep.mubr.f32.mxu0 0.0
        %4075 = vmatmul.mubr.f32.gmra.mxu0 %v3642
        %v4076 = vpop.f32.mrf.mxu0
        %v4077 = vadd.f32 0.0, %v4076
        %v4078 = vpop.f32.mrf.mxu0
        %4079 = vmatprep.mubr.f32.mxu0 0.0
        %4080 = vmatmul.mubr.f32.gmra.mxu0 %v3647
        %v4081 = vpop.f32.mrf.mxu0
        %v4082 = vadd.f32 0.0, %v4081
        %v4083 = vpop.f32.mrf.mxu0
        %4084 = vmatprep.mubr.f32.mxu0 0.0
        %4085 = vmatmul.mubr.f32.gmra.mxu0 %v3652
        %v4086 = vpop.f32.mrf.mxu0
        %v4087 = vadd.f32 0.0, %v4086
        %v4088 = vpop.f32.mrf.mxu0
        %4089 = vmatprep.mubr.f32.mxu0 0.0
        %4090 = vmatmul.mubr.f32.gmra.mxu0 %v3657
        %v4091 = vpop.f32.mrf.mxu0
        %v4092 = vadd.f32 0.0, %v4091
        %v4093 = vpop.f32.mrf.mxu0
        %4094 = vmatprep.mubr.f32.mxu0 0.0
        %4095 = vmatmul.mubr.f32.gmra.mxu0 %v3662
        %v4096 = vpop.f32.mrf.mxu0
        %v4097 = vadd.f32 0.0, %v4096
        %v4098 = vpop.f32.mrf.mxu0
        %4099 = vmatprep.mubr.f32.mxu0 0.0
        %4100 = vmatmul.mubr.f32.gmra.mxu0 %v3667
        %v4101 = vpop.f32.mrf.mxu0
        %v4102 = vadd.f32 0.0, %v4101
        %v4103 = vpop.f32.mrf.mxu0
        %4104 = vmatprep.mubr.f32.mxu0 0.0
        %4105 = vmatmul.mubr.f32.gmra.mxu0 %v3672
        %v4106 = vpop.f32.mrf.mxu0
        %v4107 = vadd.f32 0.0, %v4106
        %v4108 = vpop.f32.mrf.mxu0
        %4109 = vmatprep.mubr.f32.mxu0 0.0
        %4110 = vmatmul.mubr.f32.gmra.mxu0 %v3677
        %v4111 = vpop.f32.mrf.mxu0
        %v4112 = vadd.f32 0.0, %v4111
        %v4113 = vpop.f32.mrf.mxu0
        %4114 = vmatprep.mubr.f32.mxu0 0.0
        %4115 = vmatmul.mubr.f32.gmra.mxu0 %v3682
        %v4116 = vpop.f32.mrf.mxu0
        %v4117 = vadd.f32 0.0, %v4116
        %v4118 = vpop.f32.mrf.mxu0
        %4119 = vmatprep.mubr.f32.mxu0 0.0
        %4120 = vmatmul.mubr.f32.gmra.mxu0 %v3687
        %v4121 = vpop.f32.mrf.mxu0
        %v4122 = vadd.f32 0.0, %v4121
        %v4123 = vpop.f32.mrf.mxu0
        %4124 = vdwg.mxu0
        %4125 = vmatprep.subr.mxu0 0.0
        %4126 = vmatpush1.xpose.msra.mxu0 %v3093
        %4127 = vmatprep.subr.mxu0 0.0
        %4128 = vmatpush1.xpose.msra.mxu0 %v3092
        %4129 = vmatprep.subr.mxu0 0.0
        %4130 = vmatpush1.xpose.msra.mxu0 %v3091
        %4131 = vmatprep.subr.mxu0 0.0
        %4132 = vmatpush1.xpose.msra.mxu0 %v3090
        %4133 = vmatprep.subr.mxu0 0.0
        %4134 = vmatpush1.xpose.msra.mxu0 %v3089
        %4135 = vmatprep.subr.mxu0 0.0
        %4136 = vmatpush1.xpose.msra.mxu0 %v3088
        %4137 = vmatprep.subr.mxu0 0.0
        %4138 = vmatpush1.xpose.msra.mxu0 %v3087
        %4139 = vmatprep.subr.mxu0 0.0
        %4140 = vmatpush1.xpose.msra.mxu0 %v3086
        %4141 = vmatprep.subr.mxu0 0.0
        %4142 = vmatpush1.xpose.msra.mxu0 %v3085
        %4143 = vmatprep.subr.mxu0 0.0
        %4144 = vmatpush1.xpose.msra.mxu0 %v3084
        %4145 = vmatprep.subr.mxu0 0.0
        %4146 = vmatpush1.xpose.msra.mxu0 %v3083
        %4147 = vmatprep.subr.mxu0 0.0
        %4148 = vmatpush1.xpose.msra.mxu0 %v3082
        %4149 = vmatprep.subr.mxu0 0.0
        %4150 = vmatpush1.xpose.msra.mxu0 %v3081
        %4151 = vmatprep.subr.mxu0 0.0
        %4152 = vmatpush1.xpose.msra.mxu0 %v3080
        %4153 = vmatprep.subr.mxu0 0.0
        %4154 = vmatpush1.xpose.msra.mxu0 %v3079
        %4155 = vmatprep.subr.mxu0 0.0
        %4156 = vmatpush1.xpose.msra.mxu0 %v3078
        %4157 = vmatprep.subr.mxu0 0.0
        %4158 = vmatpush2.xpose.msra.mxu0 0.0
        %4159 = vmatprep.subr.mxu0 0.0
        %4160 = vmatpush2.xpose.msra.mxu0 0.0
        %4161 = vmatprep.subr.mxu0 0.0
        %4162 = vmatpush2.xpose.msra.mxu0 0.0
        %4163 = vmatprep.subr.mxu0 0.0
        %4164 = vmatpush2.xpose.msra.mxu0 0.0
        %4165 = vmatprep.subr.mxu0 0.0
        %4166 = vmatpush2.xpose.msra.mxu0 0.0
        %4167 = vmatprep.subr.mxu0 0.0
        %4168 = vmatpush2.xpose.msra.mxu0 0.0
        %4169 = vmatprep.subr.mxu0 0.0
        %4170 = vmatpush2.xpose.msra.mxu0 0.0
        %4171 = vmatprep.subr.mxu0 0.0
        %4172 = vmatpush2.xpose.msra.mxu0 0.0
        %4173 = vmatprep.subr.mxu0 0.0
        %4174 = vmatpush2.xpose.msra.mxu0 0.0
        %4175 = vmatprep.subr.mxu0 0.0
        %4176 = vmatpush2.xpose.msra.mxu0 0.0
        %4177 = vmatprep.subr.mxu0 0.0
        %4178 = vmatpush2.xpose.msra.mxu0 0.0
        %4179 = vmatprep.subr.mxu0 0.0
        %4180 = vmatpush2.xpose.msra.mxu0 0.0
        %4181 = vmatprep.subr.mxu0 0.0
        %4182 = vmatpush2.xpose.msra.mxu0 0.0
        %4183 = vmatprep.subr.mxu0 0.0
        %4184 = vmatpush2.xpose.msra.mxu0 0.0
        %4185 = vmatprep.subr.mxu0 0.0
        %4186 = vmatpush2.xpose.msra.mxu0 0.0
        %4187 = vmatprep.subr.mxu0 0.0
        %4188 = vmatpush2.xpose.msra.mxu0 0.0
        %4189 = vmatprep.mubr.f32.mxu0 0.0
        %4190 = vmatmul.mubr.f32.gmra.mxu0 %v3384
        %v4191 = vpop.f32.mrf.mxu0
        %v4192 = vadd.f32 0.0, %v4191
        %v4193 = vpop.f32.mrf.mxu0
        %4194 = vmatprep.mubr.f32.mxu0 0.0
        %4195 = vmatmul.mubr.f32.gmra.mxu0 %v3385
        %v4196 = vpop.f32.mrf.mxu0
        %v4197 = vadd.f32 0.0, %v4196
        %v4198 = vpop.f32.mrf.mxu0
        %4199 = vmatprep.mubr.f32.mxu0 0.0
        %4200 = vmatmul.mubr.f32.gmra.mxu0 %v3386
        %v4201 = vpop.f32.mrf.mxu0
        %v4202 = vadd.f32 0.0, %v4201
        %v4203 = vpop.f32.mrf.mxu0
        %4204 = vmatprep.mubr.f32.mxu0 0.0
        %4205 = vmatmul.mubr.f32.gmra.mxu0 %v3387
        %v4206 = vpop.f32.mrf.mxu0
        %v4207 = vadd.f32 0.0, %v4206
        %v4208 = vpop.f32.mrf.mxu0
        %4209 = vmatprep.mubr.f32.mxu0 0.0
        %4210 = vmatmul.mubr.f32.gmra.mxu0 %v3388
        %v4211 = vpop.f32.mrf.mxu0
        %v4212 = vadd.f32 0.0, %v4211
        %v4213 = vpop.f32.mrf.mxu0
        %4214 = vmatprep.mubr.f32.mxu0 0.0
        %4215 = vmatmul.mubr.f32.gmra.mxu0 %v3389
        %v4216 = vpop.f32.mrf.mxu0
        %v4217 = vadd.f32 0.0, %v4216
        %v4218 = vpop.f32.mrf.mxu0
        %4219 = vmatprep.mubr.f32.mxu0 0.0
        %4220 = vmatmul.mubr.f32.gmra.mxu0 %v3390
        %v4221 = vpop.f32.mrf.mxu0
        %v4222 = vadd.f32 0.0, %v4221
        %v4223 = vpop.f32.mrf.mxu0
        %4224 = vmatprep.mubr.f32.mxu0 0.0
        %4225 = vmatmul.mubr.f32.gmra.mxu0 %v3391
        %v4226 = vpop.f32.mrf.mxu0
        %v4227 = vadd.f32 0.0, %v4226
        %v4228 = vpop.f32.mrf.mxu0
        %4229 = vmatprep.mubr.f32.mxu0 0.0
        %4230 = vmatmul.mubr.f32.gmra.mxu0 %v3392
        %v4231 = vpop.f32.mrf.mxu0
        %v4232 = vadd.f32 0.0, %v4231
        %v4233 = vpop.f32.mrf.mxu0
        %4234 = vmatprep.mubr.f32.mxu0 0.0
        %4235 = vmatmul.mubr.f32.gmra.mxu0 %v3393
        %v4236 = vpop.f32.mrf.mxu0
        %v4237 = vadd.f32 0.0, %v4236
        %v4238 = vpop.f32.mrf.mxu0
        %4239 = vmatprep.mubr.f32.mxu0 0.0
        %4240 = vmatmul.mubr.f32.gmra.mxu0 %v3394
        %v4241 = vpop.f32.mrf.mxu0
        %v4242 = vadd.f32 0.0, %v4241
        %v4243 = vpop.f32.mrf.mxu0
        %4244 = vmatprep.mubr.f32.mxu0 0.0
        %4245 = vmatmul.mubr.f32.gmra.mxu0 %v3395
        %v4246 = vpop.f32.mrf.mxu0
        %v4247 = vadd.f32 0.0, %v4246
        %v4248 = vpop.f32.mrf.mxu0
        %4249 = vmatprep.mubr.f32.mxu0 0.0
        %4250 = vmatmul.mubr.f32.gmra.mxu0 %v3396
        %v4251 = vpop.f32.mrf.mxu0
        %v4252 = vadd.f32 0.0, %v4251
        %v4253 = vpop.f32.mrf.mxu0
        %4254 = vmatprep.mubr.f32.mxu0 0.0
        %4255 = vmatmul.mubr.f32.gmra.mxu0 %v3397
        %v4256 = vpop.f32.mrf.mxu0
        %v4257 = vadd.f32 0.0, %v4256
        %v4258 = vpop.f32.mrf.mxu0
        %4259 = vmatprep.mubr.f32.mxu0 0.0
        %4260 = vmatmul.mubr.f32.gmra.mxu0 %v3398
        %v4261 = vpop.f32.mrf.mxu0
        %v4262 = vadd.f32 0.0, %v4261
        %v4263 = vpop.f32.mrf.mxu0
        %4264 = vmatprep.mubr.f32.mxu0 0.0
        %4265 = vmatmul.mubr.f32.gmra.mxu0 %v3399
        %v4266 = vpop.f32.mrf.mxu0
        %v4267 = vadd.f32 0.0, %v4266
        %v4268 = vpop.f32.mrf.mxu0
        %4269 = vdwg.mxu0
        %v4270 = vsub.f32 %v4047, %v4192
        %v4271 = vsub.f32 %v4052, %v4197
        %v4272 = vsub.f32 %v4057, %v4202
        %v4273 = vsub.f32 %v4062, %v4207
        %v4274 = vsub.f32 %v4067, %v4212
        %v4275 = vsub.f32 %v4072, %v4217
        %v4276 = vsub.f32 %v4077, %v4222
        %v4277 = vsub.f32 %v4082, %v4227
        %v4278 = vsub.f32 %v4087, %v4232
        %v4279 = vsub.f32 %v4092, %v4237
        %v4280 = vsub.f32 %v4097, %v4242
        %v4281 = vsub.f32 %v4102, %v4247
        %v4282 = vsub.f32 %v4107, %v4252
        %v4283 = vsub.f32 %v4112, %v4257
        %v4284 = vsub.f32 %v4117, %v4262
        %v4285 = vsub.f32 %v4122, %v4267
        %4286 = vmatprep.subr.mxu0 0.0
        %4287 = vmatpush1.xpose.msra.mxu0 %v3059
        %4288 = vmatprep.subr.mxu0 0.0
        %4289 = vmatpush1.xpose.msra.mxu0 %v3058
        %4290 = vmatprep.subr.mxu0 0.0
        %4291 = vmatpush1.xpose.msra.mxu0 %v3057
        %4292 = vmatprep.subr.mxu0 0.0
        %4293 = vmatpush1.xpose.msra.mxu0 %v3056
        %4294 = vmatprep.subr.mxu0 0.0
        %4295 = vmatpush1.xpose.msra.mxu0 %v3055
        %4296 = vmatprep.subr.mxu0 0.0
        %4297 = vmatpush1.xpose.msra.mxu0 %v3054
        %4298 = vmatprep.subr.mxu0 0.0
        %4299 = vmatpush1.xpose.msra.mxu0 %v3053
        %4300 = vmatprep.subr.mxu0 0.0
        %4301 = vmatpush1.xpose.msra.mxu0 %v3052
        %4302 = vmatprep.subr.mxu0 0.0
        %4303 = vmatpush1.xpose.msra.mxu0 %v3051
        %4304 = vmatprep.subr.mxu0 0.0
        %4305 = vmatpush1.xpose.msra.mxu0 %v3050
        %4306 = vmatprep.subr.mxu0 0.0
        %4307 = vmatpush1.xpose.msra.mxu0 %v3049
        %4308 = vmatprep.subr.mxu0 0.0
        %4309 = vmatpush1.xpose.msra.mxu0 %v3048
        %4310 = vmatprep.subr.mxu0 0.0
        %4311 = vmatpush1.xpose.msra.mxu0 %v3047
        %4312 = vmatprep.subr.mxu0 0.0
        %4313 = vmatpush1.xpose.msra.mxu0 %v3046
        %4314 = vmatprep.subr.mxu0 0.0
        %4315 = vmatpush1.xpose.msra.mxu0 %v3045
        %4316 = vmatprep.subr.mxu0 0.0
        %4317 = vmatpush1.xpose.msra.mxu0 %v3044
        %4318 = vmatprep.subr.mxu0 0.0
        %4319 = vmatpush2.xpose.msra.mxu0 0.0
        %4320 = vmatprep.subr.mxu0 0.0
        %4321 = vmatpush2.xpose.msra.mxu0 0.0
        %4322 = vmatprep.subr.mxu0 0.0
        %4323 = vmatpush2.xpose.msra.mxu0 0.0
        %4324 = vmatprep.subr.mxu0 0.0
        %4325 = vmatpush2.xpose.msra.mxu0 0.0
        %4326 = vmatprep.subr.mxu0 0.0
        %4327 = vmatpush2.xpose.msra.mxu0 0.0
        %4328 = vmatprep.subr.mxu0 0.0
        %4329 = vmatpush2.xpose.msra.mxu0 0.0
        %4330 = vmatprep.subr.mxu0 0.0
        %4331 = vmatpush2.xpose.msra.mxu0 0.0
        %4332 = vmatprep.subr.mxu0 0.0
        %4333 = vmatpush2.xpose.msra.mxu0 0.0
        %4334 = vmatprep.subr.mxu0 0.0
        %4335 = vmatpush2.xpose.msra.mxu0 0.0
        %4336 = vmatprep.subr.mxu0 0.0
        %4337 = vmatpush2.xpose.msra.mxu0 0.0
        %4338 = vmatprep.subr.mxu0 0.0
        %4339 = vmatpush2.xpose.msra.mxu0 0.0
        %4340 = vmatprep.subr.mxu0 0.0
        %4341 = vmatpush2.xpose.msra.mxu0 0.0
        %4342 = vmatprep.subr.mxu0 0.0
        %4343 = vmatpush2.xpose.msra.mxu0 0.0
        %4344 = vmatprep.subr.mxu0 0.0
        %4345 = vmatpush2.xpose.msra.mxu0 0.0
        %4346 = vmatprep.subr.mxu0 0.0
        %4347 = vmatpush2.xpose.msra.mxu0 0.0
        %4348 = vmatprep.subr.mxu0 0.0
        %4349 = vmatpush2.xpose.msra.mxu0 0.0
        %4350 = vmatprep.mubr.f32.mxu0 0.0
        %4351 = vmatmul.mubr.f32.gmra.mxu0 %v1818
        %v4352 = vpop.f32.mrf.mxu0
        %v4353 = vadd.f32 0.0, %v4352
        %v4354 = vpop.f32.mrf.mxu0
        %4355 = vmatprep.mubr.f32.mxu0 0.0
        %4356 = vmatmul.mubr.f32.gmra.mxu0 %v1819
        %v4357 = vpop.f32.mrf.mxu0
        %v4358 = vadd.f32 0.0, %v4357
        %v4359 = vpop.f32.mrf.mxu0
        %4360 = vmatprep.mubr.f32.mxu0 0.0
        %4361 = vmatmul.mubr.f32.gmra.mxu0 %v1820
        %v4362 = vpop.f32.mrf.mxu0
        %v4363 = vadd.f32 0.0, %v4362
        %v4364 = vpop.f32.mrf.mxu0
        %4365 = vmatprep.mubr.f32.mxu0 0.0
        %4366 = vmatmul.mubr.f32.gmra.mxu0 %v1821
        %v4367 = vpop.f32.mrf.mxu0
        %v4368 = vadd.f32 0.0, %v4367
        %v4369 = vpop.f32.mrf.mxu0
        %4370 = vmatprep.mubr.f32.mxu0 0.0
        %4371 = vmatmul.mubr.f32.gmra.mxu0 %v1822
        %v4372 = vpop.f32.mrf.mxu0
        %v4373 = vadd.f32 0.0, %v4372
        %v4374 = vpop.f32.mrf.mxu0
        %4375 = vmatprep.mubr.f32.mxu0 0.0
        %4376 = vmatmul.mubr.f32.gmra.mxu0 %v1823
        %v4377 = vpop.f32.mrf.mxu0
        %v4378 = vadd.f32 0.0, %v4377
        %v4379 = vpop.f32.mrf.mxu0
        %4380 = vmatprep.mubr.f32.mxu0 0.0
        %4381 = vmatmul.mubr.f32.gmra.mxu0 %v1824
        %v4382 = vpop.f32.mrf.mxu0
        %v4383 = vadd.f32 0.0, %v4382
        %v4384 = vpop.f32.mrf.mxu0
        %4385 = vmatprep.mubr.f32.mxu0 0.0
        %4386 = vmatmul.mubr.f32.gmra.mxu0 %v1825
        %v4387 = vpop.f32.mrf.mxu0
        %v4388 = vadd.f32 0.0, %v4387
        %v4389 = vpop.f32.mrf.mxu0
        %4390 = vmatprep.mubr.f32.mxu0 0.0
        %4391 = vmatmul.mubr.f32.gmra.mxu0 %v1826
        %v4392 = vpop.f32.mrf.mxu0
        %v4393 = vadd.f32 0.0, %v4392
        %v4394 = vpop.f32.mrf.mxu0
        %4395 = vmatprep.mubr.f32.mxu0 0.0
        %4396 = vmatmul.mubr.f32.gmra.mxu0 %v1827
        %v4397 = vpop.f32.mrf.mxu0
        %v4398 = vadd.f32 0.0, %v4397
        %v4399 = vpop.f32.mrf.mxu0
        %4400 = vmatprep.mubr.f32.mxu0 0.0
        %4401 = vmatmul.mubr.f32.gmra.mxu0 %v1828
        %v4402 = vpop.f32.mrf.mxu0
        %v4403 = vadd.f32 0.0, %v4402
        %v4404 = vpop.f32.mrf.mxu0
        %4405 = vmatprep.mubr.f32.mxu0 0.0
        %4406 = vmatmul.mubr.f32.gmra.mxu0 %v1829
        %v4407 = vpop.f32.mrf.mxu0
        %v4408 = vadd.f32 0.0, %v4407
        %v4409 = vpop.f32.mrf.mxu0
        %4410 = vmatprep.mubr.f32.mxu0 0.0
        %4411 = vmatmul.mubr.f32.gmra.mxu0 %v1830
        %v4412 = vpop.f32.mrf.mxu0
        %v4413 = vadd.f32 0.0, %v4412
        %v4414 = vpop.f32.mrf.mxu0
        %4415 = vmatprep.mubr.f32.mxu0 0.0
        %4416 = vmatmul.mubr.f32.gmra.mxu0 %v1831
        %v4417 = vpop.f32.mrf.mxu0
        %v4418 = vadd.f32 0.0, %v4417
        %v4419 = vpop.f32.mrf.mxu0
        %4420 = vmatprep.mubr.f32.mxu0 0.0
        %4421 = vmatmul.mubr.f32.gmra.mxu0 %v1832
        %v4422 = vpop.f32.mrf.mxu0
        %v4423 = vadd.f32 0.0, %v4422
        %v4424 = vpop.f32.mrf.mxu0
        %4425 = vmatprep.mubr.f32.mxu0 0.0
        %4426 = vmatmul.mubr.f32.gmra.mxu0 %v1833
        %v4427 = vpop.f32.mrf.mxu0
        %v4428 = vadd.f32 0.0, %v4427
        %v4429 = vpop.f32.mrf.mxu0
        %4430 = vdwg.mxu0
        %4431 = vmatprep.subr.mxu0 0.0
        %4432 = vmatpush1.xpose.msra.mxu0 %v2751
        %4433 = vmatprep.subr.mxu0 0.0
        %4434 = vmatpush1.xpose.msra.mxu0 %v2746
        %4435 = vmatprep.subr.mxu0 0.0
        %4436 = vmatpush1.xpose.msra.mxu0 %v2741
        %4437 = vmatprep.subr.mxu0 0.0
        %4438 = vmatpush1.xpose.msra.mxu0 %v2736
        %4439 = vmatprep.subr.mxu0 0.0
        %4440 = vmatpush1.xpose.msra.mxu0 %v2731
        %4441 = vmatprep.subr.mxu0 0.0
        %4442 = vmatpush1.xpose.msra.mxu0 %v2726
        %4443 = vmatprep.subr.mxu0 0.0
        %4444 = vmatpush1.xpose.msra.mxu0 %v2721
        %4445 = vmatprep.subr.mxu0 0.0
        %4446 = vmatpush1.xpose.msra.mxu0 %v2716
        %4447 = vmatprep.subr.mxu0 0.0
        %4448 = vmatpush1.xpose.msra.mxu0 %v2711
        %4449 = vmatprep.subr.mxu0 0.0
        %4450 = vmatpush1.xpose.msra.mxu0 %v2706
        %4451 = vmatprep.subr.mxu0 0.0
        %4452 = vmatpush1.xpose.msra.mxu0 %v2701
        %4453 = vmatprep.subr.mxu0 0.0
        %4454 = vmatpush1.xpose.msra.mxu0 %v2696
        %4455 = vmatprep.subr.mxu0 0.0
        %4456 = vmatpush1.xpose.msra.mxu0 %v2691
        %4457 = vmatprep.subr.mxu0 0.0
        %4458 = vmatpush1.xpose.msra.mxu0 %v2686
        %4459 = vmatprep.subr.mxu0 0.0
        %4460 = vmatpush1.xpose.msra.mxu0 %v2681
        %4461 = vmatprep.subr.mxu0 0.0
        %4462 = vmatpush1.xpose.msra.mxu0 %v2676
        %4463 = vmatprep.subr.mxu0 0.0
        %4464 = vmatpush2.xpose.msra.mxu0 0.0
        %4465 = vmatprep.subr.mxu0 0.0
        %4466 = vmatpush2.xpose.msra.mxu0 0.0
        %4467 = vmatprep.subr.mxu0 0.0
        %4468 = vmatpush2.xpose.msra.mxu0 0.0
        %4469 = vmatprep.subr.mxu0 0.0
        %4470 = vmatpush2.xpose.msra.mxu0 0.0
        %4471 = vmatprep.subr.mxu0 0.0
        %4472 = vmatpush2.xpose.msra.mxu0 0.0
        %4473 = vmatprep.subr.mxu0 0.0
        %4474 = vmatpush2.xpose.msra.mxu0 0.0
        %4475 = vmatprep.subr.mxu0 0.0
        %4476 = vmatpush2.xpose.msra.mxu0 0.0
        %4477 = vmatprep.subr.mxu0 0.0
        %4478 = vmatpush2.xpose.msra.mxu0 0.0
        %4479 = vmatprep.subr.mxu0 0.0
        %4480 = vmatpush2.xpose.msra.mxu0 0.0
        %4481 = vmatprep.subr.mxu0 0.0
        %4482 = vmatpush2.xpose.msra.mxu0 0.0
        %4483 = vmatprep.subr.mxu0 0.0
        %4484 = vmatpush2.xpose.msra.mxu0 0.0
        %4485 = vmatprep.subr.mxu0 0.0
        %4486 = vmatpush2.xpose.msra.mxu0 0.0
        %4487 = vmatprep.subr.mxu0 0.0
        %4488 = vmatpush2.xpose.msra.mxu0 0.0
        %4489 = vmatprep.subr.mxu0 0.0
        %4490 = vmatpush2.xpose.msra.mxu0 0.0
        %4491 = vmatprep.subr.mxu0 0.0
        %4492 = vmatpush2.xpose.msra.mxu0 0.0
        %4493 = vmatprep.subr.mxu0 0.0
        %4494 = vmatpush2.xpose.msra.mxu0 0.0
        %4495 = vmatprep.mubr.f32.mxu0 0.0
        %4496 = vmatmul.mubr.f32.gmra.mxu0 %v1450
        %v4497 = vpop.f32.mrf.mxu0
        %v4498 = vadd.f32 %v4353, %v4497
        %v4499 = vpop.f32.mrf.mxu0
        %4500 = vmatprep.mubr.f32.mxu0 0.0
        %4501 = vmatmul.mubr.f32.gmra.mxu0 %v1455
        %v4502 = vpop.f32.mrf.mxu0
        %v4503 = vadd.f32 %v4358, %v4502
        %v4504 = vpop.f32.mrf.mxu0
        %4505 = vmatprep.mubr.f32.mxu0 0.0
        %4506 = vmatmul.mubr.f32.gmra.mxu0 %v1460
        %v4507 = vpop.f32.mrf.mxu0
        %v4508 = vadd.f32 %v4363, %v4507
        %v4509 = vpop.f32.mrf.mxu0
        %4510 = vmatprep.mubr.f32.mxu0 0.0
        %4511 = vmatmul.mubr.f32.gmra.mxu0 %v1465
        %v4512 = vpop.f32.mrf.mxu0
        %v4513 = vadd.f32 %v4368, %v4512
        %v4514 = vpop.f32.mrf.mxu0
        %4515 = vmatprep.mubr.f32.mxu0 0.0
        %4516 = vmatmul.mubr.f32.gmra.mxu0 %v1470
        %v4517 = vpop.f32.mrf.mxu0
        %v4518 = vadd.f32 %v4373, %v4517
        %v4519 = vpop.f32.mrf.mxu0
        %4520 = vmatprep.mubr.f32.mxu0 0.0
        %4521 = vmatmul.mubr.f32.gmra.mxu0 %v1475
        %v4522 = vpop.f32.mrf.mxu0
        %v4523 = vadd.f32 %v4378, %v4522
        %v4524 = vpop.f32.mrf.mxu0
        %4525 = vmatprep.mubr.f32.mxu0 0.0
        %4526 = vmatmul.mubr.f32.gmra.mxu0 %v1480
        %v4527 = vpop.f32.mrf.mxu0
        %v4528 = vadd.f32 %v4383, %v4527
        %v4529 = vpop.f32.mrf.mxu0
        %4530 = vmatprep.mubr.f32.mxu0 0.0
        %4531 = vmatmul.mubr.f32.gmra.mxu0 %v1485
        %v4532 = vpop.f32.mrf.mxu0
        %v4533 = vadd.f32 %v4388, %v4532
        %v4534 = vpop.f32.mrf.mxu0
        %4535 = vmatprep.mubr.f32.mxu0 0.0
        %4536 = vmatmul.mubr.f32.gmra.mxu0 %v1490
        %v4537 = vpop.f32.mrf.mxu0
        %v4538 = vadd.f32 %v4393, %v4537
        %v4539 = vpop.f32.mrf.mxu0
        %4540 = vmatprep.mubr.f32.mxu0 0.0
        %4541 = vmatmul.mubr.f32.gmra.mxu0 %v1495
        %v4542 = vpop.f32.mrf.mxu0
        %v4543 = vadd.f32 %v4398, %v4542
        %v4544 = vpop.f32.mrf.mxu0
        %4545 = vmatprep.mubr.f32.mxu0 0.0
        %4546 = vmatmul.mubr.f32.gmra.mxu0 %v1500
        %v4547 = vpop.f32.mrf.mxu0
        %v4548 = vadd.f32 %v4403, %v4547
        %v4549 = vpop.f32.mrf.mxu0
        %4550 = vmatprep.mubr.f32.mxu0 0.0
        %4551 = vmatmul.mubr.f32.gmra.mxu0 %v1505
        %v4552 = vpop.f32.mrf.mxu0
        %v4553 = vadd.f32 %v4408, %v4552
        %v4554 = vpop.f32.mrf.mxu0
        %4555 = vmatprep.mubr.f32.mxu0 0.0
        %4556 = vmatmul.mubr.f32.gmra.mxu0 %v1510
        %v4557 = vpop.f32.mrf.mxu0
        %v4558 = vadd.f32 %v4413, %v4557
        %v4559 = vpop.f32.mrf.mxu0
        %4560 = vmatprep.mubr.f32.mxu0 0.0
        %4561 = vmatmul.mubr.f32.gmra.mxu0 %v1515
        %v4562 = vpop.f32.mrf.mxu0
        %v4563 = vadd.f32 %v4418, %v4562
        %v4564 = vpop.f32.mrf.mxu0
        %4565 = vmatprep.mubr.f32.mxu0 0.0
        %4566 = vmatmul.mubr.f32.gmra.mxu0 %v1520
        %v4567 = vpop.f32.mrf.mxu0
        %v4568 = vadd.f32 %v4423, %v4567
        %v4569 = vpop.f32.mrf.mxu0
        %4570 = vmatprep.mubr.f32.mxu0 0.0
        %4571 = vmatmul.mubr.f32.gmra.mxu0 %v1525
        %v4572 = vpop.f32.mrf.mxu0
        %v4573 = vadd.f32 %v4428, %v4572
        %v4574 = vpop.f32.mrf.mxu0
        %4575 = vdwg.mxu0
        %v4576 = vld [vmem:[%s539] sm:$0x1]
        %v4578 = vlaneseq
        %v4579 = vshrl.u32 %v4578, 7
        %v4580 = vsub.s32 0, %v4579
        %v4581 = vrot.slane %v4576, %v4580
        %v4583 = vadd.f32 %v4498, %v4581
        %v4584 = vadd.f32 %v4503, %v4581
        %v4585 = vadd.f32 %v4508, %v4581
        %v4586 = vadd.f32 %v4513, %v4581
        %v4587 = vadd.f32 %v4518, %v4581
        %v4588 = vadd.f32 %v4523, %v4581
        %v4589 = vadd.f32 %v4528, %v4581
        %v4590 = vadd.f32 %v4533, %v4581
        %v4591 = vadd.f32 %v4538, %v4581
        %v4592 = vadd.f32 %v4543, %v4581
        %v4593 = vadd.f32 %v4548, %v4581
        %v4594 = vadd.f32 %v4553, %v4581
        %v4595 = vadd.f32 %v4558, %v4581
        %v4596 = vadd.f32 %v4563, %v4581
        %v4597 = vadd.f32 %v4568, %v4581
        %v4598 = vadd.f32 %v4573, %v4581
        %4599 = vmax.xlane.f32.xlu0 %v4583
        %v4600 = vpop.xlane.xlu0 %4599
        %4601 = vmax.xlane.f32.xlu0 %v4584
        %v4602 = vpop.xlane.xlu0 %4601
        %4603 = vmax.xlane.f32.xlu0 %v4585
        %v4604 = vpop.xlane.xlu0 %4603
        %4605 = vmax.xlane.f32.xlu0 %v4586
        %v4606 = vpop.xlane.xlu0 %4605
        %4607 = vmax.xlane.f32.xlu0 %v4587
        %v4608 = vpop.xlane.xlu0 %4607
        %4609 = vmax.xlane.f32.xlu0 %v4588
        %v4610 = vpop.xlane.xlu0 %4609
        %4611 = vmax.xlane.f32.xlu0 %v4589
        %v4612 = vpop.xlane.xlu0 %4611
        %4613 = vmax.xlane.f32.xlu0 %v4590
        %v4614 = vpop.xlane.xlu0 %4613
        %4615 = vmax.xlane.f32.xlu0 %v4591
        %v4616 = vpop.xlane.xlu0 %4615
        %4617 = vmax.xlane.f32.xlu0 %v4592
        %v4618 = vpop.xlane.xlu0 %4617
        %4619 = vmax.xlane.f32.xlu0 %v4593
        %v4620 = vpop.xlane.xlu0 %4619
        %4621 = vmax.xlane.f32.xlu0 %v4594
        %v4622 = vpop.xlane.xlu0 %4621
        %4623 = vmax.xlane.f32.xlu0 %v4595
        %v4624 = vpop.xlane.xlu0 %4623
        %4625 = vmax.xlane.f32.xlu0 %v4596
        %v4626 = vpop.xlane.xlu0 %4625
        %4627 = vmax.xlane.f32.xlu0 %v4597
        %v4628 = vpop.xlane.xlu0 %4627
        %4629 = vmax.xlane.f32.xlu0 %v4598
        %v4630 = vpop.xlane.xlu0 %4629
        %v4631 = vsub.f32 %v4583, %v4600
        %v4632 = vsub.f32 %v4584, %v4602
        %v4633 = vsub.f32 %v4585, %v4604
        %v4634 = vsub.f32 %v4586, %v4606
        %v4635 = vsub.f32 %v4587, %v4608
        %v4636 = vsub.f32 %v4588, %v4610
        %v4637 = vsub.f32 %v4589, %v4612
        %v4638 = vsub.f32 %v4590, %v4614
        %v4639 = vsub.f32 %v4591, %v4616
        %v4640 = vsub.f32 %v4592, %v4618
        %v4641 = vsub.f32 %v4593, %v4620
        %v4642 = vsub.f32 %v4594, %v4622
        %v4643 = vsub.f32 %v4595, %v4624
        %v4644 = vsub.f32 %v4596, %v4626
        %v4645 = vsub.f32 %v4597, %v4628
        %v4646 = vsub.f32 %v4598, %v4630
        %v4647 = vmul.f32 %v4631, 1.442695
        %v4648 = vpow.pop %v4647
        %v4649 = vmul.f32 %v4632, 1.442695
        %v4650 = vpow.pop %v4649
        %v4651 = vmul.f32 %v4633, 1.442695
        %v4652 = vpow.pop %v4651
        %v4653 = vmul.f32 %v4634, 1.442695
        %v4654 = vpow.pop %v4653
        %v4655 = vmul.f32 %v4635, 1.442695
        %v4656 = vpow.pop %v4655
        %v4657 = vmul.f32 %v4636, 1.442695
        %v4658 = vpow.pop %v4657
        %v4659 = vmul.f32 %v4637, 1.442695
        %v4660 = vpow.pop %v4659
        %v4661 = vmul.f32 %v4638, 1.442695
        %v4662 = vpow.pop %v4661
        %v4663 = vmul.f32 %v4639, 1.442695
        %v4664 = vpow.pop %v4663
        %v4665 = vmul.f32 %v4640, 1.442695
        %v4666 = vpow.pop %v4665
        %v4667 = vmul.f32 %v4641, 1.442695
        %v4668 = vpow.pop %v4667
        %v4669 = vmul.f32 %v4642, 1.442695
        %v4670 = vpow.pop %v4669
        %v4671 = vmul.f32 %v4643, 1.442695
        %v4672 = vpow.pop %v4671
        %v4673 = vmul.f32 %v4644, 1.442695
        %v4674 = vpow.pop %v4673
        %v4675 = vmul.f32 %v4645, 1.442695
        %v4676 = vpow.pop %v4675
        %v4677 = vmul.f32 %v4646, 1.442695
        %v4678 = vpow.pop %v4677
        %4679 = vadd.xlane.f32.xlu0 %v4648
        %v4680 = vpop.xlane.xlu0 %4679
        %4681 = vadd.xlane.f32.xlu0 %v4650
        %v4682 = vpop.xlane.xlu0 %4681
        %4683 = vadd.xlane.f32.xlu0 %v4652
        %v4684 = vpop.xlane.xlu0 %4683
        %4685 = vadd.xlane.f32.xlu0 %v4654
        %v4686 = vpop.xlane.xlu0 %4685
        %4687 = vadd.xlane.f32.xlu0 %v4656
        %v4688 = vpop.xlane.xlu0 %4687
        %4689 = vadd.xlane.f32.xlu0 %v4658
        %v4690 = vpop.xlane.xlu0 %4689
        %4691 = vadd.xlane.f32.xlu0 %v4660
        %v4692 = vpop.xlane.xlu0 %4691
        %4693 = vadd.xlane.f32.xlu0 %v4662
        %v4694 = vpop.xlane.xlu0 %4693
        %4695 = vadd.xlane.f32.xlu0 %v4664
        %v4696 = vpop.xlane.xlu0 %4695
        %4697 = vadd.xlane.f32.xlu0 %v4666
        %v4698 = vpop.xlane.xlu0 %4697
        %4699 = vadd.xlane.f32.xlu0 %v4668
        %v4700 = vpop.xlane.xlu0 %4699
        %4701 = vadd.xlane.f32.xlu0 %v4670
        %v4702 = vpop.xlane.xlu0 %4701
        %4703 = vadd.xlane.f32.xlu0 %v4672
        %v4704 = vpop.xlane.xlu0 %4703
        %4705 = vadd.xlane.f32.xlu0 %v4674
        %v4706 = vpop.xlane.xlu0 %4705
        %4707 = vadd.xlane.f32.xlu0 %v4676
        %v4708 = vpop.xlane.xlu0 %4707
        %4709 = vadd.xlane.f32.xlu0 %v4678
        %v4710 = vpop.xlane.xlu0 %4709
        %v4711 = vrcp.pop %v4680
        %v4712 = vmul.f32 %v4648, %v4711
        %v4713 = vrcp.pop %v4682
        %v4714 = vmul.f32 %v4650, %v4713
        %v4715 = vrcp.pop %v4684
        %v4716 = vmul.f32 %v4652, %v4715
        %v4717 = vrcp.pop %v4686
        %v4718 = vmul.f32 %v4654, %v4717
        %v4719 = vrcp.pop %v4688
        %v4720 = vmul.f32 %v4656, %v4719
        %v4721 = vrcp.pop %v4690
        %v4722 = vmul.f32 %v4658, %v4721
        %v4723 = vrcp.pop %v4692
        %v4724 = vmul.f32 %v4660, %v4723
        %v4725 = vrcp.pop %v4694
        %v4726 = vmul.f32 %v4662, %v4725
        %v4727 = vrcp.pop %v4696
        %v4728 = vmul.f32 %v4664, %v4727
        %v4729 = vrcp.pop %v4698
        %v4730 = vmul.f32 %v4666, %v4729
        %v4731 = vrcp.pop %v4700
        %v4732 = vmul.f32 %v4668, %v4731
        %v4733 = vrcp.pop %v4702
        %v4734 = vmul.f32 %v4670, %v4733
        %v4735 = vrcp.pop %v4704
        %v4736 = vmul.f32 %v4672, %v4735
        %v4737 = vrcp.pop %v4706
        %v4738 = vmul.f32 %v4674, %v4737
        %v4739 = vrcp.pop %v4708
        %v4740 = vmul.f32 %v4676, %v4739
        %v4741 = vrcp.pop %v4710
        %v4742 = vmul.f32 %v4678, %v4741
        %v4743 = vld [vmem:[%s544] sm:$0xff]
        %v4744 = vld [vmem:[%s544 + $0x8] sm:$0xff]
        %v4745 = vld [vmem:[%s544 + $0x10] sm:$0xff]
        %v4746 = vld [vmem:[%s544 + $0x18] sm:$0xff]
        %v4747 = vld [vmem:[%s544 + $0x20] sm:$0xff]
        %v4748 = vld [vmem:[%s544 + $0x28] sm:$0xff]
        %v4749 = vld [vmem:[%s544 + $0x30] sm:$0xff]
        %v4750 = vld [vmem:[%s544 + $0x38] sm:$0xff]
        %v4751 = vld [vmem:[%s544 + $0x40] sm:$0xff]
        %v4752 = vld [vmem:[%s544 + $0x48] sm:$0xff]
        %v4753 = vld [vmem:[%s544 + $0x50] sm:$0xff]
        %v4754 = vld [vmem:[%s544 + $0x58] sm:$0xff]
        %v4755 = vld [vmem:[%s544 + $0x60] sm:$0xff]
        %v4756 = vld [vmem:[%s544 + $0x68] sm:$0xff]
        %v4757 = vld [vmem:[%s544 + $0x70] sm:$0xff]
        %v4758 = vld [vmem:[%s544 + $0x78] sm:$0xff]
        %4759 = vmatprep.subr.mxu0 0.0
        %4760 = vmatpush1.msra.mxu0 %v3977
        %4761 = vmatprep.subr.mxu0 0.0
        %4762 = vmatpush1.msra.mxu0 %v3972
        %4763 = vmatprep.subr.mxu0 0.0
        %4764 = vmatpush1.msra.mxu0 %v3967
        %4765 = vmatprep.subr.mxu0 0.0
        %4766 = vmatpush1.msra.mxu0 %v3962
        %4767 = vmatprep.subr.mxu0 0.0
        %4768 = vmatpush1.msra.mxu0 %v3957
        %4769 = vmatprep.subr.mxu0 0.0
        %4770 = vmatpush1.msra.mxu0 %v3952
        %4771 = vmatprep.subr.mxu0 0.0
        %4772 = vmatpush1.msra.mxu0 %v3947
        %4773 = vmatprep.subr.mxu0 0.0
        %4774 = vmatpush1.msra.mxu0 %v3942
        %4775 = vmatprep.subr.mxu0 0.0
        %4776 = vmatpush1.msra.mxu0 %v3937
        %4777 = vmatprep.subr.mxu0 0.0
        %4778 = vmatpush1.msra.mxu0 %v3932
        %4779 = vmatprep.subr.mxu0 0.0
        %4780 = vmatpush1.msra.mxu0 %v3927
        %4781 = vmatprep.subr.mxu0 0.0
        %4782 = vmatpush1.msra.mxu0 %v3922
        %4783 = vmatprep.subr.mxu0 0.0
        %4784 = vmatpush1.msra.mxu0 %v3917
        %4785 = vmatprep.subr.mxu0 0.0
        %4786 = vmatpush1.msra.mxu0 %v3912
        %4787 = vmatprep.subr.mxu0 0.0
        %4788 = vmatpush1.msra.mxu0 %v3907
        %4789 = vmatprep.subr.mxu0 0.0
        %4790 = vmatpush1.msra.mxu0 %v3902
        %4791 = vmatprep.subr.mxu0 0.0
        %4792 = vmatpush2.msra.mxu0 0.0
        %4793 = vmatprep.subr.mxu0 0.0
        %4794 = vmatpush2.msra.mxu0 0.0
        %4795 = vmatprep.subr.mxu0 0.0
        %4796 = vmatpush2.msra.mxu0 0.0
        %4797 = vmatprep.subr.mxu0 0.0
        %4798 = vmatpush2.msra.mxu0 0.0
        %4799 = vmatprep.subr.mxu0 0.0
        %4800 = vmatpush2.msra.mxu0 0.0
        %4801 = vmatprep.subr.mxu0 0.0
        %4802 = vmatpush2.msra.mxu0 0.0
        %4803 = vmatprep.subr.mxu0 0.0
        %4804 = vmatpush2.msra.mxu0 0.0
        %4805 = vmatprep.subr.mxu0 0.0
        %4806 = vmatpush2.msra.mxu0 0.0
        %4807 = vmatprep.subr.mxu0 0.0
        %4808 = vmatpush2.msra.mxu0 0.0
        %4809 = vmatprep.subr.mxu0 0.0
        %4810 = vmatpush2.msra.mxu0 0.0
        %4811 = vmatprep.subr.mxu0 0.0
        %4812 = vmatpush2.msra.mxu0 0.0
        %4813 = vmatprep.subr.mxu0 0.0
        %4814 = vmatpush2.msra.mxu0 0.0
        %4815 = vmatprep.subr.mxu0 0.0
        %4816 = vmatpush2.msra.mxu0 0.0
        %4817 = vmatprep.subr.mxu0 0.0
        %4818 = vmatpush2.msra.mxu0 0.0
        %4819 = vmatprep.subr.mxu0 0.0
        %4820 = vmatpush2.msra.mxu0 0.0
        %4821 = vmatprep.subr.mxu0 0.0
        %4822 = vmatpush2.msra.mxu0 0.0
        %4823 = vmatprep.mubr.f32.mxu0 0.0
        %4824 = vmatmul.mubr.f32.gmra.mxu0 %v4712
        %v4825 = vpop.f32.mrf.mxu0
        %v4826 = vadd.f32 0.0, %v4825
        %v4827 = vpop.f32.mrf.mxu0
        %4828 = vmatprep.mubr.f32.mxu0 0.0
        %4829 = vmatmul.mubr.f32.gmra.mxu0 %v4714
        %v4830 = vpop.f32.mrf.mxu0
        %v4831 = vadd.f32 0.0, %v4830
        %v4832 = vpop.f32.mrf.mxu0
        %4833 = vmatprep.mubr.f32.mxu0 0.0
        %4834 = vmatmul.mubr.f32.gmra.mxu0 %v4716
        %v4835 = vpop.f32.mrf.mxu0
        %v4836 = vadd.f32 0.0, %v4835
        %v4837 = vpop.f32.mrf.mxu0
        %4838 = vmatprep.mubr.f32.mxu0 0.0
        %4839 = vmatmul.mubr.f32.gmra.mxu0 %v4718
        %v4840 = vpop.f32.mrf.mxu0
        %v4841 = vadd.f32 0.0, %v4840
        %v4842 = vpop.f32.mrf.mxu0
        %4843 = vmatprep.mubr.f32.mxu0 0.0
        %4844 = vmatmul.mubr.f32.gmra.mxu0 %v4720
        %v4845 = vpop.f32.mrf.mxu0
        %v4846 = vadd.f32 0.0, %v4845
        %v4847 = vpop.f32.mrf.mxu0
        %4848 = vmatprep.mubr.f32.mxu0 0.0
        %4849 = vmatmul.mubr.f32.gmra.mxu0 %v4722
        %v4850 = vpop.f32.mrf.mxu0
        %v4851 = vadd.f32 0.0, %v4850
        %v4852 = vpop.f32.mrf.mxu0
        %4853 = vmatprep.mubr.f32.mxu0 0.0
        %4854 = vmatmul.mubr.f32.gmra.mxu0 %v4724
        %v4855 = vpop.f32.mrf.mxu0
        %v4856 = vadd.f32 0.0, %v4855
        %v4857 = vpop.f32.mrf.mxu0
        %4858 = vmatprep.mubr.f32.mxu0 0.0
        %4859 = vmatmul.mubr.f32.gmra.mxu0 %v4726
        %v4860 = vpop.f32.mrf.mxu0
        %v4861 = vadd.f32 0.0, %v4860
        %v4862 = vpop.f32.mrf.mxu0
        %4863 = vmatprep.mubr.f32.mxu0 0.0
        %4864 = vmatmul.mubr.f32.gmra.mxu0 %v4728
        %v4865 = vpop.f32.mrf.mxu0
        %v4866 = vadd.f32 0.0, %v4865
        %v4867 = vpop.f32.mrf.mxu0
        %4868 = vmatprep.mubr.f32.mxu0 0.0
        %4869 = vmatmul.mubr.f32.gmra.mxu0 %v4730
        %v4870 = vpop.f32.mrf.mxu0
        %v4871 = vadd.f32 0.0, %v4870
        %v4872 = vpop.f32.mrf.mxu0
        %4873 = vmatprep.mubr.f32.mxu0 0.0
        %4874 = vmatmul.mubr.f32.gmra.mxu0 %v4732
        %v4875 = vpop.f32.mrf.mxu0
        %v4876 = vadd.f32 0.0, %v4875
        %v4877 = vpop.f32.mrf.mxu0
        %4878 = vmatprep.mubr.f32.mxu0 0.0
        %4879 = vmatmul.mubr.f32.gmra.mxu0 %v4734
        %v4880 = vpop.f32.mrf.mxu0
        %v4881 = vadd.f32 0.0, %v4880
        %v4882 = vpop.f32.mrf.mxu0
        %4883 = vmatprep.mubr.f32.mxu0 0.0
        %4884 = vmatmul.mubr.f32.gmra.mxu0 %v4736
        %v4885 = vpop.f32.mrf.mxu0
        %v4886 = vadd.f32 0.0, %v4885
        %v4887 = vpop.f32.mrf.mxu0
        %4888 = vmatprep.mubr.f32.mxu0 0.0
        %4889 = vmatmul.mubr.f32.gmra.mxu0 %v4738
        %v4890 = vpop.f32.mrf.mxu0
        %v4891 = vadd.f32 0.0, %v4890
        %v4892 = vpop.f32.mrf.mxu0
        %4893 = vmatprep.mubr.f32.mxu0 0.0
        %4894 = vmatmul.mubr.f32.gmra.mxu0 %v4740
        %v4895 = vpop.f32.mrf.mxu0
        %v4896 = vadd.f32 0.0, %v4895
        %v4897 = vpop.f32.mrf.mxu0
        %4898 = vmatprep.mubr.f32.mxu0 0.0
        %4899 = vmatmul.mubr.f32.gmra.mxu0 %v4742
        %v4900 = vpop.f32.mrf.mxu0
        %v4901 = vadd.f32 0.0, %v4900
        %v4902 = vpop.f32.mrf.mxu0
        %4903 = vdwg.mxu0
        %4905 = vset.pattern.permute.xlu0 0
        %4906 = vperm.xlu0 %4905, %v4743
        %v4907 = vpop.permute.xlu0 %4906
        %4910 = vset.pattern.permute.xlu0 0
        %4911 = vperm.xlu0 %4910, %v4744
        %v4912 = vpop.permute.xlu0 %4911
        %4915 = vset.pattern.permute.xlu0 0
        %4916 = vperm.xlu0 %4915, %v4745
        %v4917 = vpop.permute.xlu0 %4916
        %4920 = vset.pattern.permute.xlu0 0
        %4921 = vperm.xlu0 %4920, %v4746
        %v4922 = vpop.permute.xlu0 %4921
        %4925 = vset.pattern.permute.xlu0 0
        %4926 = vperm.xlu0 %4925, %v4747
        %v4927 = vpop.permute.xlu0 %4926
        %4930 = vset.pattern.permute.xlu0 0
        %4931 = vperm.xlu0 %4930, %v4748
        %v4932 = vpop.permute.xlu0 %4931
        %4935 = vset.pattern.permute.xlu0 0
        %4936 = vperm.xlu0 %4935, %v4749
        %v4937 = vpop.permute.xlu0 %4936
        %4940 = vset.pattern.permute.xlu0 0
        %4941 = vperm.xlu0 %4940, %v4750
        %v4942 = vpop.permute.xlu0 %4941
        %4945 = vset.pattern.permute.xlu0 0
        %4946 = vperm.xlu0 %4945, %v4751
        %v4947 = vpop.permute.xlu0 %4946
        %4950 = vset.pattern.permute.xlu0 0
        %4951 = vperm.xlu0 %4950, %v4752
        %v4952 = vpop.permute.xlu0 %4951
        %4955 = vset.pattern.permute.xlu0 0
        %4956 = vperm.xlu0 %4955, %v4753
        %v4957 = vpop.permute.xlu0 %4956
        %4960 = vset.pattern.permute.xlu0 0
        %4961 = vperm.xlu0 %4960, %v4754
        %v4962 = vpop.permute.xlu0 %4961
        %4965 = vset.pattern.permute.xlu0 0
        %4966 = vperm.xlu0 %4965, %v4755
        %v4967 = vpop.permute.xlu0 %4966
        %4970 = vset.pattern.permute.xlu0 0
        %4971 = vperm.xlu0 %4970, %v4756
        %v4972 = vpop.permute.xlu0 %4971
        %4975 = vset.pattern.permute.xlu0 0
        %4976 = vperm.xlu0 %4975, %v4757
        %v4977 = vpop.permute.xlu0 %4976
        %4980 = vset.pattern.permute.xlu0 0
        %4981 = vperm.xlu0 %4980, %v4758
        %v4982 = vpop.permute.xlu0 %4981
        %v4984 = vmul.f32 %v4826, %v4907
        %v4985 = vmul.f32 %v4831, %v4912
        %v4986 = vmul.f32 %v4836, %v4917
        %v4987 = vmul.f32 %v4841, %v4922
        %v4988 = vmul.f32 %v4846, %v4927
        %v4989 = vmul.f32 %v4851, %v4932
        %v4990 = vmul.f32 %v4856, %v4937
        %v4991 = vmul.f32 %v4861, %v4942
        %v4992 = vmul.f32 %v4866, %v4947
        %v4993 = vmul.f32 %v4871, %v4952
        %v4994 = vmul.f32 %v4876, %v4957
        %v4995 = vmul.f32 %v4881, %v4962
        %v4996 = vmul.f32 %v4886, %v4967
        %v4997 = vmul.f32 %v4891, %v4972
        %v4998 = vmul.f32 %v4896, %v4977
        %v4999 = vmul.f32 %v4901, %v4982
        %5000 = vmatprep.subr.mxu0 0.0
        %5001 = vmatpush1.msra.mxu0 %v4285
        %5002 = vmatprep.subr.mxu0 0.0
        %5003 = vmatpush1.msra.mxu0 %v4284
        %5004 = vmatprep.subr.mxu0 0.0
        %5005 = vmatpush1.msra.mxu0 %v4283
        %5006 = vmatprep.subr.mxu0 0.0
        %5007 = vmatpush1.msra.mxu0 %v4282
        %5008 = vmatprep.subr.mxu0 0.0
        %5009 = vmatpush1.msra.mxu0 %v4281
        %5010 = vmatprep.subr.mxu0 0.0
        %5011 = vmatpush1.msra.mxu0 %v4280
        %5012 = vmatprep.subr.mxu0 0.0
        %5013 = vmatpush1.msra.mxu0 %v4279
        %5014 = vmatprep.subr.mxu0 0.0
        %5015 = vmatpush1.msra.mxu0 %v4278
        %5016 = vmatprep.subr.mxu0 0.0
        %5017 = vmatpush1.msra.mxu0 %v4277
        %5018 = vmatprep.subr.mxu0 0.0
        %5019 = vmatpush1.msra.mxu0 %v4276
        %5020 = vmatprep.subr.mxu0 0.0
        %5021 = vmatpush1.msra.mxu0 %v4275
        %5022 = vmatprep.subr.mxu0 0.0
        %5023 = vmatpush1.msra.mxu0 %v4274
        %5024 = vmatprep.subr.mxu0 0.0
        %5025 = vmatpush1.msra.mxu0 %v4273
        %5026 = vmatprep.subr.mxu0 0.0
        %5027 = vmatpush1.msra.mxu0 %v4272
        %5028 = vmatprep.subr.mxu0 0.0
        %5029 = vmatpush1.msra.mxu0 %v4271
        %5030 = vmatprep.subr.mxu0 0.0
        %5031 = vmatpush1.msra.mxu0 %v4270
        %5032 = vmatprep.subr.mxu0 0.0
        %5033 = vmatpush2.msra.mxu0 0.0
        %5034 = vmatprep.subr.mxu0 0.0
        %5035 = vmatpush2.msra.mxu0 0.0
        %5036 = vmatprep.subr.mxu0 0.0
        %5037 = vmatpush2.msra.mxu0 0.0
        %5038 = vmatprep.subr.mxu0 0.0
        %5039 = vmatpush2.msra.mxu0 0.0
        %5040 = vmatprep.subr.mxu0 0.0
        %5041 = vmatpush2.msra.mxu0 0.0
        %5042 = vmatprep.subr.mxu0 0.0
        %5043 = vmatpush2.msra.mxu0 0.0
        %5044 = vmatprep.subr.mxu0 0.0
        %5045 = vmatpush2.msra.mxu0 0.0
        %5046 = vmatprep.subr.mxu0 0.0
        %5047 = vmatpush2.msra.mxu0 0.0
        %5048 = vmatprep.subr.mxu0 0.0
        %5049 = vmatpush2.msra.mxu0 0.0
        %5050 = vmatprep.subr.mxu0 0.0
        %5051 = vmatpush2.msra.mxu0 0.0
        %5052 = vmatprep.subr.mxu0 0.0
        %5053 = vmatpush2.msra.mxu0 0.0
        %5054 = vmatprep.subr.mxu0 0.0
        %5055 = vmatpush2.msra.mxu0 0.0
        %5056 = vmatprep.subr.mxu0 0.0
        %5057 = vmatpush2.msra.mxu0 0.0
        %5058 = vmatprep.subr.mxu0 0.0
        %5059 = vmatpush2.msra.mxu0 0.0
        %5060 = vmatprep.subr.mxu0 0.0
        %5061 = vmatpush2.msra.mxu0 0.0
        %5062 = vmatprep.subr.mxu0 0.0
        %5063 = vmatpush2.msra.mxu0 0.0
        %5064 = vmatprep.mubr.f32.mxu0 0.0
        %5065 = vmatmul.mubr.f32.gmra.mxu0 %v4712
        %v5066 = vpop.f32.mrf.mxu0
        %v5067 = vadd.f32 0.0, %v5066
        %v5068 = vpop.f32.mrf.mxu0
        %5069 = vmatprep.mubr.f32.mxu0 0.0
        %5070 = vmatmul.mubr.f32.gmra.mxu0 %v4714
        %v5071 = vpop.f32.mrf.mxu0
        %v5072 = vadd.f32 0.0, %v5071
        %v5073 = vpop.f32.mrf.mxu0
        %5074 = vmatprep.mubr.f32.mxu0 0.0
        %5075 = vmatmul.mubr.f32.gmra.mxu0 %v4716
        %v5076 = vpop.f32.mrf.mxu0
        %v5077 = vadd.f32 0.0, %v5076
        %v5078 = vpop.f32.mrf.mxu0
        %5079 = vmatprep.mubr.f32.mxu0 0.0
        %5080 = vmatmul.mubr.f32.gmra.mxu0 %v4718
        %v5081 = vpop.f32.mrf.mxu0
        %v5082 = vadd.f32 0.0, %v5081
        %v5083 = vpop.f32.mrf.mxu0
        %5084 = vmatprep.mubr.f32.mxu0 0.0
        %5085 = vmatmul.mubr.f32.gmra.mxu0 %v4720
        %v5086 = vpop.f32.mrf.mxu0
        %v5087 = vadd.f32 0.0, %v5086
        %v5088 = vpop.f32.mrf.mxu0
        %5089 = vmatprep.mubr.f32.mxu0 0.0
        %5090 = vmatmul.mubr.f32.gmra.mxu0 %v4722
        %v5091 = vpop.f32.mrf.mxu0
        %v5092 = vadd.f32 0.0, %v5091
        %v5093 = vpop.f32.mrf.mxu0
        %5094 = vmatprep.mubr.f32.mxu0 0.0
        %5095 = vmatmul.mubr.f32.gmra.mxu0 %v4724
        %v5096 = vpop.f32.mrf.mxu0
        %v5097 = vadd.f32 0.0, %v5096
        %v5098 = vpop.f32.mrf.mxu0
        %5099 = vmatprep.mubr.f32.mxu0 0.0
        %5100 = vmatmul.mubr.f32.gmra.mxu0 %v4726
        %v5101 = vpop.f32.mrf.mxu0
        %v5102 = vadd.f32 0.0, %v5101
        %v5103 = vpop.f32.mrf.mxu0
        %5104 = vmatprep.mubr.f32.mxu0 0.0
        %5105 = vmatmul.mubr.f32.gmra.mxu0 %v4728
        %v5106 = vpop.f32.mrf.mxu0
        %v5107 = vadd.f32 0.0, %v5106
        %v5108 = vpop.f32.mrf.mxu0
        %5109 = vmatprep.mubr.f32.mxu0 0.0
        %5110 = vmatmul.mubr.f32.gmra.mxu0 %v4730
        %v5111 = vpop.f32.mrf.mxu0
        %v5112 = vadd.f32 0.0, %v5111
        %v5113 = vpop.f32.mrf.mxu0
        %5114 = vmatprep.mubr.f32.mxu0 0.0
        %5115 = vmatmul.mubr.f32.gmra.mxu0 %v4732
        %v5116 = vpop.f32.mrf.mxu0
        %v5117 = vadd.f32 0.0, %v5116
        %v5118 = vpop.f32.mrf.mxu0
        %5119 = vmatprep.mubr.f32.mxu0 0.0
        %5120 = vmatmul.mubr.f32.gmra.mxu0 %v4734
        %v5121 = vpop.f32.mrf.mxu0
        %v5122 = vadd.f32 0.0, %v5121
        %v5123 = vpop.f32.mrf.mxu0
        %5124 = vmatprep.mubr.f32.mxu0 0.0
        %5125 = vmatmul.mubr.f32.gmra.mxu0 %v4736
        %v5126 = vpop.f32.mrf.mxu0
        %v5127 = vadd.f32 0.0, %v5126
        %v5128 = vpop.f32.mrf.mxu0
        %5129 = vmatprep.mubr.f32.mxu0 0.0
        %5130 = vmatmul.mubr.f32.gmra.mxu0 %v4738
        %v5131 = vpop.f32.mrf.mxu0
        %v5132 = vadd.f32 0.0, %v5131
        %v5133 = vpop.f32.mrf.mxu0
        %5134 = vmatprep.mubr.f32.mxu0 0.0
        %5135 = vmatmul.mubr.f32.gmra.mxu0 %v4740
        %v5136 = vpop.f32.mrf.mxu0
        %v5137 = vadd.f32 0.0, %v5136
        %v5138 = vpop.f32.mrf.mxu0
        %5139 = vmatprep.mubr.f32.mxu0 0.0
        %5140 = vmatmul.mubr.f32.gmra.mxu0 %v4742
        %v5141 = vpop.f32.mrf.mxu0
        %v5142 = vadd.f32 0.0, %v5141
        %v5143 = vpop.f32.mrf.mxu0
        %5144 = vdwg.mxu0
        %v5145 = vmul.f32 %v5067, %v4907
        %v5146 = vmul.f32 %v5072, %v4912
        %v5147 = vmul.f32 %v5077, %v4917
        %v5148 = vmul.f32 %v5082, %v4922
        %v5149 = vmul.f32 %v5087, %v4927
        %v5150 = vmul.f32 %v5092, %v4932
        %v5151 = vmul.f32 %v5097, %v4937
        %v5152 = vmul.f32 %v5102, %v4942
        %v5153 = vmul.f32 %v5107, %v4947
        %v5154 = vmul.f32 %v5112, %v4952
        %v5155 = vmul.f32 %v5117, %v4957
        %v5156 = vmul.f32 %v5122, %v4962
        %v5157 = vmul.f32 %v5127, %v4967
        %v5158 = vmul.f32 %v5132, %v4972
        %v5159 = vmul.f32 %v5137, %v4977
        %v5160 = vmul.f32 %v5142, %v4982
        %v5161 = vmul.f32 %v4984, 0.5
        %v5162 = vmul.f32 %v4985, 0.5
        %v5163 = vmul.f32 %v4986, 0.5
        %v5164 = vmul.f32 %v4987, 0.5
        %v5165 = vmul.f32 %v4988, 0.5
        %v5166 = vmul.f32 %v4989, 0.5
        %v5167 = vmul.f32 %v4990, 0.5
        %v5168 = vmul.f32 %v4991, 0.5
        %v5169 = vmul.f32 %v4992, 0.5
        %v5170 = vmul.f32 %v4993, 0.5
        %v5171 = vmul.f32 %v4994, 0.5
        %v5172 = vmul.f32 %v4995, 0.5
        %v5173 = vmul.f32 %v4996, 0.5
        %v5174 = vmul.f32 %v4997, 0.5
        %v5175 = vmul.f32 %v4998, 0.5
        %v5176 = vmul.f32 %v4999, 0.5
        %v5177 = vmul.f32 %v545, 0.5
        %v5178 = vmul.f32 %v546, 0.5
        %v5179 = vmul.f32 %v547, 0.5
        %v5180 = vmul.f32 %v548, 0.5
        %v5181 = vmul.f32 %v549, 0.5
        %v5182 = vmul.f32 %v550, 0.5
        %v5183 = vmul.f32 %v551, 0.5
        %v5184 = vmul.f32 %v552, 0.5
        %v5185 = vmul.f32 %v553, 0.5
        %v5186 = vmul.f32 %v554, 0.5
        %v5187 = vmul.f32 %v555, 0.5
        %v5188 = vmul.f32 %v556, 0.5
        %v5189 = vmul.f32 %v557, 0.5
        %v5190 = vmul.f32 %v558, 0.5
        %v5191 = vmul.f32 %v559, 0.5
        %v5192 = vmul.f32 %v560, 0.5
        %v5193 = vadd.f32 %v5161, %v5177
        %v5194 = vadd.f32 %v5162, %v5178
        %v5195 = vadd.f32 %v5163, %v5179
        %v5196 = vadd.f32 %v5164, %v5180
        %v5197 = vadd.f32 %v5165, %v5181
        %v5198 = vadd.f32 %v5166, %v5182
        %v5199 = vadd.f32 %v5167, %v5183
        %v5200 = vadd.f32 %v5168, %v5184
        %v5201 = vadd.f32 %v5169, %v5185
        %v5202 = vadd.f32 %v5170, %v5186
        %v5203 = vadd.f32 %v5171, %v5187
        %v5204 = vadd.f32 %v5172, %v5188
        %v5205 = vadd.f32 %v5173, %v5189
        %v5206 = vadd.f32 %v5174, %v5190
        %v5207 = vadd.f32 %v5175, %v5191
        %v5208 = vadd.f32 %v5176, %v5192
        %v5209 = vmul.f32 %v5145, 0.5
        %v5210 = vmul.f32 %v5146, 0.5
        %v5211 = vmul.f32 %v5147, 0.5
        %v5212 = vmul.f32 %v5148, 0.5
        %v5213 = vmul.f32 %v5149, 0.5
        %v5214 = vmul.f32 %v5150, 0.5
        %v5215 = vmul.f32 %v5151, 0.5
        %v5216 = vmul.f32 %v5152, 0.5
        %v5217 = vmul.f32 %v5153, 0.5
        %v5218 = vmul.f32 %v5154, 0.5
        %v5219 = vmul.f32 %v5155, 0.5
        %v5220 = vmul.f32 %v5156, 0.5
        %v5221 = vmul.f32 %v5157, 0.5
        %v5222 = vmul.f32 %v5158, 0.5
        %v5223 = vmul.f32 %v5159, 0.5
        %v5224 = vmul.f32 %v5160, 0.5
        %v5225 = vmul.f32 %v561, 0.5
        %v5226 = vmul.f32 %v562, 0.5
        %v5227 = vmul.f32 %v563, 0.5
        %v5228 = vmul.f32 %v564, 0.5
        %v5229 = vmul.f32 %v565, 0.5
        %v5230 = vmul.f32 %v566, 0.5
        %v5231 = vmul.f32 %v567, 0.5
        %v5232 = vmul.f32 %v568, 0.5
        %v5233 = vmul.f32 %v569, 0.5
        %v5234 = vmul.f32 %v570, 0.5
        %v5235 = vmul.f32 %v571, 0.5
        %v5236 = vmul.f32 %v572, 0.5
        %v5237 = vmul.f32 %v573, 0.5
        %v5238 = vmul.f32 %v574, 0.5
        %v5239 = vmul.f32 %v575, 0.5
        %v5240 = vmul.f32 %v576, 0.5
        %v5241 = vadd.f32 %v5209, %v5225
        %v5242 = vadd.f32 %v5210, %v5226
        %v5243 = vadd.f32 %v5211, %v5227
        %v5244 = vadd.f32 %v5212, %v5228
        %v5245 = vadd.f32 %v5213, %v5229
        %v5246 = vadd.f32 %v5214, %v5230
        %v5247 = vadd.f32 %v5215, %v5231
        %v5248 = vadd.f32 %v5216, %v5232
        %v5249 = vadd.f32 %v5217, %v5233
        %v5250 = vadd.f32 %v5218, %v5234
        %v5251 = vadd.f32 %v5219, %v5235
        %v5252 = vadd.f32 %v5220, %v5236
        %v5253 = vadd.f32 %v5221, %v5237
        %v5254 = vadd.f32 %v5222, %v5238
        %v5255 = vadd.f32 %v5223, %v5239
        %v5256 = vadd.f32 %v5224, %v5240
        %s5257 = scalar_lea.vmem [#allocation2], 768
        %v5258 = vld [vmem:[%s5257] sm:$0xff]
        %v5259 = vld [vmem:[%s5257 + $0x8] sm:$0xff]
        %v5260 = vld [vmem:[%s5257 + $0x10] sm:$0xff]
        %v5261 = vld [vmem:[%s5257 + $0x18] sm:$0xff]
        %v5262 = vld [vmem:[%s5257 + $0x20] sm:$0xff]
        %v5263 = vld [vmem:[%s5257 + $0x28] sm:$0xff]
        %v5264 = vld [vmem:[%s5257 + $0x30] sm:$0xff]
        %v5265 = vld [vmem:[%s5257 + $0x38] sm:$0xff]
        %v5266 = vld [vmem:[%s5257 + $0x40] sm:$0xff]
        %v5267 = vld [vmem:[%s5257 + $0x48] sm:$0xff]
        %v5268 = vld [vmem:[%s5257 + $0x50] sm:$0xff]
        %v5269 = vld [vmem:[%s5257 + $0x58] sm:$0xff]
        %v5270 = vld [vmem:[%s5257 + $0x60] sm:$0xff]
        %v5271 = vld [vmem:[%s5257 + $0x68] sm:$0xff]
        %v5272 = vld [vmem:[%s5257 + $0x70] sm:$0xff]
        %v5273 = vld [vmem:[%s5257 + $0x78] sm:$0xff]
        %s5274 = scalar_lea.vmem [#allocation2], 896
        %v5275 = vld [vmem:[%s5274] sm:$0xff]
        %v5276 = vld [vmem:[%s5274 + $0x8] sm:$0xff]
        %v5277 = vld [vmem:[%s5274 + $0x10] sm:$0xff]
        %v5278 = vld [vmem:[%s5274 + $0x18] sm:$0xff]
        %v5279 = vld [vmem:[%s5274 + $0x20] sm:$0xff]
        %v5280 = vld [vmem:[%s5274 + $0x28] sm:$0xff]
        %v5281 = vld [vmem:[%s5274 + $0x30] sm:$0xff]
        %v5282 = vld [vmem:[%s5274 + $0x38] sm:$0xff]
        %v5283 = vld [vmem:[%s5274 + $0x40] sm:$0xff]
        %v5284 = vld [vmem:[%s5274 + $0x48] sm:$0xff]
        %v5285 = vld [vmem:[%s5274 + $0x50] sm:$0xff]
        %v5286 = vld [vmem:[%s5274 + $0x58] sm:$0xff]
        %v5287 = vld [vmem:[%s5274 + $0x60] sm:$0xff]
        %v5288 = vld [vmem:[%s5274 + $0x68] sm:$0xff]
        %v5289 = vld [vmem:[%s5274 + $0x70] sm:$0xff]
        %v5290 = vld [vmem:[%s5274 + $0x78] sm:$0xff]
        %5291 = vmatprep.subr.mxu0 0.0
        %5292 = vmatpush1.msra.mxu0 %v5208
        %5293 = vmatprep.subr.mxu0 0.0
        %5294 = vmatpush1.msra.mxu0 %v5207
        %5295 = vmatprep.subr.mxu0 0.0
        %5296 = vmatpush1.msra.mxu0 %v5206
        %5297 = vmatprep.subr.mxu0 0.0
        %5298 = vmatpush1.msra.mxu0 %v5205
        %5299 = vmatprep.subr.mxu0 0.0
        %5300 = vmatpush1.msra.mxu0 %v5204
        %5301 = vmatprep.subr.mxu0 0.0
        %5302 = vmatpush1.msra.mxu0 %v5203
        %5303 = vmatprep.subr.mxu0 0.0
        %5304 = vmatpush1.msra.mxu0 %v5202
        %5305 = vmatprep.subr.mxu0 0.0
        %5306 = vmatpush1.msra.mxu0 %v5201
        %5307 = vmatprep.subr.mxu0 0.0
        %5308 = vmatpush1.msra.mxu0 %v5200
        %5309 = vmatprep.subr.mxu0 0.0
        %5310 = vmatpush1.msra.mxu0 %v5199
        %5311 = vmatprep.subr.mxu0 0.0
        %5312 = vmatpush1.msra.mxu0 %v5198
        %5313 = vmatprep.subr.mxu0 0.0
        %5314 = vmatpush1.msra.mxu0 %v5197
        %5315 = vmatprep.subr.mxu0 0.0
        %5316 = vmatpush1.msra.mxu0 %v5196
        %5317 = vmatprep.subr.mxu0 0.0
        %5318 = vmatpush1.msra.mxu0 %v5195
        %5319 = vmatprep.subr.mxu0 0.0
        %5320 = vmatpush1.msra.mxu0 %v5194
        %5321 = vmatprep.subr.mxu0 0.0
        %5322 = vmatpush1.msra.mxu0 %v5193
        %5323 = vmatprep.subr.mxu0 0.0
        %5324 = vmatpush2.msra.mxu0 0.0
        %5325 = vmatprep.subr.mxu0 0.0
        %5326 = vmatpush2.msra.mxu0 0.0
        %5327 = vmatprep.subr.mxu0 0.0
        %5328 = vmatpush2.msra.mxu0 0.0
        %5329 = vmatprep.subr.mxu0 0.0
        %5330 = vmatpush2.msra.mxu0 0.0
        %5331 = vmatprep.subr.mxu0 0.0
        %5332 = vmatpush2.msra.mxu0 0.0
        %5333 = vmatprep.subr.mxu0 0.0
        %5334 = vmatpush2.msra.mxu0 0.0
        %5335 = vmatprep.subr.mxu0 0.0
        %5336 = vmatpush2.msra.mxu0 0.0
        %5337 = vmatprep.subr.mxu0 0.0
        %5338 = vmatpush2.msra.mxu0 0.0
        %5339 = vmatprep.subr.mxu0 0.0
        %5340 = vmatpush2.msra.mxu0 0.0
        %5341 = vmatprep.subr.mxu0 0.0
        %5342 = vmatpush2.msra.mxu0 0.0
        %5343 = vmatprep.subr.mxu0 0.0
        %5344 = vmatpush2.msra.mxu0 0.0
        %5345 = vmatprep.subr.mxu0 0.0
        %5346 = vmatpush2.msra.mxu0 0.0
        %5347 = vmatprep.subr.mxu0 0.0
        %5348 = vmatpush2.msra.mxu0 0.0
        %5349 = vmatprep.subr.mxu0 0.0
        %5350 = vmatpush2.msra.mxu0 0.0
        %5351 = vmatprep.subr.mxu0 0.0
        %5352 = vmatpush2.msra.mxu0 0.0
        %5353 = vmatprep.subr.mxu0 0.0
        %5354 = vmatpush2.msra.mxu0 0.0
        %5355 = vmatprep.mubr.f32.mxu0 0.0
        %5356 = vmatmul.mubr.f32.gmra.mxu0 %v5258
        %v5357 = vpop.f32.mrf.mxu0
        %v5358 = vadd.f32 0.0, %v5357
        %v5359 = vpop.f32.mrf.mxu0
        %5360 = vmatprep.mubr.f32.mxu0 0.0
        %5361 = vmatmul.mubr.f32.gmra.mxu0 %v5259
        %v5362 = vpop.f32.mrf.mxu0
        %v5363 = vadd.f32 0.0, %v5362
        %v5364 = vpop.f32.mrf.mxu0
        %5365 = vmatprep.mubr.f32.mxu0 0.0
        %5366 = vmatmul.mubr.f32.gmra.mxu0 %v5260
        %v5367 = vpop.f32.mrf.mxu0
        %v5368 = vadd.f32 0.0, %v5367
        %v5369 = vpop.f32.mrf.mxu0
        %5370 = vmatprep.mubr.f32.mxu0 0.0
        %5371 = vmatmul.mubr.f32.gmra.mxu0 %v5261
        %v5372 = vpop.f32.mrf.mxu0
        %v5373 = vadd.f32 0.0, %v5372
        %v5374 = vpop.f32.mrf.mxu0
        %5375 = vmatprep.mubr.f32.mxu0 0.0
        %5376 = vmatmul.mubr.f32.gmra.mxu0 %v5262
        %v5377 = vpop.f32.mrf.mxu0
        %v5378 = vadd.f32 0.0, %v5377
        %v5379 = vpop.f32.mrf.mxu0
        %5380 = vmatprep.mubr.f32.mxu0 0.0
        %5381 = vmatmul.mubr.f32.gmra.mxu0 %v5263
        %v5382 = vpop.f32.mrf.mxu0
        %v5383 = vadd.f32 0.0, %v5382
        %v5384 = vpop.f32.mrf.mxu0
        %5385 = vmatprep.mubr.f32.mxu0 0.0
        %5386 = vmatmul.mubr.f32.gmra.mxu0 %v5264
        %v5387 = vpop.f32.mrf.mxu0
        %v5388 = vadd.f32 0.0, %v5387
        %v5389 = vpop.f32.mrf.mxu0
        %5390 = vmatprep.mubr.f32.mxu0 0.0
        %5391 = vmatmul.mubr.f32.gmra.mxu0 %v5265
        %v5392 = vpop.f32.mrf.mxu0
        %v5393 = vadd.f32 0.0, %v5392
        %v5394 = vpop.f32.mrf.mxu0
        %5395 = vmatprep.mubr.f32.mxu0 0.0
        %5396 = vmatmul.mubr.f32.gmra.mxu0 %v5266
        %v5397 = vpop.f32.mrf.mxu0
        %v5398 = vadd.f32 0.0, %v5397
        %v5399 = vpop.f32.mrf.mxu0
        %5400 = vmatprep.mubr.f32.mxu0 0.0
        %5401 = vmatmul.mubr.f32.gmra.mxu0 %v5267
        %v5402 = vpop.f32.mrf.mxu0
        %v5403 = vadd.f32 0.0, %v5402
        %v5404 = vpop.f32.mrf.mxu0
        %5405 = vmatprep.mubr.f32.mxu0 0.0
        %5406 = vmatmul.mubr.f32.gmra.mxu0 %v5268
        %v5407 = vpop.f32.mrf.mxu0
        %v5408 = vadd.f32 0.0, %v5407
        %v5409 = vpop.f32.mrf.mxu0
        %5410 = vmatprep.mubr.f32.mxu0 0.0
        %5411 = vmatmul.mubr.f32.gmra.mxu0 %v5269
        %v5412 = vpop.f32.mrf.mxu0
        %v5413 = vadd.f32 0.0, %v5412
        %v5414 = vpop.f32.mrf.mxu0
        %5415 = vmatprep.mubr.f32.mxu0 0.0
        %5416 = vmatmul.mubr.f32.gmra.mxu0 %v5270
        %v5417 = vpop.f32.mrf.mxu0
        %v5418 = vadd.f32 0.0, %v5417
        %v5419 = vpop.f32.mrf.mxu0
        %5420 = vmatprep.mubr.f32.mxu0 0.0
        %5421 = vmatmul.mubr.f32.gmra.mxu0 %v5271
        %v5422 = vpop.f32.mrf.mxu0
        %v5423 = vadd.f32 0.0, %v5422
        %v5424 = vpop.f32.mrf.mxu0
        %5425 = vmatprep.mubr.f32.mxu0 0.0
        %5426 = vmatmul.mubr.f32.gmra.mxu0 %v5272
        %v5427 = vpop.f32.mrf.mxu0
        %v5428 = vadd.f32 0.0, %v5427
        %v5429 = vpop.f32.mrf.mxu0
        %5430 = vmatprep.mubr.f32.mxu0 0.0
        %5431 = vmatmul.mubr.f32.gmra.mxu0 %v5273
        %v5432 = vpop.f32.mrf.mxu0
        %v5433 = vadd.f32 0.0, %v5432
        %v5434 = vpop.f32.mrf.mxu0
        %5435 = vdwg.mxu0
        %5436 = vmatprep.subr.mxu0 0.0
        %5437 = vmatpush1.msra.mxu0 %v5256
        %5438 = vmatprep.subr.mxu0 0.0
        %5439 = vmatpush1.msra.mxu0 %v5255
        %5440 = vmatprep.subr.mxu0 0.0
        %5441 = vmatpush1.msra.mxu0 %v5254
        %5442 = vmatprep.subr.mxu0 0.0
        %5443 = vmatpush1.msra.mxu0 %v5253
        %5444 = vmatprep.subr.mxu0 0.0
        %5445 = vmatpush1.msra.mxu0 %v5252
        %5446 = vmatprep.subr.mxu0 0.0
        %5447 = vmatpush1.msra.mxu0 %v5251
        %5448 = vmatprep.subr.mxu0 0.0
        %5449 = vmatpush1.msra.mxu0 %v5250
        %5450 = vmatprep.subr.mxu0 0.0
        %5451 = vmatpush1.msra.mxu0 %v5249
        %5452 = vmatprep.subr.mxu0 0.0
        %5453 = vmatpush1.msra.mxu0 %v5248
        %5454 = vmatprep.subr.mxu0 0.0
        %5455 = vmatpush1.msra.mxu0 %v5247
        %5456 = vmatprep.subr.mxu0 0.0
        %5457 = vmatpush1.msra.mxu0 %v5246
        %5458 = vmatprep.subr.mxu0 0.0
        %5459 = vmatpush1.msra.mxu0 %v5245
        %5460 = vmatprep.subr.mxu0 0.0
        %5461 = vmatpush1.msra.mxu0 %v5244
        %5462 = vmatprep.subr.mxu0 0.0
        %5463 = vmatpush1.msra.mxu0 %v5243
        %5464 = vmatprep.subr.mxu0 0.0
        %5465 = vmatpush1.msra.mxu0 %v5242
        %5466 = vmatprep.subr.mxu0 0.0
        %5467 = vmatpush1.msra.mxu0 %v5241
        %5468 = vmatprep.subr.mxu0 0.0
        %5469 = vmatpush2.msra.mxu0 0.0
        %5470 = vmatprep.subr.mxu0 0.0
        %5471 = vmatpush2.msra.mxu0 0.0
        %5472 = vmatprep.subr.mxu0 0.0
        %5473 = vmatpush2.msra.mxu0 0.0
        %5474 = vmatprep.subr.mxu0 0.0
        %5475 = vmatpush2.msra.mxu0 0.0
        %5476 = vmatprep.subr.mxu0 0.0
        %5477 = vmatpush2.msra.mxu0 0.0
        %5478 = vmatprep.subr.mxu0 0.0
        %5479 = vmatpush2.msra.mxu0 0.0
        %5480 = vmatprep.subr.mxu0 0.0
        %5481 = vmatpush2.msra.mxu0 0.0
        %5482 = vmatprep.subr.mxu0 0.0
        %5483 = vmatpush2.msra.mxu0 0.0
        %5484 = vmatprep.subr.mxu0 0.0
        %5485 = vmatpush2.msra.mxu0 0.0
        %5486 = vmatprep.subr.mxu0 0.0
        %5487 = vmatpush2.msra.mxu0 0.0
        %5488 = vmatprep.subr.mxu0 0.0
        %5489 = vmatpush2.msra.mxu0 0.0
        %5490 = vmatprep.subr.mxu0 0.0
        %5491 = vmatpush2.msra.mxu0 0.0
        %5492 = vmatprep.subr.mxu0 0.0
        %5493 = vmatpush2.msra.mxu0 0.0
        %5494 = vmatprep.subr.mxu0 0.0
        %5495 = vmatpush2.msra.mxu0 0.0
        %5496 = vmatprep.subr.mxu0 0.0
        %5497 = vmatpush2.msra.mxu0 0.0
        %5498 = vmatprep.subr.mxu0 0.0
        %5499 = vmatpush2.msra.mxu0 0.0
        %5500 = vmatprep.mubr.f32.mxu0 0.0
        %5501 = vmatmul.mubr.f32.gmra.mxu0 %v5275
        %v5502 = vpop.f32.mrf.mxu0
        %v5503 = vadd.f32 0.0, %v5502
        %v5504 = vpop.f32.mrf.mxu0
        %5505 = vmatprep.mubr.f32.mxu0 0.0
        %5506 = vmatmul.mubr.f32.gmra.mxu0 %v5276
        %v5507 = vpop.f32.mrf.mxu0
        %v5508 = vadd.f32 0.0, %v5507
        %v5509 = vpop.f32.mrf.mxu0
        %5510 = vmatprep.mubr.f32.mxu0 0.0
        %5511 = vmatmul.mubr.f32.gmra.mxu0 %v5277
        %v5512 = vpop.f32.mrf.mxu0
        %v5513 = vadd.f32 0.0, %v5512
        %v5514 = vpop.f32.mrf.mxu0
        %5515 = vmatprep.mubr.f32.mxu0 0.0
        %5516 = vmatmul.mubr.f32.gmra.mxu0 %v5278
        %v5517 = vpop.f32.mrf.mxu0
        %v5518 = vadd.f32 0.0, %v5517
        %v5519 = vpop.f32.mrf.mxu0
        %5520 = vmatprep.mubr.f32.mxu0 0.0
        %5521 = vmatmul.mubr.f32.gmra.mxu0 %v5279
        %v5522 = vpop.f32.mrf.mxu0
        %v5523 = vadd.f32 0.0, %v5522
        %v5524 = vpop.f32.mrf.mxu0
        %5525 = vmatprep.mubr.f32.mxu0 0.0
        %5526 = vmatmul.mubr.f32.gmra.mxu0 %v5280
        %v5527 = vpop.f32.mrf.mxu0
        %v5528 = vadd.f32 0.0, %v5527
        %v5529 = vpop.f32.mrf.mxu0
        %5530 = vmatprep.mubr.f32.mxu0 0.0
        %5531 = vmatmul.mubr.f32.gmra.mxu0 %v5281
        %v5532 = vpop.f32.mrf.mxu0
        %v5533 = vadd.f32 0.0, %v5532
        %v5534 = vpop.f32.mrf.mxu0
        %5535 = vmatprep.mubr.f32.mxu0 0.0
        %5536 = vmatmul.mubr.f32.gmra.mxu0 %v5282
        %v5537 = vpop.f32.mrf.mxu0
        %v5538 = vadd.f32 0.0, %v5537
        %v5539 = vpop.f32.mrf.mxu0
        %5540 = vmatprep.mubr.f32.mxu0 0.0
        %5541 = vmatmul.mubr.f32.gmra.mxu0 %v5283
        %v5542 = vpop.f32.mrf.mxu0
        %v5543 = vadd.f32 0.0, %v5542
        %v5544 = vpop.f32.mrf.mxu0
        %5545 = vmatprep.mubr.f32.mxu0 0.0
        %5546 = vmatmul.mubr.f32.gmra.mxu0 %v5284
        %v5547 = vpop.f32.mrf.mxu0
        %v5548 = vadd.f32 0.0, %v5547
        %v5549 = vpop.f32.mrf.mxu0
        %5550 = vmatprep.mubr.f32.mxu0 0.0
        %5551 = vmatmul.mubr.f32.gmra.mxu0 %v5285
        %v5552 = vpop.f32.mrf.mxu0
        %v5553 = vadd.f32 0.0, %v5552
        %v5554 = vpop.f32.mrf.mxu0
        %5555 = vmatprep.mubr.f32.mxu0 0.0
        %5556 = vmatmul.mubr.f32.gmra.mxu0 %v5286
        %v5557 = vpop.f32.mrf.mxu0
        %v5558 = vadd.f32 0.0, %v5557
        %v5559 = vpop.f32.mrf.mxu0
        %5560 = vmatprep.mubr.f32.mxu0 0.0
        %5561 = vmatmul.mubr.f32.gmra.mxu0 %v5287
        %v5562 = vpop.f32.mrf.mxu0
        %v5563 = vadd.f32 0.0, %v5562
        %v5564 = vpop.f32.mrf.mxu0
        %5565 = vmatprep.mubr.f32.mxu0 0.0
        %5566 = vmatmul.mubr.f32.gmra.mxu0 %v5288
        %v5567 = vpop.f32.mrf.mxu0
        %v5568 = vadd.f32 0.0, %v5567
        %v5569 = vpop.f32.mrf.mxu0
        %5570 = vmatprep.mubr.f32.mxu0 0.0
        %5571 = vmatmul.mubr.f32.gmra.mxu0 %v5289
        %v5572 = vpop.f32.mrf.mxu0
        %v5573 = vadd.f32 0.0, %v5572
        %v5574 = vpop.f32.mrf.mxu0
        %5575 = vmatprep.mubr.f32.mxu0 0.0
        %5576 = vmatmul.mubr.f32.gmra.mxu0 %v5290
        %v5577 = vpop.f32.mrf.mxu0
        %v5578 = vadd.f32 0.0, %v5577
        %v5579 = vpop.f32.mrf.mxu0
        %5580 = vdwg.mxu0
        %v5581 = vsub.f32 %v5358, %v5503
        %v5582 = vsub.f32 %v5363, %v5508
        %v5583 = vsub.f32 %v5368, %v5513
        %v5584 = vsub.f32 %v5373, %v5518
        %v5585 = vsub.f32 %v5378, %v5523
        %v5586 = vsub.f32 %v5383, %v5528
        %v5587 = vsub.f32 %v5388, %v5533
        %v5588 = vsub.f32 %v5393, %v5538
        %v5589 = vsub.f32 %v5398, %v5543
        %v5590 = vsub.f32 %v5403, %v5548
        %v5591 = vsub.f32 %v5408, %v5553
        %v5592 = vsub.f32 %v5413, %v5558
        %v5593 = vsub.f32 %v5418, %v5563
        %v5594 = vsub.f32 %v5423, %v5568
        %v5595 = vsub.f32 %v5428, %v5573
        %v5596 = vsub.f32 %v5433, %v5578
        %5597 = vmatprep.subr.mxu0 0.0
        %5598 = vmatpush1.msra.mxu0 %v5208
        %5599 = vmatprep.subr.mxu0 0.0
        %5600 = vmatpush1.msra.mxu0 %v5207
        %5601 = vmatprep.subr.mxu0 0.0
        %5602 = vmatpush1.msra.mxu0 %v5206
        %5603 = vmatprep.subr.mxu0 0.0
        %5604 = vmatpush1.msra.mxu0 %v5205
        %5605 = vmatprep.subr.mxu0 0.0
        %5606 = vmatpush1.msra.mxu0 %v5204
        %5607 = vmatprep.subr.mxu0 0.0
        %5608 = vmatpush1.msra.mxu0 %v5203
        %5609 = vmatprep.subr.mxu0 0.0
        %5610 = vmatpush1.msra.mxu0 %v5202
        %5611 = vmatprep.subr.mxu0 0.0
        %5612 = vmatpush1.msra.mxu0 %v5201
        %5613 = vmatprep.subr.mxu0 0.0
        %5614 = vmatpush1.msra.mxu0 %v5200
        %5615 = vmatprep.subr.mxu0 0.0
        %5616 = vmatpush1.msra.mxu0 %v5199
        %5617 = vmatprep.subr.mxu0 0.0
        %5618 = vmatpush1.msra.mxu0 %v5198
        %5619 = vmatprep.subr.mxu0 0.0
        %5620 = vmatpush1.msra.mxu0 %v5197
        %5621 = vmatprep.subr.mxu0 0.0
        %5622 = vmatpush1.msra.mxu0 %v5196
        %5623 = vmatprep.subr.mxu0 0.0
        %5624 = vmatpush1.msra.mxu0 %v5195
        %5625 = vmatprep.subr.mxu0 0.0
        %5626 = vmatpush1.msra.mxu0 %v5194
        %5627 = vmatprep.subr.mxu0 0.0
        %5628 = vmatpush1.msra.mxu0 %v5193
        %5629 = vmatprep.subr.mxu0 0.0
        %5630 = vmatpush2.msra.mxu0 0.0
        %5631 = vmatprep.subr.mxu0 0.0
        %5632 = vmatpush2.msra.mxu0 0.0
        %5633 = vmatprep.subr.mxu0 0.0
        %5634 = vmatpush2.msra.mxu0 0.0
        %5635 = vmatprep.subr.mxu0 0.0
        %5636 = vmatpush2.msra.mxu0 0.0
        %5637 = vmatprep.subr.mxu0 0.0
        %5638 = vmatpush2.msra.mxu0 0.0
        %5639 = vmatprep.subr.mxu0 0.0
        %5640 = vmatpush2.msra.mxu0 0.0
        %5641 = vmatprep.subr.mxu0 0.0
        %5642 = vmatpush2.msra.mxu0 0.0
        %5643 = vmatprep.subr.mxu0 0.0
        %5644 = vmatpush2.msra.mxu0 0.0
        %5645 = vmatprep.subr.mxu0 0.0
        %5646 = vmatpush2.msra.mxu0 0.0
        %5647 = vmatprep.subr.mxu0 0.0
        %5648 = vmatpush2.msra.mxu0 0.0
        %5649 = vmatprep.subr.mxu0 0.0
        %5650 = vmatpush2.msra.mxu0 0.0
        %5651 = vmatprep.subr.mxu0 0.0
        %5652 = vmatpush2.msra.mxu0 0.0
        %5653 = vmatprep.subr.mxu0 0.0
        %5654 = vmatpush2.msra.mxu0 0.0
        %5655 = vmatprep.subr.mxu0 0.0
        %5656 = vmatpush2.msra.mxu0 0.0
        %5657 = vmatprep.subr.mxu0 0.0
        %5658 = vmatpush2.msra.mxu0 0.0
        %5659 = vmatprep.subr.mxu0 0.0
        %5660 = vmatpush2.msra.mxu0 0.0
        %5661 = vmatprep.mubr.f32.mxu0 0.0
        %5662 = vmatmul.mubr.f32.gmra.mxu0 %v5275
        %v5663 = vpop.f32.mrf.mxu0
        %v5664 = vadd.f32 0.0, %v5663
        %v5665 = vpop.f32.mrf.mxu0
        %5666 = vmatprep.mubr.f32.mxu0 0.0
        %5667 = vmatmul.mubr.f32.gmra.mxu0 %v5276
        %v5668 = vpop.f32.mrf.mxu0
        %v5669 = vadd.f32 0.0, %v5668
        %v5670 = vpop.f32.mrf.mxu0
        %5671 = vmatprep.mubr.f32.mxu0 0.0
        %5672 = vmatmul.mubr.f32.gmra.mxu0 %v5277
        %v5673 = vpop.f32.mrf.mxu0
        %v5674 = vadd.f32 0.0, %v5673
        %v5675 = vpop.f32.mrf.mxu0
        %5676 = vmatprep.mubr.f32.mxu0 0.0
        %5677 = vmatmul.mubr.f32.gmra.mxu0 %v5278
        %v5678 = vpop.f32.mrf.mxu0
        %v5679 = vadd.f32 0.0, %v5678
        %v5680 = vpop.f32.mrf.mxu0
        %5681 = vmatprep.mubr.f32.mxu0 0.0
        %5682 = vmatmul.mubr.f32.gmra.mxu0 %v5279
        %v5683 = vpop.f32.mrf.mxu0
        %v5684 = vadd.f32 0.0, %v5683
        %v5685 = vpop.f32.mrf.mxu0
        %5686 = vmatprep.mubr.f32.mxu0 0.0
        %5687 = vmatmul.mubr.f32.gmra.mxu0 %v5280
        %v5688 = vpop.f32.mrf.mxu0
        %v5689 = vadd.f32 0.0, %v5688
        %v5690 = vpop.f32.mrf.mxu0
        %5691 = vmatprep.mubr.f32.mxu0 0.0
        %5692 = vmatmul.mubr.f32.gmra.mxu0 %v5281
        %v5693 = vpop.f32.mrf.mxu0
        %v5694 = vadd.f32 0.0, %v5693
        %v5695 = vpop.f32.mrf.mxu0
        %5696 = vmatprep.mubr.f32.mxu0 0.0
        %5697 = vmatmul.mubr.f32.gmra.mxu0 %v5282
        %v5698 = vpop.f32.mrf.mxu0
        %v5699 = vadd.f32 0.0, %v5698
        %v5700 = vpop.f32.mrf.mxu0
        %5701 = vmatprep.mubr.f32.mxu0 0.0
        %5702 = vmatmul.mubr.f32.gmra.mxu0 %v5283
        %v5703 = vpop.f32.mrf.mxu0
        %v5704 = vadd.f32 0.0, %v5703
        %v5705 = vpop.f32.mrf.mxu0
        %5706 = vmatprep.mubr.f32.mxu0 0.0
        %5707 = vmatmul.mubr.f32.gmra.mxu0 %v5284
        %v5708 = vpop.f32.mrf.mxu0
        %v5709 = vadd.f32 0.0, %v5708
        %v5710 = vpop.f32.mrf.mxu0
        %5711 = vmatprep.mubr.f32.mxu0 0.0
        %5712 = vmatmul.mubr.f32.gmra.mxu0 %v5285
        %v5713 = vpop.f32.mrf.mxu0
        %v5714 = vadd.f32 0.0, %v5713
        %v5715 = vpop.f32.mrf.mxu0
        %5716 = vmatprep.mubr.f32.mxu0 0.0
        %5717 = vmatmul.mubr.f32.gmra.mxu0 %v5286
        %v5718 = vpop.f32.mrf.mxu0
        %v5719 = vadd.f32 0.0, %v5718
        %v5720 = vpop.f32.mrf.mxu0
        %5721 = vmatprep.mubr.f32.mxu0 0.0
        %5722 = vmatmul.mubr.f32.gmra.mxu0 %v5287
        %v5723 = vpop.f32.mrf.mxu0
        %v5724 = vadd.f32 0.0, %v5723
        %v5725 = vpop.f32.mrf.mxu0
        %5726 = vmatprep.mubr.f32.mxu0 0.0
        %5727 = vmatmul.mubr.f32.gmra.mxu0 %v5288
        %v5728 = vpop.f32.mrf.mxu0
        %v5729 = vadd.f32 0.0, %v5728
        %v5730 = vpop.f32.mrf.mxu0
        %5731 = vmatprep.mubr.f32.mxu0 0.0
        %5732 = vmatmul.mubr.f32.gmra.mxu0 %v5289
        %v5733 = vpop.f32.mrf.mxu0
        %v5734 = vadd.f32 0.0, %v5733
        %v5735 = vpop.f32.mrf.mxu0
        %5736 = vmatprep.mubr.f32.mxu0 0.0
        %5737 = vmatmul.mubr.f32.gmra.mxu0 %v5290
        %v5738 = vpop.f32.mrf.mxu0
        %v5739 = vadd.f32 0.0, %v5738
        %v5740 = vpop.f32.mrf.mxu0
        %5741 = vdwg.mxu0
        %5742 = vmatprep.subr.mxu0 0.0
        %5743 = vmatpush1.msra.mxu0 %v5256
        %5744 = vmatprep.subr.mxu0 0.0
        %5745 = vmatpush1.msra.mxu0 %v5255
        %5746 = vmatprep.subr.mxu0 0.0
        %5747 = vmatpush1.msra.mxu0 %v5254
        %5748 = vmatprep.subr.mxu0 0.0
        %5749 = vmatpush1.msra.mxu0 %v5253
        %5750 = vmatprep.subr.mxu0 0.0
        %5751 = vmatpush1.msra.mxu0 %v5252
        %5752 = vmatprep.subr.mxu0 0.0
        %5753 = vmatpush1.msra.mxu0 %v5251
        %5754 = vmatprep.subr.mxu0 0.0
        %5755 = vmatpush1.msra.mxu0 %v5250
        %5756 = vmatprep.subr.mxu0 0.0
        %5757 = vmatpush1.msra.mxu0 %v5249
        %5758 = vmatprep.subr.mxu0 0.0
        %5759 = vmatpush1.msra.mxu0 %v5248
        %5760 = vmatprep.subr.mxu0 0.0
        %5761 = vmatpush1.msra.mxu0 %v5247
        %5762 = vmatprep.subr.mxu0 0.0
        %5763 = vmatpush1.msra.mxu0 %v5246
        %5764 = vmatprep.subr.mxu0 0.0
        %5765 = vmatpush1.msra.mxu0 %v5245
        %5766 = vmatprep.subr.mxu0 0.0
        %5767 = vmatpush1.msra.mxu0 %v5244
        %5768 = vmatprep.subr.mxu0 0.0
        %5769 = vmatpush1.msra.mxu0 %v5243
        %5770 = vmatprep.subr.mxu0 0.0
        %5771 = vmatpush1.msra.mxu0 %v5242
        %5772 = vmatprep.subr.mxu0 0.0
        %5773 = vmatpush1.msra.mxu0 %v5241
        %5774 = vmatprep.subr.mxu0 0.0
        %5775 = vmatpush2.msra.mxu0 0.0
        %5776 = vmatprep.subr.mxu0 0.0
        %5777 = vmatpush2.msra.mxu0 0.0
        %5778 = vmatprep.subr.mxu0 0.0
        %5779 = vmatpush2.msra.mxu0 0.0
        %5780 = vmatprep.subr.mxu0 0.0
        %5781 = vmatpush2.msra.mxu0 0.0
        %5782 = vmatprep.subr.mxu0 0.0
        %5783 = vmatpush2.msra.mxu0 0.0
        %5784 = vmatprep.subr.mxu0 0.0
        %5785 = vmatpush2.msra.mxu0 0.0
        %5786 = vmatprep.subr.mxu0 0.0
        %5787 = vmatpush2.msra.mxu0 0.0
        %5788 = vmatprep.subr.mxu0 0.0
        %5789 = vmatpush2.msra.mxu0 0.0
        %5790 = vmatprep.subr.mxu0 0.0
        %5791 = vmatpush2.msra.mxu0 0.0
        %5792 = vmatprep.subr.mxu0 0.0
        %5793 = vmatpush2.msra.mxu0 0.0
        %5794 = vmatprep.subr.mxu0 0.0
        %5795 = vmatpush2.msra.mxu0 0.0
        %5796 = vmatprep.subr.mxu0 0.0
        %5797 = vmatpush2.msra.mxu0 0.0
        %5798 = vmatprep.subr.mxu0 0.0
        %5799 = vmatpush2.msra.mxu0 0.0
        %5800 = vmatprep.subr.mxu0 0.0
        %5801 = vmatpush2.msra.mxu0 0.0
        %5802 = vmatprep.subr.mxu0 0.0
        %5803 = vmatpush2.msra.mxu0 0.0
        %5804 = vmatprep.subr.mxu0 0.0
        %5805 = vmatpush2.msra.mxu0 0.0
        %5806 = vmatprep.mubr.f32.mxu0 0.0
        %5807 = vmatmul.mubr.f32.gmra.mxu0 %v5258
        %v5808 = vpop.f32.mrf.mxu0
        %v5809 = vadd.f32 %v5664, %v5808
        %v5810 = vpop.f32.mrf.mxu0
        %5811 = vmatprep.mubr.f32.mxu0 0.0
        %5812 = vmatmul.mubr.f32.gmra.mxu0 %v5259
        %v5813 = vpop.f32.mrf.mxu0
        %v5814 = vadd.f32 %v5669, %v5813
        %v5815 = vpop.f32.mrf.mxu0
        %5816 = vmatprep.mubr.f32.mxu0 0.0
        %5817 = vmatmul.mubr.f32.gmra.mxu0 %v5260
        %v5818 = vpop.f32.mrf.mxu0
        %v5819 = vadd.f32 %v5674, %v5818
        %v5820 = vpop.f32.mrf.mxu0
        %5821 = vmatprep.mubr.f32.mxu0 0.0
        %5822 = vmatmul.mubr.f32.gmra.mxu0 %v5261
        %v5823 = vpop.f32.mrf.mxu0
        %v5824 = vadd.f32 %v5679, %v5823
        %v5825 = vpop.f32.mrf.mxu0
        %5826 = vmatprep.mubr.f32.mxu0 0.0
        %5827 = vmatmul.mubr.f32.gmra.mxu0 %v5262
        %v5828 = vpop.f32.mrf.mxu0
        %v5829 = vadd.f32 %v5684, %v5828
        %v5830 = vpop.f32.mrf.mxu0
        %5831 = vmatprep.mubr.f32.mxu0 0.0
        %5832 = vmatmul.mubr.f32.gmra.mxu0 %v5263
        %v5833 = vpop.f32.mrf.mxu0
        %v5834 = vadd.f32 %v5689, %v5833
        %v5835 = vpop.f32.mrf.mxu0
        %5836 = vmatprep.mubr.f32.mxu0 0.0
        %5837 = vmatmul.mubr.f32.gmra.mxu0 %v5264
        %v5838 = vpop.f32.mrf.mxu0
        %v5839 = vadd.f32 %v5694, %v5838
        %v5840 = vpop.f32.mrf.mxu0
        %5841 = vmatprep.mubr.f32.mxu0 0.0
        %5842 = vmatmul.mubr.f32.gmra.mxu0 %v5265
        %v5843 = vpop.f32.mrf.mxu0
        %v5844 = vadd.f32 %v5699, %v5843
        %v5845 = vpop.f32.mrf.mxu0
        %5846 = vmatprep.mubr.f32.mxu0 0.0
        %5847 = vmatmul.mubr.f32.gmra.mxu0 %v5266
        %v5848 = vpop.f32.mrf.mxu0
        %v5849 = vadd.f32 %v5704, %v5848
        %v5850 = vpop.f32.mrf.mxu0
        %5851 = vmatprep.mubr.f32.mxu0 0.0
        %5852 = vmatmul.mubr.f32.gmra.mxu0 %v5267
        %v5853 = vpop.f32.mrf.mxu0
        %v5854 = vadd.f32 %v5709, %v5853
        %v5855 = vpop.f32.mrf.mxu0
        %5856 = vmatprep.mubr.f32.mxu0 0.0
        %5857 = vmatmul.mubr.f32.gmra.mxu0 %v5268
        %v5858 = vpop.f32.mrf.mxu0
        %v5859 = vadd.f32 %v5714, %v5858
        %v5860 = vpop.f32.mrf.mxu0
        %5861 = vmatprep.mubr.f32.mxu0 0.0
        %5862 = vmatmul.mubr.f32.gmra.mxu0 %v5269
        %v5863 = vpop.f32.mrf.mxu0
        %v5864 = vadd.f32 %v5719, %v5863
        %v5865 = vpop.f32.mrf.mxu0
        %5866 = vmatprep.mubr.f32.mxu0 0.0
        %5867 = vmatmul.mubr.f32.gmra.mxu0 %v5270
        %v5868 = vpop.f32.mrf.mxu0
        %v5869 = vadd.f32 %v5724, %v5868
        %v5870 = vpop.f32.mrf.mxu0
        %5871 = vmatprep.mubr.f32.mxu0 0.0
        %5872 = vmatmul.mubr.f32.gmra.mxu0 %v5271
        %v5873 = vpop.f32.mrf.mxu0
        %v5874 = vadd.f32 %v5729, %v5873
        %v5875 = vpop.f32.mrf.mxu0
        %5876 = vmatprep.mubr.f32.mxu0 0.0
        %5877 = vmatmul.mubr.f32.gmra.mxu0 %v5272
        %v5878 = vpop.f32.mrf.mxu0
        %v5879 = vadd.f32 %v5734, %v5878
        %v5880 = vpop.f32.mrf.mxu0
        %5881 = vmatprep.mubr.f32.mxu0 0.0
        %5882 = vmatmul.mubr.f32.gmra.mxu0 %v5273
        %v5883 = vpop.f32.mrf.mxu0
        %v5884 = vadd.f32 %v5739, %v5883
        %v5885 = vpop.f32.mrf.mxu0
        %5886 = vdwg.mxu0
        %5887 = vmatprep.subr.mxu0 0.0
        %5888 = vmatpush1.xpose.msra.mxu0 %v5290
        %5889 = vmatprep.subr.mxu0 0.0
        %5890 = vmatpush1.xpose.msra.mxu0 %v5289
        %5891 = vmatprep.subr.mxu0 0.0
        %5892 = vmatpush1.xpose.msra.mxu0 %v5288
        %5893 = vmatprep.subr.mxu0 0.0
        %5894 = vmatpush1.xpose.msra.mxu0 %v5287
        %5895 = vmatprep.subr.mxu0 0.0
        %5896 = vmatpush1.xpose.msra.mxu0 %v5286
        %5897 = vmatprep.subr.mxu0 0.0
        %5898 = vmatpush1.xpose.msra.mxu0 %v5285
        %5899 = vmatprep.subr.mxu0 0.0
        %5900 = vmatpush1.xpose.msra.mxu0 %v5284
        %5901 = vmatprep.subr.mxu0 0.0
        %5902 = vmatpush1.xpose.msra.mxu0 %v5283
        %5903 = vmatprep.subr.mxu0 0.0
        %5904 = vmatpush1.xpose.msra.mxu0 %v5282
        %5905 = vmatprep.subr.mxu0 0.0
        %5906 = vmatpush1.xpose.msra.mxu0 %v5281
        %5907 = vmatprep.subr.mxu0 0.0
        %5908 = vmatpush1.xpose.msra.mxu0 %v5280
        %5909 = vmatprep.subr.mxu0 0.0
        %5910 = vmatpush1.xpose.msra.mxu0 %v5279
        %5911 = vmatprep.subr.mxu0 0.0
        %5912 = vmatpush1.xpose.msra.mxu0 %v5278
        %5913 = vmatprep.subr.mxu0 0.0
        %5914 = vmatpush1.xpose.msra.mxu0 %v5277
        %5915 = vmatprep.subr.mxu0 0.0
        %5916 = vmatpush1.xpose.msra.mxu0 %v5276
        %5917 = vmatprep.subr.mxu0 0.0
        %5918 = vmatpush1.xpose.msra.mxu0 %v5275
        %5919 = vmatprep.subr.mxu0 0.0
        %5920 = vmatpush2.xpose.msra.mxu0 0.0
        %5921 = vmatprep.subr.mxu0 0.0
        %5922 = vmatpush2.xpose.msra.mxu0 0.0
        %5923 = vmatprep.subr.mxu0 0.0
        %5924 = vmatpush2.xpose.msra.mxu0 0.0
        %5925 = vmatprep.subr.mxu0 0.0
        %5926 = vmatpush2.xpose.msra.mxu0 0.0
        %5927 = vmatprep.subr.mxu0 0.0
        %5928 = vmatpush2.xpose.msra.mxu0 0.0
        %5929 = vmatprep.subr.mxu0 0.0
        %5930 = vmatpush2.xpose.msra.mxu0 0.0
        %5931 = vmatprep.subr.mxu0 0.0
        %5932 = vmatpush2.xpose.msra.mxu0 0.0
        %5933 = vmatprep.subr.mxu0 0.0
        %5934 = vmatpush2.xpose.msra.mxu0 0.0
        %5935 = vmatprep.subr.mxu0 0.0
        %5936 = vmatpush2.xpose.msra.mxu0 0.0
        %5937 = vmatprep.subr.mxu0 0.0
        %5938 = vmatpush2.xpose.msra.mxu0 0.0
        %5939 = vmatprep.subr.mxu0 0.0
        %5940 = vmatpush2.xpose.msra.mxu0 0.0
        %5941 = vmatprep.subr.mxu0 0.0
        %5942 = vmatpush2.xpose.msra.mxu0 0.0
        %5943 = vmatprep.subr.mxu0 0.0
        %5944 = vmatpush2.xpose.msra.mxu0 0.0
        %5945 = vmatprep.subr.mxu0 0.0
        %5946 = vmatpush2.xpose.msra.mxu0 0.0
        %5947 = vmatprep.subr.mxu0 0.0
        %5948 = vmatpush2.xpose.msra.mxu0 0.0
        %5949 = vmatprep.subr.mxu0 0.0
        %5950 = vmatpush2.xpose.msra.mxu0 0.0
        %5951 = vmatprep.mubr.f32.mxu0 0.0
        %5952 = vmatmul.mubr.f32.gmra.mxu0 %v5809
        %v5953 = vpop.f32.mrf.mxu0
        %v5954 = vadd.f32 0.0, %v5953
        %v5955 = vpop.f32.mrf.mxu0
        %5956 = vmatprep.mubr.f32.mxu0 0.0
        %5957 = vmatmul.mubr.f32.gmra.mxu0 %v5814
        %v5958 = vpop.f32.mrf.mxu0
        %v5959 = vadd.f32 0.0, %v5958
        %v5960 = vpop.f32.mrf.mxu0
        %5961 = vmatprep.mubr.f32.mxu0 0.0
        %5962 = vmatmul.mubr.f32.gmra.mxu0 %v5819
        %v5963 = vpop.f32.mrf.mxu0
        %v5964 = vadd.f32 0.0, %v5963
        %v5965 = vpop.f32.mrf.mxu0
        %5966 = vmatprep.mubr.f32.mxu0 0.0
        %5967 = vmatmul.mubr.f32.gmra.mxu0 %v5824
        %v5968 = vpop.f32.mrf.mxu0
        %v5969 = vadd.f32 0.0, %v5968
        %v5970 = vpop.f32.mrf.mxu0
        %5971 = vmatprep.mubr.f32.mxu0 0.0
        %5972 = vmatmul.mubr.f32.gmra.mxu0 %v5829
        %v5973 = vpop.f32.mrf.mxu0
        %v5974 = vadd.f32 0.0, %v5973
        %v5975 = vpop.f32.mrf.mxu0
        %5976 = vmatprep.mubr.f32.mxu0 0.0
        %5977 = vmatmul.mubr.f32.gmra.mxu0 %v5834
        %v5978 = vpop.f32.mrf.mxu0
        %v5979 = vadd.f32 0.0, %v5978
        %v5980 = vpop.f32.mrf.mxu0
        %5981 = vmatprep.mubr.f32.mxu0 0.0
        %5982 = vmatmul.mubr.f32.gmra.mxu0 %v5839
        %v5983 = vpop.f32.mrf.mxu0
        %v5984 = vadd.f32 0.0, %v5983
        %v5985 = vpop.f32.mrf.mxu0
        %5986 = vmatprep.mubr.f32.mxu0 0.0
        %5987 = vmatmul.mubr.f32.gmra.mxu0 %v5844
        %v5988 = vpop.f32.mrf.mxu0
        %v5989 = vadd.f32 0.0, %v5988
        %v5990 = vpop.f32.mrf.mxu0
        %5991 = vmatprep.mubr.f32.mxu0 0.0
        %5992 = vmatmul.mubr.f32.gmra.mxu0 %v5849
        %v5993 = vpop.f32.mrf.mxu0
        %v5994 = vadd.f32 0.0, %v5993
        %v5995 = vpop.f32.mrf.mxu0
        %5996 = vmatprep.mubr.f32.mxu0 0.0
        %5997 = vmatmul.mubr.f32.gmra.mxu0 %v5854
        %v5998 = vpop.f32.mrf.mxu0
        %v5999 = vadd.f32 0.0, %v5998
        %v6000 = vpop.f32.mrf.mxu0
        %6001 = vmatprep.mubr.f32.mxu0 0.0
        %6002 = vmatmul.mubr.f32.gmra.mxu0 %v5859
        %v6003 = vpop.f32.mrf.mxu0
        %v6004 = vadd.f32 0.0, %v6003
        %v6005 = vpop.f32.mrf.mxu0
        %6006 = vmatprep.mubr.f32.mxu0 0.0
        %6007 = vmatmul.mubr.f32.gmra.mxu0 %v5864
        %v6008 = vpop.f32.mrf.mxu0
        %v6009 = vadd.f32 0.0, %v6008
        %v6010 = vpop.f32.mrf.mxu0
        %6011 = vmatprep.mubr.f32.mxu0 0.0
        %6012 = vmatmul.mubr.f32.gmra.mxu0 %v5869
        %v6013 = vpop.f32.mrf.mxu0
        %v6014 = vadd.f32 0.0, %v6013
        %v6015 = vpop.f32.mrf.mxu0
        %6016 = vmatprep.mubr.f32.mxu0 0.0
        %6017 = vmatmul.mubr.f32.gmra.mxu0 %v5874
        %v6018 = vpop.f32.mrf.mxu0
        %v6019 = vadd.f32 0.0, %v6018
        %v6020 = vpop.f32.mrf.mxu0
        %6021 = vmatprep.mubr.f32.mxu0 0.0
        %6022 = vmatmul.mubr.f32.gmra.mxu0 %v5879
        %v6023 = vpop.f32.mrf.mxu0
        %v6024 = vadd.f32 0.0, %v6023
        %v6025 = vpop.f32.mrf.mxu0
        %6026 = vmatprep.mubr.f32.mxu0 0.0
        %6027 = vmatmul.mubr.f32.gmra.mxu0 %v5884
        %v6028 = vpop.f32.mrf.mxu0
        %v6029 = vadd.f32 0.0, %v6028
        %v6030 = vpop.f32.mrf.mxu0
        %6031 = vdwg.mxu0
        %6032 = vmatprep.subr.mxu0 0.0
        %6033 = vmatpush1.xpose.msra.mxu0 %v5273
        %6034 = vmatprep.subr.mxu0 0.0
        %6035 = vmatpush1.xpose.msra.mxu0 %v5272
        %6036 = vmatprep.subr.mxu0 0.0
        %6037 = vmatpush1.xpose.msra.mxu0 %v5271
        %6038 = vmatprep.subr.mxu0 0.0
        %6039 = vmatpush1.xpose.msra.mxu0 %v5270
        %6040 = vmatprep.subr.mxu0 0.0
        %6041 = vmatpush1.xpose.msra.mxu0 %v5269
        %6042 = vmatprep.subr.mxu0 0.0
        %6043 = vmatpush1.xpose.msra.mxu0 %v5268
        %6044 = vmatprep.subr.mxu0 0.0
        %6045 = vmatpush1.xpose.msra.mxu0 %v5267
        %6046 = vmatprep.subr.mxu0 0.0
        %6047 = vmatpush1.xpose.msra.mxu0 %v5266
        %6048 = vmatprep.subr.mxu0 0.0
        %6049 = vmatpush1.xpose.msra.mxu0 %v5265
        %6050 = vmatprep.subr.mxu0 0.0
        %6051 = vmatpush1.xpose.msra.mxu0 %v5264
        %6052 = vmatprep.subr.mxu0 0.0
        %6053 = vmatpush1.xpose.msra.mxu0 %v5263
        %6054 = vmatprep.subr.mxu0 0.0
        %6055 = vmatpush1.xpose.msra.mxu0 %v5262
        %6056 = vmatprep.subr.mxu0 0.0
        %6057 = vmatpush1.xpose.msra.mxu0 %v5261
        %6058 = vmatprep.subr.mxu0 0.0
        %6059 = vmatpush1.xpose.msra.mxu0 %v5260
        %6060 = vmatprep.subr.mxu0 0.0
        %6061 = vmatpush1.xpose.msra.mxu0 %v5259
        %6062 = vmatprep.subr.mxu0 0.0
        %6063 = vmatpush1.xpose.msra.mxu0 %v5258
        %6064 = vmatprep.subr.mxu0 0.0
        %6065 = vmatpush2.xpose.msra.mxu0 0.0
        %6066 = vmatprep.subr.mxu0 0.0
        %6067 = vmatpush2.xpose.msra.mxu0 0.0
        %6068 = vmatprep.subr.mxu0 0.0
        %6069 = vmatpush2.xpose.msra.mxu0 0.0
        %6070 = vmatprep.subr.mxu0 0.0
        %6071 = vmatpush2.xpose.msra.mxu0 0.0
        %6072 = vmatprep.subr.mxu0 0.0
        %6073 = vmatpush2.xpose.msra.mxu0 0.0
        %6074 = vmatprep.subr.mxu0 0.0
        %6075 = vmatpush2.xpose.msra.mxu0 0.0
        %6076 = vmatprep.subr.mxu0 0.0
        %6077 = vmatpush2.xpose.msra.mxu0 0.0
        %6078 = vmatprep.subr.mxu0 0.0
        %6079 = vmatpush2.xpose.msra.mxu0 0.0
        %6080 = vmatprep.subr.mxu0 0.0
        %6081 = vmatpush2.xpose.msra.mxu0 0.0
        %6082 = vmatprep.subr.mxu0 0.0
        %6083 = vmatpush2.xpose.msra.mxu0 0.0
        %6084 = vmatprep.subr.mxu0 0.0
        %6085 = vmatpush2.xpose.msra.mxu0 0.0
        %6086 = vmatprep.subr.mxu0 0.0
        %6087 = vmatpush2.xpose.msra.mxu0 0.0
        %6088 = vmatprep.subr.mxu0 0.0
        %6089 = vmatpush2.xpose.msra.mxu0 0.0
        %6090 = vmatprep.subr.mxu0 0.0
        %6091 = vmatpush2.xpose.msra.mxu0 0.0
        %6092 = vmatprep.subr.mxu0 0.0
        %6093 = vmatpush2.xpose.msra.mxu0 0.0
        %6094 = vmatprep.subr.mxu0 0.0
        %6095 = vmatpush2.xpose.msra.mxu0 0.0
        %6096 = vmatprep.mubr.f32.mxu0 0.0
        %6097 = vmatmul.mubr.f32.gmra.mxu0 %v5581
        %v6098 = vpop.f32.mrf.mxu0
        %v6099 = vadd.f32 %v5954, %v6098
        %v6100 = vpop.f32.mrf.mxu0
        %6101 = vmatprep.mubr.f32.mxu0 0.0
        %6102 = vmatmul.mubr.f32.gmra.mxu0 %v5582
        %v6103 = vpop.f32.mrf.mxu0
        %v6104 = vadd.f32 %v5959, %v6103
        %v6105 = vpop.f32.mrf.mxu0
        %6106 = vmatprep.mubr.f32.mxu0 0.0
        %6107 = vmatmul.mubr.f32.gmra.mxu0 %v5583
        %v6108 = vpop.f32.mrf.mxu0
        %v6109 = vadd.f32 %v5964, %v6108
        %v6110 = vpop.f32.mrf.mxu0
        %6111 = vmatprep.mubr.f32.mxu0 0.0
        %6112 = vmatmul.mubr.f32.gmra.mxu0 %v5584
        %v6113 = vpop.f32.mrf.mxu0
        %v6114 = vadd.f32 %v5969, %v6113
        %v6115 = vpop.f32.mrf.mxu0
        %6116 = vmatprep.mubr.f32.mxu0 0.0
        %6117 = vmatmul.mubr.f32.gmra.mxu0 %v5585
        %v6118 = vpop.f32.mrf.mxu0
        %v6119 = vadd.f32 %v5974, %v6118
        %v6120 = vpop.f32.mrf.mxu0
        %6121 = vmatprep.mubr.f32.mxu0 0.0
        %6122 = vmatmul.mubr.f32.gmra.mxu0 %v5586
        %v6123 = vpop.f32.mrf.mxu0
        %v6124 = vadd.f32 %v5979, %v6123
        %v6125 = vpop.f32.mrf.mxu0
        %6126 = vmatprep.mubr.f32.mxu0 0.0
        %6127 = vmatmul.mubr.f32.gmra.mxu0 %v5587
        %v6128 = vpop.f32.mrf.mxu0
        %v6129 = vadd.f32 %v5984, %v6128
        %v6130 = vpop.f32.mrf.mxu0
        %6131 = vmatprep.mubr.f32.mxu0 0.0
        %6132 = vmatmul.mubr.f32.gmra.mxu0 %v5588
        %v6133 = vpop.f32.mrf.mxu0
        %v6134 = vadd.f32 %v5989, %v6133
        %v6135 = vpop.f32.mrf.mxu0
        %6136 = vmatprep.mubr.f32.mxu0 0.0
        %6137 = vmatmul.mubr.f32.gmra.mxu0 %v5589
        %v6138 = vpop.f32.mrf.mxu0
        %v6139 = vadd.f32 %v5994, %v6138
        %v6140 = vpop.f32.mrf.mxu0
        %6141 = vmatprep.mubr.f32.mxu0 0.0
        %6142 = vmatmul.mubr.f32.gmra.mxu0 %v5590
        %v6143 = vpop.f32.mrf.mxu0
        %v6144 = vadd.f32 %v5999, %v6143
        %v6145 = vpop.f32.mrf.mxu0
        %6146 = vmatprep.mubr.f32.mxu0 0.0
        %6147 = vmatmul.mubr.f32.gmra.mxu0 %v5591
        %v6148 = vpop.f32.mrf.mxu0
        %v6149 = vadd.f32 %v6004, %v6148
        %v6150 = vpop.f32.mrf.mxu0
        %6151 = vmatprep.mubr.f32.mxu0 0.0
        %6152 = vmatmul.mubr.f32.gmra.mxu0 %v5592
        %v6153 = vpop.f32.mrf.mxu0
        %v6154 = vadd.f32 %v6009, %v6153
        %v6155 = vpop.f32.mrf.mxu0
        %6156 = vmatprep.mubr.f32.mxu0 0.0
        %6157 = vmatmul.mubr.f32.gmra.mxu0 %v5593
        %v6158 = vpop.f32.mrf.mxu0
        %v6159 = vadd.f32 %v6014, %v6158
        %v6160 = vpop.f32.mrf.mxu0
        %6161 = vmatprep.mubr.f32.mxu0 0.0
        %6162 = vmatmul.mubr.f32.gmra.mxu0 %v5594
        %v6163 = vpop.f32.mrf.mxu0
        %v6164 = vadd.f32 %v6019, %v6163
        %v6165 = vpop.f32.mrf.mxu0
        %6166 = vmatprep.mubr.f32.mxu0 0.0
        %6167 = vmatmul.mubr.f32.gmra.mxu0 %v5595
        %v6168 = vpop.f32.mrf.mxu0
        %v6169 = vadd.f32 %v6024, %v6168
        %v6170 = vpop.f32.mrf.mxu0
        %6171 = vmatprep.mubr.f32.mxu0 0.0
        %6172 = vmatmul.mubr.f32.gmra.mxu0 %v5596
        %v6173 = vpop.f32.mrf.mxu0
        %v6174 = vadd.f32 %v6029, %v6173
        %v6175 = vpop.f32.mrf.mxu0
        %6176 = vdwg.mxu0
        %6177 = vmatprep.subr.mxu0 0.0
        %6178 = vmatpush1.xpose.msra.mxu0 %v5273
        %6179 = vmatprep.subr.mxu0 0.0
        %6180 = vmatpush1.xpose.msra.mxu0 %v5272
        %6181 = vmatprep.subr.mxu0 0.0
        %6182 = vmatpush1.xpose.msra.mxu0 %v5271
        %6183 = vmatprep.subr.mxu0 0.0
        %6184 = vmatpush1.xpose.msra.mxu0 %v5270
        %6185 = vmatprep.subr.mxu0 0.0
        %6186 = vmatpush1.xpose.msra.mxu0 %v5269
        %6187 = vmatprep.subr.mxu0 0.0
        %6188 = vmatpush1.xpose.msra.mxu0 %v5268
        %6189 = vmatprep.subr.mxu0 0.0
        %6190 = vmatpush1.xpose.msra.mxu0 %v5267
        %6191 = vmatprep.subr.mxu0 0.0
        %6192 = vmatpush1.xpose.msra.mxu0 %v5266
        %6193 = vmatprep.subr.mxu0 0.0
        %6194 = vmatpush1.xpose.msra.mxu0 %v5265
        %6195 = vmatprep.subr.mxu0 0.0
        %6196 = vmatpush1.xpose.msra.mxu0 %v5264
        %6197 = vmatprep.subr.mxu0 0.0
        %6198 = vmatpush1.xpose.msra.mxu0 %v5263
        %6199 = vmatprep.subr.mxu0 0.0
        %6200 = vmatpush1.xpose.msra.mxu0 %v5262
        %6201 = vmatprep.subr.mxu0 0.0
        %6202 = vmatpush1.xpose.msra.mxu0 %v5261
        %6203 = vmatprep.subr.mxu0 0.0
        %6204 = vmatpush1.xpose.msra.mxu0 %v5260
        %6205 = vmatprep.subr.mxu0 0.0
        %6206 = vmatpush1.xpose.msra.mxu0 %v5259
        %6207 = vmatprep.subr.mxu0 0.0
        %6208 = vmatpush1.xpose.msra.mxu0 %v5258
        %6209 = vmatprep.subr.mxu0 0.0
        %6210 = vmatpush2.xpose.msra.mxu0 0.0
        %6211 = vmatprep.subr.mxu0 0.0
        %6212 = vmatpush2.xpose.msra.mxu0 0.0
        %6213 = vmatprep.subr.mxu0 0.0
        %6214 = vmatpush2.xpose.msra.mxu0 0.0
        %6215 = vmatprep.subr.mxu0 0.0
        %6216 = vmatpush2.xpose.msra.mxu0 0.0
        %6217 = vmatprep.subr.mxu0 0.0
        %6218 = vmatpush2.xpose.msra.mxu0 0.0
        %6219 = vmatprep.subr.mxu0 0.0
        %6220 = vmatpush2.xpose.msra.mxu0 0.0
        %6221 = vmatprep.subr.mxu0 0.0
        %6222 = vmatpush2.xpose.msra.mxu0 0.0
        %6223 = vmatprep.subr.mxu0 0.0
        %6224 = vmatpush2.xpose.msra.mxu0 0.0
        %6225 = vmatprep.subr.mxu0 0.0
        %6226 = vmatpush2.xpose.msra.mxu0 0.0
        %6227 = vmatprep.subr.mxu0 0.0
        %6228 = vmatpush2.xpose.msra.mxu0 0.0
        %6229 = vmatprep.subr.mxu0 0.0
        %6230 = vmatpush2.xpose.msra.mxu0 0.0
        %6231 = vmatprep.subr.mxu0 0.0
        %6232 = vmatpush2.xpose.msra.mxu0 0.0
        %6233 = vmatprep.subr.mxu0 0.0
        %6234 = vmatpush2.xpose.msra.mxu0 0.0
        %6235 = vmatprep.subr.mxu0 0.0
        %6236 = vmatpush2.xpose.msra.mxu0 0.0
        %6237 = vmatprep.subr.mxu0 0.0
        %6238 = vmatpush2.xpose.msra.mxu0 0.0
        %6239 = vmatprep.subr.mxu0 0.0
        %6240 = vmatpush2.xpose.msra.mxu0 0.0
        %6241 = vmatprep.mubr.f32.mxu0 0.0
        %6242 = vmatmul.mubr.f32.gmra.mxu0 %v5809
        %v6243 = vpop.f32.mrf.mxu0
        %v6244 = vadd.f32 0.0, %v6243
        %v6245 = vpop.f32.mrf.mxu0
        %6246 = vmatprep.mubr.f32.mxu0 0.0
        %6247 = vmatmul.mubr.f32.gmra.mxu0 %v5814
        %v6248 = vpop.f32.mrf.mxu0
        %v6249 = vadd.f32 0.0, %v6248
        %v6250 = vpop.f32.mrf.mxu0
        %6251 = vmatprep.mubr.f32.mxu0 0.0
        %6252 = vmatmul.mubr.f32.gmra.mxu0 %v5819
        %v6253 = vpop.f32.mrf.mxu0
        %v6254 = vadd.f32 0.0, %v6253
        %v6255 = vpop.f32.mrf.mxu0
        %6256 = vmatprep.mubr.f32.mxu0 0.0
        %6257 = vmatmul.mubr.f32.gmra.mxu0 %v5824
        %v6258 = vpop.f32.mrf.mxu0
        %v6259 = vadd.f32 0.0, %v6258
        %v6260 = vpop.f32.mrf.mxu0
        %6261 = vmatprep.mubr.f32.mxu0 0.0
        %6262 = vmatmul.mubr.f32.gmra.mxu0 %v5829
        %v6263 = vpop.f32.mrf.mxu0
        %v6264 = vadd.f32 0.0, %v6263
        %v6265 = vpop.f32.mrf.mxu0
        %6266 = vmatprep.mubr.f32.mxu0 0.0
        %6267 = vmatmul.mubr.f32.gmra.mxu0 %v5834
        %v6268 = vpop.f32.mrf.mxu0
        %v6269 = vadd.f32 0.0, %v6268
        %v6270 = vpop.f32.mrf.mxu0
        %6271 = vmatprep.mubr.f32.mxu0 0.0
        %6272 = vmatmul.mubr.f32.gmra.mxu0 %v5839
        %v6273 = vpop.f32.mrf.mxu0
        %v6274 = vadd.f32 0.0, %v6273
        %v6275 = vpop.f32.mrf.mxu0
        %6276 = vmatprep.mubr.f32.mxu0 0.0
        %6277 = vmatmul.mubr.f32.gmra.mxu0 %v5844
        %v6278 = vpop.f32.mrf.mxu0
        %v6279 = vadd.f32 0.0, %v6278
        %v6280 = vpop.f32.mrf.mxu0
        %6281 = vmatprep.mubr.f32.mxu0 0.0
        %6282 = vmatmul.mubr.f32.gmra.mxu0 %v5849
        %v6283 = vpop.f32.mrf.mxu0
        %v6284 = vadd.f32 0.0, %v6283
        %v6285 = vpop.f32.mrf.mxu0
        %6286 = vmatprep.mubr.f32.mxu0 0.0
        %6287 = vmatmul.mubr.f32.gmra.mxu0 %v5854
        %v6288 = vpop.f32.mrf.mxu0
        %v6289 = vadd.f32 0.0, %v6288
        %v6290 = vpop.f32.mrf.mxu0
        %6291 = vmatprep.mubr.f32.mxu0 0.0
        %6292 = vmatmul.mubr.f32.gmra.mxu0 %v5859
        %v6293 = vpop.f32.mrf.mxu0
        %v6294 = vadd.f32 0.0, %v6293
        %v6295 = vpop.f32.mrf.mxu0
        %6296 = vmatprep.mubr.f32.mxu0 0.0
        %6297 = vmatmul.mubr.f32.gmra.mxu0 %v5864
        %v6298 = vpop.f32.mrf.mxu0
        %v6299 = vadd.f32 0.0, %v6298
        %v6300 = vpop.f32.mrf.mxu0
        %6301 = vmatprep.mubr.f32.mxu0 0.0
        %6302 = vmatmul.mubr.f32.gmra.mxu0 %v5869
        %v6303 = vpop.f32.mrf.mxu0
        %v6304 = vadd.f32 0.0, %v6303
        %v6305 = vpop.f32.mrf.mxu0
        %6306 = vmatprep.mubr.f32.mxu0 0.0
        %6307 = vmatmul.mubr.f32.gmra.mxu0 %v5874
        %v6308 = vpop.f32.mrf.mxu0
        %v6309 = vadd.f32 0.0, %v6308
        %v6310 = vpop.f32.mrf.mxu0
        %6311 = vmatprep.mubr.f32.mxu0 0.0
        %6312 = vmatmul.mubr.f32.gmra.mxu0 %v5879
        %v6313 = vpop.f32.mrf.mxu0
        %v6314 = vadd.f32 0.0, %v6313
        %v6315 = vpop.f32.mrf.mxu0
        %6316 = vmatprep.mubr.f32.mxu0 0.0
        %6317 = vmatmul.mubr.f32.gmra.mxu0 %v5884
        %v6318 = vpop.f32.mrf.mxu0
        %v6319 = vadd.f32 0.0, %v6318
        %v6320 = vpop.f32.mrf.mxu0
        %6321 = vdwg.mxu0
        %6322 = vmatprep.subr.mxu0 0.0
        %6323 = vmatpush1.xpose.msra.mxu0 %v5290
        %6324 = vmatprep.subr.mxu0 0.0
        %6325 = vmatpush1.xpose.msra.mxu0 %v5289
        %6326 = vmatprep.subr.mxu0 0.0
        %6327 = vmatpush1.xpose.msra.mxu0 %v5288
        %6328 = vmatprep.subr.mxu0 0.0
        %6329 = vmatpush1.xpose.msra.mxu0 %v5287
        %6330 = vmatprep.subr.mxu0 0.0
        %6331 = vmatpush1.xpose.msra.mxu0 %v5286
        %6332 = vmatprep.subr.mxu0 0.0
        %6333 = vmatpush1.xpose.msra.mxu0 %v5285
        %6334 = vmatprep.subr.mxu0 0.0
        %6335 = vmatpush1.xpose.msra.mxu0 %v5284
        %6336 = vmatprep.subr.mxu0 0.0
        %6337 = vmatpush1.xpose.msra.mxu0 %v5283
        %6338 = vmatprep.subr.mxu0 0.0
        %6339 = vmatpush1.xpose.msra.mxu0 %v5282
        %6340 = vmatprep.subr.mxu0 0.0
        %6341 = vmatpush1.xpose.msra.mxu0 %v5281
        %6342 = vmatprep.subr.mxu0 0.0
        %6343 = vmatpush1.xpose.msra.mxu0 %v5280
        %6344 = vmatprep.subr.mxu0 0.0
        %6345 = vmatpush1.xpose.msra.mxu0 %v5279
        %6346 = vmatprep.subr.mxu0 0.0
        %6347 = vmatpush1.xpose.msra.mxu0 %v5278
        %6348 = vmatprep.subr.mxu0 0.0
        %6349 = vmatpush1.xpose.msra.mxu0 %v5277
        %6350 = vmatprep.subr.mxu0 0.0
        %6351 = vmatpush1.xpose.msra.mxu0 %v5276
        %6352 = vmatprep.subr.mxu0 0.0
        %6353 = vmatpush1.xpose.msra.mxu0 %v5275
        %6354 = vmatprep.subr.mxu0 0.0
        %6355 = vmatpush2.xpose.msra.mxu0 0.0
        %6356 = vmatprep.subr.mxu0 0.0
        %6357 = vmatpush2.xpose.msra.mxu0 0.0
        %6358 = vmatprep.subr.mxu0 0.0
        %6359 = vmatpush2.xpose.msra.mxu0 0.0
        %6360 = vmatprep.subr.mxu0 0.0
        %6361 = vmatpush2.xpose.msra.mxu0 0.0
        %6362 = vmatprep.subr.mxu0 0.0
        %6363 = vmatpush2.xpose.msra.mxu0 0.0
        %6364 = vmatprep.subr.mxu0 0.0
        %6365 = vmatpush2.xpose.msra.mxu0 0.0
        %6366 = vmatprep.subr.mxu0 0.0
        %6367 = vmatpush2.xpose.msra.mxu0 0.0
        %6368 = vmatprep.subr.mxu0 0.0
        %6369 = vmatpush2.xpose.msra.mxu0 0.0
        %6370 = vmatprep.subr.mxu0 0.0
        %6371 = vmatpush2.xpose.msra.mxu0 0.0
        %6372 = vmatprep.subr.mxu0 0.0
        %6373 = vmatpush2.xpose.msra.mxu0 0.0
        %6374 = vmatprep.subr.mxu0 0.0
        %6375 = vmatpush2.xpose.msra.mxu0 0.0
        %6376 = vmatprep.subr.mxu0 0.0
        %6377 = vmatpush2.xpose.msra.mxu0 0.0
        %6378 = vmatprep.subr.mxu0 0.0
        %6379 = vmatpush2.xpose.msra.mxu0 0.0
        %6380 = vmatprep.subr.mxu0 0.0
        %6381 = vmatpush2.xpose.msra.mxu0 0.0
        %6382 = vmatprep.subr.mxu0 0.0
        %6383 = vmatpush2.xpose.msra.mxu0 0.0
        %6384 = vmatprep.subr.mxu0 0.0
        %6385 = vmatpush2.xpose.msra.mxu0 0.0
        %6386 = vmatprep.mubr.f32.mxu0 0.0
        %6387 = vmatmul.mubr.f32.gmra.mxu0 %v5581
        %v6388 = vpop.f32.mrf.mxu0
        %v6389 = vadd.f32 0.0, %v6388
        %v6390 = vpop.f32.mrf.mxu0
        %6391 = vmatprep.mubr.f32.mxu0 0.0
        %6392 = vmatmul.mubr.f32.gmra.mxu0 %v5582
        %v6393 = vpop.f32.mrf.mxu0
        %v6394 = vadd.f32 0.0, %v6393
        %v6395 = vpop.f32.mrf.mxu0
        %6396 = vmatprep.mubr.f32.mxu0 0.0
        %6397 = vmatmul.mubr.f32.gmra.mxu0 %v5583
        %v6398 = vpop.f32.mrf.mxu0
        %v6399 = vadd.f32 0.0, %v6398
        %v6400 = vpop.f32.mrf.mxu0
        %6401 = vmatprep.mubr.f32.mxu0 0.0
        %6402 = vmatmul.mubr.f32.gmra.mxu0 %v5584
        %v6403 = vpop.f32.mrf.mxu0
        %v6404 = vadd.f32 0.0, %v6403
        %v6405 = vpop.f32.mrf.mxu0
        %6406 = vmatprep.mubr.f32.mxu0 0.0
        %6407 = vmatmul.mubr.f32.gmra.mxu0 %v5585
        %v6408 = vpop.f32.mrf.mxu0
        %v6409 = vadd.f32 0.0, %v6408
        %v6410 = vpop.f32.mrf.mxu0
        %6411 = vmatprep.mubr.f32.mxu0 0.0
        %6412 = vmatmul.mubr.f32.gmra.mxu0 %v5586
        %v6413 = vpop.f32.mrf.mxu0
        %v6414 = vadd.f32 0.0, %v6413
        %v6415 = vpop.f32.mrf.mxu0
        %6416 = vmatprep.mubr.f32.mxu0 0.0
        %6417 = vmatmul.mubr.f32.gmra.mxu0 %v5587
        %v6418 = vpop.f32.mrf.mxu0
        %v6419 = vadd.f32 0.0, %v6418
        %v6420 = vpop.f32.mrf.mxu0
        %6421 = vmatprep.mubr.f32.mxu0 0.0
        %6422 = vmatmul.mubr.f32.gmra.mxu0 %v5588
        %v6423 = vpop.f32.mrf.mxu0
        %v6424 = vadd.f32 0.0, %v6423
        %v6425 = vpop.f32.mrf.mxu0
        %6426 = vmatprep.mubr.f32.mxu0 0.0
        %6427 = vmatmul.mubr.f32.gmra.mxu0 %v5589
        %v6428 = vpop.f32.mrf.mxu0
        %v6429 = vadd.f32 0.0, %v6428
        %v6430 = vpop.f32.mrf.mxu0
        %6431 = vmatprep.mubr.f32.mxu0 0.0
        %6432 = vmatmul.mubr.f32.gmra.mxu0 %v5590
        %v6433 = vpop.f32.mrf.mxu0
        %v6434 = vadd.f32 0.0, %v6433
        %v6435 = vpop.f32.mrf.mxu0
        %6436 = vmatprep.mubr.f32.mxu0 0.0
        %6437 = vmatmul.mubr.f32.gmra.mxu0 %v5591
        %v6438 = vpop.f32.mrf.mxu0
        %v6439 = vadd.f32 0.0, %v6438
        %v6440 = vpop.f32.mrf.mxu0
        %6441 = vmatprep.mubr.f32.mxu0 0.0
        %6442 = vmatmul.mubr.f32.gmra.mxu0 %v5592
        %v6443 = vpop.f32.mrf.mxu0
        %v6444 = vadd.f32 0.0, %v6443
        %v6445 = vpop.f32.mrf.mxu0
        %6446 = vmatprep.mubr.f32.mxu0 0.0
        %6447 = vmatmul.mubr.f32.gmra.mxu0 %v5593
        %v6448 = vpop.f32.mrf.mxu0
        %v6449 = vadd.f32 0.0, %v6448
        %v6450 = vpop.f32.mrf.mxu0
        %6451 = vmatprep.mubr.f32.mxu0 0.0
        %6452 = vmatmul.mubr.f32.gmra.mxu0 %v5594
        %v6453 = vpop.f32.mrf.mxu0
        %v6454 = vadd.f32 0.0, %v6453
        %v6455 = vpop.f32.mrf.mxu0
        %6456 = vmatprep.mubr.f32.mxu0 0.0
        %6457 = vmatmul.mubr.f32.gmra.mxu0 %v5595
        %v6458 = vpop.f32.mrf.mxu0
        %v6459 = vadd.f32 0.0, %v6458
        %v6460 = vpop.f32.mrf.mxu0
        %6461 = vmatprep.mubr.f32.mxu0 0.0
        %6462 = vmatmul.mubr.f32.gmra.mxu0 %v5596
        %v6463 = vpop.f32.mrf.mxu0
        %v6464 = vadd.f32 0.0, %v6463
        %v6465 = vpop.f32.mrf.mxu0
        %6466 = vdwg.mxu0
        %v6467 = vsub.f32 %v6244, %v6389
        %v6468 = vsub.f32 %v6249, %v6394
        %v6469 = vsub.f32 %v6254, %v6399
        %v6470 = vsub.f32 %v6259, %v6404
        %v6471 = vsub.f32 %v6264, %v6409
        %v6472 = vsub.f32 %v6269, %v6414
        %v6473 = vsub.f32 %v6274, %v6419
        %v6474 = vsub.f32 %v6279, %v6424
        %v6475 = vsub.f32 %v6284, %v6429
        %v6476 = vsub.f32 %v6289, %v6434
        %v6477 = vsub.f32 %v6294, %v6439
        %v6478 = vsub.f32 %v6299, %v6444
        %v6479 = vsub.f32 %v6304, %v6449
        %v6480 = vsub.f32 %v6309, %v6454
        %v6481 = vsub.f32 %v6314, %v6459
        %v6482 = vsub.f32 %v6319, %v6464
        %v6483 = vld [vmem:[%s464] sm:$0xff]
        %v6484 = vld [vmem:[%s464 + $0x8] sm:$0xff]
        %v6485 = vld [vmem:[%s464 + $0x10] sm:$0xff]
        %v6486 = vld [vmem:[%s464 + $0x18] sm:$0xff]
        %v6487 = vld [vmem:[%s464 + $0x20] sm:$0xff]
        %v6488 = vld [vmem:[%s464 + $0x28] sm:$0xff]
        %v6489 = vld [vmem:[%s464 + $0x30] sm:$0xff]
        %v6490 = vld [vmem:[%s464 + $0x38] sm:$0xff]
        %v6491 = vld [vmem:[%s464 + $0x40] sm:$0xff]
        %v6492 = vld [vmem:[%s464 + $0x48] sm:$0xff]
        %v6493 = vld [vmem:[%s464 + $0x50] sm:$0xff]
        %v6494 = vld [vmem:[%s464 + $0x58] sm:$0xff]
        %v6495 = vld [vmem:[%s464 + $0x60] sm:$0xff]
        %v6496 = vld [vmem:[%s464 + $0x68] sm:$0xff]
        %v6497 = vld [vmem:[%s464 + $0x70] sm:$0xff]
        %v6498 = vld [vmem:[%s464 + $0x78] sm:$0xff]
        %v6499 = vmul.f32 %v5193, 0.5
        %v6500 = vmul.f32 %v5194, 0.5
        %v6501 = vmul.f32 %v5195, 0.5
        %v6502 = vmul.f32 %v5196, 0.5
        %v6503 = vmul.f32 %v5197, 0.5
        %v6504 = vmul.f32 %v5198, 0.5
        %v6505 = vmul.f32 %v5199, 0.5
        %v6506 = vmul.f32 %v5200, 0.5
        %v6507 = vmul.f32 %v5201, 0.5
        %v6508 = vmul.f32 %v5202, 0.5
        %v6509 = vmul.f32 %v5203, 0.5
        %v6510 = vmul.f32 %v5204, 0.5
        %v6511 = vmul.f32 %v5205, 0.5
        %v6512 = vmul.f32 %v5206, 0.5
        %v6513 = vmul.f32 %v5207, 0.5
        %v6514 = vmul.f32 %v5208, 0.5
        %v6515 = vmul.f32 %v6099, %v6483
        %v6516 = vmul.f32 %v6104, %v6484
        %v6517 = vmul.f32 %v6109, %v6485
        %v6518 = vmul.f32 %v6114, %v6486
        %v6519 = vmul.f32 %v6119, %v6487
        %v6520 = vmul.f32 %v6124, %v6488
        %v6521 = vmul.f32 %v6129, %v6489
        %v6522 = vmul.f32 %v6134, %v6490
        %v6523 = vmul.f32 %v6139, %v6491
        %v6524 = vmul.f32 %v6144, %v6492
        %v6525 = vmul.f32 %v6149, %v6493
        %v6526 = vmul.f32 %v6154, %v6494
        %v6527 = vmul.f32 %v6159, %v6495
        %v6528 = vmul.f32 %v6164, %v6496
        %v6529 = vmul.f32 %v6169, %v6497
        %v6530 = vmul.f32 %v6174, %v6498
        %v6531 = vmul.f32 %v6515, 0.5
        %v6532 = vmul.f32 %v6516, 0.5
        %v6533 = vmul.f32 %v6517, 0.5
        %v6534 = vmul.f32 %v6518, 0.5
        %v6535 = vmul.f32 %v6519, 0.5
        %v6536 = vmul.f32 %v6520, 0.5
        %v6537 = vmul.f32 %v6521, 0.5
        %v6538 = vmul.f32 %v6522, 0.5
        %v6539 = vmul.f32 %v6523, 0.5
        %v6540 = vmul.f32 %v6524, 0.5
        %v6541 = vmul.f32 %v6525, 0.5
        %v6542 = vmul.f32 %v6526, 0.5
        %v6543 = vmul.f32 %v6527, 0.5
        %v6544 = vmul.f32 %v6528, 0.5
        %v6545 = vmul.f32 %v6529, 0.5
        %v6546 = vmul.f32 %v6530, 0.5
        %v6547 = vadd.f32 %v6499, %v6531
        %v6548 = vadd.f32 %v6500, %v6532
        %v6549 = vadd.f32 %v6501, %v6533
        %v6550 = vadd.f32 %v6502, %v6534
        %v6551 = vadd.f32 %v6503, %v6535
        %v6552 = vadd.f32 %v6504, %v6536
        %v6553 = vadd.f32 %v6505, %v6537
        %v6554 = vadd.f32 %v6506, %v6538
        %v6555 = vadd.f32 %v6507, %v6539
        %v6556 = vadd.f32 %v6508, %v6540
        %v6557 = vadd.f32 %v6509, %v6541
        %v6558 = vadd.f32 %v6510, %v6542
        %v6559 = vadd.f32 %v6511, %v6543
        %v6560 = vadd.f32 %v6512, %v6544
        %v6561 = vadd.f32 %v6513, %v6545
        %v6562 = vadd.f32 %v6514, %v6546
        %6563 = vst [vmem:[%s524] sm:$0xff] %v6547
        %6564 = vst [vmem:[%s524 + $0x8] sm:$0xff] %v6548
        %6565 = vst [vmem:[%s524 + $0x10] sm:$0xff] %v6549
        %6566 = vst [vmem:[%s524 + $0x18] sm:$0xff] %v6550
        %6567 = vst [vmem:[%s524 + $0x20] sm:$0xff] %v6551
        %6568 = vst [vmem:[%s524 + $0x28] sm:$0xff] %v6552
        %6569 = vst [vmem:[%s524 + $0x30] sm:$0xff] %v6553
        %6570 = vst [vmem:[%s524 + $0x38] sm:$0xff] %v6554
        %6571 = vst [vmem:[%s524 + $0x40] sm:$0xff] %v6555
        %6572 = vst [vmem:[%s524 + $0x48] sm:$0xff] %v6556
        %6573 = vst [vmem:[%s524 + $0x50] sm:$0xff] %v6557
        %6574 = vst [vmem:[%s524 + $0x58] sm:$0xff] %v6558
        %6575 = vst [vmem:[%s524 + $0x60] sm:$0xff] %v6559
        %6576 = vst [vmem:[%s524 + $0x68] sm:$0xff] %v6560
        %6577 = vst [vmem:[%s524 + $0x70] sm:$0xff] %v6561
        %6578 = vst [vmem:[%s524 + $0x78] sm:$0xff] %v6562
        %v6579 = vmul.f32 %v5241, 0.5
        %v6580 = vmul.f32 %v5242, 0.5
        %v6581 = vmul.f32 %v5243, 0.5
        %v6582 = vmul.f32 %v5244, 0.5
        %v6583 = vmul.f32 %v5245, 0.5
        %v6584 = vmul.f32 %v5246, 0.5
        %v6585 = vmul.f32 %v5247, 0.5
        %v6586 = vmul.f32 %v5248, 0.5
        %v6587 = vmul.f32 %v5249, 0.5
        %v6588 = vmul.f32 %v5250, 0.5
        %v6589 = vmul.f32 %v5251, 0.5
        %v6590 = vmul.f32 %v5252, 0.5
        %v6591 = vmul.f32 %v5253, 0.5
        %v6592 = vmul.f32 %v5254, 0.5
        %v6593 = vmul.f32 %v5255, 0.5
        %v6594 = vmul.f32 %v5256, 0.5
        %v6595 = vmul.f32 %v6467, %v6483
        %v6596 = vmul.f32 %v6468, %v6484
        %v6597 = vmul.f32 %v6469, %v6485
        %v6598 = vmul.f32 %v6470, %v6486
        %v6599 = vmul.f32 %v6471, %v6487
        %v6600 = vmul.f32 %v6472, %v6488
        %v6601 = vmul.f32 %v6473, %v6489
        %v6602 = vmul.f32 %v6474, %v6490
        %v6603 = vmul.f32 %v6475, %v6491
        %v6604 = vmul.f32 %v6476, %v6492
        %v6605 = vmul.f32 %v6477, %v6493
        %v6606 = vmul.f32 %v6478, %v6494
        %v6607 = vmul.f32 %v6479, %v6495
        %v6608 = vmul.f32 %v6480, %v6496
        %v6609 = vmul.f32 %v6481, %v6497
        %v6610 = vmul.f32 %v6482, %v6498
        %v6611 = vmul.f32 %v6595, 0.5
        %v6612 = vmul.f32 %v6596, 0.5
        %v6613 = vmul.f32 %v6597, 0.5
        %v6614 = vmul.f32 %v6598, 0.5
        %v6615 = vmul.f32 %v6599, 0.5
        %v6616 = vmul.f32 %v6600, 0.5
        %v6617 = vmul.f32 %v6601, 0.5
        %v6618 = vmul.f32 %v6602, 0.5
        %v6619 = vmul.f32 %v6603, 0.5
        %v6620 = vmul.f32 %v6604, 0.5
        %v6621 = vmul.f32 %v6605, 0.5
        %v6622 = vmul.f32 %v6606, 0.5
        %v6623 = vmul.f32 %v6607, 0.5
        %v6624 = vmul.f32 %v6608, 0.5
        %v6625 = vmul.f32 %v6609, 0.5
        %v6626 = vmul.f32 %v6610, 0.5
        %v6627 = vadd.f32 %v6579, %v6611
        %v6628 = vadd.f32 %v6580, %v6612
        %v6629 = vadd.f32 %v6581, %v6613
        %v6630 = vadd.f32 %v6582, %v6614
        %v6631 = vadd.f32 %v6583, %v6615
        %v6632 = vadd.f32 %v6584, %v6616
        %v6633 = vadd.f32 %v6585, %v6617
        %v6634 = vadd.f32 %v6586, %v6618
        %v6635 = vadd.f32 %v6587, %v6619
        %v6636 = vadd.f32 %v6588, %v6620
        %v6637 = vadd.f32 %v6589, %v6621
        %v6638 = vadd.f32 %v6590, %v6622
        %v6639 = vadd.f32 %v6591, %v6623
        %v6640 = vadd.f32 %v6592, %v6624
        %v6641 = vadd.f32 %v6593, %v6625
        %v6642 = vadd.f32 %v6594, %v6626
        %6643 = vst [vmem:[%s531] sm:$0xff] %v6627
        %6644 = vst [vmem:[%s531 + $0x8] sm:$0xff] %v6628
        %6645 = vst [vmem:[%s531 + $0x10] sm:$0xff] %v6629
        %6646 = vst [vmem:[%s531 + $0x18] sm:$0xff] %v6630
        %6647 = vst [vmem:[%s531 + $0x20] sm:$0xff] %v6631
        %6648 = vst [vmem:[%s531 + $0x28] sm:$0xff] %v6632
        %6649 = vst [vmem:[%s531 + $0x30] sm:$0xff] %v6633
        %6650 = vst [vmem:[%s531 + $0x38] sm:$0xff] %v6634
        %6651 = vst [vmem:[%s531 + $0x40] sm:$0xff] %v6635
        %6652 = vst [vmem:[%s531 + $0x48] sm:$0xff] %v6636
        %6653 = vst [vmem:[%s531 + $0x50] sm:$0xff] %v6637
        %6654 = vst [vmem:[%s531 + $0x58] sm:$0xff] %v6638
        %6655 = vst [vmem:[%s531 + $0x60] sm:$0xff] %v6639
        %6656 = vst [vmem:[%s531 + $0x68] sm:$0xff] %v6640
        %6657 = vst [vmem:[%s531 + $0x70] sm:$0xff] %v6641
        %6658 = vst [vmem:[%s531 + $0x78] sm:$0xff] %v6642
        %s6659 = sand.u32 %s245, 1
        %s6660 = scalar_lea.sflag [#allocation4], %s6659
        %s6661 = sand.u32 %s245, 1
        %s6662 = smul.addr %s6661, 128
        %s6663 = scalar_lea.vmem [#allocation11], %s6662
        %s6664 = sand.u32 %s271, 1
        %s6665 = scalar_lea.sflag [#allocation13], %s6664
        %s6666 = sand.u32 %s271, 1
        %s6667 = smul.addr %s6666, 128
        %s6668 = scalar_lea.vmem [#allocation12], %s6667
        // Predicated region
        $region73: #{tpu_custom_call.1} parent=51 // pred_check
          %p6669 = pneg %p255
        $region74: #{tpu_custom_call.1} parent=51 // pred_check_branch
          %6671 = sbr.rel (%p6669) target = $region76
        $region75: #{tpu_custom_call.1} parent=51 // pred_region
          %s6673 = ssub.s32 2048, 2048
          %6674 = vsyncadd %s6660, %s6673
          %s6675 = smul.addr %s34, 16
          %s6676 = smul.addr %s6675, 128
          %s6677 = scalar_lea.hbm %s8, %s6676
          %s6678 = sshll.u32 %s6663, 4
          %s6679 = int_to_ptr.vmem [resolvable:$true] %s6678
          %6684 = dma.vmem_to_hbm [thread:$0]  %s6679, 2048, %s6677, %s6660, 128, 128, 8
        $region76: #{tpu_custom_call.1} parent=51 // pred_fallthru
          _
        // Predicated region
        $region77: #{tpu_custom_call.1} parent=51 // pred_check
          %p6685 = pneg %p281
        $region78: #{tpu_custom_call.1} parent=51 // pred_check_branch
          %6687 = sbr.rel (%p6685) target = $region80
        $region79: #{tpu_custom_call.1} parent=51 // pred_region
          %s6689 = ssub.s32 2048, 2048
          %6690 = vsyncadd %s6665, %s6689
          %s6691 = smul.addr %s34, 16
          %s6692 = smul.addr %s6691, 128
          %s6693 = scalar_lea.hbm %s9, %s6692
          %s6694 = sshll.u32 %s6668, 4
          %s6695 = int_to_ptr.vmem [resolvable:$true] %s6694
          %6700 = dma.vmem_to_hbm [thread:$0]  %s6695, 2048, %s6693, %s6665, 128, 128, 8
        $region80: #{tpu_custom_call.1} parent=51 // pred_fallthru
          _
      $region52: #{tpu_custom_call.1} parent=5 // pred_fallthru
        _
      %p6701 = scmp.le.s32.totalorder 2, %s29
      // Predicated region
      $region81: #{tpu_custom_call.1} parent=5 // pred_check
        %p6702 = pneg %p6701
      $region82: #{tpu_custom_call.1} parent=5 // pred_check_branch
        %6704 = sbr.rel (%p6702) target = $region84
      $region83: #{tpu_custom_call.1} parent=5 // pred_region
        %s6705 = ssub.s32 %s29, 2
        // Predicated region
        $region85: #{tpu_custom_call.1} parent=83 // pred_check
          %p6706 = pneg %p261
        $region86: #{tpu_custom_call.1} parent=83 // pred_check_branch
          %6708 = sbr.rel (%p6706) target = $region88
        $region87: #{tpu_custom_call.1} parent=83 // pred_region
          %s6709 = sand.u32 %s246, 1
          %s6710 = scalar_lea.sflag [#allocation4], %s6709
          %s6711 = sand.u32 %s246, 1
          %s6712 = smul.addr %s6711, 128
          %s6713 = scalar_lea.vmem [#allocation11], %s6712
          %6714 = dma.done %s6710, 2048
        $region88: #{tpu_custom_call.1} parent=83 // pred_fallthru
          _
        // Predicated region
        $region89: #{tpu_custom_call.1} parent=83 // pred_check
          %p6715 = pneg %p287
        $region90: #{tpu_custom_call.1} parent=83 // pred_check_branch
          %6717 = sbr.rel (%p6715) target = $region92
        $region91: #{tpu_custom_call.1} parent=83 // pred_region
          %s6718 = sand.u32 %s272, 1
          %s6719 = scalar_lea.sflag [#allocation13], %s6718
          %s6720 = sand.u32 %s272, 1
          %s6721 = smul.addr %s6720, 128
          %s6722 = scalar_lea.vmem [#allocation12], %s6721
          %6723 = dma.done %s6719, 2048
        $region92: #{tpu_custom_call.1} parent=83 // pred_fallthru
          _
      $region84: #{tpu_custom_call.1} parent=5 // pred_fallthru
        _
    $region6: #{tpu_custom_call.1} parent=1 // loop_footer
      %s33 = sadd.s32 1, %s29
    $region7: #{tpu_custom_call.1} parent=1 // loop_footer_branch
      %28 = sbr.rel target = $region3
    $region8: #{tpu_custom_call.1} parent=1 // loop_exit
      _
    %6724 = vsyncpa [#allocation3], 1
    %s6725 = scalar_lea.sflag [#allocation3], 1
    %6726 = vsyncpa %s6725, 1
    %6727 = vsyncpa [#allocation6], 1
    %s6728 = scalar_lea.sflag [#allocation6], 1
    %6729 = vsyncpa %s6728, 1
    %6730 = vsyncpa [#allocation9], 1
    %s6731 = scalar_lea.sflag [#allocation9], 1
    %6732 = vsyncpa %s6731, 1
    %6733 = vsyncpa [#allocation4], 1
    %s6734 = scalar_lea.sflag [#allocation4], 1
    %6735 = vsyncpa %s6734, 1
    %6736 = vsyncpa [#allocation13], 1
    %s6737 = scalar_lea.sflag [#allocation13], 1
    %6738 = vsyncpa %s6737, 1

</llo_original>
